<compile_context>
chip_gen: v7x
topology: tpu7x:2x2x1
jax: 0.10.0
libtpu: 0.0.40
codegen_flags: <defaults>
</compile_context>

<pallas_src>
import functools
import math

import jax
import jax.numpy as jnp
from jax.experimental import pallas as pl
from jax.experimental.pallas import tpu as pltpu  # noqa: F401  (TPU backend)

# ---- model hyper-parameters (small, consistent with the module) ----
INPUT_DIM = 50        # vocab size
D_MODEL = 32
N_HEADS = 4
D_FF = 64
N_LAYERS = 2
MAX_LEN = 100
HEAD_DIM = D_MODEL // N_HEADS
LN_EPS = 1e-5


def _layernorm(x, gamma, beta):
    mu = jnp.mean(x, axis=-1, keepdims=True)
    var = jnp.mean((x - mu) ** 2, axis=-1, keepdims=True)
    return (x - mu) * jax.lax.rsqrt(var + LN_EPS) * gamma + beta


def encoder_kernel(x_ref, mask_ref,
                   wq_ref, bq_ref, wk_ref, bk_ref, wv_ref, bv_ref,
                   wo_ref, bo_ref, ln1g_ref, ln1b_ref,
                   w1_ref, b1_ref, w2_ref, b2_ref, ln2g_ref, ln2b_ref,
                   out_ref, attn_ref, *, batch, seq):
    """Full encoder stack for the whole batch in a single program.

    x_ref:    (B*S, D) f32      mask_ref: (B, S) int32  (1 = keep, 0 = pad)
    weights:  stacked over layers (and heads for the attention projections)
    out_ref:  (B*S, D) f32      attn_ref: (L, B, H, S, S) f32
    """
    x = x_ref[...]                                  # (B*S, D)

    # Pad mask is identical for every layer / head — compute the per-batch
    # boolean rows exactly once (hoisted out of all loops).
    pad = [mask_ref[b:b + 1, :] == 0 for b in range(batch)]   # each (1, S)

    for l in range(N_LAYERS):                       # static unroll (N_LAYERS = 2)
        # ---------------- multi-head self-attention ----------------
        per_batch = [jnp.zeros((seq, D_MODEL), jnp.float32) for _ in range(batch)]
        for h in range(N_HEADS):                    # static unroll
            # Leading-dim weight indexing only — no lane slicing of activations.
            # NOTE: wq/bq already include the 1/sqrt(head_dim) scale.
            q = jnp.dot(x, wq_ref[l, h], preferred_element_type=jnp.float32) + bq_ref[l, h]
            k = jnp.dot(x, wk_ref[l, h], preferred_element_type=jnp.float32) + bk_ref[l, h]
            v = jnp.dot(x, wv_ref[l, h], preferred_element_type=jnp.float32) + bv_ref[l, h]
            wo = wo_ref[l, h]                       # (HEAD_DIM, D)
            for b in range(batch):                  # static unroll; 8-aligned sublane rows
                rs = slice(b * seq, (b + 1) * seq)
                qh, kh, vh = q[rs], k[rs], v[rs]    # (S, HEAD_DIM)
                energy = jnp.dot(qh, kh.T,
                                 preferred_element_type=jnp.float32)   # (S, S), pre-scaled
                energy = jnp.where(pad[b], -10000.0, energy)           # masked_fill
                # numerically-stable softmax (matches torch.softmax)
                m = jnp.max(energy, axis=-1, keepdims=True)
                e = jnp.exp(energy - m)
                denom = jnp.sum(e, axis=-1, keepdims=True)
                attn = e * pl.reciprocal(denom, approx=True)
                attn_ref[l, b, h, :, :] = attn
                # accumulate through the per-head slice of W_O (replaces concat)
                per_batch[b] = per_batch[b] + jnp.dot(
                    jnp.dot(attn, vh, preferred_element_type=jnp.float32),
                    wo, preferred_element_type=jnp.float32)
        attn_out = jnp.concatenate(per_batch, axis=0) + bo_ref[l]   # (B*S, D)

        # -------- residual + layernorm 1 (dropout = identity, eval mode) --------
        y = _layernorm(x + attn_out, ln1g_ref[l], ln1b_ref[l])

        # ---------------- position-wise feed-forward ----------------
        h1 = jnp.dot(y, w1_ref[l], preferred_element_type=jnp.float32) + b1_ref[l]
        h1 = jnp.maximum(h1, 0.0)
        ff = jnp.dot(h1, w2_ref[l], preferred_element_type=jnp.float32) + b2_ref[l]

        # -------- residual + layernorm 2 --------
        x = _layernorm(y + ff, ln2g_ref[l], ln2b_ref[l])

    out_ref[...] = x


# ---------------- parameter construction (deterministic) ----------------
def init_params(key):
    keys = jax.random.split(key, 1 + N_LAYERS)
    emb = 0.02 * jax.random.normal(keys[0], (INPUT_DIM, D_MODEL), jnp.float32)

    # positional encoding table (sin/cos), same as the PyTorch module
    position = jnp.arange(MAX_LEN, dtype=jnp.float32)[:, None]
    div_term = jnp.exp(jnp.arange(0, D_MODEL, 2, dtype=jnp.float32)
                       * (-math.log(10000.0) / D_MODEL))
    pe = jnp.zeros((MAX_LEN, D_MODEL), jnp.float32)
    pe = pe.at[:, 0::2].set(jnp.sin(position * div_term))
    pe = pe.at[:, 1::2].set(jnp.cos(position * div_term))

    layers = []
    for l in range(N_LAYERS):
        lk = jax.random.split(keys[1 + l], 6)
        wq = 0.02 * jax.random.normal(lk[0], (D_MODEL, D_MODEL), jnp.float32)
        wk = 0.02 * jax.random.normal(lk[1], (D_MODEL, D_MODEL), jnp.float32)
        wv = 0.02 * jax.random.normal(lk[2], (D_MODEL, D_MODEL), jnp.float32)
        wo = 0.02 * jax.random.normal(lk[3], (D_MODEL, D_MODEL), jnp.float32)
        w1 = 0.02 * jax.random.normal(lk[4], (D_MODEL, D_FF), jnp.float32)
        w2 = 0.02 * jax.random.normal(lk[5], (D_FF, D_MODEL), jnp.float32)
        bq = jnp.zeros((1, D_MODEL), jnp.float32)
        bk = jnp.zeros((1, D_MODEL), jnp.float32)
        bv = jnp.zeros((1, D_MODEL), jnp.float32)
        bo = jnp.zeros((1, D_MODEL), jnp.float32)
        b1 = jnp.zeros((1, D_FF), jnp.float32)
        b2 = jnp.zeros((1, D_MODEL), jnp.float32)
        ln1g = jnp.ones((1, D_MODEL), jnp.float32)
        ln1b = jnp.zeros((1, D_MODEL), jnp.float32)
        ln2g = jnp.ones((1, D_MODEL), jnp.float32)
        ln2b = jnp.zeros((1, D_MODEL), jnp.float32)
        layers.append((wq, bq, wk, bk, wv, bv, wo, bo,
                       ln1g, ln1b, w1, b1, w2, b2, ln2g, ln2b))
    return emb, pe, layers


def stack_params(layers):
    """Stack per-layer params along a leading L axis, split Q/K/V/O by head and
    fold the 1/sqrt(head_dim) attention scale into W_q / b_q (one-time cost)."""
    def st(i):
        return jnp.stack([lp[i] for lp in layers], axis=0)

    (wq, bq, wk, bk, wv, bv, wo, bo,
     ln1g, ln1b, w1, b1, w2, b2, ln2g, ln2b) = (st(i) for i in range(16))

    L, H, HD, D = N_LAYERS, N_HEADS, HEAD_DIM, D_MODEL
    inv_scale = 1.0 / math.sqrt(HD)               # torch: energy / sqrt(head_dim)
    # fc_q/k/v output columns are grouped by head (torch .view(..., H, HD))
    wq = (wq * inv_scale).reshape(L, D, H, HD).transpose(0, 2, 1, 3)   # (L, H, D, HD)
    wk = wk.reshape(L, D, H, HD).transpose(0, 2, 1, 3)
    wv = wv.reshape(L, D, H, HD).transpose(0, 2, 1, 3)
    bq = (bq * inv_scale).reshape(L, 1, H, HD).transpose(0, 2, 1, 3)   # (L, H, 1, HD)
    bk = bk.reshape(L, 1, H, HD).transpose(0, 2, 1, 3)
    bv = bv.reshape(L, 1, H, HD).transpose(0, 2, 1, 3)
    # fc_out input rows are grouped by head
    wo = wo.reshape(L, H, HD, D)                                       # (L, H, HD, D)
    return (wq, bq, wk, bk, wv, bv, wo, bo,
            ln1g, ln1b, w1, b1, w2, b2, ln2g, ln2b)


# ---------------- full Encoder.forward ----------------
def encoder_forward(src, src_mask, emb, pe, stacked):
    """src: (B, S) int32, src_mask: (B, 1, 1, S) int32."""
    B, S = src.shape
    x = emb[src] + pe[None, :S, :]            # tok_embedding + positional encoding
    # dropout -> identity (eval mode)
    mask = src_mask.reshape(B, S).astype(jnp.int32)
    x2d = x.reshape(B * S, D_MODEL).astype(jnp.float32)

    kernel = functools.partial(encoder_kernel, batch=B, seq=S)
    out2d, attn = pl.pallas_call(
        kernel,
        out_shape=[
            jax.ShapeDtypeStruct((B * S, D_MODEL), jnp.float32),
            jax.ShapeDtypeStruct((N_LAYERS, B, N_HEADS, S, S), jnp.float32),
        ],
    )(x2d, mask, *stacked)

    out = out2d.reshape(B, S, D_MODEL)
    attentions = [attn[l] for l in range(N_LAYERS)]
    return out, attentions


if __name__ == "__main__":
    key = jax.random.PRNGKey(0)
    pkey, dkey = jax.random.split(key)
    emb, pe, layers = init_params(pkey)
    stacked = stack_params(layers)

    B, S = 2, 8
    src = jax.random.randint(dkey, (B, S), 1, INPUT_DIM, dtype=jnp.int32)
    src = src.at[0, -2:].set(0)                                   # some padding tokens
    src_mask = (src != 0).astype(jnp.int32)[:, None, None, :]     # (B, 1, 1, S)

    out, attns = encoder_forward(src, src_mask, emb, pe, stacked)
    out = jax.block_until_ready(out)
    attns = [jax.block_until_ready(a) for a in attns]

    assert out.shape == (B, S, D_MODEL)
    assert all(a.shape == (B, N_HEADS, S, S) for a in attns)
    assert bool(jnp.all(jnp.isfinite(out)))
    # attention rows must sum to ~1 over the key axis
    assert bool(jnp.all(jnp.abs(jnp.sum(attns[0], axis=-1) - 1.0) < 1e-2))
    print("KERNEL_OK")
</pallas_src>

<mosaic_0001>
module attributes {stable_mosaic.version = 11 : i64} {
  func.func @encoder_kernel(%arg0: memref<16x32xf32, #tpu.memory_space<vmem>>, %arg1: memref<2x8xi32, #tpu.memory_space<vmem>>, %arg2: memref<2x4x32x8xf32, #tpu.memory_space<vmem>>, %arg3: memref<2x4x1x8xf32, #tpu.memory_space<vmem>>, %arg4: memref<2x4x32x8xf32, #tpu.memory_space<vmem>>, %arg5: memref<2x4x1x8xf32, #tpu.memory_space<vmem>>, %arg6: memref<2x4x32x8xf32, #tpu.memory_space<vmem>>, %arg7: memref<2x4x1x8xf32, #tpu.memory_space<vmem>>, %arg8: memref<2x4x8x32xf32, #tpu.memory_space<vmem>>, %arg9: memref<2x1x32xf32, #tpu.memory_space<vmem>>, %arg10: memref<2x1x32xf32, #tpu.memory_space<vmem>>, %arg11: memref<2x1x32xf32, #tpu.memory_space<vmem>>, %arg12: memref<2x32x64xf32, #tpu.memory_space<vmem>>, %arg13: memref<2x1x64xf32, #tpu.memory_space<vmem>>, %arg14: memref<2x64x32xf32, #tpu.memory_space<vmem>>, %arg15: memref<2x1x32xf32, #tpu.memory_space<vmem>>, %arg16: memref<2x1x32xf32, #tpu.memory_space<vmem>>, %arg17: memref<2x1x32xf32, #tpu.memory_space<vmem>>, %arg18: memref<16x32xf32, #tpu.memory_space<vmem>>, %arg19: memref<2x2x4x8x8xf32, #tpu.memory_space<vmem>>) attributes {dimension_semantics = [], scalar_prefetch = 0 : i64, scratch_operands = 0 : i64, tpu.core_type = #tpu.core_type<tc>} {
    %c0 = arith.constant 0 : index
    %c0_0 = arith.constant 0 : index
    %0 = vector.load %arg0[%c0, %c0_0] : memref<16x32xf32, #tpu.memory_space<vmem>>, vector<16x32xf32>
    %c0_1 = arith.constant 0 : index
    %c0_2 = arith.constant 0 : index
    %1 = vector.load %arg1[%c0_1, %c0_2] : memref<2x8xi32, #tpu.memory_space<vmem>>, vector<1x8xi32>
    %c0_i32 = arith.constant 0 : i32
    %2 = vector.broadcast %c0_i32 : i32 to vector<1x8xi32>
    %3 = arith.cmpi eq, %1, %2 : vector<1x8xi32>
    %c1 = arith.constant 1 : index
    %c0_3 = arith.constant 0 : index
    %4 = vector.load %arg1[%c1, %c0_3] : memref<2x8xi32, #tpu.memory_space<vmem>>, vector<1x8xi32>
    %c0_i32_4 = arith.constant 0 : i32
    %5 = vector.broadcast %c0_i32_4 : i32 to vector<1x8xi32>
    %6 = arith.cmpi eq, %4, %5 : vector<1x8xi32>
    %cst = arith.constant 0.000000e+00 : f32
    %7 = vector.broadcast %cst : f32 to vector<8x32xf32>
    %cst_5 = arith.constant 0.000000e+00 : f32
    %8 = vector.broadcast %cst_5 : f32 to vector<8x32xf32>
    %c0_6 = arith.constant 0 : index
    %c0_7 = arith.constant 0 : index
    %c0_8 = arith.constant 0 : index
    %c0_9 = arith.constant 0 : index
    %9 = vector.load %arg2[%c0_6, %c0_7, %c0_8, %c0_9] : memref<2x4x32x8xf32, #tpu.memory_space<vmem>>, vector<1x1x32x8xf32>
    %10 = vector.shape_cast %9 : vector<1x1x32x8xf32> to vector<32x8xf32>
    %cst_10 = arith.constant dense<0.000000e+00> : vector<16x8xf32>
    %11 = tpu.matmul %0, %10, %cst_10 {dimension_numbers = #tpu.dot_dimension_numbers<[1], [0], [0], [1], [0, 0, 1, 1], [], []>} : vector<16x32xf32>, vector<32x8xf32>, vector<16x8xf32> -> vector<16x8xf32>
    %c0_11 = arith.constant 0 : index
    %c0_12 = arith.constant 0 : index
    %c0_13 = arith.constant 0 : index
    %c0_14 = arith.constant 0 : index
    %12 = vector.load %arg3[%c0_11, %c0_12, %c0_13, %c0_14] : memref<2x4x1x8xf32, #tpu.memory_space<vmem>>, vector<1x1x1x8xf32>
    %13 = vector.shape_cast %12 : vector<1x1x1x8xf32> to vector<1x8xf32>
    %14 = vector.broadcast %13 : vector<1x8xf32> to vector<16x8xf32>
    %15 = arith.addf %11, %14 : vector<16x8xf32>
    %c0_15 = arith.constant 0 : index
    %c0_16 = arith.constant 0 : index
    %c0_17 = arith.constant 0 : index
    %c0_18 = arith.constant 0 : index
    %16 = vector.load %arg4[%c0_15, %c0_16, %c0_17, %c0_18] : memref<2x4x32x8xf32, #tpu.memory_space<vmem>>, vector<1x1x32x8xf32>
    %17 = vector.shape_cast %16 : vector<1x1x32x8xf32> to vector<32x8xf32>
    %cst_19 = arith.constant dense<0.000000e+00> : vector<16x8xf32>
    %18 = tpu.matmul %0, %17, %cst_19 {dimension_numbers = #tpu.dot_dimension_numbers<[1], [0], [0], [1], [0, 0, 1, 1], [], []>} : vector<16x32xf32>, vector<32x8xf32>, vector<16x8xf32> -> vector<16x8xf32>
    %c0_20 = arith.constant 0 : index
    %c0_21 = arith.constant 0 : index
    %c0_22 = arith.constant 0 : index
    %c0_23 = arith.constant 0 : index
    %19 = vector.load %arg5[%c0_20, %c0_21, %c0_22, %c0_23] : memref<2x4x1x8xf32, #tpu.memory_space<vmem>>, vector<1x1x1x8xf32>
    %20 = vector.shape_cast %19 : vector<1x1x1x8xf32> to vector<1x8xf32>
    %21 = vector.broadcast %20 : vector<1x8xf32> to vector<16x8xf32>
    %22 = arith.addf %18, %21 : vector<16x8xf32>
    %c0_24 = arith.constant 0 : index
    %c0_25 = arith.constant 0 : index
    %c0_26 = arith.constant 0 : index
    %c0_27 = arith.constant 0 : index
    %23 = vector.load %arg6[%c0_24, %c0_25, %c0_26, %c0_27] : memref<2x4x32x8xf32, #tpu.memory_space<vmem>>, vector<1x1x32x8xf32>
    %24 = vector.shape_cast %23 : vector<1x1x32x8xf32> to vector<32x8xf32>
    %cst_28 = arith.constant dense<0.000000e+00> : vector<16x8xf32>
    %25 = tpu.matmul %0, %24, %cst_28 {dimension_numbers = #tpu.dot_dimension_numbers<[1], [0], [0], [1], [0, 0, 1, 1], [], []>} : vector<16x32xf32>, vector<32x8xf32>, vector<16x8xf32> -> vector<16x8xf32>
    %c0_29 = arith.constant 0 : index
    %c0_30 = arith.constant 0 : index
    %c0_31 = arith.constant 0 : index
    %c0_32 = arith.constant 0 : index
    %26 = vector.load %arg7[%c0_29, %c0_30, %c0_31, %c0_32] : memref<2x4x1x8xf32, #tpu.memory_space<vmem>>, vector<1x1x1x8xf32>
    %27 = vector.shape_cast %26 : vector<1x1x1x8xf32> to vector<1x8xf32>
    %28 = vector.broadcast %27 : vector<1x8xf32> to vector<16x8xf32>
    %29 = arith.addf %25, %28 : vector<16x8xf32>
    %c0_33 = arith.constant 0 : index
    %c0_34 = arith.constant 0 : index
    %c0_35 = arith.constant 0 : index
    %c0_36 = arith.constant 0 : index
    %30 = vector.load %arg8[%c0_33, %c0_34, %c0_35, %c0_36] : memref<2x4x8x32xf32, #tpu.memory_space<vmem>>, vector<1x1x8x32xf32>
    %31 = vector.shape_cast %30 : vector<1x1x8x32xf32> to vector<8x32xf32>
    %32 = vector.extract_strided_slice %15 {offsets = [0, 0], sizes = [8, 8], strides = [1, 1]} : vector<16x8xf32> to vector<8x8xf32>
    %33 = vector.extract_strided_slice %22 {offsets = [0, 0], sizes = [8, 8], strides = [1, 1]} : vector<16x8xf32> to vector<8x8xf32>
    %34 = vector.extract_strided_slice %29 {offsets = [0, 0], sizes = [8, 8], strides = [1, 1]} : vector<16x8xf32> to vector<8x8xf32>
    %35 = tpu.transpose %33, [1, 0] : vector<8x8xf32> -> vector<8x8xf32>
    %cst_37 = arith.constant dense<0.000000e+00> : vector<8x8xf32>
    %36 = tpu.matmul %32, %35, %cst_37 {dimension_numbers = #tpu.dot_dimension_numbers<[1], [0], [0], [1], [0, 0, 1, 1], [], []>} : vector<8x8xf32>, vector<8x8xf32>, vector<8x8xf32> -> vector<8x8xf32>
    %cst_38 = arith.constant -1.000000e+04 : f32
    %37 = vector.shape_cast %3 : vector<1x8xi1> to vector<1x8xi1>
    %38 = vector.broadcast %37 : vector<1x8xi1> to vector<8x8xi1>
    %39 = vector.broadcast %cst_38 : f32 to vector<8x8xf32>
    %40 = arith.select %38, %39, %36 : vector<8x8xi1>, vector<8x8xf32>
    %cst_39 = arith.constant dense<0xFF800000> : vector<8xf32>
    %41 = vector.multi_reduction <maximumf>, %40, %cst_39 [1] : vector<8x8xf32> to vector<8xf32>
    %42 = vector.shape_cast %41 : vector<8xf32> to vector<8x1xf32>
    %43 = vector.broadcast %42 : vector<8x1xf32> to vector<8x8xf32>
    %44 = arith.subf %40, %43 : vector<8x8xf32>
    %45 = math.exp %44 : vector<8x8xf32>
    %cst_40 = arith.constant dense<0.000000e+00> : vector<8xf32>
    %46 = vector.multi_reduction <add>, %45, %cst_40 [1] : vector<8x8xf32> to vector<8xf32>
    %47 = vector.shape_cast %46 : vector<8xf32> to vector<8x1xf32>
    %48 = tpu.reciprocal %47 {approx = true} : vector<8x1xf32> -> vector<8x1xf32>
    %49 = vector.broadcast %48 : vector<8x1xf32> to vector<8x8xf32>
    %50 = arith.mulf %45, %49 : vector<8x8xf32>
    %c0_41 = arith.constant 0 : index
    %c0_42 = arith.constant 0 : index
    %c0_43 = arith.constant 0 : index
    %c0_44 = arith.constant 0 : index
    %c0_45 = arith.constant 0 : index
    %51 = vector.load %arg19[%c0_41, %c0_42, %c0_43, %c0_44, %c0_45] : memref<2x2x4x8x8xf32, #tpu.memory_space<vmem>>, vector<1x1x1x8x8xf32>
    %52 = vector.shape_cast %51 : vector<1x1x1x8x8xf32> to vector<8x8xf32>
    %53 = vector.shape_cast %50 : vector<8x8xf32> to vector<1x1x1x8x8xf32>
    tpu.vector_store %arg19[%c0_41, %c0_42, %c0_43, %c0_44, %c0_45], %53 {strides = array<i32>} : memref<2x2x4x8x8xf32, #tpu.memory_space<vmem>>, vector<1x1x1x8x8xf32>,
    %cst_46 = arith.constant dense<0.000000e+00> : vector<8x8xf32>
    %54 = tpu.matmul %50, %34, %cst_46 {dimension_numbers = #tpu.dot_dimension_numbers<[1], [0], [0], [1], [0, 0, 1, 1], [], []>} : vector<8x8xf32>, vector<8x8xf32>, vector<8x8xf32> -> vector<8x8xf32>
    %cst_47 = arith.constant dense<0.000000e+00> : vector<8x32xf32>
    %55 = tpu.matmul %54, %31, %cst_47 {dimension_numbers = #tpu.dot_dimension_numbers<[1], [0], [0], [1], [0, 0, 1, 1], [], []>} : vector<8x8xf32>, vector<8x32xf32>, vector<8x32xf32> -> vector<8x32xf32>
    %56 = arith.addf %7, %55 : vector<8x32xf32>
    %57 = vector.extract_strided_slice %15 {offsets = [8, 0], sizes = [8, 8], strides = [1, 1]} : vector<16x8xf32> to vector<8x8xf32>
    %58 = vector.extract_strided_slice %22 {offsets = [8, 0], sizes = [8, 8], strides = [1, 1]} : vector<16x8xf32> to vector<8x8xf32>
    %59 = vector.extract_strided_slice %29 {offsets = [8, 0], sizes = [8, 8], strides = [1, 1]} : vector<16x8xf32> to vector<8x8xf32>
    %60 = tpu.transpose %58, [1, 0] : vector<8x8xf32> -> vector<8x8xf32>
    %cst_48 = arith.constant dense<0.000000e+00> : vector<8x8xf32>
    %61 = tpu.matmul %57, %60, %cst_48 {dimension_numbers = #tpu.dot_dimension_numbers<[1], [0], [0], [1], [0, 0, 1, 1], [], []>} : vector<8x8xf32>, vector<8x8xf32>, vector<8x8xf32> -> vector<8x8xf32>
    %cst_49 = arith.constant -1.000000e+04 : f32
    %62 = vector.shape_cast %6 : vector<1x8xi1> to vector<1x8xi1>
    %63 = vector.broadcast %62 : vector<1x8xi1> to vector<8x8xi1>
    %64 = vector.broadcast %cst_49 : f32 to vector<8x8xf32>
    %65 = arith.select %63, %64, %61 : vector<8x8xi1>, vector<8x8xf32>
    %cst_50 = arith.constant dense<0xFF800000> : vector<8xf32>
    %66 = vector.multi_reduction <maximumf>, %65, %cst_50 [1] : vector<8x8xf32> to vector<8xf32>
    %67 = vector.shape_cast %66 : vector<8xf32> to vector<8x1xf32>
    %68 = vector.broadcast %67 : vector<8x1xf32> to vector<8x8xf32>
    %69 = arith.subf %65, %68 : vector<8x8xf32>
    %70 = math.exp %69 : vector<8x8xf32>
    %cst_51 = arith.constant dense<0.000000e+00> : vector<8xf32>
    %71 = vector.multi_reduction <add>, %70, %cst_51 [1] : vector<8x8xf32> to vector<8xf32>
    %72 = vector.shape_cast %71 : vector<8xf32> to vector<8x1xf32>
    %73 = tpu.reciprocal %72 {approx = true} : vector<8x1xf32> -> vector<8x1xf32>
    %74 = vector.broadcast %73 : vector<8x1xf32> to vector<8x8xf32>
    %75 = arith.mulf %70, %74 : vector<8x8xf32>
    %c0_52 = arith.constant 0 : index
    %c1_53 = arith.constant 1 : index
    %c0_54 = arith.constant 0 : index
    %c0_55 = arith.constant 0 : index
    %c0_56 = arith.constant 0 : index
    %76 = vector.load %arg19[%c0_52, %c1_53, %c0_54, %c0_55, %c0_56] : memref<2x2x4x8x8xf32, #tpu.memory_space<vmem>>, vector<1x1x1x8x8xf32>
    %77 = vector.shape_cast %76 : vector<1x1x1x8x8xf32> to vector<8x8xf32>
    %78 = vector.shape_cast %75 : vector<8x8xf32> to vector<1x1x1x8x8xf32>
    tpu.vector_store %arg19[%c0_52, %c1_53, %c0_54, %c0_55, %c0_56], %78 {strides = array<i32>} : memref<2x2x4x8x8xf32, #tpu.memory_space<vmem>>, vector<1x1x1x8x8xf32>,
    %cst_57 = arith.constant dense<0.000000e+00> : vector<8x8xf32>
    %79 = tpu.matmul %75, %59, %cst_57 {dimension_numbers = #tpu.dot_dimension_numbers<[1], [0], [0], [1], [0, 0, 1, 1], [], []>} : vector<8x8xf32>, vector<8x8xf32>, vector<8x8xf32> -> vector<8x8xf32>
    %cst_58 = arith.constant dense<0.000000e+00> : vector<8x32xf32>
    %80 = tpu.matmul %79, %31, %cst_58 {dimension_numbers = #tpu.dot_dimension_numbers<[1], [0], [0], [1], [0, 0, 1, 1], [], []>} : vector<8x8xf32>, vector<8x32xf32>, vector<8x32xf32> -> vector<8x32xf32>
    %81 = arith.addf %8, %80 : vector<8x32xf32>
    %c0_59 = arith.constant 0 : index
    %c1_60 = arith.constant 1 : index
    %c0_61 = arith.constant 0 : index
    %c0_62 = arith.constant 0 : index
    %82 = vector.load %arg2[%c0_59, %c1_60, %c0_61, %c0_62] : memref<2x4x32x8xf32, #tpu.memory_space<vmem>>, vector<1x1x32x8xf32>
    %83 = vector.shape_cast %82 : vector<1x1x32x8xf32> to vector<32x8xf32>
    %cst_63 = arith.constant dense<0.000000e+00> : vector<16x8xf32>
    %84 = tpu.matmul %0, %83, %cst_63 {dimension_numbers = #tpu.dot_dimension_numbers<[1], [0], [0], [1], [0, 0, 1, 1], [], []>} : vector<16x32xf32>, vector<32x8xf32>, vector<16x8xf32> -> vector<16x8xf32>
    %c0_64 = arith.constant 0 : index
    %c1_65 = arith.constant 1 : index
    %c0_66 = arith.constant 0 : index
    %c0_67 = arith.constant 0 : index
    %85 = vector.load %arg3[%c0_64, %c1_65, %c0_66, %c0_67] : memref<2x4x1x8xf32, #tpu.memory_space<vmem>>, vector<1x1x1x8xf32>
    %86 = vector.shape_cast %85 : vector<1x1x1x8xf32> to vector<1x8xf32>
    %87 = vector.broadcast %86 : vector<1x8xf32> to vector<16x8xf32>
    %88 = arith.addf %84, %87 : vector<16x8xf32>
    %c0_68 = arith.constant 0 : index
    %c1_69 = arith.constant 1 : index
    %c0_70 = arith.constant 0 : index
    %c0_71 = arith.constant 0 : index
    %89 = vector.load %arg4[%c0_68, %c1_69, %c0_70, %c0_71] : memref<2x4x32x8xf32, #tpu.memory_space<vmem>>, vector<1x1x32x8xf32>
    %90 = vector.shape_cast %89 : vector<1x1x32x8xf32> to vector<32x8xf32>
    %cst_72 = arith.constant dense<0.000000e+00> : vector<16x8xf32>
    %91 = tpu.matmul %0, %90, %cst_72 {dimension_numbers = #tpu.dot_dimension_numbers<[1], [0], [0], [1], [0, 0, 1, 1], [], []>} : vector<16x32xf32>, vector<32x8xf32>, vector<16x8xf32> -> vector<16x8xf32>
    %c0_73 = arith.constant 0 : index
    %c1_74 = arith.constant 1 : index
    %c0_75 = arith.constant 0 : index
    %c0_76 = arith.constant 0 : index
    %92 = vector.load %arg5[%c0_73, %c1_74, %c0_75, %c0_76] : memref<2x4x1x8xf32, #tpu.memory_space<vmem>>, vector<1x1x1x8xf32>
    %93 = vector.shape_cast %92 : vector<1x1x1x8xf32> to vector<1x8xf32>
    %94 = vector.broadcast %93 : vector<1x8xf32> to vector<16x8xf32>
    %95 = arith.addf %91, %94 : vector<16x8xf32>
    %c0_77 = arith.constant 0 : index
    %c1_78 = arith.constant 1 : index
    %c0_79 = arith.constant 0 : index
    %c0_80 = arith.constant 0 : index
    %96 = vector.load %arg6[%c0_77, %c1_78, %c0_79, %c0_80] : memref<2x4x32x8xf32, #tpu.memory_space<vmem>>, vector<1x1x32x8xf32>
    %97 = vector.shape_cast %96 : vector<1x1x32x8xf32> to vector<32x8xf32>
    %cst_81 = arith.constant dense<0.000000e+00> : vector<16x8xf32>
    %98 = tpu.matmul %0, %97, %cst_81 {dimension_numbers = #tpu.dot_dimension_numbers<[1], [0], [0], [1], [0, 0, 1, 1], [], []>} : vector<16x32xf32>, vector<32x8xf32>, vector<16x8xf32> -> vector<16x8xf32>
    %c0_82 = arith.constant 0 : index
    %c1_83 = arith.constant 1 : index
    %c0_84 = arith.constant 0 : index
    %c0_85 = arith.constant 0 : index
    %99 = vector.load %arg7[%c0_82, %c1_83, %c0_84, %c0_85] : memref<2x4x1x8xf32, #tpu.memory_space<vmem>>, vector<1x1x1x8xf32>
    %100 = vector.shape_cast %99 : vector<1x1x1x8xf32> to vector<1x8xf32>
    %101 = vector.broadcast %100 : vector<1x8xf32> to vector<16x8xf32>
    %102 = arith.addf %98, %101 : vector<16x8xf32>
    %c0_86 = arith.constant 0 : index
    %c1_87 = arith.constant 1 : index
    %c0_88 = arith.constant 0 : index
    %c0_89 = arith.constant 0 : index
    %103 = vector.load %arg8[%c0_86, %c1_87, %c0_88, %c0_89] : memref<2x4x8x32xf32, #tpu.memory_space<vmem>>, vector<1x1x8x32xf32>
    %104 = vector.shape_cast %103 : vector<1x1x8x32xf32> to vector<8x32xf32>
    %105 = vector.extract_strided_slice %88 {offsets = [0, 0], sizes = [8, 8], strides = [1, 1]} : vector<16x8xf32> to vector<8x8xf32>
    %106 = vector.extract_strided_slice %95 {offsets = [0, 0], sizes = [8, 8], strides = [1, 1]} : vector<16x8xf32> to vector<8x8xf32>
    %107 = vector.extract_strided_slice %102 {offsets = [0, 0], sizes = [8, 8], strides = [1, 1]} : vector<16x8xf32> to vector<8x8xf32>
    %108 = tpu.transpose %106, [1, 0] : vector<8x8xf32> -> vector<8x8xf32>
    %cst_90 = arith.constant dense<0.000000e+00> : vector<8x8xf32>
    %109 = tpu.matmul %105, %108, %cst_90 {dimension_numbers = #tpu.dot_dimension_numbers<[1], [0], [0], [1], [0, 0, 1, 1], [], []>} : vector<8x8xf32>, vector<8x8xf32>, vector<8x8xf32> -> vector<8x8xf32>
    %cst_91 = arith.constant -1.000000e+04 : f32
    %110 = vector.shape_cast %3 : vector<1x8xi1> to vector<1x8xi1>
    %111 = vector.broadcast %110 : vector<1x8xi1> to vector<8x8xi1>
    %112 = vector.broadcast %cst_91 : f32 to vector<8x8xf32>
    %113 = arith.select %111, %112, %109 : vector<8x8xi1>, vector<8x8xf32>
    %cst_92 = arith.constant dense<0xFF800000> : vector<8xf32>
    %114 = vector.multi_reduction <maximumf>, %113, %cst_92 [1] : vector<8x8xf32> to vector<8xf32>
    %115 = vector.shape_cast %114 : vector<8xf32> to vector<8x1xf32>
    %116 = vector.broadcast %115 : vector<8x1xf32> to vector<8x8xf32>
    %117 = arith.subf %113, %116 : vector<8x8xf32>
    %118 = math.exp %117 : vector<8x8xf32>
    %cst_93 = arith.constant dense<0.000000e+00> : vector<8xf32>
    %119 = vector.multi_reduction <add>, %118, %cst_93 [1] : vector<8x8xf32> to vector<8xf32>
    %120 = vector.shape_cast %119 : vector<8xf32> to vector<8x1xf32>
    %121 = tpu.reciprocal %120 {approx = true} : vector<8x1xf32> -> vector<8x1xf32>
    %122 = vector.broadcast %121 : vector<8x1xf32> to vector<8x8xf32>
    %123 = arith.mulf %118, %122 : vector<8x8xf32>
    %c0_94 = arith.constant 0 : index
    %c0_95 = arith.constant 0 : index
    %c1_96 = arith.constant 1 : index
    %c0_97 = arith.constant 0 : index
    %c0_98 = arith.constant 0 : index
    %124 = vector.load %arg19[%c0_94, %c0_95, %c1_96, %c0_97, %c0_98] : memref<2x2x4x8x8xf32, #tpu.memory_space<vmem>>, vector<1x1x1x8x8xf32>
    %125 = vector.shape_cast %124 : vector<1x1x1x8x8xf32> to vector<8x8xf32>
    %126 = vector.shape_cast %123 : vector<8x8xf32> to vector<1x1x1x8x8xf32>
    tpu.vector_store %arg19[%c0_94, %c0_95, %c1_96, %c0_97, %c0_98], %126 {strides = array<i32>} : memref<2x2x4x8x8xf32, #tpu.memory_space<vmem>>, vector<1x1x1x8x8xf32>,
    %cst_99 = arith.constant dense<0.000000e+00> : vector<8x8xf32>
    %127 = tpu.matmul %123, %107, %cst_99 {dimension_numbers = #tpu.dot_dimension_numbers<[1], [0], [0], [1], [0, 0, 1, 1], [], []>} : vector<8x8xf32>, vector<8x8xf32>, vector<8x8xf32> -> vector<8x8xf32>
    %cst_100 = arith.constant dense<0.000000e+00> : vector<8x32xf32>
    %128 = tpu.matmul %127, %104, %cst_100 {dimension_numbers = #tpu.dot_dimension_numbers<[1], [0], [0], [1], [0, 0, 1, 1], [], []>} : vector<8x8xf32>, vector<8x32xf32>, vector<8x32xf32> -> vector<8x32xf32>
    %129 = arith.addf %56, %128 : vector<8x32xf32>
    %130 = vector.extract_strided_slice %88 {offsets = [8, 0], sizes = [8, 8], strides = [1, 1]} : vector<16x8xf32> to vector<8x8xf32>
    %131 = vector.extract_strided_slice %95 {offsets = [8, 0], sizes = [8, 8], strides = [1, 1]} : vector<16x8xf32> to vector<8x8xf32>
    %132 = vector.extract_strided_slice %102 {offsets = [8, 0], sizes = [8, 8], strides = [1, 1]} : vector<16x8xf32> to vector<8x8xf32>
    %133 = tpu.transpose %131, [1, 0] : vector<8x8xf32> -> vector<8x8xf32>
    %cst_101 = arith.constant dense<0.000000e+00> : vector<8x8xf32>
    %134 = tpu.matmul %130, %133, %cst_101 {dimension_numbers = #tpu.dot_dimension_numbers<[1], [0], [0], [1], [0, 0, 1, 1], [], []>} : vector<8x8xf32>, vector<8x8xf32>, vector<8x8xf32> -> vector<8x8xf32>
    %cst_102 = arith.constant -1.000000e+04 : f32
    %135 = vector.shape_cast %6 : vector<1x8xi1> to vector<1x8xi1>
    %136 = vector.broadcast %135 : vector<1x8xi1> to vector<8x8xi1>
    %137 = vector.broadcast %cst_102 : f32 to vector<8x8xf32>
    %138 = arith.select %136, %137, %134 : vector<8x8xi1>, vector<8x8xf32>
    %cst_103 = arith.constant dense<0xFF800000> : vector<8xf32>
    %139 = vector.multi_reduction <maximumf>, %138, %cst_103 [1] : vector<8x8xf32> to vector<8xf32>
    %140 = vector.shape_cast %139 : vector<8xf32> to vector<8x1xf32>
    %141 = vector.broadcast %140 : vector<8x1xf32> to vector<8x8xf32>
    %142 = arith.subf %138, %141 : vector<8x8xf32>
    %143 = math.exp %142 : vector<8x8xf32>
    %cst_104 = arith.constant dense<0.000000e+00> : vector<8xf32>
    %144 = vector.multi_reduction <add>, %143, %cst_104 [1] : vector<8x8xf32> to vector<8xf32>
    %145 = vector.shape_cast %144 : vector<8xf32> to vector<8x1xf32>
    %146 = tpu.reciprocal %145 {approx = true} : vector<8x1xf32> -> vector<8x1xf32>
    %147 = vector.broadcast %146 : vector<8x1xf32> to vector<8x8xf32>
    %148 = arith.mulf %143, %147 : vector<8x8xf32>
    %c0_105 = arith.constant 0 : index
    %c1_106 = arith.constant 1 : index
    %c1_107 = arith.constant 1 : index
    %c0_108 = arith.constant 0 : index
    %c0_109 = arith.constant 0 : index
    %149 = vector.load %arg19[%c0_105, %c1_106, %c1_107, %c0_108, %c0_109] : memref<2x2x4x8x8xf32, #tpu.memory_space<vmem>>, vector<1x1x1x8x8xf32>
    %150 = vector.shape_cast %149 : vector<1x1x1x8x8xf32> to vector<8x8xf32>
    %151 = vector.shape_cast %148 : vector<8x8xf32> to vector<1x1x1x8x8xf32>
    tpu.vector_store %arg19[%c0_105, %c1_106, %c1_107, %c0_108, %c0_109], %151 {strides = array<i32>} : memref<2x2x4x8x8xf32, #tpu.memory_space<vmem>>, vector<1x1x1x8x8xf32>,
    %cst_110 = arith.constant dense<0.000000e+00> : vector<8x8xf32>
    %152 = tpu.matmul %148, %132, %cst_110 {dimension_numbers = #tpu.dot_dimension_numbers<[1], [0], [0], [1], [0, 0, 1, 1], [], []>} : vector<8x8xf32>, vector<8x8xf32>, vector<8x8xf32> -> vector<8x8xf32>
    %cst_111 = arith.constant dense<0.000000e+00> : vector<8x32xf32>
    %153 = tpu.matmul %152, %104, %cst_111 {dimension_numbers = #tpu.dot_dimension_numbers<[1], [0], [0], [1], [0, 0, 1, 1], [], []>} : vector<8x8xf32>, vector<8x32xf32>, vector<8x32xf32> -> vector<8x32xf32>
    %154 = arith.addf %81, %153 : vector<8x32xf32>
    %c0_112 = arith.constant 0 : index
    %c2 = arith.constant 2 : index
    %c0_113 = arith.constant 0 : index
    %c0_114 = arith.constant 0 : index
    %155 = vector.load %arg2[%c0_112, %c2, %c0_113, %c0_114] : memref<2x4x32x8xf32, #tpu.memory_space<vmem>>, vector<1x1x32x8xf32>
    %156 = vector.shape_cast %155 : vector<1x1x32x8xf32> to vector<32x8xf32>
    %cst_115 = arith.constant dense<0.000000e+00> : vector<16x8xf32>
    %157 = tpu.matmul %0, %156, %cst_115 {dimension_numbers = #tpu.dot_dimension_numbers<[1], [0], [0], [1], [0, 0, 1, 1], [], []>} : vector<16x32xf32>, vector<32x8xf32>, vector<16x8xf32> -> vector<16x8xf32>
    %c0_116 = arith.constant 0 : index
    %c2_117 = arith.constant 2 : index
    %c0_118 = arith.constant 0 : index
    %c0_119 = arith.constant 0 : index
    %158 = vector.load %arg3[%c0_116, %c2_117, %c0_118, %c0_119] : memref<2x4x1x8xf32, #tpu.memory_space<vmem>>, vector<1x1x1x8xf32>
    %159 = vector.shape_cast %158 : vector<1x1x1x8xf32> to vector<1x8xf32>
    %160 = vector.broadcast %159 : vector<1x8xf32> to vector<16x8xf32>
    %161 = arith.addf %157, %160 : vector<16x8xf32>
    %c0_120 = arith.constant 0 : index
    %c2_121 = arith.constant 2 : index
    %c0_122 = arith.constant 0 : index
    %c0_123 = arith.constant 0 : index
    %162 = vector.load %arg4[%c0_120, %c2_121, %c0_122, %c0_123] : memref<2x4x32x8xf32, #tpu.memory_space<vmem>>, vector<1x1x32x8xf32>
    %163 = vector.shape_cast %162 : vector<1x1x32x8xf32> to vector<32x8xf32>
    %cst_124 = arith.constant dense<0.000000e+00> : vector<16x8xf32>
    %164 = tpu.matmul %0, %163, %cst_124 {dimension_numbers = #tpu.dot_dimension_numbers<[1], [0], [0], [1], [0, 0, 1, 1], [], []>} : vector<16x32xf32>, vector<32x8xf32>, vector<16x8xf32> -> vector<16x8xf32>
    %c0_125 = arith.constant 0 : index
    %c2_126 = arith.constant 2 : index
    %c0_127 = arith.constant 0 : index
    %c0_128 = arith.constant 0 : index
    %165 = vector.load %arg5[%c0_125, %c2_126, %c0_127, %c0_128] : memref<2x4x1x8xf32, #tpu.memory_space<vmem>>, vector<1x1x1x8xf32>
    %166 = vector.shape_cast %165 : vector<1x1x1x8xf32> to vector<1x8xf32>
    %167 = vector.broadcast %166 : vector<1x8xf32> to vector<16x8xf32>
    %168 = arith.addf %164, %167 : vector<16x8xf32>
    %c0_129 = arith.constant 0 : index
    %c2_130 = arith.constant 2 : index
    %c0_131 = arith.constant 0 : index
    %c0_132 = arith.constant 0 : index
    %169 = vector.load %arg6[%c0_129, %c2_130, %c0_131, %c0_132] : memref<2x4x32x8xf32, #tpu.memory_space<vmem>>, vector<1x1x32x8xf32>
    %170 = vector.shape_cast %169 : vector<1x1x32x8xf32> to vector<32x8xf32>
    %cst_133 = arith.constant dense<0.000000e+00> : vector<16x8xf32>
    %171 = tpu.matmul %0, %170, %cst_133 {dimension_numbers = #tpu.dot_dimension_numbers<[1], [0], [0], [1], [0, 0, 1, 1], [], []>} : vector<16x32xf32>, vector<32x8xf32>, vector<16x8xf32> -> vector<16x8xf32>
    %c0_134 = arith.constant 0 : index
    %c2_135 = arith.constant 2 : index
    %c0_136 = arith.constant 0 : index
    %c0_137 = arith.constant 0 : index
    %172 = vector.load %arg7[%c0_134, %c2_135, %c0_136, %c0_137] : memref<2x4x1x8xf32, #tpu.memory_space<vmem>>, vector<1x1x1x8xf32>
    %173 = vector.shape_cast %172 : vector<1x1x1x8xf32> to vector<1x8xf32>
    %174 = vector.broadcast %173 : vector<1x8xf32> to vector<16x8xf32>
    %175 = arith.addf %171, %174 : vector<16x8xf32>
    %c0_138 = arith.constant 0 : index
    %c2_139 = arith.constant 2 : index
    %c0_140 = arith.constant 0 : index
    %c0_141 = arith.constant 0 : index
    %176 = vector.load %arg8[%c0_138, %c2_139, %c0_140, %c0_141] : memref<2x4x8x32xf32, #tpu.memory_space<vmem>>, vector<1x1x8x32xf32>
    %177 = vector.shape_cast %176 : vector<1x1x8x32xf32> to vector<8x32xf32>
    %178 = vector.extract_strided_slice %161 {offsets = [0, 0], sizes = [8, 8], strides = [1, 1]} : vector<16x8xf32> to vector<8x8xf32>
    %179 = vector.extract_strided_slice %168 {offsets = [0, 0], sizes = [8, 8], strides = [1, 1]} : vector<16x8xf32> to vector<8x8xf32>
    %180 = vector.extract_strided_slice %175 {offsets = [0, 0], sizes = [8, 8], strides = [1, 1]} : vector<16x8xf32> to vector<8x8xf32>
    %181 = tpu.transpose %179, [1, 0] : vector<8x8xf32> -> vector<8x8xf32>
    %cst_142 = arith.constant dense<0.000000e+00> : vector<8x8xf32>
    %182 = tpu.matmul %178, %181, %cst_142 {dimension_numbers = #tpu.dot_dimension_numbers<[1], [0], [0], [1], [0, 0, 1, 1], [], []>} : vector<8x8xf32>, vector<8x8xf32>, vector<8x8xf32> -> vector<8x8xf32>
    %cst_143 = arith.constant -1.000000e+04 : f32
    %183 = vector.shape_cast %3 : vector<1x8xi1> to vector<1x8xi1>
    %184 = vector.broadcast %183 : vector<1x8xi1> to vector<8x8xi1>
    %185 = vector.broadcast %cst_143 : f32 to vector<8x8xf32>
    %186 = arith.select %184, %185, %182 : vector<8x8xi1>, vector<8x8xf32>
    %cst_144 = arith.constant dense<0xFF800000> : vector<8xf32>
    %187 = vector.multi_reduction <maximumf>, %186, %cst_144 [1] : vector<8x8xf32> to vector<8xf32>
    %188 = vector.shape_cast %187 : vector<8xf32> to vector<8x1xf32>
    %189 = vector.broadcast %188 : vector<8x1xf32> to vector<8x8xf32>
    %190 = arith.subf %186, %189 : vector<8x8xf32>
    %191 = math.exp %190 : vector<8x8xf32>
    %cst_145 = arith.constant dense<0.000000e+00> : vector<8xf32>
    %192 = vector.multi_reduction <add>, %191, %cst_145 [1] : vector<8x8xf32> to vector<8xf32>
    %193 = vector.shape_cast %192 : vector<8xf32> to vector<8x1xf32>
    %194 = tpu.reciprocal %193 {approx = true} : vector<8x1xf32> -> vector<8x1xf32>
    %195 = vector.broadcast %194 : vector<8x1xf32> to vector<8x8xf32>
    %196 = arith.mulf %191, %195 : vector<8x8xf32>
    %c0_146 = arith.constant 0 : index
    %c0_147 = arith.constant 0 : index
    %c2_148 = arith.constant 2 : index
    %c0_149 = arith.constant 0 : index
    %c0_150 = arith.constant 0 : index
    %197 = vector.load %arg19[%c0_146, %c0_147, %c2_148, %c0_149, %c0_150] : memref<2x2x4x8x8xf32, #tpu.memory_space<vmem>>, vector<1x1x1x8x8xf32>
    %198 = vector.shape_cast %197 : vector<1x1x1x8x8xf32> to vector<8x8xf32>
    %199 = vector.shape_cast %196 : vector<8x8xf32> to vector<1x1x1x8x8xf32>
    tpu.vector_store %arg19[%c0_146, %c0_147, %c2_148, %c0_149, %c0_150], %199 {strides = array<i32>} : memref<2x2x4x8x8xf32, #tpu.memory_space<vmem>>, vector<1x1x1x8x8xf32>,
    %cst_151 = arith.constant dense<0.000000e+00> : vector<8x8xf32>
    %200 = tpu.matmul %196, %180, %cst_151 {dimension_numbers = #tpu.dot_dimension_numbers<[1], [0], [0], [1], [0, 0, 1, 1], [], []>} : vector<8x8xf32>, vector<8x8xf32>, vector<8x8xf32> -> vector<8x8xf32>
    %cst_152 = arith.constant dense<0.000000e+00> : vector<8x32xf32>
    %201 = tpu.matmul %200, %177, %cst_152 {dimension_numbers = #tpu.dot_dimension_numbers<[1], [0], [0], [1], [0, 0, 1, 1], [], []>} : vector<8x8xf32>, vector<8x32xf32>, vector<8x32xf32> -> vector<8x32xf32>
    %202 = arith.addf %129, %201 : vector<8x32xf32>
    %203 = vector.extract_strided_slice %161 {offsets = [8, 0], sizes = [8, 8], strides = [1, 1]} : vector<16x8xf32> to vector<8x8xf32>
    %204 = vector.extract_strided_slice %168 {offsets = [8, 0], sizes = [8, 8], strides = [1, 1]} : vector<16x8xf32> to vector<8x8xf32>
    %205 = vector.extract_strided_slice %175 {offsets = [8, 0], sizes = [8, 8], strides = [1, 1]} : vector<16x8xf32> to vector<8x8xf32>
    %206 = tpu.transpose %204, [1, 0] : vector<8x8xf32> -> vector<8x8xf32>
    %cst_153 = arith.constant dense<0.000000e+00> : vector<8x8xf32>
    %207 = tpu.matmul %203, %206, %cst_153 {dimension_numbers = #tpu.dot_dimension_numbers<[1], [0], [0], [1], [0, 0, 1, 1], [], []>} : vector<8x8xf32>, vector<8x8xf32>, vector<8x8xf32> -> vector<8x8xf32>
    %cst_154 = arith.constant -1.000000e+04 : f32
    %208 = vector.shape_cast %6 : vector<1x8xi1> to vector<1x8xi1>
    %209 = vector.broadcast %208 : vector<1x8xi1> to vector<8x8xi1>
    %210 = vector.broadcast %cst_154 : f32 to vector<8x8xf32>
    %211 = arith.select %209, %210, %207 : vector<8x8xi1>, vector<8x8xf32>
    %cst_155 = arith.constant dense<0xFF800000> : vector<8xf32>
    %212 = vector.multi_reduction <maximumf>, %211, %cst_155 [1] : vector<8x8xf32> to vector<8xf32>
    %213 = vector.shape_cast %212 : vector<8xf32> to vector<8x1xf32>
    %214 = vector.broadcast %213 : vector<8x1xf32> to vector<8x8xf32>
    %215 = arith.subf %211, %214 : vector<8x8xf32>
    %216 = math.exp %215 : vector<8x8xf32>
    %cst_156 = arith.constant dense<0.000000e+00> : vector<8xf32>
    %217 = vector.multi_reduction <add>, %216, %cst_156 [1] : vector<8x8xf32> to vector<8xf32>
    %218 = vector.shape_cast %217 : vector<8xf32> to vector<8x1xf32>
    %219 = tpu.reciprocal %218 {approx = true} : vector<8x1xf32> -> vector<8x1xf32>
    %220 = vector.broadcast %219 : vector<8x1xf32> to vector<8x8xf32>
    %221 = arith.mulf %216, %220 : vector<8x8xf32>
    %c0_157 = arith.constant 0 : index
    %c1_158 = arith.constant 1 : index
    %c2_159 = arith.constant 2 : index
    %c0_160 = arith.constant 0 : index
    %c0_161 = arith.constant 0 : index
    %222 = vector.load %arg19[%c0_157, %c1_158, %c2_159, %c0_160, %c0_161] : memref<2x2x4x8x8xf32, #tpu.memory_space<vmem>>, vector<1x1x1x8x8xf32>
    %223 = vector.shape_cast %222 : vector<1x1x1x8x8xf32> to vector<8x8xf32>
    %224 = vector.shape_cast %221 : vector<8x8xf32> to vector<1x1x1x8x8xf32>
    tpu.vector_store %arg19[%c0_157, %c1_158, %c2_159, %c0_160, %c0_161], %224 {strides = array<i32>} : memref<2x2x4x8x8xf32, #tpu.memory_space<vmem>>, vector<1x1x1x8x8xf32>,
    %cst_162 = arith.constant dense<0.000000e+00> : vector<8x8xf32>
    %225 = tpu.matmul %221, %205, %cst_162 {dimension_numbers = #tpu.dot_dimension_numbers<[1], [0], [0], [1], [0, 0, 1, 1], [], []>} : vector<8x8xf32>, vector<8x8xf32>, vector<8x8xf32> -> vector<8x8xf32>
    %cst_163 = arith.constant dense<0.000000e+00> : vector<8x32xf32>
    %226 = tpu.matmul %225, %177, %cst_163 {dimension_numbers = #tpu.dot_dimension_numbers<[1], [0], [0], [1], [0, 0, 1, 1], [], []>} : vector<8x8xf32>, vector<8x32xf32>, vector<8x32xf32> -> vector<8x32xf32>
    %227 = arith.addf %154, %226 : vector<8x32xf32>
    %c0_164 = arith.constant 0 : index
    %c3 = arith.constant 3 : index
    %c0_165 = arith.constant 0 : index
    %c0_166 = arith.constant 0 : index
    %228 = vector.load %arg2[%c0_164, %c3, %c0_165, %c0_166] : memref<2x4x32x8xf32, #tpu.memory_space<vmem>>, vector<1x1x32x8xf32>
    %229 = vector.shape_cast %228 : vector<1x1x32x8xf32> to vector<32x8xf32>
    %cst_167 = arith.constant dense<0.000000e+00> : vector<16x8xf32>
    %230 = tpu.matmul %0, %229, %cst_167 {dimension_numbers = #tpu.dot_dimension_numbers<[1], [0], [0], [1], [0, 0, 1, 1], [], []>} : vector<16x32xf32>, vector<32x8xf32>, vector<16x8xf32> -> vector<16x8xf32>
    %c0_168 = arith.constant 0 : index
    %c3_169 = arith.constant 3 : index
    %c0_170 = arith.constant 0 : index
    %c0_171 = arith.constant 0 : index
    %231 = vector.load %arg3[%c0_168, %c3_169, %c0_170, %c0_171] : memref<2x4x1x8xf32, #tpu.memory_space<vmem>>, vector<1x1x1x8xf32>
    %232 = vector.shape_cast %231 : vector<1x1x1x8xf32> to vector<1x8xf32>
    %233 = vector.broadcast %232 : vector<1x8xf32> to vector<16x8xf32>
    %234 = arith.addf %230, %233 : vector<16x8xf32>
    %c0_172 = arith.constant 0 : index
    %c3_173 = arith.constant 3 : index
    %c0_174 = arith.constant 0 : index
    %c0_175 = arith.constant 0 : index
    %235 = vector.load %arg4[%c0_172, %c3_173, %c0_174, %c0_175] : memref<2x4x32x8xf32, #tpu.memory_space<vmem>>, vector<1x1x32x8xf32>
    %236 = vector.shape_cast %235 : vector<1x1x32x8xf32> to vector<32x8xf32>
    %cst_176 = arith.constant dense<0.000000e+00> : vector<16x8xf32>
    %237 = tpu.matmul %0, %236, %cst_176 {dimension_numbers = #tpu.dot_dimension_numbers<[1], [0], [0], [1], [0, 0, 1, 1], [], []>} : vector<16x32xf32>, vector<32x8xf32>, vector<16x8xf32> -> vector<16x8xf32>
    %c0_177 = arith.constant 0 : index
    %c3_178 = arith.constant 3 : index
    %c0_179 = arith.constant 0 : index
    %c0_180 = arith.constant 0 : index
    %238 = vector.load %arg5[%c0_177, %c3_178, %c0_179, %c0_180] : memref<2x4x1x8xf32, #tpu.memory_space<vmem>>, vector<1x1x1x8xf32>
    %239 = vector.shape_cast %238 : vector<1x1x1x8xf32> to vector<1x8xf32>
    %240 = vector.broadcast %239 : vector<1x8xf32> to vector<16x8xf32>
    %241 = arith.addf %237, %240 : vector<16x8xf32>
    %c0_181 = arith.constant 0 : index
    %c3_182 = arith.constant 3 : index
    %c0_183 = arith.constant 0 : index
    %c0_184 = arith.constant 0 : index
    %242 = vector.load %arg6[%c0_181, %c3_182, %c0_183, %c0_184] : memref<2x4x32x8xf32, #tpu.memory_space<vmem>>, vector<1x1x32x8xf32>
    %243 = vector.shape_cast %242 : vector<1x1x32x8xf32> to vector<32x8xf32>
    %cst_185 = arith.constant dense<0.000000e+00> : vector<16x8xf32>
    %244 = tpu.matmul %0, %243, %cst_185 {dimension_numbers = #tpu.dot_dimension_numbers<[1], [0], [0], [1], [0, 0, 1, 1], [], []>} : vector<16x32xf32>, vector<32x8xf32>, vector<16x8xf32> -> vector<16x8xf32>
    %c0_186 = arith.constant 0 : index
    %c3_187 = arith.constant 3 : index
    %c0_188 = arith.constant 0 : index
    %c0_189 = arith.constant 0 : index
    %245 = vector.load %arg7[%c0_186, %c3_187, %c0_188, %c0_189] : memref<2x4x1x8xf32, #tpu.memory_space<vmem>>, vector<1x1x1x8xf32>
    %246 = vector.shape_cast %245 : vector<1x1x1x8xf32> to vector<1x8xf32>
    %247 = vector.broadcast %246 : vector<1x8xf32> to vector<16x8xf32>
    %248 = arith.addf %244, %247 : vector<16x8xf32>
    %c0_190 = arith.constant 0 : index
    %c3_191 = arith.constant 3 : index
    %c0_192 = arith.constant 0 : index
    %c0_193 = arith.constant 0 : index
    %249 = vector.load %arg8[%c0_190, %c3_191, %c0_192, %c0_193] : memref<2x4x8x32xf32, #tpu.memory_space<vmem>>, vector<1x1x8x32xf32>
    %250 = vector.shape_cast %249 : vector<1x1x8x32xf32> to vector<8x32xf32>
    %251 = vector.extract_strided_slice %234 {offsets = [0, 0], sizes = [8, 8], strides = [1, 1]} : vector<16x8xf32> to vector<8x8xf32>
    %252 = vector.extract_strided_slice %241 {offsets = [0, 0], sizes = [8, 8], strides = [1, 1]} : vector<16x8xf32> to vector<8x8xf32>
    %253 = vector.extract_strided_slice %248 {offsets = [0, 0], sizes = [8, 8], strides = [1, 1]} : vector<16x8xf32> to vector<8x8xf32>
    %254 = tpu.transpose %252, [1, 0] : vector<8x8xf32> -> vector<8x8xf32>
    %cst_194 = arith.constant dense<0.000000e+00> : vector<8x8xf32>
    %255 = tpu.matmul %251, %254, %cst_194 {dimension_numbers = #tpu.dot_dimension_numbers<[1], [0], [0], [1], [0, 0, 1, 1], [], []>} : vector<8x8xf32>, vector<8x8xf32>, vector<8x8xf32> -> vector<8x8xf32>
    %cst_195 = arith.constant -1.000000e+04 : f32
    %256 = vector.shape_cast %3 : vector<1x8xi1> to vector<1x8xi1>
    %257 = vector.broadcast %256 : vector<1x8xi1> to vector<8x8xi1>
    %258 = vector.broadcast %cst_195 : f32 to vector<8x8xf32>
    %259 = arith.select %257, %258, %255 : vector<8x8xi1>, vector<8x8xf32>
    %cst_196 = arith.constant dense<0xFF800000> : vector<8xf32>
    %260 = vector.multi_reduction <maximumf>, %259, %cst_196 [1] : vector<8x8xf32> to vector<8xf32>
    %261 = vector.shape_cast %260 : vector<8xf32> to vector<8x1xf32>
    %262 = vector.broadcast %261 : vector<8x1xf32> to vector<8x8xf32>
    %263 = arith.subf %259, %262 : vector<8x8xf32>
    %264 = math.exp %263 : vector<8x8xf32>
    %cst_197 = arith.constant dense<0.000000e+00> : vector<8xf32>
    %265 = vector.multi_reduction <add>, %264, %cst_197 [1] : vector<8x8xf32> to vector<8xf32>
    %266 = vector.shape_cast %265 : vector<8xf32> to vector<8x1xf32>
    %267 = tpu.reciprocal %266 {approx = true} : vector<8x1xf32> -> vector<8x1xf32>
    %268 = vector.broadcast %267 : vector<8x1xf32> to vector<8x8xf32>
    %269 = arith.mulf %264, %268 : vector<8x8xf32>
    %c0_198 = arith.constant 0 : index
    %c0_199 = arith.constant 0 : index
    %c3_200 = arith.constant 3 : index
    %c0_201 = arith.constant 0 : index
    %c0_202 = arith.constant 0 : index
    %270 = vector.load %arg19[%c0_198, %c0_199, %c3_200, %c0_201, %c0_202] : memref<2x2x4x8x8xf32, #tpu.memory_space<vmem>>, vector<1x1x1x8x8xf32>
    %271 = vector.shape_cast %270 : vector<1x1x1x8x8xf32> to vector<8x8xf32>
    %272 = vector.shape_cast %269 : vector<8x8xf32> to vector<1x1x1x8x8xf32>
    tpu.vector_store %arg19[%c0_198, %c0_199, %c3_200, %c0_201, %c0_202], %272 {strides = array<i32>} : memref<2x2x4x8x8xf32, #tpu.memory_space<vmem>>, vector<1x1x1x8x8xf32>,
    %cst_203 = arith.constant dense<0.000000e+00> : vector<8x8xf32>
    %273 = tpu.matmul %269, %253, %cst_203 {dimension_numbers = #tpu.dot_dimension_numbers<[1], [0], [0], [1], [0, 0, 1, 1], [], []>} : vector<8x8xf32>, vector<8x8xf32>, vector<8x8xf32> -> vector<8x8xf32>
    %cst_204 = arith.constant dense<0.000000e+00> : vector<8x32xf32>
    %274 = tpu.matmul %273, %250, %cst_204 {dimension_numbers = #tpu.dot_dimension_numbers<[1], [0], [0], [1], [0, 0, 1, 1], [], []>} : vector<8x8xf32>, vector<8x32xf32>, vector<8x32xf32> -> vector<8x32xf32>
    %275 = arith.addf %202, %274 : vector<8x32xf32>
    %276 = vector.extract_strided_slice %234 {offsets = [8, 0], sizes = [8, 8], strides = [1, 1]} : vector<16x8xf32> to vector<8x8xf32>
    %277 = vector.extract_strided_slice %241 {offsets = [8, 0], sizes = [8, 8], strides = [1, 1]} : vector<16x8xf32> to vector<8x8xf32>
    %278 = vector.extract_strided_slice %248 {offsets = [8, 0], sizes = [8, 8], strides = [1, 1]} : vector<16x8xf32> to vector<8x8xf32>
    %279 = tpu.transpose %277, [1, 0] : vector<8x8xf32> -> vector<8x8xf32>
    %cst_205 = arith.constant dense<0.000000e+00> : vector<8x8xf32>
    %280 = tpu.matmul %276, %279, %cst_205 {dimension_numbers = #tpu.dot_dimension_numbers<[1], [0], [0], [1], [0, 0, 1, 1], [], []>} : vector<8x8xf32>, vector<8x8xf32>, vector<8x8xf32> -> vector<8x8xf32>
    %cst_206 = arith.constant -1.000000e+04 : f32
    %281 = vector.shape_cast %6 : vector<1x8xi1> to vector<1x8xi1>
    %282 = vector.broadcast %281 : vector<1x8xi1> to vector<8x8xi1>
    %283 = vector.broadcast %cst_206 : f32 to vector<8x8xf32>
    %284 = arith.select %282, %283, %280 : vector<8x8xi1>, vector<8x8xf32>
    %cst_207 = arith.constant dense<0xFF800000> : vector<8xf32>
    %285 = vector.multi_reduction <maximumf>, %284, %cst_207 [1] : vector<8x8xf32> to vector<8xf32>
    %286 = vector.shape_cast %285 : vector<8xf32> to vector<8x1xf32>
    %287 = vector.broadcast %286 : vector<8x1xf32> to vector<8x8xf32>
    %288 = arith.subf %284, %287 : vector<8x8xf32>
    %289 = math.exp %288 : vector<8x8xf32>
    %cst_208 = arith.constant dense<0.000000e+00> : vector<8xf32>
    %290 = vector.multi_reduction <add>, %289, %cst_208 [1] : vector<8x8xf32> to vector<8xf32>
    %291 = vector.shape_cast %290 : vector<8xf32> to vector<8x1xf32>
    %292 = tpu.reciprocal %291 {approx = true} : vector<8x1xf32> -> vector<8x1xf32>
    %293 = vector.broadcast %292 : vector<8x1xf32> to vector<8x8xf32>
    %294 = arith.mulf %289, %293 : vector<8x8xf32>
    %c0_209 = arith.constant 0 : index
    %c1_210 = arith.constant 1 : index
    %c3_211 = arith.constant 3 : index
    %c0_212 = arith.constant 0 : index
    %c0_213 = arith.constant 0 : index
    %295 = vector.load %arg19[%c0_209, %c1_210, %c3_211, %c0_212, %c0_213] : memref<2x2x4x8x8xf32, #tpu.memory_space<vmem>>, vector<1x1x1x8x8xf32>
    %296 = vector.shape_cast %295 : vector<1x1x1x8x8xf32> to vector<8x8xf32>
    %297 = vector.shape_cast %294 : vector<8x8xf32> to vector<1x1x1x8x8xf32>
    tpu.vector_store %arg19[%c0_209, %c1_210, %c3_211, %c0_212, %c0_213], %297 {strides = array<i32>} : memref<2x2x4x8x8xf32, #tpu.memory_space<vmem>>, vector<1x1x1x8x8xf32>,
    %cst_214 = arith.constant dense<0.000000e+00> : vector<8x8xf32>
    %298 = tpu.matmul %294, %278, %cst_214 {dimension_numbers = #tpu.dot_dimension_numbers<[1], [0], [0], [1], [0, 0, 1, 1], [], []>} : vector<8x8xf32>, vector<8x8xf32>, vector<8x8xf32> -> vector<8x8xf32>
    %cst_215 = arith.constant dense<0.000000e+00> : vector<8x32xf32>
    %299 = tpu.matmul %298, %250, %cst_215 {dimension_numbers = #tpu.dot_dimension_numbers<[1], [0], [0], [1], [0, 0, 1, 1], [], []>} : vector<8x8xf32>, vector<8x32xf32>, vector<8x32xf32> -> vector<8x32xf32>
    %300 = arith.addf %227, %299 : vector<8x32xf32>
    %301 = tpu.concatenate %275, %300 in 0 : vector<8x32xf32>, vector<8x32xf32> -> vector<16x32xf32>
    %c0_216 = arith.constant 0 : index
    %c0_217 = arith.constant 0 : index
    %c0_218 = arith.constant 0 : index
    %302 = vector.load %arg9[%c0_216, %c0_217, %c0_218] : memref<2x1x32xf32, #tpu.memory_space<vmem>>, vector<1x1x32xf32>
    %303 = vector.shape_cast %302 : vector<1x1x32xf32> to vector<1x32xf32>
    %304 = vector.broadcast %303 : vector<1x32xf32> to vector<16x32xf32>
    %305 = arith.addf %301, %304 : vector<16x32xf32>
    %306 = arith.addf %0, %305 : vector<16x32xf32>
    %c0_219 = arith.constant 0 : index
    %c0_220 = arith.constant 0 : index
    %c0_221 = arith.constant 0 : index
    %307 = vector.load %arg10[%c0_219, %c0_220, %c0_221] : memref<2x1x32xf32, #tpu.memory_space<vmem>>, vector<1x1x32xf32>
    %308 = vector.shape_cast %307 : vector<1x1x32xf32> to vector<1x32xf32>
    %c0_222 = arith.constant 0 : index
    %c0_223 = arith.constant 0 : index
    %c0_224 = arith.constant 0 : index
    %309 = vector.load %arg11[%c0_222, %c0_223, %c0_224] : memref<2x1x32xf32, #tpu.memory_space<vmem>>, vector<1x1x32xf32>
    %310 = vector.shape_cast %309 : vector<1x1x32xf32> to vector<1x32xf32>
    %cst_225 = arith.constant dense<0.000000e+00> : vector<16xf32>
    %311 = vector.multi_reduction <add>, %306, %cst_225 [1] : vector<16x32xf32> to vector<16xf32>
    %312 = vector.shape_cast %311 : vector<16xf32> to vector<16x1xf32>
    %cst_226 = arith.constant 3.200000e+01 : f32
    %313 = vector.broadcast %cst_226 : f32 to vector<16x1xf32>
    %314 = arith.divf %312, %313 : vector<16x1xf32>
    %315 = vector.broadcast %314 : vector<16x1xf32> to vector<16x32xf32>
    %316 = arith.subf %306, %315 : vector<16x32xf32>
    %317 = arith.mulf %316, %316 : vector<16x32xf32>
    %cst_227 = arith.constant dense<0.000000e+00> : vector<16xf32>
    %318 = vector.multi_reduction <add>, %317, %cst_227 [1] : vector<16x32xf32> to vector<16xf32>
    %319 = vector.shape_cast %318 : vector<16xf32> to vector<16x1xf32>
    %cst_228 = arith.constant 3.200000e+01 : f32
    %320 = vector.broadcast %cst_228 : f32 to vector<16x1xf32>
    %321 = arith.divf %319, %320 : vector<16x1xf32>
    %322 = vector.broadcast %314 : vector<16x1xf32> to vector<16x32xf32>
    %323 = arith.subf %306, %322 : vector<16x32xf32>
    %cst_229 = arith.constant 9.99999974E-6 : f32
    %324 = vector.broadcast %cst_229 : f32 to vector<16x1xf32>
    %325 = arith.addf %321, %324 : vector<16x1xf32>
    %326 = math.rsqrt %325 : vector<16x1xf32>
    %327 = vector.broadcast %326 : vector<16x1xf32> to vector<16x32xf32>
    %328 = arith.mulf %323, %327 : vector<16x32xf32>
    %329 = vector.broadcast %308 : vector<1x32xf32> to vector<16x32xf32>
    %330 = arith.mulf %328, %329 : vector<16x32xf32>
    %331 = vector.broadcast %310 : vector<1x32xf32> to vector<16x32xf32>
    %332 = arith.addf %330, %331 : vector<16x32xf32>
    %c0_230 = arith.constant 0 : index
    %c0_231 = arith.constant 0 : index
    %c0_232 = arith.constant 0 : index
    %333 = vector.load %arg12[%c0_230, %c0_231, %c0_232] : memref<2x32x64xf32, #tpu.memory_space<vmem>>, vector<1x32x64xf32>
    %334 = vector.shape_cast %333 : vector<1x32x64xf32> to vector<32x64xf32>
    %cst_233 = arith.constant dense<0.000000e+00> : vector<16x64xf32>
    %335 = tpu.matmul %332, %334, %cst_233 {dimension_numbers = #tpu.dot_dimension_numbers<[1], [0], [0], [1], [0, 0, 1, 1], [], []>} : vector<16x32xf32>, vector<32x64xf32>, vector<16x64xf32> -> vector<16x64xf32>
    %c0_234 = arith.constant 0 : index
    %c0_235 = arith.constant 0 : index
    %c0_236 = arith.constant 0 : index
    %336 = vector.load %arg13[%c0_234, %c0_235, %c0_236] : memref<2x1x64xf32, #tpu.memory_space<vmem>>, vector<1x1x64xf32>
    %337 = vector.shape_cast %336 : vector<1x1x64xf32> to vector<1x64xf32>
    %338 = vector.broadcast %337 : vector<1x64xf32> to vector<16x64xf32>
    %339 = arith.addf %335, %338 : vector<16x64xf32>
    %cst_237 = arith.constant 0.000000e+00 : f32
    %340 = vector.broadcast %cst_237 : f32 to vector<16x64xf32>
    %341 = arith.maximumf %339, %340 : vector<16x64xf32>
    %c0_238 = arith.constant 0 : index
    %c0_239 = arith.constant 0 : index
    %c0_240 = arith.constant 0 : index
    %342 = vector.load %arg14[%c0_238, %c0_239, %c0_240] : memref<2x64x32xf32, #tpu.memory_space<vmem>>, vector<1x64x32xf32>
    %343 = vector.shape_cast %342 : vector<1x64x32xf32> to vector<64x32xf32>
    %cst_241 = arith.constant dense<0.000000e+00> : vector<16x32xf32>
    %344 = tpu.matmul %341, %343, %cst_241 {dimension_numbers = #tpu.dot_dimension_numbers<[1], [0], [0], [1], [0, 0, 1, 1], [], []>} : vector<16x64xf32>, vector<64x32xf32>, vector<16x32xf32> -> vector<16x32xf32>
    %c0_242 = arith.constant 0 : index
    %c0_243 = arith.constant 0 : index
    %c0_244 = arith.constant 0 : index
    %345 = vector.load %arg15[%c0_242, %c0_243, %c0_244] : memref<2x1x32xf32, #tpu.memory_space<vmem>>, vector<1x1x32xf32>
    %346 = vector.shape_cast %345 : vector<1x1x32xf32> to vector<1x32xf32>
    %347 = vector.broadcast %346 : vector<1x32xf32> to vector<16x32xf32>
    %348 = arith.addf %344, %347 : vector<16x32xf32>
    %349 = arith.addf %332, %348 : vector<16x32xf32>
    %c0_245 = arith.constant 0 : index
    %c0_246 = arith.constant 0 : index
    %c0_247 = arith.constant 0 : index
    %350 = vector.load %arg16[%c0_245, %c0_246, %c0_247] : memref<2x1x32xf32, #tpu.memory_space<vmem>>, vector<1x1x32xf32>
    %351 = vector.shape_cast %350 : vector<1x1x32xf32> to vector<1x32xf32>
    %c0_248 = arith.constant 0 : index
    %c0_249 = arith.constant 0 : index
    %c0_250 = arith.constant 0 : index
    %352 = vector.load %arg17[%c0_248, %c0_249, %c0_250] : memref<2x1x32xf32, #tpu.memory_space<vmem>>, vector<1x1x32xf32>
    %353 = vector.shape_cast %352 : vector<1x1x32xf32> to vector<1x32xf32>
    %cst_251 = arith.constant dense<0.000000e+00> : vector<16xf32>
    %354 = vector.multi_reduction <add>, %349, %cst_251 [1] : vector<16x32xf32> to vector<16xf32>
    %355 = vector.shape_cast %354 : vector<16xf32> to vector<16x1xf32>
    %cst_252 = arith.constant 3.200000e+01 : f32
    %356 = vector.broadcast %cst_252 : f32 to vector<16x1xf32>
    %357 = arith.divf %355, %356 : vector<16x1xf32>
    %358 = vector.broadcast %357 : vector<16x1xf32> to vector<16x32xf32>
    %359 = arith.subf %349, %358 : vector<16x32xf32>
    %360 = arith.mulf %359, %359 : vector<16x32xf32>
    %cst_253 = arith.constant dense<0.000000e+00> : vector<16xf32>
    %361 = vector.multi_reduction <add>, %360, %cst_253 [1] : vector<16x32xf32> to vector<16xf32>
    %362 = vector.shape_cast %361 : vector<16xf32> to vector<16x1xf32>
    %cst_254 = arith.constant 3.200000e+01 : f32
    %363 = vector.broadcast %cst_254 : f32 to vector<16x1xf32>
    %364 = arith.divf %362, %363 : vector<16x1xf32>
    %365 = vector.broadcast %357 : vector<16x1xf32> to vector<16x32xf32>
    %366 = arith.subf %349, %365 : vector<16x32xf32>
    %cst_255 = arith.constant 9.99999974E-6 : f32
    %367 = vector.broadcast %cst_255 : f32 to vector<16x1xf32>
    %368 = arith.addf %364, %367 : vector<16x1xf32>
    %369 = math.rsqrt %368 : vector<16x1xf32>
    %370 = vector.broadcast %369 : vector<16x1xf32> to vector<16x32xf32>
    %371 = arith.mulf %366, %370 : vector<16x32xf32>
    %372 = vector.broadcast %351 : vector<1x32xf32> to vector<16x32xf32>
    %373 = arith.mulf %371, %372 : vector<16x32xf32>
    %374 = vector.broadcast %353 : vector<1x32xf32> to vector<16x32xf32>
    %375 = arith.addf %373, %374 : vector<16x32xf32>
    %cst_256 = arith.constant 0.000000e+00 : f32
    %376 = vector.broadcast %cst_256 : f32 to vector<8x32xf32>
    %cst_257 = arith.constant 0.000000e+00 : f32
    %377 = vector.broadcast %cst_257 : f32 to vector<8x32xf32>
    %c1_258 = arith.constant 1 : index
    %c0_259 = arith.constant 0 : index
    %c0_260 = arith.constant 0 : index
    %c0_261 = arith.constant 0 : index
    %378 = vector.load %arg2[%c1_258, %c0_259, %c0_260, %c0_261] : memref<2x4x32x8xf32, #tpu.memory_space<vmem>>, vector<1x1x32x8xf32>
    %379 = vector.shape_cast %378 : vector<1x1x32x8xf32> to vector<32x8xf32>
    %cst_262 = arith.constant dense<0.000000e+00> : vector<16x8xf32>
    %380 = tpu.matmul %375, %379, %cst_262 {dimension_numbers = #tpu.dot_dimension_numbers<[1], [0], [0], [1], [0, 0, 1, 1], [], []>} : vector<16x32xf32>, vector<32x8xf32>, vector<16x8xf32> -> vector<16x8xf32>
    %c1_263 = arith.constant 1 : index
    %c0_264 = arith.constant 0 : index
    %c0_265 = arith.constant 0 : index
    %c0_266 = arith.constant 0 : index
    %381 = vector.load %arg3[%c1_263, %c0_264, %c0_265, %c0_266] : memref<2x4x1x8xf32, #tpu.memory_space<vmem>>, vector<1x1x1x8xf32>
    %382 = vector.shape_cast %381 : vector<1x1x1x8xf32> to vector<1x8xf32>
    %383 = vector.broadcast %382 : vector<1x8xf32> to vector<16x8xf32>
    %384 = arith.addf %380, %383 : vector<16x8xf32>
    %c1_267 = arith.constant 1 : index
    %c0_268 = arith.constant 0 : index
    %c0_269 = arith.constant 0 : index
    %c0_270 = arith.constant 0 : index
    %385 = vector.load %arg4[%c1_267, %c0_268, %c0_269, %c0_270] : memref<2x4x32x8xf32, #tpu.memory_space<vmem>>, vector<1x1x32x8xf32>
    %386 = vector.shape_cast %385 : vector<1x1x32x8xf32> to vector<32x8xf32>
    %cst_271 = arith.constant dense<0.000000e+00> : vector<16x8xf32>
    %387 = tpu.matmul %375, %386, %cst_271 {dimension_numbers = #tpu.dot_dimension_numbers<[1], [0], [0], [1], [0, 0, 1, 1], [], []>} : vector<16x32xf32>, vector<32x8xf32>, vector<16x8xf32> -> vector<16x8xf32>
    %c1_272 = arith.constant 1 : index
    %c0_273 = arith.constant 0 : index
    %c0_274 = arith.constant 0 : index
    %c0_275 = arith.constant 0 : index
    %388 = vector.load %arg5[%c1_272, %c0_273, %c0_274, %c0_275] : memref<2x4x1x8xf32, #tpu.memory_space<vmem>>, vector<1x1x1x8xf32>
    %389 = vector.shape_cast %388 : vector<1x1x1x8xf32> to vector<1x8xf32>
    %390 = vector.broadcast %389 : vector<1x8xf32> to vector<16x8xf32>
    %391 = arith.addf %387, %390 : vector<16x8xf32>
    %c1_276 = arith.constant 1 : index
    %c0_277 = arith.constant 0 : index
    %c0_278 = arith.constant 0 : index
    %c0_279 = arith.constant 0 : index
    %392 = vector.load %arg6[%c1_276, %c0_277, %c0_278, %c0_279] : memref<2x4x32x8xf32, #tpu.memory_space<vmem>>, vector<1x1x32x8xf32>
    %393 = vector.shape_cast %392 : vector<1x1x32x8xf32> to vector<32x8xf32>
    %cst_280 = arith.constant dense<0.000000e+00> : vector<16x8xf32>
    %394 = tpu.matmul %375, %393, %cst_280 {dimension_numbers = #tpu.dot_dimension_numbers<[1], [0], [0], [1], [0, 0, 1, 1], [], []>} : vector<16x32xf32>, vector<32x8xf32>, vector<16x8xf32> -> vector<16x8xf32>
    %c1_281 = arith.constant 1 : index
    %c0_282 = arith.constant 0 : index
    %c0_283 = arith.constant 0 : index
    %c0_284 = arith.constant 0 : index
    %395 = vector.load %arg7[%c1_281, %c0_282, %c0_283, %c0_284] : memref<2x4x1x8xf32, #tpu.memory_space<vmem>>, vector<1x1x1x8xf32>
    %396 = vector.shape_cast %395 : vector<1x1x1x8xf32> to vector<1x8xf32>
    %397 = vector.broadcast %396 : vector<1x8xf32> to vector<16x8xf32>
    %398 = arith.addf %394, %397 : vector<16x8xf32>
    %c1_285 = arith.constant 1 : index
    %c0_286 = arith.constant 0 : index
    %c0_287 = arith.constant 0 : index
    %c0_288 = arith.constant 0 : index
    %399 = vector.load %arg8[%c1_285, %c0_286, %c0_287, %c0_288] : memref<2x4x8x32xf32, #tpu.memory_space<vmem>>, vector<1x1x8x32xf32>
    %400 = vector.shape_cast %399 : vector<1x1x8x32xf32> to vector<8x32xf32>
    %401 = vector.extract_strided_slice %384 {offsets = [0, 0], sizes = [8, 8], strides = [1, 1]} : vector<16x8xf32> to vector<8x8xf32>
    %402 = vector.extract_strided_slice %391 {offsets = [0, 0], sizes = [8, 8], strides = [1, 1]} : vector<16x8xf32> to vector<8x8xf32>
    %403 = vector.extract_strided_slice %398 {offsets = [0, 0], sizes = [8, 8], strides = [1, 1]} : vector<16x8xf32> to vector<8x8xf32>
    %404 = tpu.transpose %402, [1, 0] : vector<8x8xf32> -> vector<8x8xf32>
    %cst_289 = arith.constant dense<0.000000e+00> : vector<8x8xf32>
    %405 = tpu.matmul %401, %404, %cst_289 {dimension_numbers = #tpu.dot_dimension_numbers<[1], [0], [0], [1], [0, 0, 1, 1], [], []>} : vector<8x8xf32>, vector<8x8xf32>, vector<8x8xf32> -> vector<8x8xf32>
    %cst_290 = arith.constant -1.000000e+04 : f32
    %406 = vector.shape_cast %3 : vector<1x8xi1> to vector<1x8xi1>
    %407 = vector.broadcast %406 : vector<1x8xi1> to vector<8x8xi1>
    %408 = vector.broadcast %cst_290 : f32 to vector<8x8xf32>
    %409 = arith.select %407, %408, %405 : vector<8x8xi1>, vector<8x8xf32>
    %cst_291 = arith.constant dense<0xFF800000> : vector<8xf32>
    %410 = vector.multi_reduction <maximumf>, %409, %cst_291 [1] : vector<8x8xf32> to vector<8xf32>
    %411 = vector.shape_cast %410 : vector<8xf32> to vector<8x1xf32>
    %412 = vector.broadcast %411 : vector<8x1xf32> to vector<8x8xf32>
    %413 = arith.subf %409, %412 : vector<8x8xf32>
    %414 = math.exp %413 : vector<8x8xf32>
    %cst_292 = arith.constant dense<0.000000e+00> : vector<8xf32>
    %415 = vector.multi_reduction <add>, %414, %cst_292 [1] : vector<8x8xf32> to vector<8xf32>
    %416 = vector.shape_cast %415 : vector<8xf32> to vector<8x1xf32>
    %417 = tpu.reciprocal %416 {approx = true} : vector<8x1xf32> -> vector<8x1xf32>
    %418 = vector.broadcast %417 : vector<8x1xf32> to vector<8x8xf32>
    %419 = arith.mulf %414, %418 : vector<8x8xf32>
    %c1_293 = arith.constant 1 : index
    %c0_294 = arith.constant 0 : index
    %c0_295 = arith.constant 0 : index
    %c0_296 = arith.constant 0 : index
    %c0_297 = arith.constant 0 : index
    %420 = vector.load %arg19[%c1_293, %c0_294, %c0_295, %c0_296, %c0_297] : memref<2x2x4x8x8xf32, #tpu.memory_space<vmem>>, vector<1x1x1x8x8xf32>
    %421 = vector.shape_cast %420 : vector<1x1x1x8x8xf32> to vector<8x8xf32>
    %422 = vector.shape_cast %419 : vector<8x8xf32> to vector<1x1x1x8x8xf32>
    tpu.vector_store %arg19[%c1_293, %c0_294, %c0_295, %c0_296, %c0_297], %422 {strides = array<i32>} : memref<2x2x4x8x8xf32, #tpu.memory_space<vmem>>, vector<1x1x1x8x8xf32>,
    %cst_298 = arith.constant dense<0.000000e+00> : vector<8x8xf32>
    %423 = tpu.matmul %419, %403, %cst_298 {dimension_numbers = #tpu.dot_dimension_numbers<[1], [0], [0], [1], [0, 0, 1, 1], [], []>} : vector<8x8xf32>, vector<8x8xf32>, vector<8x8xf32> -> vector<8x8xf32>
    %cst_299 = arith.constant dense<0.000000e+00> : vector<8x32xf32>
    %424 = tpu.matmul %423, %400, %cst_299 {dimension_numbers = #tpu.dot_dimension_numbers<[1], [0], [0], [1], [0, 0, 1, 1], [], []>} : vector<8x8xf32>, vector<8x32xf32>, vector<8x32xf32> -> vector<8x32xf32>
    %425 = arith.addf %376, %424 : vector<8x32xf32>
    %426 = vector.extract_strided_slice %384 {offsets = [8, 0], sizes = [8, 8], strides = [1, 1]} : vector<16x8xf32> to vector<8x8xf32>
    %427 = vector.extract_strided_slice %391 {offsets = [8, 0], sizes = [8, 8], strides = [1, 1]} : vector<16x8xf32> to vector<8x8xf32>
    %428 = vector.extract_strided_slice %398 {offsets = [8, 0], sizes = [8, 8], strides = [1, 1]} : vector<16x8xf32> to vector<8x8xf32>
    %429 = tpu.transpose %427, [1, 0] : vector<8x8xf32> -> vector<8x8xf32>
    %cst_300 = arith.constant dense<0.000000e+00> : vector<8x8xf32>
    %430 = tpu.matmul %426, %429, %cst_300 {dimension_numbers = #tpu.dot_dimension_numbers<[1], [0], [0], [1], [0, 0, 1, 1], [], []>} : vector<8x8xf32>, vector<8x8xf32>, vector<8x8xf32> -> vector<8x8xf32>
    %cst_301 = arith.constant -1.000000e+04 : f32
    %431 = vector.shape_cast %6 : vector<1x8xi1> to vector<1x8xi1>
    %432 = vector.broadcast %431 : vector<1x8xi1> to vector<8x8xi1>
    %433 = vector.broadcast %cst_301 : f32 to vector<8x8xf32>
    %434 = arith.select %432, %433, %430 : vector<8x8xi1>, vector<8x8xf32>
    %cst_302 = arith.constant dense<0xFF800000> : vector<8xf32>
    %435 = vector.multi_reduction <maximumf>, %434, %cst_302 [1] : vector<8x8xf32> to vector<8xf32>
    %436 = vector.shape_cast %435 : vector<8xf32> to vector<8x1xf32>
    %437 = vector.broadcast %436 : vector<8x1xf32> to vector<8x8xf32>
    %438 = arith.subf %434, %437 : vector<8x8xf32>
    %439 = math.exp %438 : vector<8x8xf32>
    %cst_303 = arith.constant dense<0.000000e+00> : vector<8xf32>
    %440 = vector.multi_reduction <add>, %439, %cst_303 [1] : vector<8x8xf32> to vector<8xf32>
    %441 = vector.shape_cast %440 : vector<8xf32> to vector<8x1xf32>
    %442 = tpu.reciprocal %441 {approx = true} : vector<8x1xf32> -> vector<8x1xf32>
    %443 = vector.broadcast %442 : vector<8x1xf32> to vector<8x8xf32>
    %444 = arith.mulf %439, %443 : vector<8x8xf32>
    %c1_304 = arith.constant 1 : index
    %c1_305 = arith.constant 1 : index
    %c0_306 = arith.constant 0 : index
    %c0_307 = arith.constant 0 : index
    %c0_308 = arith.constant 0 : index
    %445 = vector.load %arg19[%c1_304, %c1_305, %c0_306, %c0_307, %c0_308] : memref<2x2x4x8x8xf32, #tpu.memory_space<vmem>>, vector<1x1x1x8x8xf32>
    %446 = vector.shape_cast %445 : vector<1x1x1x8x8xf32> to vector<8x8xf32>
    %447 = vector.shape_cast %444 : vector<8x8xf32> to vector<1x1x1x8x8xf32>
    tpu.vector_store %arg19[%c1_304, %c1_305, %c0_306, %c0_307, %c0_308], %447 {strides = array<i32>} : memref<2x2x4x8x8xf32, #tpu.memory_space<vmem>>, vector<1x1x1x8x8xf32>,
    %cst_309 = arith.constant dense<0.000000e+00> : vector<8x8xf32>
    %448 = tpu.matmul %444, %428, %cst_309 {dimension_numbers = #tpu.dot_dimension_numbers<[1], [0], [0], [1], [0, 0, 1, 1], [], []>} : vector<8x8xf32>, vector<8x8xf32>, vector<8x8xf32> -> vector<8x8xf32>
    %cst_310 = arith.constant dense<0.000000e+00> : vector<8x32xf32>
    %449 = tpu.matmul %448, %400, %cst_310 {dimension_numbers = #tpu.dot_dimension_numbers<[1], [0], [0], [1], [0, 0, 1, 1], [], []>} : vector<8x8xf32>, vector<8x32xf32>, vector<8x32xf32> -> vector<8x32xf32>
    %450 = arith.addf %377, %449 : vector<8x32xf32>
    %c1_311 = arith.constant 1 : index
    %c1_312 = arith.constant 1 : index
    %c0_313 = arith.constant 0 : index
    %c0_314 = arith.constant 0 : index
    %451 = vector.load %arg2[%c1_311, %c1_312, %c0_313, %c0_314] : memref<2x4x32x8xf32, #tpu.memory_space<vmem>>, vector<1x1x32x8xf32>
    %452 = vector.shape_cast %451 : vector<1x1x32x8xf32> to vector<32x8xf32>
    %cst_315 = arith.constant dense<0.000000e+00> : vector<16x8xf32>
    %453 = tpu.matmul %375, %452, %cst_315 {dimension_numbers = #tpu.dot_dimension_numbers<[1], [0], [0], [1], [0, 0, 1, 1], [], []>} : vector<16x32xf32>, vector<32x8xf32>, vector<16x8xf32> -> vector<16x8xf32>
    %c1_316 = arith.constant 1 : index
    %c1_317 = arith.constant 1 : index
    %c0_318 = arith.constant 0 : index
    %c0_319 = arith.constant 0 : index
    %454 = vector.load %arg3[%c1_316, %c1_317, %c0_318, %c0_319] : memref<2x4x1x8xf32, #tpu.memory_space<vmem>>, vector<1x1x1x8xf32>
    %455 = vector.shape_cast %454 : vector<1x1x1x8xf32> to vector<1x8xf32>
    %456 = vector.broadcast %455 : vector<1x8xf32> to vector<16x8xf32>
    %457 = arith.addf %453, %456 : vector<16x8xf32>
    %c1_320 = arith.constant 1 : index
    %c1_321 = arith.constant 1 : index
    %c0_322 = arith.constant 0 : index
    %c0_323 = arith.constant 0 : index
    %458 = vector.load %arg4[%c1_320, %c1_321, %c0_322, %c0_323] : memref<2x4x32x8xf32, #tpu.memory_space<vmem>>, vector<1x1x32x8xf32>
    %459 = vector.shape_cast %458 : vector<1x1x32x8xf32> to vector<32x8xf32>
    %cst_324 = arith.constant dense<0.000000e+00> : vector<16x8xf32>
    %460 = tpu.matmul %375, %459, %cst_324 {dimension_numbers = #tpu.dot_dimension_numbers<[1], [0], [0], [1], [0, 0, 1, 1], [], []>} : vector<16x32xf32>, vector<32x8xf32>, vector<16x8xf32> -> vector<16x8xf32>
    %c1_325 = arith.constant 1 : index
    %c1_326 = arith.constant 1 : index
    %c0_327 = arith.constant 0 : index
    %c0_328 = arith.constant 0 : index
    %461 = vector.load %arg5[%c1_325, %c1_326, %c0_327, %c0_328] : memref<2x4x1x8xf32, #tpu.memory_space<vmem>>, vector<1x1x1x8xf32>
    %462 = vector.shape_cast %461 : vector<1x1x1x8xf32> to vector<1x8xf32>
    %463 = vector.broadcast %462 : vector<1x8xf32> to vector<16x8xf32>
    %464 = arith.addf %460, %463 : vector<16x8xf32>
    %c1_329 = arith.constant 1 : index
    %c1_330 = arith.constant 1 : index
    %c0_331 = arith.constant 0 : index
    %c0_332 = arith.constant 0 : index
    %465 = vector.load %arg6[%c1_329, %c1_330, %c0_331, %c0_332] : memref<2x4x32x8xf32, #tpu.memory_space<vmem>>, vector<1x1x32x8xf32>
    %466 = vector.shape_cast %465 : vector<1x1x32x8xf32> to vector<32x8xf32>
    %cst_333 = arith.constant dense<0.000000e+00> : vector<16x8xf32>
    %467 = tpu.matmul %375, %466, %cst_333 {dimension_numbers = #tpu.dot_dimension_numbers<[1], [0], [0], [1], [0, 0, 1, 1], [], []>} : vector<16x32xf32>, vector<32x8xf32>, vector<16x8xf32> -> vector<16x8xf32>
    %c1_334 = arith.constant 1 : index
    %c1_335 = arith.constant 1 : index
    %c0_336 = arith.constant 0 : index
    %c0_337 = arith.constant 0 : index
    %468 = vector.load %arg7[%c1_334, %c1_335, %c0_336, %c0_337] : memref<2x4x1x8xf32, #tpu.memory_space<vmem>>, vector<1x1x1x8xf32>
    %469 = vector.shape_cast %468 : vector<1x1x1x8xf32> to vector<1x8xf32>
    %470 = vector.broadcast %469 : vector<1x8xf32> to vector<16x8xf32>
    %471 = arith.addf %467, %470 : vector<16x8xf32>
    %c1_338 = arith.constant 1 : index
    %c1_339 = arith.constant 1 : index
    %c0_340 = arith.constant 0 : index
    %c0_341 = arith.constant 0 : index
    %472 = vector.load %arg8[%c1_338, %c1_339, %c0_340, %c0_341] : memref<2x4x8x32xf32, #tpu.memory_space<vmem>>, vector<1x1x8x32xf32>
    %473 = vector.shape_cast %472 : vector<1x1x8x32xf32> to vector<8x32xf32>
    %474 = vector.extract_strided_slice %457 {offsets = [0, 0], sizes = [8, 8], strides = [1, 1]} : vector<16x8xf32> to vector<8x8xf32>
    %475 = vector.extract_strided_slice %464 {offsets = [0, 0], sizes = [8, 8], strides = [1, 1]} : vector<16x8xf32> to vector<8x8xf32>
    %476 = vector.extract_strided_slice %471 {offsets = [0, 0], sizes = [8, 8], strides = [1, 1]} : vector<16x8xf32> to vector<8x8xf32>
    %477 = tpu.transpose %475, [1, 0] : vector<8x8xf32> -> vector<8x8xf32>
    %cst_342 = arith.constant dense<0.000000e+00> : vector<8x8xf32>
    %478 = tpu.matmul %474, %477, %cst_342 {dimension_numbers = #tpu.dot_dimension_numbers<[1], [0], [0], [1], [0, 0, 1, 1], [], []>} : vector<8x8xf32>, vector<8x8xf32>, vector<8x8xf32> -> vector<8x8xf32>
    %cst_343 = arith.constant -1.000000e+04 : f32
    %479 = vector.shape_cast %3 : vector<1x8xi1> to vector<1x8xi1>
    %480 = vector.broadcast %479 : vector<1x8xi1> to vector<8x8xi1>
    %481 = vector.broadcast %cst_343 : f32 to vector<8x8xf32>
    %482 = arith.select %480, %481, %478 : vector<8x8xi1>, vector<8x8xf32>
    %cst_344 = arith.constant dense<0xFF800000> : vector<8xf32>
    %483 = vector.multi_reduction <maximumf>, %482, %cst_344 [1] : vector<8x8xf32> to vector<8xf32>
    %484 = vector.shape_cast %483 : vector<8xf32> to vector<8x1xf32>
    %485 = vector.broadcast %484 : vector<8x1xf32> to vector<8x8xf32>
    %486 = arith.subf %482, %485 : vector<8x8xf32>
    %487 = math.exp %486 : vector<8x8xf32>
    %cst_345 = arith.constant dense<0.000000e+00> : vector<8xf32>
    %488 = vector.multi_reduction <add>, %487, %cst_345 [1] : vector<8x8xf32> to vector<8xf32>
    %489 = vector.shape_cast %488 : vector<8xf32> to vector<8x1xf32>
    %490 = tpu.reciprocal %489 {approx = true} : vector<8x1xf32> -> vector<8x1xf32>
    %491 = vector.broadcast %490 : vector<8x1xf32> to vector<8x8xf32>
    %492 = arith.mulf %487, %491 : vector<8x8xf32>
    %c1_346 = arith.constant 1 : index
    %c0_347 = arith.constant 0 : index
    %c1_348 = arith.constant 1 : index
    %c0_349 = arith.constant 0 : index
    %c0_350 = arith.constant 0 : index
    %493 = vector.load %arg19[%c1_346, %c0_347, %c1_348, %c0_349, %c0_350] : memref<2x2x4x8x8xf32, #tpu.memory_space<vmem>>, vector<1x1x1x8x8xf32>
    %494 = vector.shape_cast %493 : vector<1x1x1x8x8xf32> to vector<8x8xf32>
    %495 = vector.shape_cast %492 : vector<8x8xf32> to vector<1x1x1x8x8xf32>
    tpu.vector_store %arg19[%c1_346, %c0_347, %c1_348, %c0_349, %c0_350], %495 {strides = array<i32>} : memref<2x2x4x8x8xf32, #tpu.memory_space<vmem>>, vector<1x1x1x8x8xf32>,
    %cst_351 = arith.constant dense<0.000000e+00> : vector<8x8xf32>
    %496 = tpu.matmul %492, %476, %cst_351 {dimension_numbers = #tpu.dot_dimension_numbers<[1], [0], [0], [1], [0, 0, 1, 1], [], []>} : vector<8x8xf32>, vector<8x8xf32>, vector<8x8xf32> -> vector<8x8xf32>
    %cst_352 = arith.constant dense<0.000000e+00> : vector<8x32xf32>
    %497 = tpu.matmul %496, %473, %cst_352 {dimension_numbers = #tpu.dot_dimension_numbers<[1], [0], [0], [1], [0, 0, 1, 1], [], []>} : vector<8x8xf32>, vector<8x32xf32>, vector<8x32xf32> -> vector<8x32xf32>
    %498 = arith.addf %425, %497 : vector<8x32xf32>
    %499 = vector.extract_strided_slice %457 {offsets = [8, 0], sizes = [8, 8], strides = [1, 1]} : vector<16x8xf32> to vector<8x8xf32>
    %500 = vector.extract_strided_slice %464 {offsets = [8, 0], sizes = [8, 8], strides = [1, 1]} : vector<16x8xf32> to vector<8x8xf32>
    %501 = vector.extract_strided_slice %471 {offsets = [8, 0], sizes = [8, 8], strides = [1, 1]} : vector<16x8xf32> to vector<8x8xf32>
    %502 = tpu.transpose %500, [1, 0] : vector<8x8xf32> -> vector<8x8xf32>
    %cst_353 = arith.constant dense<0.000000e+00> : vector<8x8xf32>
    %503 = tpu.matmul %499, %502, %cst_353 {dimension_numbers = #tpu.dot_dimension_numbers<[1], [0], [0], [1], [0, 0, 1, 1], [], []>} : vector<8x8xf32>, vector<8x8xf32>, vector<8x8xf32> -> vector<8x8xf32>
    %cst_354 = arith.constant -1.000000e+04 : f32
    %504 = vector.shape_cast %6 : vector<1x8xi1> to vector<1x8xi1>
    %505 = vector.broadcast %504 : vector<1x8xi1> to vector<8x8xi1>
    %506 = vector.broadcast %cst_354 : f32 to vector<8x8xf32>
    %507 = arith.select %505, %506, %503 : vector<8x8xi1>, vector<8x8xf32>
    %cst_355 = arith.constant dense<0xFF800000> : vector<8xf32>
    %508 = vector.multi_reduction <maximumf>, %507, %cst_355 [1] : vector<8x8xf32> to vector<8xf32>
    %509 = vector.shape_cast %508 : vector<8xf32> to vector<8x1xf32>
    %510 = vector.broadcast %509 : vector<8x1xf32> to vector<8x8xf32>
    %511 = arith.subf %507, %510 : vector<8x8xf32>
    %512 = math.exp %511 : vector<8x8xf32>
    %cst_356 = arith.constant dense<0.000000e+00> : vector<8xf32>
    %513 = vector.multi_reduction <add>, %512, %cst_356 [1] : vector<8x8xf32> to vector<8xf32>
    %514 = vector.shape_cast %513 : vector<8xf32> to vector<8x1xf32>
    %515 = tpu.reciprocal %514 {approx = true} : vector<8x1xf32> -> vector<8x1xf32>
    %516 = vector.broadcast %515 : vector<8x1xf32> to vector<8x8xf32>
    %517 = arith.mulf %512, %516 : vector<8x8xf32>
    %c1_357 = arith.constant 1 : index
    %c1_358 = arith.constant 1 : index
    %c1_359 = arith.constant 1 : index
    %c0_360 = arith.constant 0 : index
    %c0_361 = arith.constant 0 : index
    %518 = vector.load %arg19[%c1_357, %c1_358, %c1_359, %c0_360, %c0_361] : memref<2x2x4x8x8xf32, #tpu.memory_space<vmem>>, vector<1x1x1x8x8xf32>
    %519 = vector.shape_cast %518 : vector<1x1x1x8x8xf32> to vector<8x8xf32>
    %520 = vector.shape_cast %517 : vector<8x8xf32> to vector<1x1x1x8x8xf32>
    tpu.vector_store %arg19[%c1_357, %c1_358, %c1_359, %c0_360, %c0_361], %520 {strides = array<i32>} : memref<2x2x4x8x8xf32, #tpu.memory_space<vmem>>, vector<1x1x1x8x8xf32>,
    %cst_362 = arith.constant dense<0.000000e+00> : vector<8x8xf32>
    %521 = tpu.matmul %517, %501, %cst_362 {dimension_numbers = #tpu.dot_dimension_numbers<[1], [0], [0], [1], [0, 0, 1, 1], [], []>} : vector<8x8xf32>, vector<8x8xf32>, vector<8x8xf32> -> vector<8x8xf32>
    %cst_363 = arith.constant dense<0.000000e+00> : vector<8x32xf32>
    %522 = tpu.matmul %521, %473, %cst_363 {dimension_numbers = #tpu.dot_dimension_numbers<[1], [0], [0], [1], [0, 0, 1, 1], [], []>} : vector<8x8xf32>, vector<8x32xf32>, vector<8x32xf32> -> vector<8x32xf32>
    %523 = arith.addf %450, %522 : vector<8x32xf32>
    %c1_364 = arith.constant 1 : index
    %c2_365 = arith.constant 2 : index
    %c0_366 = arith.constant 0 : index
    %c0_367 = arith.constant 0 : index
    %524 = vector.load %arg2[%c1_364, %c2_365, %c0_366, %c0_367] : memref<2x4x32x8xf32, #tpu.memory_space<vmem>>, vector<1x1x32x8xf32>
    %525 = vector.shape_cast %524 : vector<1x1x32x8xf32> to vector<32x8xf32>
    %cst_368 = arith.constant dense<0.000000e+00> : vector<16x8xf32>
    %526 = tpu.matmul %375, %525, %cst_368 {dimension_numbers = #tpu.dot_dimension_numbers<[1], [0], [0], [1], [0, 0, 1, 1], [], []>} : vector<16x32xf32>, vector<32x8xf32>, vector<16x8xf32> -> vector<16x8xf32>
    %c1_369 = arith.constant 1 : index
    %c2_370 = arith.constant 2 : index
    %c0_371 = arith.constant 0 : index
    %c0_372 = arith.constant 0 : index
    %527 = vector.load %arg3[%c1_369, %c2_370, %c0_371, %c0_372] : memref<2x4x1x8xf32, #tpu.memory_space<vmem>>, vector<1x1x1x8xf32>
    %528 = vector.shape_cast %527 : vector<1x1x1x8xf32> to vector<1x8xf32>
    %529 = vector.broadcast %528 : vector<1x8xf32> to vector<16x8xf32>
    %530 = arith.addf %526, %529 : vector<16x8xf32>
    %c1_373 = arith.constant 1 : index
    %c2_374 = arith.constant 2 : index
    %c0_375 = arith.constant 0 : index
    %c0_376 = arith.constant 0 : index
    %531 = vector.load %arg4[%c1_373, %c2_374, %c0_375, %c0_376] : memref<2x4x32x8xf32, #tpu.memory_space<vmem>>, vector<1x1x32x8xf32>
    %532 = vector.shape_cast %531 : vector<1x1x32x8xf32> to vector<32x8xf32>
    %cst_377 = arith.constant dense<0.000000e+00> : vector<16x8xf32>
    %533 = tpu.matmul %375, %532, %cst_377 {dimension_numbers = #tpu.dot_dimension_numbers<[1], [0], [0], [1], [0, 0, 1, 1], [], []>} : vector<16x32xf32>, vector<32x8xf32>, vector<16x8xf32> -> vector<16x8xf32>
    %c1_378 = arith.constant 1 : index
    %c2_379 = arith.constant 2 : index
    %c0_380 = arith.constant 0 : index
    %c0_381 = arith.constant 0 : index
    %534 = vector.load %arg5[%c1_378, %c2_379, %c0_380, %c0_381] : memref<2x4x1x8xf32, #tpu.memory_space<vmem>>, vector<1x1x1x8xf32>
    %535 = vector.shape_cast %534 : vector<1x1x1x8xf32> to vector<1x8xf32>
    %536 = vector.broadcast %535 : vector<1x8xf32> to vector<16x8xf32>
    %537 = arith.addf %533, %536 : vector<16x8xf32>
    %c1_382 = arith.constant 1 : index
    %c2_383 = arith.constant 2 : index
    %c0_384 = arith.constant 0 : index
    %c0_385 = arith.constant 0 : index
    %538 = vector.load %arg6[%c1_382, %c2_383, %c0_384, %c0_385] : memref<2x4x32x8xf32, #tpu.memory_space<vmem>>, vector<1x1x32x8xf32>
    %539 = vector.shape_cast %538 : vector<1x1x32x8xf32> to vector<32x8xf32>
    %cst_386 = arith.constant dense<0.000000e+00> : vector<16x8xf32>
    %540 = tpu.matmul %375, %539, %cst_386 {dimension_numbers = #tpu.dot_dimension_numbers<[1], [0], [0], [1], [0, 0, 1, 1], [], []>} : vector<16x32xf32>, vector<32x8xf32>, vector<16x8xf32> -> vector<16x8xf32>
    %c1_387 = arith.constant 1 : index
    %c2_388 = arith.constant 2 : index
    %c0_389 = arith.constant 0 : index
    %c0_390 = arith.constant 0 : index
    %541 = vector.load %arg7[%c1_387, %c2_388, %c0_389, %c0_390] : memref<2x4x1x8xf32, #tpu.memory_space<vmem>>, vector<1x1x1x8xf32>
    %542 = vector.shape_cast %541 : vector<1x1x1x8xf32> to vector<1x8xf32>
    %543 = vector.broadcast %542 : vector<1x8xf32> to vector<16x8xf32>
    %544 = arith.addf %540, %543 : vector<16x8xf32>
    %c1_391 = arith.constant 1 : index
    %c2_392 = arith.constant 2 : index
    %c0_393 = arith.constant 0 : index
    %c0_394 = arith.constant 0 : index
    %545 = vector.load %arg8[%c1_391, %c2_392, %c0_393, %c0_394] : memref<2x4x8x32xf32, #tpu.memory_space<vmem>>, vector<1x1x8x32xf32>
    %546 = vector.shape_cast %545 : vector<1x1x8x32xf32> to vector<8x32xf32>
    %547 = vector.extract_strided_slice %530 {offsets = [0, 0], sizes = [8, 8], strides = [1, 1]} : vector<16x8xf32> to vector<8x8xf32>
    %548 = vector.extract_strided_slice %537 {offsets = [0, 0], sizes = [8, 8], strides = [1, 1]} : vector<16x8xf32> to vector<8x8xf32>
    %549 = vector.extract_strided_slice %544 {offsets = [0, 0], sizes = [8, 8], strides = [1, 1]} : vector<16x8xf32> to vector<8x8xf32>
    %550 = tpu.transpose %548, [1, 0] : vector<8x8xf32> -> vector<8x8xf32>
    %cst_395 = arith.constant dense<0.000000e+00> : vector<8x8xf32>
    %551 = tpu.matmul %547, %550, %cst_395 {dimension_numbers = #tpu.dot_dimension_numbers<[1], [0], [0], [1], [0, 0, 1, 1], [], []>} : vector<8x8xf32>, vector<8x8xf32>, vector<8x8xf32> -> vector<8x8xf32>
    %cst_396 = arith.constant -1.000000e+04 : f32
    %552 = vector.shape_cast %3 : vector<1x8xi1> to vector<1x8xi1>
    %553 = vector.broadcast %552 : vector<1x8xi1> to vector<8x8xi1>
    %554 = vector.broadcast %cst_396 : f32 to vector<8x8xf32>
    %555 = arith.select %553, %554, %551 : vector<8x8xi1>, vector<8x8xf32>
    %cst_397 = arith.constant dense<0xFF800000> : vector<8xf32>
    %556 = vector.multi_reduction <maximumf>, %555, %cst_397 [1] : vector<8x8xf32> to vector<8xf32>
    %557 = vector.shape_cast %556 : vector<8xf32> to vector<8x1xf32>
    %558 = vector.broadcast %557 : vector<8x1xf32> to vector<8x8xf32>
    %559 = arith.subf %555, %558 : vector<8x8xf32>
    %560 = math.exp %559 : vector<8x8xf32>
    %cst_398 = arith.constant dense<0.000000e+00> : vector<8xf32>
    %561 = vector.multi_reduction <add>, %560, %cst_398 [1] : vector<8x8xf32> to vector<8xf32>
    %562 = vector.shape_cast %561 : vector<8xf32> to vector<8x1xf32>
    %563 = tpu.reciprocal %562 {approx = true} : vector<8x1xf32> -> vector<8x1xf32>
    %564 = vector.broadcast %563 : vector<8x1xf32> to vector<8x8xf32>
    %565 = arith.mulf %560, %564 : vector<8x8xf32>
    %c1_399 = arith.constant 1 : index
    %c0_400 = arith.constant 0 : index
    %c2_401 = arith.constant 2 : index
    %c0_402 = arith.constant 0 : index
    %c0_403 = arith.constant 0 : index
    %566 = vector.load %arg19[%c1_399, %c0_400, %c2_401, %c0_402, %c0_403] : memref<2x2x4x8x8xf32, #tpu.memory_space<vmem>>, vector<1x1x1x8x8xf32>
    %567 = vector.shape_cast %566 : vector<1x1x1x8x8xf32> to vector<8x8xf32>
    %568 = vector.shape_cast %565 : vector<8x8xf32> to vector<1x1x1x8x8xf32>
    tpu.vector_store %arg19[%c1_399, %c0_400, %c2_401, %c0_402, %c0_403], %568 {strides = array<i32>} : memref<2x2x4x8x8xf32, #tpu.memory_space<vmem>>, vector<1x1x1x8x8xf32>,
    %cst_404 = arith.constant dense<0.000000e+00> : vector<8x8xf32>
    %569 = tpu.matmul %565, %549, %cst_404 {dimension_numbers = #tpu.dot_dimension_numbers<[1], [0], [0], [1], [0, 0, 1, 1], [], []>} : vector<8x8xf32>, vector<8x8xf32>, vector<8x8xf32> -> vector<8x8xf32>
    %cst_405 = arith.constant dense<0.000000e+00> : vector<8x32xf32>
    %570 = tpu.matmul %569, %546, %cst_405 {dimension_numbers = #tpu.dot_dimension_numbers<[1], [0], [0], [1], [0, 0, 1, 1], [], []>} : vector<8x8xf32>, vector<8x32xf32>, vector<8x32xf32> -> vector<8x32xf32>
    %571 = arith.addf %498, %570 : vector<8x32xf32>
    %572 = vector.extract_strided_slice %530 {offsets = [8, 0], sizes = [8, 8], strides = [1, 1]} : vector<16x8xf32> to vector<8x8xf32>
    %573 = vector.extract_strided_slice %537 {offsets = [8, 0], sizes = [8, 8], strides = [1, 1]} : vector<16x8xf32> to vector<8x8xf32>
    %574 = vector.extract_strided_slice %544 {offsets = [8, 0], sizes = [8, 8], strides = [1, 1]} : vector<16x8xf32> to vector<8x8xf32>
    %575 = tpu.transpose %573, [1, 0] : vector<8x8xf32> -> vector<8x8xf32>
    %cst_406 = arith.constant dense<0.000000e+00> : vector<8x8xf32>
    %576 = tpu.matmul %572, %575, %cst_406 {dimension_numbers = #tpu.dot_dimension_numbers<[1], [0], [0], [1], [0, 0, 1, 1], [], []>} : vector<8x8xf32>, vector<8x8xf32>, vector<8x8xf32> -> vector<8x8xf32>
    %cst_407 = arith.constant -1.000000e+04 : f32
    %577 = vector.shape_cast %6 : vector<1x8xi1> to vector<1x8xi1>
    %578 = vector.broadcast %577 : vector<1x8xi1> to vector<8x8xi1>
    %579 = vector.broadcast %cst_407 : f32 to vector<8x8xf32>
    %580 = arith.select %578, %579, %576 : vector<8x8xi1>, vector<8x8xf32>
    %cst_408 = arith.constant dense<0xFF800000> : vector<8xf32>
    %581 = vector.multi_reduction <maximumf>, %580, %cst_408 [1] : vector<8x8xf32> to vector<8xf32>
    %582 = vector.shape_cast %581 : vector<8xf32> to vector<8x1xf32>
    %583 = vector.broadcast %582 : vector<8x1xf32> to vector<8x8xf32>
    %584 = arith.subf %580, %583 : vector<8x8xf32>
    %585 = math.exp %584 : vector<8x8xf32>
    %cst_409 = arith.constant dense<0.000000e+00> : vector<8xf32>
    %586 = vector.multi_reduction <add>, %585, %cst_409 [1] : vector<8x8xf32> to vector<8xf32>
    %587 = vector.shape_cast %586 : vector<8xf32> to vector<8x1xf32>
    %588 = tpu.reciprocal %587 {approx = true} : vector<8x1xf32> -> vector<8x1xf32>
    %589 = vector.broadcast %588 : vector<8x1xf32> to vector<8x8xf32>
    %590 = arith.mulf %585, %589 : vector<8x8xf32>
    %c1_410 = arith.constant 1 : index
    %c1_411 = arith.constant 1 : index
    %c2_412 = arith.constant 2 : index
    %c0_413 = arith.constant 0 : index
    %c0_414 = arith.constant 0 : index
    %591 = vector.load %arg19[%c1_410, %c1_411, %c2_412, %c0_413, %c0_414] : memref<2x2x4x8x8xf32, #tpu.memory_space<vmem>>, vector<1x1x1x8x8xf32>
    %592 = vector.shape_cast %591 : vector<1x1x1x8x8xf32> to vector<8x8xf32>
    %593 = vector.shape_cast %590 : vector<8x8xf32> to vector<1x1x1x8x8xf32>
    tpu.vector_store %arg19[%c1_410, %c1_411, %c2_412, %c0_413, %c0_414], %593 {strides = array<i32>} : memref<2x2x4x8x8xf32, #tpu.memory_space<vmem>>, vector<1x1x1x8x8xf32>,
    %cst_415 = arith.constant dense<0.000000e+00> : vector<8x8xf32>
    %594 = tpu.matmul %590, %574, %cst_415 {dimension_numbers = #tpu.dot_dimension_numbers<[1], [0], [0], [1], [0, 0, 1, 1], [], []>} : vector<8x8xf32>, vector<8x8xf32>, vector<8x8xf32> -> vector<8x8xf32>
    %cst_416 = arith.constant dense<0.000000e+00> : vector<8x32xf32>
    %595 = tpu.matmul %594, %546, %cst_416 {dimension_numbers = #tpu.dot_dimension_numbers<[1], [0], [0], [1], [0, 0, 1, 1], [], []>} : vector<8x8xf32>, vector<8x32xf32>, vector<8x32xf32> -> vector<8x32xf32>
    %596 = arith.addf %523, %595 : vector<8x32xf32>
    %c1_417 = arith.constant 1 : index
    %c3_418 = arith.constant 3 : index
    %c0_419 = arith.constant 0 : index
    %c0_420 = arith.constant 0 : index
    %597 = vector.load %arg2[%c1_417, %c3_418, %c0_419, %c0_420] : memref<2x4x32x8xf32, #tpu.memory_space<vmem>>, vector<1x1x32x8xf32>
    %598 = vector.shape_cast %597 : vector<1x1x32x8xf32> to vector<32x8xf32>
    %cst_421 = arith.constant dense<0.000000e+00> : vector<16x8xf32>
    %599 = tpu.matmul %375, %598, %cst_421 {dimension_numbers = #tpu.dot_dimension_numbers<[1], [0], [0], [1], [0, 0, 1, 1], [], []>} : vector<16x32xf32>, vector<32x8xf32>, vector<16x8xf32> -> vector<16x8xf32>
    %c1_422 = arith.constant 1 : index
    %c3_423 = arith.constant 3 : index
    %c0_424 = arith.constant 0 : index
    %c0_425 = arith.constant 0 : index
    %600 = vector.load %arg3[%c1_422, %c3_423, %c0_424, %c0_425] : memref<2x4x1x8xf32, #tpu.memory_space<vmem>>, vector<1x1x1x8xf32>
    %601 = vector.shape_cast %600 : vector<1x1x1x8xf32> to vector<1x8xf32>
    %602 = vector.broadcast %601 : vector<1x8xf32> to vector<16x8xf32>
    %603 = arith.addf %599, %602 : vector<16x8xf32>
    %c1_426 = arith.constant 1 : index
    %c3_427 = arith.constant 3 : index
    %c0_428 = arith.constant 0 : index
    %c0_429 = arith.constant 0 : index
    %604 = vector.load %arg4[%c1_426, %c3_427, %c0_428, %c0_429] : memref<2x4x32x8xf32, #tpu.memory_space<vmem>>, vector<1x1x32x8xf32>
    %605 = vector.shape_cast %604 : vector<1x1x32x8xf32> to vector<32x8xf32>
    %cst_430 = arith.constant dense<0.000000e+00> : vector<16x8xf32>
    %606 = tpu.matmul %375, %605, %cst_430 {dimension_numbers = #tpu.dot_dimension_numbers<[1], [0], [0], [1], [0, 0, 1, 1], [], []>} : vector<16x32xf32>, vector<32x8xf32>, vector<16x8xf32> -> vector<16x8xf32>
    %c1_431 = arith.constant 1 : index
    %c3_432 = arith.constant 3 : index
    %c0_433 = arith.constant 0 : index
    %c0_434 = arith.constant 0 : index
    %607 = vector.load %arg5[%c1_431, %c3_432, %c0_433, %c0_434] : memref<2x4x1x8xf32, #tpu.memory_space<vmem>>, vector<1x1x1x8xf32>
    %608 = vector.shape_cast %607 : vector<1x1x1x8xf32> to vector<1x8xf32>
    %609 = vector.broadcast %608 : vector<1x8xf32> to vector<16x8xf32>
    %610 = arith.addf %606, %609 : vector<16x8xf32>
    %c1_435 = arith.constant 1 : index
    %c3_436 = arith.constant 3 : index
    %c0_437 = arith.constant 0 : index
    %c0_438 = arith.constant 0 : index
    %611 = vector.load %arg6[%c1_435, %c3_436, %c0_437, %c0_438] : memref<2x4x32x8xf32, #tpu.memory_space<vmem>>, vector<1x1x32x8xf32>
    %612 = vector.shape_cast %611 : vector<1x1x32x8xf32> to vector<32x8xf32>
    %cst_439 = arith.constant dense<0.000000e+00> : vector<16x8xf32>
    %613 = tpu.matmul %375, %612, %cst_439 {dimension_numbers = #tpu.dot_dimension_numbers<[1], [0], [0], [1], [0, 0, 1, 1], [], []>} : vector<16x32xf32>, vector<32x8xf32>, vector<16x8xf32> -> vector<16x8xf32>
    %c1_440 = arith.constant 1 : index
    %c3_441 = arith.constant 3 : index
    %c0_442 = arith.constant 0 : index
    %c0_443 = arith.constant 0 : index
    %614 = vector.load %arg7[%c1_440, %c3_441, %c0_442, %c0_443] : memref<2x4x1x8xf32, #tpu.memory_space<vmem>>, vector<1x1x1x8xf32>
    %615 = vector.shape_cast %614 : vector<1x1x1x8xf32> to vector<1x8xf32>
    %616 = vector.broadcast %615 : vector<1x8xf32> to vector<16x8xf32>
    %617 = arith.addf %613, %616 : vector<16x8xf32>
    %c1_444 = arith.constant 1 : index
    %c3_445 = arith.constant 3 : index
    %c0_446 = arith.constant 0 : index
    %c0_447 = arith.constant 0 : index
    %618 = vector.load %arg8[%c1_444, %c3_445, %c0_446, %c0_447] : memref<2x4x8x32xf32, #tpu.memory_space<vmem>>, vector<1x1x8x32xf32>
    %619 = vector.shape_cast %618 : vector<1x1x8x32xf32> to vector<8x32xf32>
    %620 = vector.extract_strided_slice %603 {offsets = [0, 0], sizes = [8, 8], strides = [1, 1]} : vector<16x8xf32> to vector<8x8xf32>
    %621 = vector.extract_strided_slice %610 {offsets = [0, 0], sizes = [8, 8], strides = [1, 1]} : vector<16x8xf32> to vector<8x8xf32>
    %622 = vector.extract_strided_slice %617 {offsets = [0, 0], sizes = [8, 8], strides = [1, 1]} : vector<16x8xf32> to vector<8x8xf32>
    %623 = tpu.transpose %621, [1, 0] : vector<8x8xf32> -> vector<8x8xf32>
    %cst_448 = arith.constant dense<0.000000e+00> : vector<8x8xf32>
    %624 = tpu.matmul %620, %623, %cst_448 {dimension_numbers = #tpu.dot_dimension_numbers<[1], [0], [0], [1], [0, 0, 1, 1], [], []>} : vector<8x8xf32>, vector<8x8xf32>, vector<8x8xf32> -> vector<8x8xf32>
    %cst_449 = arith.constant -1.000000e+04 : f32
    %625 = vector.shape_cast %3 : vector<1x8xi1> to vector<1x8xi1>
    %626 = vector.broadcast %625 : vector<1x8xi1> to vector<8x8xi1>
    %627 = vector.broadcast %cst_449 : f32 to vector<8x8xf32>
    %628 = arith.select %626, %627, %624 : vector<8x8xi1>, vector<8x8xf32>
    %cst_450 = arith.constant dense<0xFF800000> : vector<8xf32>
    %629 = vector.multi_reduction <maximumf>, %628, %cst_450 [1] : vector<8x8xf32> to vector<8xf32>
    %630 = vector.shape_cast %629 : vector<8xf32> to vector<8x1xf32>
    %631 = vector.broadcast %630 : vector<8x1xf32> to vector<8x8xf32>
    %632 = arith.subf %628, %631 : vector<8x8xf32>
    %633 = math.exp %632 : vector<8x8xf32>
    %cst_451 = arith.constant dense<0.000000e+00> : vector<8xf32>
    %634 = vector.multi_reduction <add>, %633, %cst_451 [1] : vector<8x8xf32> to vector<8xf32>
    %635 = vector.shape_cast %634 : vector<8xf32> to vector<8x1xf32>
    %636 = tpu.reciprocal %635 {approx = true} : vector<8x1xf32> -> vector<8x1xf32>
    %637 = vector.broadcast %636 : vector<8x1xf32> to vector<8x8xf32>
    %638 = arith.mulf %633, %637 : vector<8x8xf32>
    %c1_452 = arith.constant 1 : index
    %c0_453 = arith.constant 0 : index
    %c3_454 = arith.constant 3 : index
    %c0_455 = arith.constant 0 : index
    %c0_456 = arith.constant 0 : index
    %639 = vector.load %arg19[%c1_452, %c0_453, %c3_454, %c0_455, %c0_456] : memref<2x2x4x8x8xf32, #tpu.memory_space<vmem>>, vector<1x1x1x8x8xf32>
    %640 = vector.shape_cast %639 : vector<1x1x1x8x8xf32> to vector<8x8xf32>
    %641 = vector.shape_cast %638 : vector<8x8xf32> to vector<1x1x1x8x8xf32>
    tpu.vector_store %arg19[%c1_452, %c0_453, %c3_454, %c0_455, %c0_456], %641 {strides = array<i32>} : memref<2x2x4x8x8xf32, #tpu.memory_space<vmem>>, vector<1x1x1x8x8xf32>,
    %cst_457 = arith.constant dense<0.000000e+00> : vector<8x8xf32>
    %642 = tpu.matmul %638, %622, %cst_457 {dimension_numbers = #tpu.dot_dimension_numbers<[1], [0], [0], [1], [0, 0, 1, 1], [], []>} : vector<8x8xf32>, vector<8x8xf32>, vector<8x8xf32> -> vector<8x8xf32>
    %cst_458 = arith.constant dense<0.000000e+00> : vector<8x32xf32>
    %643 = tpu.matmul %642, %619, %cst_458 {dimension_numbers = #tpu.dot_dimension_numbers<[1], [0], [0], [1], [0, 0, 1, 1], [], []>} : vector<8x8xf32>, vector<8x32xf32>, vector<8x32xf32> -> vector<8x32xf32>
    %644 = arith.addf %571, %643 : vector<8x32xf32>
    %645 = vector.extract_strided_slice %603 {offsets = [8, 0], sizes = [8, 8], strides = [1, 1]} : vector<16x8xf32> to vector<8x8xf32>
    %646 = vector.extract_strided_slice %610 {offsets = [8, 0], sizes = [8, 8], strides = [1, 1]} : vector<16x8xf32> to vector<8x8xf32>
    %647 = vector.extract_strided_slice %617 {offsets = [8, 0], sizes = [8, 8], strides = [1, 1]} : vector<16x8xf32> to vector<8x8xf32>
    %648 = tpu.transpose %646, [1, 0] : vector<8x8xf32> -> vector<8x8xf32>
    %cst_459 = arith.constant dense<0.000000e+00> : vector<8x8xf32>
    %649 = tpu.matmul %645, %648, %cst_459 {dimension_numbers = #tpu.dot_dimension_numbers<[1], [0], [0], [1], [0, 0, 1, 1], [], []>} : vector<8x8xf32>, vector<8x8xf32>, vector<8x8xf32> -> vector<8x8xf32>
    %cst_460 = arith.constant -1.000000e+04 : f32
    %650 = vector.shape_cast %6 : vector<1x8xi1> to vector<1x8xi1>
    %651 = vector.broadcast %650 : vector<1x8xi1> to vector<8x8xi1>
    %652 = vector.broadcast %cst_460 : f32 to vector<8x8xf32>
    %653 = arith.select %651, %652, %649 : vector<8x8xi1>, vector<8x8xf32>
    %cst_461 = arith.constant dense<0xFF800000> : vector<8xf32>
    %654 = vector.multi_reduction <maximumf>, %653, %cst_461 [1] : vector<8x8xf32> to vector<8xf32>
    %655 = vector.shape_cast %654 : vector<8xf32> to vector<8x1xf32>
    %656 = vector.broadcast %655 : vector<8x1xf32> to vector<8x8xf32>
    %657 = arith.subf %653, %656 : vector<8x8xf32>
    %658 = math.exp %657 : vector<8x8xf32>
    %cst_462 = arith.constant dense<0.000000e+00> : vector<8xf32>
    %659 = vector.multi_reduction <add>, %658, %cst_462 [1] : vector<8x8xf32> to vector<8xf32>
    %660 = vector.shape_cast %659 : vector<8xf32> to vector<8x1xf32>
    %661 = tpu.reciprocal %660 {approx = true} : vector<8x1xf32> -> vector<8x1xf32>
    %662 = vector.broadcast %661 : vector<8x1xf32> to vector<8x8xf32>
    %663 = arith.mulf %658, %662 : vector<8x8xf32>
    %c1_463 = arith.constant 1 : index
    %c1_464 = arith.constant 1 : index
    %c3_465 = arith.constant 3 : index
    %c0_466 = arith.constant 0 : index
    %c0_467 = arith.constant 0 : index
    %664 = vector.load %arg19[%c1_463, %c1_464, %c3_465, %c0_466, %c0_467] : memref<2x2x4x8x8xf32, #tpu.memory_space<vmem>>, vector<1x1x1x8x8xf32>
    %665 = vector.shape_cast %664 : vector<1x1x1x8x8xf32> to vector<8x8xf32>
    %666 = vector.shape_cast %663 : vector<8x8xf32> to vector<1x1x1x8x8xf32>
    tpu.vector_store %arg19[%c1_463, %c1_464, %c3_465, %c0_466, %c0_467], %666 {strides = array<i32>} : memref<2x2x4x8x8xf32, #tpu.memory_space<vmem>>, vector<1x1x1x8x8xf32>,
    %cst_468 = arith.constant dense<0.000000e+00> : vector<8x8xf32>
    %667 = tpu.matmul %663, %647, %cst_468 {dimension_numbers = #tpu.dot_dimension_numbers<[1], [0], [0], [1], [0, 0, 1, 1], [], []>} : vector<8x8xf32>, vector<8x8xf32>, vector<8x8xf32> -> vector<8x8xf32>
    %cst_469 = arith.constant dense<0.000000e+00> : vector<8x32xf32>
    %668 = tpu.matmul %667, %619, %cst_469 {dimension_numbers = #tpu.dot_dimension_numbers<[1], [0], [0], [1], [0, 0, 1, 1], [], []>} : vector<8x8xf32>, vector<8x32xf32>, vector<8x32xf32> -> vector<8x32xf32>
    %669 = arith.addf %596, %668 : vector<8x32xf32>
    %670 = tpu.concatenate %644, %669 in 0 : vector<8x32xf32>, vector<8x32xf32> -> vector<16x32xf32>
    %c1_470 = arith.constant 1 : index
    %c0_471 = arith.constant 0 : index
    %c0_472 = arith.constant 0 : index
    %671 = vector.load %arg9[%c1_470, %c0_471, %c0_472] : memref<2x1x32xf32, #tpu.memory_space<vmem>>, vector<1x1x32xf32>
    %672 = vector.shape_cast %671 : vector<1x1x32xf32> to vector<1x32xf32>
    %673 = vector.broadcast %672 : vector<1x32xf32> to vector<16x32xf32>
    %674 = arith.addf %670, %673 : vector<16x32xf32>
    %675 = arith.addf %375, %674 : vector<16x32xf32>
    %c1_473 = arith.constant 1 : index
    %c0_474 = arith.constant 0 : index
    %c0_475 = arith.constant 0 : index
    %676 = vector.load %arg10[%c1_473, %c0_474, %c0_475] : memref<2x1x32xf32, #tpu.memory_space<vmem>>, vector<1x1x32xf32>
    %677 = vector.shape_cast %676 : vector<1x1x32xf32> to vector<1x32xf32>
    %c1_476 = arith.constant 1 : index
    %c0_477 = arith.constant 0 : index
    %c0_478 = arith.constant 0 : index
    %678 = vector.load %arg11[%c1_476, %c0_477, %c0_478] : memref<2x1x32xf32, #tpu.memory_space<vmem>>, vector<1x1x32xf32>
    %679 = vector.shape_cast %678 : vector<1x1x32xf32> to vector<1x32xf32>
    %cst_479 = arith.constant dense<0.000000e+00> : vector<16xf32>
    %680 = vector.multi_reduction <add>, %675, %cst_479 [1] : vector<16x32xf32> to vector<16xf32>
    %681 = vector.shape_cast %680 : vector<16xf32> to vector<16x1xf32>
    %cst_480 = arith.constant 3.200000e+01 : f32
    %682 = vector.broadcast %cst_480 : f32 to vector<16x1xf32>
    %683 = arith.divf %681, %682 : vector<16x1xf32>
    %684 = vector.broadcast %683 : vector<16x1xf32> to vector<16x32xf32>
    %685 = arith.subf %675, %684 : vector<16x32xf32>
    %686 = arith.mulf %685, %685 : vector<16x32xf32>
    %cst_481 = arith.constant dense<0.000000e+00> : vector<16xf32>
    %687 = vector.multi_reduction <add>, %686, %cst_481 [1] : vector<16x32xf32> to vector<16xf32>
    %688 = vector.shape_cast %687 : vector<16xf32> to vector<16x1xf32>
    %cst_482 = arith.constant 3.200000e+01 : f32
    %689 = vector.broadcast %cst_482 : f32 to vector<16x1xf32>
    %690 = arith.divf %688, %689 : vector<16x1xf32>
    %691 = vector.broadcast %683 : vector<16x1xf32> to vector<16x32xf32>
    %692 = arith.subf %675, %691 : vector<16x32xf32>
    %cst_483 = arith.constant 9.99999974E-6 : f32
    %693 = vector.broadcast %cst_483 : f32 to vector<16x1xf32>
    %694 = arith.addf %690, %693 : vector<16x1xf32>
    %695 = math.rsqrt %694 : vector<16x1xf32>
    %696 = vector.broadcast %695 : vector<16x1xf32> to vector<16x32xf32>
    %697 = arith.mulf %692, %696 : vector<16x32xf32>
    %698 = vector.broadcast %677 : vector<1x32xf32> to vector<16x32xf32>
    %699 = arith.mulf %697, %698 : vector<16x32xf32>
    %700 = vector.broadcast %679 : vector<1x32xf32> to vector<16x32xf32>
    %701 = arith.addf %699, %700 : vector<16x32xf32>
    %c1_484 = arith.constant 1 : index
    %c0_485 = arith.constant 0 : index
    %c0_486 = arith.constant 0 : index
    %702 = vector.load %arg12[%c1_484, %c0_485, %c0_486] : memref<2x32x64xf32, #tpu.memory_space<vmem>>, vector<1x32x64xf32>
    %703 = vector.shape_cast %702 : vector<1x32x64xf32> to vector<32x64xf32>
    %cst_487 = arith.constant dense<0.000000e+00> : vector<16x64xf32>
    %704 = tpu.matmul %701, %703, %cst_487 {dimension_numbers = #tpu.dot_dimension_numbers<[1], [0], [0], [1], [0, 0, 1, 1], [], []>} : vector<16x32xf32>, vector<32x64xf32>, vector<16x64xf32> -> vector<16x64xf32>
    %c1_488 = arith.constant 1 : index
    %c0_489 = arith.constant 0 : index
    %c0_490 = arith.constant 0 : index
    %705 = vector.load %arg13[%c1_488, %c0_489, %c0_490] : memref<2x1x64xf32, #tpu.memory_space<vmem>>, vector<1x1x64xf32>
    %706 = vector.shape_cast %705 : vector<1x1x64xf32> to vector<1x64xf32>
    %707 = vector.broadcast %706 : vector<1x64xf32> to vector<16x64xf32>
    %708 = arith.addf %704, %707 : vector<16x64xf32>
    %cst_491 = arith.constant 0.000000e+00 : f32
    %709 = vector.broadcast %cst_491 : f32 to vector<16x64xf32>
    %710 = arith.maximumf %708, %709 : vector<16x64xf32>
    %c1_492 = arith.constant 1 : index
    %c0_493 = arith.constant 0 : index
    %c0_494 = arith.constant 0 : index
    %711 = vector.load %arg14[%c1_492, %c0_493, %c0_494] : memref<2x64x32xf32, #tpu.memory_space<vmem>>, vector<1x64x32xf32>
    %712 = vector.shape_cast %711 : vector<1x64x32xf32> to vector<64x32xf32>
    %cst_495 = arith.constant dense<0.000000e+00> : vector<16x32xf32>
    %713 = tpu.matmul %710, %712, %cst_495 {dimension_numbers = #tpu.dot_dimension_numbers<[1], [0], [0], [1], [0, 0, 1, 1], [], []>} : vector<16x64xf32>, vector<64x32xf32>, vector<16x32xf32> -> vector<16x32xf32>
    %c1_496 = arith.constant 1 : index
    %c0_497 = arith.constant 0 : index
    %c0_498 = arith.constant 0 : index
    %714 = vector.load %arg15[%c1_496, %c0_497, %c0_498] : memref<2x1x32xf32, #tpu.memory_space<vmem>>, vector<1x1x32xf32>
    %715 = vector.shape_cast %714 : vector<1x1x32xf32> to vector<1x32xf32>
    %716 = vector.broadcast %715 : vector<1x32xf32> to vector<16x32xf32>
    %717 = arith.addf %713, %716 : vector<16x32xf32>
    %718 = arith.addf %701, %717 : vector<16x32xf32>
    %c1_499 = arith.constant 1 : index
    %c0_500 = arith.constant 0 : index
    %c0_501 = arith.constant 0 : index
    %719 = vector.load %arg16[%c1_499, %c0_500, %c0_501] : memref<2x1x32xf32, #tpu.memory_space<vmem>>, vector<1x1x32xf32>
    %720 = vector.shape_cast %719 : vector<1x1x32xf32> to vector<1x32xf32>
    %c1_502 = arith.constant 1 : index
    %c0_503 = arith.constant 0 : index
    %c0_504 = arith.constant 0 : index
    %721 = vector.load %arg17[%c1_502, %c0_503, %c0_504] : memref<2x1x32xf32, #tpu.memory_space<vmem>>, vector<1x1x32xf32>
    %722 = vector.shape_cast %721 : vector<1x1x32xf32> to vector<1x32xf32>
    %cst_505 = arith.constant dense<0.000000e+00> : vector<16xf32>
    %723 = vector.multi_reduction <add>, %718, %cst_505 [1] : vector<16x32xf32> to vector<16xf32>
    %724 = vector.shape_cast %723 : vector<16xf32> to vector<16x1xf32>
    %cst_506 = arith.constant 3.200000e+01 : f32
    %725 = vector.broadcast %cst_506 : f32 to vector<16x1xf32>
    %726 = arith.divf %724, %725 : vector<16x1xf32>
    %727 = vector.broadcast %726 : vector<16x1xf32> to vector<16x32xf32>
    %728 = arith.subf %718, %727 : vector<16x32xf32>
    %729 = arith.mulf %728, %728 : vector<16x32xf32>
    %cst_507 = arith.constant dense<0.000000e+00> : vector<16xf32>
    %730 = vector.multi_reduction <add>, %729, %cst_507 [1] : vector<16x32xf32> to vector<16xf32>
    %731 = vector.shape_cast %730 : vector<16xf32> to vector<16x1xf32>
    %cst_508 = arith.constant 3.200000e+01 : f32
    %732 = vector.broadcast %cst_508 : f32 to vector<16x1xf32>
    %733 = arith.divf %731, %732 : vector<16x1xf32>
    %734 = vector.broadcast %726 : vector<16x1xf32> to vector<16x32xf32>
    %735 = arith.subf %718, %734 : vector<16x32xf32>
    %cst_509 = arith.constant 9.99999974E-6 : f32
    %736 = vector.broadcast %cst_509 : f32 to vector<16x1xf32>
    %737 = arith.addf %733, %736 : vector<16x1xf32>
    %738 = math.rsqrt %737 : vector<16x1xf32>
    %739 = vector.broadcast %738 : vector<16x1xf32> to vector<16x32xf32>
    %740 = arith.mulf %735, %739 : vector<16x32xf32>
    %741 = vector.broadcast %720 : vector<1x32xf32> to vector<16x32xf32>
    %742 = arith.mulf %740, %741 : vector<16x32xf32>
    %743 = vector.broadcast %722 : vector<1x32xf32> to vector<16x32xf32>
    %744 = arith.addf %742, %743 : vector<16x32xf32>
    %c0_510 = arith.constant 0 : index
    %c0_511 = arith.constant 0 : index
    %745 = vector.load %arg18[%c0_510, %c0_511] : memref<16x32xf32, #tpu.memory_space<vmem>>, vector<16x32xf32>
    tpu.vector_store %arg18[%c0_510, %c0_511], %744 {strides = array<i32>} : memref<16x32xf32, #tpu.memory_space<vmem>>, vector<16x32xf32>,
    return
  }
}

</mosaic_0001>

<llo_original>
// kernel: tpu_custom_call.1
$region0: #{tpu_custom_call.1}
  #allocation0 [shape = 'u32[]', space=smem, size = 0x4, offset = 0x4, fixed_abs, tag = 'smem constant byte address 0x4 - core index']
  #allocation1 [shape = 'u32[144,128]{1,0:T(1,128)}', space=vmem, size = 0x12000, scoped, tag = 'internal scratch']
  %s0 = inlined_call_operand.vmem [shape: f32[16,32], index: 0, kind: input, shape index: {}]
  %s1 = inlined_call_operand.vmem [shape: s32[2,8], index: 1, kind: input, shape index: {}]
  %s2 = inlined_call_operand.vmem [shape: f32[2,4,32,8], index: 2, kind: input, shape index: {}]
  %s3 = inlined_call_operand.vmem [shape: f32[2,4,1,8], index: 3, kind: input, shape index: {}]
  %s4 = inlined_call_operand.vmem [shape: f32[2,4,32,8], index: 4, kind: input, shape index: {}]
  %s5 = inlined_call_operand.vmem [shape: f32[2,4,1,8], index: 5, kind: input, shape index: {}]
  %s6 = inlined_call_operand.vmem [shape: f32[2,4,32,8], index: 6, kind: input, shape index: {}]
  %s7 = inlined_call_operand.vmem [shape: f32[2,4,1,8], index: 7, kind: input, shape index: {}]
  %s8 = inlined_call_operand.vmem [shape: f32[2,4,8,32], index: 8, kind: input, shape index: {}]
  %s9 = inlined_call_operand.vmem [shape: f32[2,1,32], index: 9, kind: input, shape index: {}]
  %s10 = inlined_call_operand.vmem [shape: f32[2,1,32], index: 10, kind: input, shape index: {}]
  %s11 = inlined_call_operand.vmem [shape: f32[2,1,32], index: 11, kind: input, shape index: {}]
  %s12 = inlined_call_operand.vmem [shape: f32[2,32,64], index: 12, kind: input, shape index: {}]
  %s13 = inlined_call_operand.vmem [shape: f32[2,1,64], index: 13, kind: input, shape index: {}]
  %s14 = inlined_call_operand.vmem [shape: f32[2,64,32], index: 14, kind: input, shape index: {}]
  %s15 = inlined_call_operand.vmem [shape: f32[2,1,32], index: 15, kind: input, shape index: {}]
  %s16 = inlined_call_operand.vmem [shape: f32[2,1,32], index: 16, kind: input, shape index: {}]
  %s17 = inlined_call_operand.vmem [shape: f32[2,1,32], index: 17, kind: input, shape index: {}]
  %s18 = inlined_call_operand.hbm [shape: f32[16,32], index: 18, kind: output, shape index: {0}]
  %s19 = inlined_call_operand.hbm [shape: f32[2,2,4,8,8], index: 19, kind: output, shape index: {1}]
  %20 = xla_tuple %s18, %s19
  %s21 = sld [smem:[#allocation0]]
  $region90: #{tpu_custom_call.1} parent=0
    _
  %s23 = ssub.s32 1, %s21
  %s24 = scalar_select 0, %s23, %s21
  $region1: #{tpu_custom_call.1} parent=0
    #allocation2 [shape = 'u8[8192]{0}', space=vmem, size = 0x2000, scoped, tag = 'output window, operand 0, single buffered']
    #allocation3 [shape = 's32[1]{0}', space=sflag, size = 0x4, scoped, tag = 'scoped memory for tpu_custom_call.1']
    #allocation4 [shape = 'u8[65536]{0}', space=vmem, size = 0x10000, scoped, tag = 'output window, operand 1, single buffered']
    #allocation5 [shape = 's32[1]{0}', space=sflag, size = 0x4, scoped, tag = 'scoped memory for tpu_custom_call.1']
    %25 = vsyncpa [#allocation3], 0
    %26 = vsyncpa [#allocation5], 0
    // Predicated region
    $region2: #{tpu_custom_call.1} parent=1 // pred_check
      _
    $region3: #{tpu_custom_call.1} parent=1 // pred_check_branch
      %28 = sbr.rel (0) target = $region5
    $region4: #{tpu_custom_call.1} parent=1 // pred_region
      _
    $region5: #{tpu_custom_call.1} parent=1 // pred_fallthru
      _
    // Predicated region
    $region6: #{tpu_custom_call.1} parent=1 // pred_check
      _
    $region7: #{tpu_custom_call.1} parent=1 // pred_check_branch
      %30 = sbr.rel (0) target = $region9
    $region8: #{tpu_custom_call.1} parent=1 // pred_region
      _
    $region9: #{tpu_custom_call.1} parent=1 // pred_fallthru
      _
    // Predicated region
    $region10: #{tpu_custom_call.1} parent=1 // pred_check
      _
    $region11: #{tpu_custom_call.1} parent=1 // pred_check_branch
      %32 = sbr.rel (0) target = $region13
    $region12: #{tpu_custom_call.1} parent=1 // pred_region
      _
    $region13: #{tpu_custom_call.1} parent=1 // pred_fallthru
      _
    // Predicated region
    $region14: #{tpu_custom_call.1} parent=1 // pred_check
      _
    $region15: #{tpu_custom_call.1} parent=1 // pred_check_branch
      %34 = sbr.rel (0) target = $region17
    $region16: #{tpu_custom_call.1} parent=1 // pred_region
      _
    $region17: #{tpu_custom_call.1} parent=1 // pred_fallthru
      _
    // Predicated region
    $region18: #{tpu_custom_call.1} parent=1 // pred_check
      _
    $region19: #{tpu_custom_call.1} parent=1 // pred_check_branch
      %36 = sbr.rel (0) target = $region21
    $region20: #{tpu_custom_call.1} parent=1 // pred_region
      _
    $region21: #{tpu_custom_call.1} parent=1 // pred_fallthru
      _
    // Predicated region
    $region22: #{tpu_custom_call.1} parent=1 // pred_check
      _
    $region23: #{tpu_custom_call.1} parent=1 // pred_check_branch
      %38 = sbr.rel (0) target = $region25
    $region24: #{tpu_custom_call.1} parent=1 // pred_region
      _
    $region25: #{tpu_custom_call.1} parent=1 // pred_fallthru
      _
    // Predicated region
    $region26: #{tpu_custom_call.1} parent=1 // pred_check
      _
    $region27: #{tpu_custom_call.1} parent=1 // pred_check_branch
      %40 = sbr.rel (0) target = $region29
    $region28: #{tpu_custom_call.1} parent=1 // pred_region
      _
    $region29: #{tpu_custom_call.1} parent=1 // pred_fallthru
      _
    // Predicated region
    $region30: #{tpu_custom_call.1} parent=1 // pred_check
      _
    $region31: #{tpu_custom_call.1} parent=1 // pred_check_branch
      %42 = sbr.rel (0) target = $region33
    $region32: #{tpu_custom_call.1} parent=1 // pred_region
      _
    $region33: #{tpu_custom_call.1} parent=1 // pred_fallthru
      _
    // Predicated region
    $region34: #{tpu_custom_call.1} parent=1 // pred_check
      _
    $region35: #{tpu_custom_call.1} parent=1 // pred_check_branch
      %44 = sbr.rel (0) target = $region37
    $region36: #{tpu_custom_call.1} parent=1 // pred_region
      _
    $region37: #{tpu_custom_call.1} parent=1 // pred_fallthru
      _
    // Predicated region
    $region38: #{tpu_custom_call.1} parent=1 // pred_check
      _
    $region39: #{tpu_custom_call.1} parent=1 // pred_check_branch
      %46 = sbr.rel (0) target = $region41
    $region40: #{tpu_custom_call.1} parent=1 // pred_region
      _
    $region41: #{tpu_custom_call.1} parent=1 // pred_fallthru
      _
    // Predicated region
    $region42: #{tpu_custom_call.1} parent=1 // pred_check
      _
    $region43: #{tpu_custom_call.1} parent=1 // pred_check_branch
      %48 = sbr.rel (0) target = $region45
    $region44: #{tpu_custom_call.1} parent=1 // pred_region
      _
    $region45: #{tpu_custom_call.1} parent=1 // pred_fallthru
      _
    // Predicated region
    $region46: #{tpu_custom_call.1} parent=1 // pred_check
      _
    $region47: #{tpu_custom_call.1} parent=1 // pred_check_branch
      %50 = sbr.rel (0) target = $region49
    $region48: #{tpu_custom_call.1} parent=1 // pred_region
      _
    $region49: #{tpu_custom_call.1} parent=1 // pred_fallthru
      _
    // Predicated region
    $region50: #{tpu_custom_call.1} parent=1 // pred_check
      _
    $region51: #{tpu_custom_call.1} parent=1 // pred_check_branch
      %52 = sbr.rel (0) target = $region53
    $region52: #{tpu_custom_call.1} parent=1 // pred_region
      _
    $region53: #{tpu_custom_call.1} parent=1 // pred_fallthru
      _
    // Predicated region
    $region54: #{tpu_custom_call.1} parent=1 // pred_check
      _
    $region55: #{tpu_custom_call.1} parent=1 // pred_check_branch
      %54 = sbr.rel (0) target = $region57
    $region56: #{tpu_custom_call.1} parent=1 // pred_region
      _
    $region57: #{tpu_custom_call.1} parent=1 // pred_fallthru
      _
    // Predicated region
    $region58: #{tpu_custom_call.1} parent=1 // pred_check
      _
    $region59: #{tpu_custom_call.1} parent=1 // pred_check_branch
      %56 = sbr.rel (0) target = $region61
    $region60: #{tpu_custom_call.1} parent=1 // pred_region
      _
    $region61: #{tpu_custom_call.1} parent=1 // pred_fallthru
      _
    // Predicated region
    $region62: #{tpu_custom_call.1} parent=1 // pred_check
      _
    $region63: #{tpu_custom_call.1} parent=1 // pred_check_branch
      %58 = sbr.rel (0) target = $region65
    $region64: #{tpu_custom_call.1} parent=1 // pred_region
      _
    $region65: #{tpu_custom_call.1} parent=1 // pred_fallthru
      _
    // Predicated region
    $region66: #{tpu_custom_call.1} parent=1 // pred_check
      _
    $region67: #{tpu_custom_call.1} parent=1 // pred_check_branch
      %60 = sbr.rel (0) target = $region69
    $region68: #{tpu_custom_call.1} parent=1 // pred_region
      _
    $region69: #{tpu_custom_call.1} parent=1 // pred_fallthru
      _
    // Predicated region
    $region70: #{tpu_custom_call.1} parent=1 // pred_check
      _
    $region71: #{tpu_custom_call.1} parent=1 // pred_check_branch
      %62 = sbr.rel (0) target = $region73
    $region72: #{tpu_custom_call.1} parent=1 // pred_region
      _
    $region73: #{tpu_custom_call.1} parent=1 // pred_fallthru
      _
    %v63 = vld [vmem:[%s0] sm:$0xff]
    %v64 = vld [vmem:[%s0 + $0x8] sm:$0xff]
    %v65 = vld [vmem:[%s1] sm:$0x1]
    %vm66 = vcmp.eq.s32.totalorder %v65, 0
    %v67 = vld [vmem:[%s1 + $0x1] sm:$0x1]
    %vm68 = vcmp.eq.s32.totalorder %v67, 0
    %v69 = vld [vmem:[%s2] sm:$0xff]
    %v70 = vld [vmem:[%s2 + $0x8] sm:$0xff]
    %v71 = vld [vmem:[%s2 + $0x10] sm:$0xff]
    %v72 = vld [vmem:[%s2 + $0x18] sm:$0xff]
    %v73 = vld [vmem:[%s3] sm:$0x1]
    %v75 = vlaneseq
    %v76 = vshrl.u32 %v75, 7
    %v77 = vsub.s32 0, %v76
    %v78 = vrot.slane %v73, %v77
    %vm80 = vcmask 261120
    %v82 = vsel %vm80, %v63, 0
    %v85 = vsel %vm80, %v64, 0
    %87 = vmatprep.subr.mxu0 0.0
    %88 = vmatpush1.msra.mxu0 %v69
    %89 = vmatprep.subr.mxu0 0.0
    %90 = vmatpush1.msra.mxu0 %v70
    %91 = vmatprep.subr.mxu0 0.0
    %92 = vmatpush1.msra.mxu0 %v71
    %93 = vmatprep.subr.mxu0 0.0
    %94 = vmatpush1.msra.mxu0 %v72
    %95 = vmatprep.subr.mxu0 0.0
    %96 = vmatpush1.msra.mxu0 0.0
    %97 = vmatprep.subr.mxu0 0.0
    %98 = vmatpush1.msra.mxu0 0.0
    %99 = vmatprep.subr.mxu0 0.0
    %100 = vmatpush1.msra.mxu0 0.0
    %101 = vmatprep.subr.mxu0 0.0
    %102 = vmatpush1.msra.mxu0 0.0
    %103 = vmatprep.subr.mxu0 0.0
    %104 = vmatpush1.msra.mxu0 0.0
    %105 = vmatprep.subr.mxu0 0.0
    %106 = vmatpush1.msra.mxu0 0.0
    %107 = vmatprep.subr.mxu0 0.0
    %108 = vmatpush1.msra.mxu0 0.0
    %109 = vmatprep.subr.mxu0 0.0
    %110 = vmatpush1.msra.mxu0 0.0
    %111 = vmatprep.subr.mxu0 0.0
    %112 = vmatpush1.msra.mxu0 0.0
    %113 = vmatprep.subr.mxu0 0.0
    %114 = vmatpush1.msra.mxu0 0.0
    %115 = vmatprep.subr.mxu0 0.0
    %116 = vmatpush1.msra.mxu0 0.0
    %117 = vmatprep.subr.mxu0 0.0
    %118 = vmatpush1.msra.mxu0 0.0
    %119 = vmatprep.subr.mxu0 0.0
    %120 = vmatpush1.msra.mxu0 0.0
    %121 = vmatprep.subr.mxu0 0.0
    %122 = vmatpush1.msra.mxu0 0.0
    %123 = vmatprep.subr.mxu0 0.0
    %124 = vmatpush1.msra.mxu0 0.0
    %125 = vmatprep.subr.mxu0 0.0
    %126 = vmatpush1.msra.mxu0 0.0
    %127 = vmatprep.subr.mxu0 0.0
    %128 = vmatpush1.msra.mxu0 0.0
    %129 = vmatprep.subr.mxu0 0.0
    %130 = vmatpush1.msra.mxu0 0.0
    %131 = vmatprep.subr.mxu0 0.0
    %132 = vmatpush1.msra.mxu0 0.0
    %133 = vmatprep.subr.mxu0 0.0
    %134 = vmatpush1.msra.mxu0 0.0
    %135 = vmatprep.subr.mxu0 0.0
    %136 = vmatpush1.msra.mxu0 0.0
    %137 = vmatprep.subr.mxu0 0.0
    %138 = vmatpush1.msra.mxu0 0.0
    %139 = vmatprep.subr.mxu0 0.0
    %140 = vmatpush1.msra.mxu0 0.0
    %141 = vmatprep.subr.mxu0 0.0
    %142 = vmatpush1.msra.mxu0 0.0
    %143 = vmatprep.subr.mxu0 0.0
    %144 = vmatpush1.msra.mxu0 0.0
    %145 = vmatprep.subr.mxu0 0.0
    %146 = vmatpush1.msra.mxu0 0.0
    %147 = vmatprep.subr.mxu0 0.0
    %148 = vmatpush1.msra.mxu0 0.0
    %149 = vmatprep.subr.mxu0 0.0
    %150 = vmatpush1.msra.mxu0 0.0
    %151 = vmatprep.mubr.f32.mxu0 0.0
    %152 = vmatmul.mubr.f32.gmra.mrb[0].mxu0 %v82
    %v153 = vpop.f32.mrb[0].mxu0
    %v154 = vadd.f32 %v78, %v153
    %v155 = vpop.f32.mrb[0].mxu0
    %156 = vmatprep.mubr.f32.mxu0 0.0
    %157 = vmatmul.mubr.f32.gmra.mrb[0].mxu0 %v85
    %v158 = vpop.f32.mrb[0].mxu0
    %v159 = vadd.f32 %v78, %v158
    %v160 = vpop.f32.mrb[0].mxu0
    %161 = vdwg.mxu0
    %v162 = vld [vmem:[%s4] sm:$0xff]
    %v163 = vld [vmem:[%s4 + $0x8] sm:$0xff]
    %v164 = vld [vmem:[%s4 + $0x10] sm:$0xff]
    %v165 = vld [vmem:[%s4 + $0x18] sm:$0xff]
    %v166 = vld [vmem:[%s5] sm:$0x1]
    %v168 = vlaneseq
    %v169 = vshrl.u32 %v168, 7
    %v170 = vsub.s32 0, %v169
    %v171 = vrot.slane %v166, %v170
    %173 = vmatprep.subr.mxu0 0.0
    %174 = vmatpush1.msra.mxu0 %v162
    %175 = vmatprep.subr.mxu0 0.0
    %176 = vmatpush1.msra.mxu0 %v163
    %177 = vmatprep.subr.mxu0 0.0
    %178 = vmatpush1.msra.mxu0 %v164
    %179 = vmatprep.subr.mxu0 0.0
    %180 = vmatpush1.msra.mxu0 %v165
    %181 = vmatprep.subr.mxu0 0.0
    %182 = vmatpush1.msra.mxu0 0.0
    %183 = vmatprep.subr.mxu0 0.0
    %184 = vmatpush1.msra.mxu0 0.0
    %185 = vmatprep.subr.mxu0 0.0
    %186 = vmatpush1.msra.mxu0 0.0
    %187 = vmatprep.subr.mxu0 0.0
    %188 = vmatpush1.msra.mxu0 0.0
    %189 = vmatprep.subr.mxu0 0.0
    %190 = vmatpush1.msra.mxu0 0.0
    %191 = vmatprep.subr.mxu0 0.0
    %192 = vmatpush1.msra.mxu0 0.0
    %193 = vmatprep.subr.mxu0 0.0
    %194 = vmatpush1.msra.mxu0 0.0
    %195 = vmatprep.subr.mxu0 0.0
    %196 = vmatpush1.msra.mxu0 0.0
    %197 = vmatprep.subr.mxu0 0.0
    %198 = vmatpush1.msra.mxu0 0.0
    %199 = vmatprep.subr.mxu0 0.0
    %200 = vmatpush1.msra.mxu0 0.0
    %201 = vmatprep.subr.mxu0 0.0
    %202 = vmatpush1.msra.mxu0 0.0
    %203 = vmatprep.subr.mxu0 0.0
    %204 = vmatpush1.msra.mxu0 0.0
    %205 = vmatprep.subr.mxu0 0.0
    %206 = vmatpush1.msra.mxu0 0.0
    %207 = vmatprep.subr.mxu0 0.0
    %208 = vmatpush1.msra.mxu0 0.0
    %209 = vmatprep.subr.mxu0 0.0
    %210 = vmatpush1.msra.mxu0 0.0
    %211 = vmatprep.subr.mxu0 0.0
    %212 = vmatpush1.msra.mxu0 0.0
    %213 = vmatprep.subr.mxu0 0.0
    %214 = vmatpush1.msra.mxu0 0.0
    %215 = vmatprep.subr.mxu0 0.0
    %216 = vmatpush1.msra.mxu0 0.0
    %217 = vmatprep.subr.mxu0 0.0
    %218 = vmatpush1.msra.mxu0 0.0
    %219 = vmatprep.subr.mxu0 0.0
    %220 = vmatpush1.msra.mxu0 0.0
    %221 = vmatprep.subr.mxu0 0.0
    %222 = vmatpush1.msra.mxu0 0.0
    %223 = vmatprep.subr.mxu0 0.0
    %224 = vmatpush1.msra.mxu0 0.0
    %225 = vmatprep.subr.mxu0 0.0
    %226 = vmatpush1.msra.mxu0 0.0
    %227 = vmatprep.subr.mxu0 0.0
    %228 = vmatpush1.msra.mxu0 0.0
    %229 = vmatprep.subr.mxu0 0.0
    %230 = vmatpush1.msra.mxu0 0.0
    %231 = vmatprep.subr.mxu0 0.0
    %232 = vmatpush1.msra.mxu0 0.0
    %233 = vmatprep.subr.mxu0 0.0
    %234 = vmatpush1.msra.mxu0 0.0
    %235 = vmatprep.subr.mxu0 0.0
    %236 = vmatpush1.msra.mxu0 0.0
    %237 = vmatprep.mubr.f32.mxu0 0.0
    %238 = vmatmul.mubr.f32.gmra.mrb[0].mxu0 %v82
    %v239 = vpop.f32.mrb[0].mxu0
    %v240 = vadd.f32 %v171, %v239
    %v241 = vpop.f32.mrb[0].mxu0
    %242 = vmatprep.mubr.f32.mxu0 0.0
    %243 = vmatmul.mubr.f32.gmra.mrb[0].mxu0 %v85
    %v244 = vpop.f32.mrb[0].mxu0
    %v245 = vadd.f32 %v171, %v244
    %v246 = vpop.f32.mrb[0].mxu0
    %247 = vdwg.mxu0
    %v248 = vld [vmem:[%s6] sm:$0xff]
    %v249 = vld [vmem:[%s6 + $0x8] sm:$0xff]
    %v250 = vld [vmem:[%s6 + $0x10] sm:$0xff]
    %v251 = vld [vmem:[%s6 + $0x18] sm:$0xff]
    %v252 = vld [vmem:[%s7] sm:$0x1]
    %v254 = vlaneseq
    %v255 = vshrl.u32 %v254, 7
    %v256 = vsub.s32 0, %v255
    %v257 = vrot.slane %v252, %v256
    %259 = vmatprep.subr.mxu0 0.0
    %260 = vmatpush1.msra.mxu0 %v248
    %261 = vmatprep.subr.mxu0 0.0
    %262 = vmatpush1.msra.mxu0 %v249
    %263 = vmatprep.subr.mxu0 0.0
    %264 = vmatpush1.msra.mxu0 %v250
    %265 = vmatprep.subr.mxu0 0.0
    %266 = vmatpush1.msra.mxu0 %v251
    %267 = vmatprep.subr.mxu0 0.0
    %268 = vmatpush1.msra.mxu0 0.0
    %269 = vmatprep.subr.mxu0 0.0
    %270 = vmatpush1.msra.mxu0 0.0
    %271 = vmatprep.subr.mxu0 0.0
    %272 = vmatpush1.msra.mxu0 0.0
    %273 = vmatprep.subr.mxu0 0.0
    %274 = vmatpush1.msra.mxu0 0.0
    %275 = vmatprep.subr.mxu0 0.0
    %276 = vmatpush1.msra.mxu0 0.0
    %277 = vmatprep.subr.mxu0 0.0
    %278 = vmatpush1.msra.mxu0 0.0
    %279 = vmatprep.subr.mxu0 0.0
    %280 = vmatpush1.msra.mxu0 0.0
    %281 = vmatprep.subr.mxu0 0.0
    %282 = vmatpush1.msra.mxu0 0.0
    %283 = vmatprep.subr.mxu0 0.0
    %284 = vmatpush1.msra.mxu0 0.0
    %285 = vmatprep.subr.mxu0 0.0
    %286 = vmatpush1.msra.mxu0 0.0
    %287 = vmatprep.subr.mxu0 0.0
    %288 = vmatpush1.msra.mxu0 0.0
    %289 = vmatprep.subr.mxu0 0.0
    %290 = vmatpush1.msra.mxu0 0.0
    %291 = vmatprep.subr.mxu0 0.0
    %292 = vmatpush1.msra.mxu0 0.0
    %293 = vmatprep.subr.mxu0 0.0
    %294 = vmatpush1.msra.mxu0 0.0
    %295 = vmatprep.subr.mxu0 0.0
    %296 = vmatpush1.msra.mxu0 0.0
    %297 = vmatprep.subr.mxu0 0.0
    %298 = vmatpush1.msra.mxu0 0.0
    %299 = vmatprep.subr.mxu0 0.0
    %300 = vmatpush1.msra.mxu0 0.0
    %301 = vmatprep.subr.mxu0 0.0
    %302 = vmatpush1.msra.mxu0 0.0
    %303 = vmatprep.subr.mxu0 0.0
    %304 = vmatpush1.msra.mxu0 0.0
    %305 = vmatprep.subr.mxu0 0.0
    %306 = vmatpush1.msra.mxu0 0.0
    %307 = vmatprep.subr.mxu0 0.0
    %308 = vmatpush1.msra.mxu0 0.0
    %309 = vmatprep.subr.mxu0 0.0
    %310 = vmatpush1.msra.mxu0 0.0
    %311 = vmatprep.subr.mxu0 0.0
    %312 = vmatpush1.msra.mxu0 0.0
    %313 = vmatprep.subr.mxu0 0.0
    %314 = vmatpush1.msra.mxu0 0.0
    %315 = vmatprep.subr.mxu0 0.0
    %316 = vmatpush1.msra.mxu0 0.0
    %317 = vmatprep.subr.mxu0 0.0
    %318 = vmatpush1.msra.mxu0 0.0
    %319 = vmatprep.subr.mxu0 0.0
    %320 = vmatpush1.msra.mxu0 0.0
    %321 = vmatprep.subr.mxu0 0.0
    %322 = vmatpush1.msra.mxu0 0.0
    %323 = vmatprep.mubr.f32.mxu0 0.0
    %324 = vmatmul.mubr.f32.gmra.mrb[0].mxu0 %v82
    %v325 = vpop.f32.mrb[0].mxu0
    %v326 = vadd.f32 %v257, %v325
    %v327 = vpop.f32.mrb[0].mxu0
    %328 = vmatprep.mubr.f32.mxu0 0.0
    %329 = vmatmul.mubr.f32.gmra.mrb[0].mxu0 %v85
    %v330 = vpop.f32.mrb[0].mxu0
    %v331 = vadd.f32 %v257, %v330
    %v332 = vpop.f32.mrb[0].mxu0
    %333 = vdwg.mxu0
    %v334 = vld [vmem:[%s8] sm:$0xff]
    %vm335 = vcmask 64512
    %v337 = vsel %vm335, %v154, 0
    %v340 = vsel %vm335, %v240, 0
    %342 = vmatprep.subr.mxu0 0.0
    %343 = vmatpush1.xpose.msra.mxu0 %v340
    %344 = vmatprep.subr.mxu0 0.0
    %345 = vmatpush1.xpose.msra.mxu0 0.0
    %346 = vmatprep.subr.mxu0 0.0
    %347 = vmatpush1.xpose.msra.mxu0 0.0
    %348 = vmatprep.subr.mxu0 0.0
    %349 = vmatpush1.xpose.msra.mxu0 0.0
    %350 = vmatprep.subr.mxu0 0.0
    %351 = vmatpush1.xpose.msra.mxu0 0.0
    %352 = vmatprep.subr.mxu0 0.0
    %353 = vmatpush1.xpose.msra.mxu0 0.0
    %354 = vmatprep.subr.mxu0 0.0
    %355 = vmatpush1.xpose.msra.mxu0 0.0
    %356 = vmatprep.subr.mxu0 0.0
    %357 = vmatpush1.xpose.msra.mxu0 0.0
    %358 = vmatprep.subr.mxu0 0.0
    %359 = vmatpush1.xpose.msra.mxu0 0.0
    %360 = vmatprep.subr.mxu0 0.0
    %361 = vmatpush1.xpose.msra.mxu0 0.0
    %362 = vmatprep.subr.mxu0 0.0
    %363 = vmatpush1.xpose.msra.mxu0 0.0
    %364 = vmatprep.subr.mxu0 0.0
    %365 = vmatpush1.xpose.msra.mxu0 0.0
    %366 = vmatprep.subr.mxu0 0.0
    %367 = vmatpush1.xpose.msra.mxu0 0.0
    %368 = vmatprep.subr.mxu0 0.0
    %369 = vmatpush1.xpose.msra.mxu0 0.0
    %370 = vmatprep.subr.mxu0 0.0
    %371 = vmatpush1.xpose.msra.mxu0 0.0
    %372 = vmatprep.subr.mxu0 0.0
    %373 = vmatpush1.xpose.msra.mxu0 0.0
    %374 = vmatprep.subr.mxu0 0.0
    %375 = vmatpush1.xpose.msra.mxu0 0.0
    %376 = vmatprep.subr.mxu0 0.0
    %377 = vmatpush1.xpose.msra.mxu0 0.0
    %378 = vmatprep.subr.mxu0 0.0
    %379 = vmatpush1.xpose.msra.mxu0 0.0
    %380 = vmatprep.subr.mxu0 0.0
    %381 = vmatpush1.xpose.msra.mxu0 0.0
    %382 = vmatprep.subr.mxu0 0.0
    %383 = vmatpush1.xpose.msra.mxu0 0.0
    %384 = vmatprep.subr.mxu0 0.0
    %385 = vmatpush1.xpose.msra.mxu0 0.0
    %386 = vmatprep.subr.mxu0 0.0
    %387 = vmatpush1.xpose.msra.mxu0 0.0
    %388 = vmatprep.subr.mxu0 0.0
    %389 = vmatpush1.xpose.msra.mxu0 0.0
    %390 = vmatprep.subr.mxu0 0.0
    %391 = vmatpush1.xpose.msra.mxu0 0.0
    %392 = vmatprep.subr.mxu0 0.0
    %393 = vmatpush1.xpose.msra.mxu0 0.0
    %394 = vmatprep.subr.mxu0 0.0
    %395 = vmatpush1.xpose.msra.mxu0 0.0
    %396 = vmatprep.subr.mxu0 0.0
    %397 = vmatpush1.xpose.msra.mxu0 0.0
    %398 = vmatprep.subr.mxu0 0.0
    %399 = vmatpush1.xpose.msra.mxu0 0.0
    %400 = vmatprep.subr.mxu0 0.0
    %401 = vmatpush1.xpose.msra.mxu0 0.0
    %402 = vmatprep.subr.mxu0 0.0
    %403 = vmatpush1.xpose.msra.mxu0 0.0
    %404 = vmatprep.subr.mxu0 0.0
    %405 = vmatpush1.xpose.msra.mxu0 0.0
    %406 = vmatprep.mubr.f32.mxu0 0.0
    %407 = vmatmul.mubr.f32.gmra.mrb[0].mxu0 %v337
    %v408 = vpop.f32.mrb[0].mxu0
    %v409 = vadd.f32 0.0, %v408
    %v410 = vpop.f32.mrb[0].mxu0
    %411 = vdwg.mxu0
    %v412 = vsel %vm66, 1, 0
    %v413 = vlaneseq
    %v414 = vshrl.u32 %v413, 7
    %v415 = vsub.s32 0, %v414
    %v416 = vrot.slane %v412, %v415
    %vm417 = vcmp.eq.s32.totalorder %v416, 1
    %v418 = vsel %vm417, -10000.0, %v409
    %v419 = vsel %vm335, %v418, -inf
    %420 = vmax.xlane.f32.xlu0 %v419
    %v421 = vpop.xlane.xlu0 %420
    %v422 = vsub.f32 %v418, %v421
    %v423 = vmul.f32 %v422, 1.442695
    %v424 = vpow.pop %v423
    %v425 = vsel %vm335, %v424, 0.0
    %426 = vadd.xlane.f32.xlu0 %v425
    %v427 = vpop.xlane.xlu0 %426
    %v428 = vrcp.pop %v427
    %v429 = vmul.f32 %v424, %v428
    %430 = vst.msk [vmem:[#allocation4] sm:$0xff] %vm335, %v429
    %v432 = vsel %vm335, %v429, 0
    %434 = vmatprep.subr.mxu0 0.0
    %435 = vmatpush1.msra.mxu0 %v326
    %436 = vmatprep.subr.mxu0 0.0
    %437 = vmatpush1.msra.mxu0 0.0
    %438 = vmatprep.subr.mxu0 0.0
    %439 = vmatpush1.msra.mxu0 0.0
    %440 = vmatprep.subr.mxu0 0.0
    %441 = vmatpush1.msra.mxu0 0.0
    %442 = vmatprep.subr.mxu0 0.0
    %443 = vmatpush1.msra.mxu0 0.0
    %444 = vmatprep.subr.mxu0 0.0
    %445 = vmatpush1.msra.mxu0 0.0
    %446 = vmatprep.subr.mxu0 0.0
    %447 = vmatpush1.msra.mxu0 0.0
    %448 = vmatprep.subr.mxu0 0.0
    %449 = vmatpush1.msra.mxu0 0.0
    %450 = vmatprep.subr.mxu0 0.0
    %451 = vmatpush1.msra.mxu0 0.0
    %452 = vmatprep.subr.mxu0 0.0
    %453 = vmatpush1.msra.mxu0 0.0
    %454 = vmatprep.subr.mxu0 0.0
    %455 = vmatpush1.msra.mxu0 0.0
    %456 = vmatprep.subr.mxu0 0.0
    %457 = vmatpush1.msra.mxu0 0.0
    %458 = vmatprep.subr.mxu0 0.0
    %459 = vmatpush1.msra.mxu0 0.0
    %460 = vmatprep.subr.mxu0 0.0
    %461 = vmatpush1.msra.mxu0 0.0
    %462 = vmatprep.subr.mxu0 0.0
    %463 = vmatpush1.msra.mxu0 0.0
    %464 = vmatprep.subr.mxu0 0.0
    %465 = vmatpush1.msra.mxu0 0.0
    %466 = vmatprep.subr.mxu0 0.0
    %467 = vmatpush1.msra.mxu0 0.0
    %468 = vmatprep.subr.mxu0 0.0
    %469 = vmatpush1.msra.mxu0 0.0
    %470 = vmatprep.subr.mxu0 0.0
    %471 = vmatpush1.msra.mxu0 0.0
    %472 = vmatprep.subr.mxu0 0.0
    %473 = vmatpush1.msra.mxu0 0.0
    %474 = vmatprep.subr.mxu0 0.0
    %475 = vmatpush1.msra.mxu0 0.0
    %476 = vmatprep.subr.mxu0 0.0
    %477 = vmatpush1.msra.mxu0 0.0
    %478 = vmatprep.subr.mxu0 0.0
    %479 = vmatpush1.msra.mxu0 0.0
    %480 = vmatprep.subr.mxu0 0.0
    %481 = vmatpush1.msra.mxu0 0.0
    %482 = vmatprep.subr.mxu0 0.0
    %483 = vmatpush1.msra.mxu0 0.0
    %484 = vmatprep.subr.mxu0 0.0
    %485 = vmatpush1.msra.mxu0 0.0
    %486 = vmatprep.subr.mxu0 0.0
    %487 = vmatpush1.msra.mxu0 0.0
    %488 = vmatprep.subr.mxu0 0.0
    %489 = vmatpush1.msra.mxu0 0.0
    %490 = vmatprep.subr.mxu0 0.0
    %491 = vmatpush1.msra.mxu0 0.0
    %492 = vmatprep.subr.mxu0 0.0
    %493 = vmatpush1.msra.mxu0 0.0
    %494 = vmatprep.subr.mxu0 0.0
    %495 = vmatpush1.msra.mxu0 0.0
    %496 = vmatprep.subr.mxu0 0.0
    %497 = vmatpush1.msra.mxu0 0.0
    %498 = vmatprep.mubr.f32.mxu0 0.0
    %499 = vmatmul.mubr.f32.gmra.mrb[0].mxu0 %v432
    %v500 = vpop.f32.mrb[0].mxu0
    %v501 = vadd.f32 0.0, %v500
    %v502 = vpop.f32.mrb[0].mxu0
    %503 = vdwg.mxu0
    %v505 = vsel %vm335, %v159, 0
    %v508 = vsel %vm335, %v245, 0
    %510 = vmatprep.subr.mxu0 0.0
    %511 = vmatpush1.xpose.msra.mxu0 %v508
    %512 = vmatprep.subr.mxu0 0.0
    %513 = vmatpush1.xpose.msra.mxu0 0.0
    %514 = vmatprep.subr.mxu0 0.0
    %515 = vmatpush1.xpose.msra.mxu0 0.0
    %516 = vmatprep.subr.mxu0 0.0
    %517 = vmatpush1.xpose.msra.mxu0 0.0
    %518 = vmatprep.subr.mxu0 0.0
    %519 = vmatpush1.xpose.msra.mxu0 0.0
    %520 = vmatprep.subr.mxu0 0.0
    %521 = vmatpush1.xpose.msra.mxu0 0.0
    %522 = vmatprep.subr.mxu0 0.0
    %523 = vmatpush1.xpose.msra.mxu0 0.0
    %524 = vmatprep.subr.mxu0 0.0
    %525 = vmatpush1.xpose.msra.mxu0 0.0
    %526 = vmatprep.subr.mxu0 0.0
    %527 = vmatpush1.xpose.msra.mxu0 0.0
    %528 = vmatprep.subr.mxu0 0.0
    %529 = vmatpush1.xpose.msra.mxu0 0.0
    %530 = vmatprep.subr.mxu0 0.0
    %531 = vmatpush1.xpose.msra.mxu0 0.0
    %532 = vmatprep.subr.mxu0 0.0
    %533 = vmatpush1.xpose.msra.mxu0 0.0
    %534 = vmatprep.subr.mxu0 0.0
    %535 = vmatpush1.xpose.msra.mxu0 0.0
    %536 = vmatprep.subr.mxu0 0.0
    %537 = vmatpush1.xpose.msra.mxu0 0.0
    %538 = vmatprep.subr.mxu0 0.0
    %539 = vmatpush1.xpose.msra.mxu0 0.0
    %540 = vmatprep.subr.mxu0 0.0
    %541 = vmatpush1.xpose.msra.mxu0 0.0
    %542 = vmatprep.subr.mxu0 0.0
    %543 = vmatpush1.xpose.msra.mxu0 0.0
    %544 = vmatprep.subr.mxu0 0.0
    %545 = vmatpush1.xpose.msra.mxu0 0.0
    %546 = vmatprep.subr.mxu0 0.0
    %547 = vmatpush1.xpose.msra.mxu0 0.0
    %548 = vmatprep.subr.mxu0 0.0
    %549 = vmatpush1.xpose.msra.mxu0 0.0
    %550 = vmatprep.subr.mxu0 0.0
    %551 = vmatpush1.xpose.msra.mxu0 0.0
    %552 = vmatprep.subr.mxu0 0.0
    %553 = vmatpush1.xpose.msra.mxu0 0.0
    %554 = vmatprep.subr.mxu0 0.0
    %555 = vmatpush1.xpose.msra.mxu0 0.0
    %556 = vmatprep.subr.mxu0 0.0
    %557 = vmatpush1.xpose.msra.mxu0 0.0
    %558 = vmatprep.subr.mxu0 0.0
    %559 = vmatpush1.xpose.msra.mxu0 0.0
    %560 = vmatprep.subr.mxu0 0.0
    %561 = vmatpush1.xpose.msra.mxu0 0.0
    %562 = vmatprep.subr.mxu0 0.0
    %563 = vmatpush1.xpose.msra.mxu0 0.0
    %564 = vmatprep.subr.mxu0 0.0
    %565 = vmatpush1.xpose.msra.mxu0 0.0
    %566 = vmatprep.subr.mxu0 0.0
    %567 = vmatpush1.xpose.msra.mxu0 0.0
    %568 = vmatprep.subr.mxu0 0.0
    %569 = vmatpush1.xpose.msra.mxu0 0.0
    %570 = vmatprep.subr.mxu0 0.0
    %571 = vmatpush1.xpose.msra.mxu0 0.0
    %572 = vmatprep.subr.mxu0 0.0
    %573 = vmatpush1.xpose.msra.mxu0 0.0
    %574 = vmatprep.mubr.f32.mxu0 0.0
    %575 = vmatmul.mubr.f32.gmra.mrb[0].mxu0 %v505
    %v576 = vpop.f32.mrb[0].mxu0
    %v577 = vadd.f32 0.0, %v576
    %v578 = vpop.f32.mrb[0].mxu0
    %579 = vdwg.mxu0
    %v580 = vsel %vm68, 1, 0
    %v581 = vlaneseq
    %v582 = vshrl.u32 %v581, 7
    %v583 = vsub.s32 0, %v582
    %v584 = vrot.slane %v580, %v583
    %vm585 = vcmp.eq.s32.totalorder %v584, 1
    %v586 = vsel %vm585, -10000.0, %v577
    %v587 = vsel %vm335, %v586, -inf
    %588 = vmax.xlane.f32.xlu0 %v587
    %v589 = vpop.xlane.xlu0 %588
    %v590 = vsub.f32 %v586, %v589
    %v591 = vmul.f32 %v590, 1.442695
    %v592 = vpow.pop %v591
    %v593 = vsel %vm335, %v592, 0.0
    %594 = vadd.xlane.f32.xlu0 %v593
    %v595 = vpop.xlane.xlu0 %594
    %v596 = vrcp.pop %v595
    %v597 = vmul.f32 %v592, %v596
    %s598 = scalar_lea.vmem [#allocation4], 32
    %599 = vst.msk [vmem:[%s598] sm:$0xff] %vm335, %v597
    %v601 = vsel %vm335, %v597, 0
    %603 = vmatprep.subr.mxu0 0.0
    %604 = vmatpush1.msra.mxu0 %v331
    %605 = vmatprep.subr.mxu0 0.0
    %606 = vmatpush1.msra.mxu0 0.0
    %607 = vmatprep.subr.mxu0 0.0
    %608 = vmatpush1.msra.mxu0 0.0
    %609 = vmatprep.subr.mxu0 0.0
    %610 = vmatpush1.msra.mxu0 0.0
    %611 = vmatprep.subr.mxu0 0.0
    %612 = vmatpush1.msra.mxu0 0.0
    %613 = vmatprep.subr.mxu0 0.0
    %614 = vmatpush1.msra.mxu0 0.0
    %615 = vmatprep.subr.mxu0 0.0
    %616 = vmatpush1.msra.mxu0 0.0
    %617 = vmatprep.subr.mxu0 0.0
    %618 = vmatpush1.msra.mxu0 0.0
    %619 = vmatprep.subr.mxu0 0.0
    %620 = vmatpush1.msra.mxu0 0.0
    %621 = vmatprep.subr.mxu0 0.0
    %622 = vmatpush1.msra.mxu0 0.0
    %623 = vmatprep.subr.mxu0 0.0
    %624 = vmatpush1.msra.mxu0 0.0
    %625 = vmatprep.subr.mxu0 0.0
    %626 = vmatpush1.msra.mxu0 0.0
    %627 = vmatprep.subr.mxu0 0.0
    %628 = vmatpush1.msra.mxu0 0.0
    %629 = vmatprep.subr.mxu0 0.0
    %630 = vmatpush1.msra.mxu0 0.0
    %631 = vmatprep.subr.mxu0 0.0
    %632 = vmatpush1.msra.mxu0 0.0
    %633 = vmatprep.subr.mxu0 0.0
    %634 = vmatpush1.msra.mxu0 0.0
    %635 = vmatprep.subr.mxu0 0.0
    %636 = vmatpush1.msra.mxu0 0.0
    %637 = vmatprep.subr.mxu0 0.0
    %638 = vmatpush1.msra.mxu0 0.0
    %639 = vmatprep.subr.mxu0 0.0
    %640 = vmatpush1.msra.mxu0 0.0
    %641 = vmatprep.subr.mxu0 0.0
    %642 = vmatpush1.msra.mxu0 0.0
    %643 = vmatprep.subr.mxu0 0.0
    %644 = vmatpush1.msra.mxu0 0.0
    %645 = vmatprep.subr.mxu0 0.0
    %646 = vmatpush1.msra.mxu0 0.0
    %647 = vmatprep.subr.mxu0 0.0
    %648 = vmatpush1.msra.mxu0 0.0
    %649 = vmatprep.subr.mxu0 0.0
    %650 = vmatpush1.msra.mxu0 0.0
    %651 = vmatprep.subr.mxu0 0.0
    %652 = vmatpush1.msra.mxu0 0.0
    %653 = vmatprep.subr.mxu0 0.0
    %654 = vmatpush1.msra.mxu0 0.0
    %655 = vmatprep.subr.mxu0 0.0
    %656 = vmatpush1.msra.mxu0 0.0
    %657 = vmatprep.subr.mxu0 0.0
    %658 = vmatpush1.msra.mxu0 0.0
    %659 = vmatprep.subr.mxu0 0.0
    %660 = vmatpush1.msra.mxu0 0.0
    %661 = vmatprep.subr.mxu0 0.0
    %662 = vmatpush1.msra.mxu0 0.0
    %663 = vmatprep.subr.mxu0 0.0
    %664 = vmatpush1.msra.mxu0 0.0
    %665 = vmatprep.subr.mxu0 0.0
    %666 = vmatpush1.msra.mxu0 0.0
    %667 = vmatprep.mubr.f32.mxu0 0.0
    %668 = vmatmul.mubr.f32.gmra.mrb[0].mxu0 %v601
    %v669 = vpop.f32.mrb[0].mxu0
    %v670 = vadd.f32 0.0, %v669
    %v671 = vpop.f32.mrb[0].mxu0
    %672 = vdwg.mxu0
    %s673 = scalar_lea.vmem %s2, 32
    %v674 = vld [vmem:[%s673] sm:$0xff]
    %v675 = vld [vmem:[%s673 + $0x8] sm:$0xff]
    %v676 = vld [vmem:[%s673 + $0x10] sm:$0xff]
    %v677 = vld [vmem:[%s673 + $0x18] sm:$0xff]
    %s678 = scalar_lea.vmem %s3, 1
    %v679 = vld [vmem:[%s678] sm:$0x1]
    %v681 = vlaneseq
    %v682 = vshrl.u32 %v681, 7
    %v683 = vsub.s32 0, %v682
    %v684 = vrot.slane %v679, %v683
    %686 = vmatprep.subr.mxu0 0.0
    %687 = vmatpush1.msra.mxu0 %v674
    %688 = vmatprep.subr.mxu0 0.0
    %689 = vmatpush1.msra.mxu0 %v675
    %690 = vmatprep.subr.mxu0 0.0
    %691 = vmatpush1.msra.mxu0 %v676
    %692 = vmatprep.subr.mxu0 0.0
    %693 = vmatpush1.msra.mxu0 %v677
    %694 = vmatprep.subr.mxu0 0.0
    %695 = vmatpush1.msra.mxu0 0.0
    %696 = vmatprep.subr.mxu0 0.0
    %697 = vmatpush1.msra.mxu0 0.0
    %698 = vmatprep.subr.mxu0 0.0
    %699 = vmatpush1.msra.mxu0 0.0
    %700 = vmatprep.subr.mxu0 0.0
    %701 = vmatpush1.msra.mxu0 0.0
    %702 = vmatprep.subr.mxu0 0.0
    %703 = vmatpush1.msra.mxu0 0.0
    %704 = vmatprep.subr.mxu0 0.0
    %705 = vmatpush1.msra.mxu0 0.0
    %706 = vmatprep.subr.mxu0 0.0
    %707 = vmatpush1.msra.mxu0 0.0
    %708 = vmatprep.subr.mxu0 0.0
    %709 = vmatpush1.msra.mxu0 0.0
    %710 = vmatprep.subr.mxu0 0.0
    %711 = vmatpush1.msra.mxu0 0.0
    %712 = vmatprep.subr.mxu0 0.0
    %713 = vmatpush1.msra.mxu0 0.0
    %714 = vmatprep.subr.mxu0 0.0
    %715 = vmatpush1.msra.mxu0 0.0
    %716 = vmatprep.subr.mxu0 0.0
    %717 = vmatpush1.msra.mxu0 0.0
    %718 = vmatprep.subr.mxu0 0.0
    %719 = vmatpush1.msra.mxu0 0.0
    %720 = vmatprep.subr.mxu0 0.0
    %721 = vmatpush1.msra.mxu0 0.0
    %722 = vmatprep.subr.mxu0 0.0
    %723 = vmatpush1.msra.mxu0 0.0
    %724 = vmatprep.subr.mxu0 0.0
    %725 = vmatpush1.msra.mxu0 0.0
    %726 = vmatprep.subr.mxu0 0.0
    %727 = vmatpush1.msra.mxu0 0.0
    %728 = vmatprep.subr.mxu0 0.0
    %729 = vmatpush1.msra.mxu0 0.0
    %730 = vmatprep.subr.mxu0 0.0
    %731 = vmatpush1.msra.mxu0 0.0
    %732 = vmatprep.subr.mxu0 0.0
    %733 = vmatpush1.msra.mxu0 0.0
    %734 = vmatprep.subr.mxu0 0.0
    %735 = vmatpush1.msra.mxu0 0.0
    %736 = vmatprep.subr.mxu0 0.0
    %737 = vmatpush1.msra.mxu0 0.0
    %738 = vmatprep.subr.mxu0 0.0
    %739 = vmatpush1.msra.mxu0 0.0
    %740 = vmatprep.subr.mxu0 0.0
    %741 = vmatpush1.msra.mxu0 0.0
    %742 = vmatprep.subr.mxu0 0.0
    %743 = vmatpush1.msra.mxu0 0.0
    %744 = vmatprep.subr.mxu0 0.0
    %745 = vmatpush1.msra.mxu0 0.0
    %746 = vmatprep.subr.mxu0 0.0
    %747 = vmatpush1.msra.mxu0 0.0
    %748 = vmatprep.subr.mxu0 0.0
    %749 = vmatpush1.msra.mxu0 0.0
    %750 = vmatprep.mubr.f32.mxu0 0.0
    %751 = vmatmul.mubr.f32.gmra.mrb[0].mxu0 %v82
    %v752 = vpop.f32.mrb[0].mxu0
    %v753 = vadd.f32 %v684, %v752
    %v754 = vpop.f32.mrb[0].mxu0
    %755 = vmatprep.mubr.f32.mxu0 0.0
    %756 = vmatmul.mubr.f32.gmra.mrb[0].mxu0 %v85
    %v757 = vpop.f32.mrb[0].mxu0
    %v758 = vadd.f32 %v684, %v757
    %v759 = vpop.f32.mrb[0].mxu0
    %760 = vdwg.mxu0
    %s761 = scalar_lea.vmem %s4, 32
    %v762 = vld [vmem:[%s761] sm:$0xff]
    %v763 = vld [vmem:[%s761 + $0x8] sm:$0xff]
    %v764 = vld [vmem:[%s761 + $0x10] sm:$0xff]
    %v765 = vld [vmem:[%s761 + $0x18] sm:$0xff]
    %s766 = scalar_lea.vmem %s5, 1
    %v767 = vld [vmem:[%s766] sm:$0x1]
    %v769 = vlaneseq
    %v770 = vshrl.u32 %v769, 7
    %v771 = vsub.s32 0, %v770
    %v772 = vrot.slane %v767, %v771
    %774 = vmatprep.subr.mxu0 0.0
    %775 = vmatpush1.msra.mxu0 %v762
    %776 = vmatprep.subr.mxu0 0.0
    %777 = vmatpush1.msra.mxu0 %v763
    %778 = vmatprep.subr.mxu0 0.0
    %779 = vmatpush1.msra.mxu0 %v764
    %780 = vmatprep.subr.mxu0 0.0
    %781 = vmatpush1.msra.mxu0 %v765
    %782 = vmatprep.subr.mxu0 0.0
    %783 = vmatpush1.msra.mxu0 0.0
    %784 = vmatprep.subr.mxu0 0.0
    %785 = vmatpush1.msra.mxu0 0.0
    %786 = vmatprep.subr.mxu0 0.0
    %787 = vmatpush1.msra.mxu0 0.0
    %788 = vmatprep.subr.mxu0 0.0
    %789 = vmatpush1.msra.mxu0 0.0
    %790 = vmatprep.subr.mxu0 0.0
    %791 = vmatpush1.msra.mxu0 0.0
    %792 = vmatprep.subr.mxu0 0.0
    %793 = vmatpush1.msra.mxu0 0.0
    %794 = vmatprep.subr.mxu0 0.0
    %795 = vmatpush1.msra.mxu0 0.0
    %796 = vmatprep.subr.mxu0 0.0
    %797 = vmatpush1.msra.mxu0 0.0
    %798 = vmatprep.subr.mxu0 0.0
    %799 = vmatpush1.msra.mxu0 0.0
    %800 = vmatprep.subr.mxu0 0.0
    %801 = vmatpush1.msra.mxu0 0.0
    %802 = vmatprep.subr.mxu0 0.0
    %803 = vmatpush1.msra.mxu0 0.0
    %804 = vmatprep.subr.mxu0 0.0
    %805 = vmatpush1.msra.mxu0 0.0
    %806 = vmatprep.subr.mxu0 0.0
    %807 = vmatpush1.msra.mxu0 0.0
    %808 = vmatprep.subr.mxu0 0.0
    %809 = vmatpush1.msra.mxu0 0.0
    %810 = vmatprep.subr.mxu0 0.0
    %811 = vmatpush1.msra.mxu0 0.0
    %812 = vmatprep.subr.mxu0 0.0
    %813 = vmatpush1.msra.mxu0 0.0
    %814 = vmatprep.subr.mxu0 0.0
    %815 = vmatpush1.msra.mxu0 0.0
    %816 = vmatprep.subr.mxu0 0.0
    %817 = vmatpush1.msra.mxu0 0.0
    %818 = vmatprep.subr.mxu0 0.0
    %819 = vmatpush1.msra.mxu0 0.0
    %820 = vmatprep.subr.mxu0 0.0
    %821 = vmatpush1.msra.mxu0 0.0
    %822 = vmatprep.subr.mxu0 0.0
    %823 = vmatpush1.msra.mxu0 0.0
    %824 = vmatprep.subr.mxu0 0.0
    %825 = vmatpush1.msra.mxu0 0.0
    %826 = vmatprep.subr.mxu0 0.0
    %827 = vmatpush1.msra.mxu0 0.0
    %828 = vmatprep.subr.mxu0 0.0
    %829 = vmatpush1.msra.mxu0 0.0
    %830 = vmatprep.subr.mxu0 0.0
    %831 = vmatpush1.msra.mxu0 0.0
    %832 = vmatprep.subr.mxu0 0.0
    %833 = vmatpush1.msra.mxu0 0.0
    %834 = vmatprep.subr.mxu0 0.0
    %835 = vmatpush1.msra.mxu0 0.0
    %836 = vmatprep.subr.mxu0 0.0
    %837 = vmatpush1.msra.mxu0 0.0
    %838 = vmatprep.mubr.f32.mxu0 0.0
    %839 = vmatmul.mubr.f32.gmra.mrb[0].mxu0 %v82
    %v840 = vpop.f32.mrb[0].mxu0
    %v841 = vadd.f32 %v772, %v840
    %v842 = vpop.f32.mrb[0].mxu0
    %843 = vmatprep.mubr.f32.mxu0 0.0
    %844 = vmatmul.mubr.f32.gmra.mrb[0].mxu0 %v85
    %v845 = vpop.f32.mrb[0].mxu0
    %v846 = vadd.f32 %v772, %v845
    %v847 = vpop.f32.mrb[0].mxu0
    %848 = vdwg.mxu0
    %s849 = scalar_lea.vmem %s6, 32
    %v850 = vld [vmem:[%s849] sm:$0xff]
    %v851 = vld [vmem:[%s849 + $0x8] sm:$0xff]
    %v852 = vld [vmem:[%s849 + $0x10] sm:$0xff]
    %v853 = vld [vmem:[%s849 + $0x18] sm:$0xff]
    %s854 = scalar_lea.vmem %s7, 1
    %v855 = vld [vmem:[%s854] sm:$0x1]
    %v857 = vlaneseq
    %v858 = vshrl.u32 %v857, 7
    %v859 = vsub.s32 0, %v858
    %v860 = vrot.slane %v855, %v859
    %862 = vmatprep.subr.mxu0 0.0
    %863 = vmatpush1.msra.mxu0 %v850
    %864 = vmatprep.subr.mxu0 0.0
    %865 = vmatpush1.msra.mxu0 %v851
    %866 = vmatprep.subr.mxu0 0.0
    %867 = vmatpush1.msra.mxu0 %v852
    %868 = vmatprep.subr.mxu0 0.0
    %869 = vmatpush1.msra.mxu0 %v853
    %870 = vmatprep.subr.mxu0 0.0
    %871 = vmatpush1.msra.mxu0 0.0
    %872 = vmatprep.subr.mxu0 0.0
    %873 = vmatpush1.msra.mxu0 0.0
    %874 = vmatprep.subr.mxu0 0.0
    %875 = vmatpush1.msra.mxu0 0.0
    %876 = vmatprep.subr.mxu0 0.0
    %877 = vmatpush1.msra.mxu0 0.0
    %878 = vmatprep.subr.mxu0 0.0
    %879 = vmatpush1.msra.mxu0 0.0
    %880 = vmatprep.subr.mxu0 0.0
    %881 = vmatpush1.msra.mxu0 0.0
    %882 = vmatprep.subr.mxu0 0.0
    %883 = vmatpush1.msra.mxu0 0.0
    %884 = vmatprep.subr.mxu0 0.0
    %885 = vmatpush1.msra.mxu0 0.0
    %886 = vmatprep.subr.mxu0 0.0
    %887 = vmatpush1.msra.mxu0 0.0
    %888 = vmatprep.subr.mxu0 0.0
    %889 = vmatpush1.msra.mxu0 0.0
    %890 = vmatprep.subr.mxu0 0.0
    %891 = vmatpush1.msra.mxu0 0.0
    %892 = vmatprep.subr.mxu0 0.0
    %893 = vmatpush1.msra.mxu0 0.0
    %894 = vmatprep.subr.mxu0 0.0
    %895 = vmatpush1.msra.mxu0 0.0
    %896 = vmatprep.subr.mxu0 0.0
    %897 = vmatpush1.msra.mxu0 0.0
    %898 = vmatprep.subr.mxu0 0.0
    %899 = vmatpush1.msra.mxu0 0.0
    %900 = vmatprep.subr.mxu0 0.0
    %901 = vmatpush1.msra.mxu0 0.0
    %902 = vmatprep.subr.mxu0 0.0
    %903 = vmatpush1.msra.mxu0 0.0
    %904 = vmatprep.subr.mxu0 0.0
    %905 = vmatpush1.msra.mxu0 0.0
    %906 = vmatprep.subr.mxu0 0.0
    %907 = vmatpush1.msra.mxu0 0.0
    %908 = vmatprep.subr.mxu0 0.0
    %909 = vmatpush1.msra.mxu0 0.0
    %910 = vmatprep.subr.mxu0 0.0
    %911 = vmatpush1.msra.mxu0 0.0
    %912 = vmatprep.subr.mxu0 0.0
    %913 = vmatpush1.msra.mxu0 0.0
    %914 = vmatprep.subr.mxu0 0.0
    %915 = vmatpush1.msra.mxu0 0.0
    %916 = vmatprep.subr.mxu0 0.0
    %917 = vmatpush1.msra.mxu0 0.0
    %918 = vmatprep.subr.mxu0 0.0
    %919 = vmatpush1.msra.mxu0 0.0
    %920 = vmatprep.subr.mxu0 0.0
    %921 = vmatpush1.msra.mxu0 0.0
    %922 = vmatprep.subr.mxu0 0.0
    %923 = vmatpush1.msra.mxu0 0.0
    %924 = vmatprep.subr.mxu0 0.0
    %925 = vmatpush1.msra.mxu0 0.0
    %926 = vmatprep.mubr.f32.mxu0 0.0
    %927 = vmatmul.mubr.f32.gmra.mrb[0].mxu0 %v82
    %v928 = vpop.f32.mrb[0].mxu0
    %v929 = vadd.f32 %v860, %v928
    %v930 = vpop.f32.mrb[0].mxu0
    %931 = vmatprep.mubr.f32.mxu0 0.0
    %932 = vmatmul.mubr.f32.gmra.mrb[0].mxu0 %v85
    %v933 = vpop.f32.mrb[0].mxu0
    %v934 = vadd.f32 %v860, %v933
    %v935 = vpop.f32.mrb[0].mxu0
    %936 = vdwg.mxu0
    %s937 = scalar_lea.vmem %s8, 8
    %v938 = vld [vmem:[%s937] sm:$0xff]
    %v940 = vsel %vm335, %v753, 0
    %v943 = vsel %vm335, %v841, 0
    %945 = vmatprep.subr.mxu0 0.0
    %946 = vmatpush1.xpose.msra.mxu0 %v943
    %947 = vmatprep.subr.mxu0 0.0
    %948 = vmatpush1.xpose.msra.mxu0 0.0
    %949 = vmatprep.subr.mxu0 0.0
    %950 = vmatpush1.xpose.msra.mxu0 0.0
    %951 = vmatprep.subr.mxu0 0.0
    %952 = vmatpush1.xpose.msra.mxu0 0.0
    %953 = vmatprep.subr.mxu0 0.0
    %954 = vmatpush1.xpose.msra.mxu0 0.0
    %955 = vmatprep.subr.mxu0 0.0
    %956 = vmatpush1.xpose.msra.mxu0 0.0
    %957 = vmatprep.subr.mxu0 0.0
    %958 = vmatpush1.xpose.msra.mxu0 0.0
    %959 = vmatprep.subr.mxu0 0.0
    %960 = vmatpush1.xpose.msra.mxu0 0.0
    %961 = vmatprep.subr.mxu0 0.0
    %962 = vmatpush1.xpose.msra.mxu0 0.0
    %963 = vmatprep.subr.mxu0 0.0
    %964 = vmatpush1.xpose.msra.mxu0 0.0
    %965 = vmatprep.subr.mxu0 0.0
    %966 = vmatpush1.xpose.msra.mxu0 0.0
    %967 = vmatprep.subr.mxu0 0.0
    %968 = vmatpush1.xpose.msra.mxu0 0.0
    %969 = vmatprep.subr.mxu0 0.0
    %970 = vmatpush1.xpose.msra.mxu0 0.0
    %971 = vmatprep.subr.mxu0 0.0
    %972 = vmatpush1.xpose.msra.mxu0 0.0
    %973 = vmatprep.subr.mxu0 0.0
    %974 = vmatpush1.xpose.msra.mxu0 0.0
    %975 = vmatprep.subr.mxu0 0.0
    %976 = vmatpush1.xpose.msra.mxu0 0.0
    %977 = vmatprep.subr.mxu0 0.0
    %978 = vmatpush1.xpose.msra.mxu0 0.0
    %979 = vmatprep.subr.mxu0 0.0
    %980 = vmatpush1.xpose.msra.mxu0 0.0
    %981 = vmatprep.subr.mxu0 0.0
    %982 = vmatpush1.xpose.msra.mxu0 0.0
    %983 = vmatprep.subr.mxu0 0.0
    %984 = vmatpush1.xpose.msra.mxu0 0.0
    %985 = vmatprep.subr.mxu0 0.0
    %986 = vmatpush1.xpose.msra.mxu0 0.0
    %987 = vmatprep.subr.mxu0 0.0
    %988 = vmatpush1.xpose.msra.mxu0 0.0
    %989 = vmatprep.subr.mxu0 0.0
    %990 = vmatpush1.xpose.msra.mxu0 0.0
    %991 = vmatprep.subr.mxu0 0.0
    %992 = vmatpush1.xpose.msra.mxu0 0.0
    %993 = vmatprep.subr.mxu0 0.0
    %994 = vmatpush1.xpose.msra.mxu0 0.0
    %995 = vmatprep.subr.mxu0 0.0
    %996 = vmatpush1.xpose.msra.mxu0 0.0
    %997 = vmatprep.subr.mxu0 0.0
    %998 = vmatpush1.xpose.msra.mxu0 0.0
    %999 = vmatprep.subr.mxu0 0.0
    %1000 = vmatpush1.xpose.msra.mxu0 0.0
    %1001 = vmatprep.subr.mxu0 0.0
    %1002 = vmatpush1.xpose.msra.mxu0 0.0
    %1003 = vmatprep.subr.mxu0 0.0
    %1004 = vmatpush1.xpose.msra.mxu0 0.0
    %1005 = vmatprep.subr.mxu0 0.0
    %1006 = vmatpush1.xpose.msra.mxu0 0.0
    %1007 = vmatprep.subr.mxu0 0.0
    %1008 = vmatpush1.xpose.msra.mxu0 0.0
    %1009 = vmatprep.mubr.f32.mxu0 0.0
    %1010 = vmatmul.mubr.f32.gmra.mrb[0].mxu0 %v940
    %v1011 = vpop.f32.mrb[0].mxu0
    %v1012 = vadd.f32 0.0, %v1011
    %v1013 = vpop.f32.mrb[0].mxu0
    %1014 = vdwg.mxu0
    %v1015 = vsel %vm417, -10000.0, %v1012
    %v1016 = vsel %vm335, %v1015, -inf
    %1017 = vmax.xlane.f32.xlu0 %v1016
    %v1018 = vpop.xlane.xlu0 %1017
    %v1019 = vsub.f32 %v1015, %v1018
    %v1020 = vmul.f32 %v1019, 1.442695
    %v1021 = vpow.pop %v1020
    %v1022 = vsel %vm335, %v1021, 0.0
    %1023 = vadd.xlane.f32.xlu0 %v1022
    %v1024 = vpop.xlane.xlu0 %1023
    %v1025 = vrcp.pop %v1024
    %v1026 = vmul.f32 %v1021, %v1025
    %s1027 = scalar_lea.vmem [#allocation4], 8
    %1028 = vst.msk [vmem:[%s1027] sm:$0xff] %vm335, %v1026
    %v1030 = vsel %vm335, %v1026, 0
    %1032 = vmatprep.subr.mxu0 0.0
    %1033 = vmatpush1.msra.mxu0 %v929
    %1034 = vmatprep.subr.mxu0 0.0
    %1035 = vmatpush1.msra.mxu0 0.0
    %1036 = vmatprep.subr.mxu0 0.0
    %1037 = vmatpush1.msra.mxu0 0.0
    %1038 = vmatprep.subr.mxu0 0.0
    %1039 = vmatpush1.msra.mxu0 0.0
    %1040 = vmatprep.subr.mxu0 0.0
    %1041 = vmatpush1.msra.mxu0 0.0
    %1042 = vmatprep.subr.mxu0 0.0
    %1043 = vmatpush1.msra.mxu0 0.0
    %1044 = vmatprep.subr.mxu0 0.0
    %1045 = vmatpush1.msra.mxu0 0.0
    %1046 = vmatprep.subr.mxu0 0.0
    %1047 = vmatpush1.msra.mxu0 0.0
    %1048 = vmatprep.subr.mxu0 0.0
    %1049 = vmatpush1.msra.mxu0 0.0
    %1050 = vmatprep.subr.mxu0 0.0
    %1051 = vmatpush1.msra.mxu0 0.0
    %1052 = vmatprep.subr.mxu0 0.0
    %1053 = vmatpush1.msra.mxu0 0.0
    %1054 = vmatprep.subr.mxu0 0.0
    %1055 = vmatpush1.msra.mxu0 0.0
    %1056 = vmatprep.subr.mxu0 0.0
    %1057 = vmatpush1.msra.mxu0 0.0
    %1058 = vmatprep.subr.mxu0 0.0
    %1059 = vmatpush1.msra.mxu0 0.0
    %1060 = vmatprep.subr.mxu0 0.0
    %1061 = vmatpush1.msra.mxu0 0.0
    %1062 = vmatprep.subr.mxu0 0.0
    %1063 = vmatpush1.msra.mxu0 0.0
    %1064 = vmatprep.subr.mxu0 0.0
    %1065 = vmatpush1.msra.mxu0 0.0
    %1066 = vmatprep.subr.mxu0 0.0
    %1067 = vmatpush1.msra.mxu0 0.0
    %1068 = vmatprep.subr.mxu0 0.0
    %1069 = vmatpush1.msra.mxu0 0.0
    %1070 = vmatprep.subr.mxu0 0.0
    %1071 = vmatpush1.msra.mxu0 0.0
    %1072 = vmatprep.subr.mxu0 0.0
    %1073 = vmatpush1.msra.mxu0 0.0
    %1074 = vmatprep.subr.mxu0 0.0
    %1075 = vmatpush1.msra.mxu0 0.0
    %1076 = vmatprep.subr.mxu0 0.0
    %1077 = vmatpush1.msra.mxu0 0.0
    %1078 = vmatprep.subr.mxu0 0.0
    %1079 = vmatpush1.msra.mxu0 0.0
    %1080 = vmatprep.subr.mxu0 0.0
    %1081 = vmatpush1.msra.mxu0 0.0
    %1082 = vmatprep.subr.mxu0 0.0
    %1083 = vmatpush1.msra.mxu0 0.0
    %1084 = vmatprep.subr.mxu0 0.0
    %1085 = vmatpush1.msra.mxu0 0.0
    %1086 = vmatprep.subr.mxu0 0.0
    %1087 = vmatpush1.msra.mxu0 0.0
    %1088 = vmatprep.subr.mxu0 0.0
    %1089 = vmatpush1.msra.mxu0 0.0
    %1090 = vmatprep.subr.mxu0 0.0
    %1091 = vmatpush1.msra.mxu0 0.0
    %1092 = vmatprep.subr.mxu0 0.0
    %1093 = vmatpush1.msra.mxu0 0.0
    %1094 = vmatprep.subr.mxu0 0.0
    %1095 = vmatpush1.msra.mxu0 0.0
    %1096 = vmatprep.mubr.f32.mxu0 0.0
    %1097 = vmatmul.mubr.f32.gmra.mrb[0].mxu0 %v1030
    %v1098 = vpop.f32.mrb[0].mxu0
    %v1099 = vadd.f32 0.0, %v1098
    %v1100 = vpop.f32.mrb[0].mxu0
    %1101 = vdwg.mxu0
    %v1103 = vsel %vm335, %v1099, 0
    %1105 = vmatprep.subr.mxu0 0.0
    %1106 = vmatpush1.msra.mxu0 %v938
    %1107 = vmatprep.subr.mxu0 0.0
    %1108 = vmatpush1.msra.mxu0 0.0
    %1109 = vmatprep.subr.mxu0 0.0
    %1110 = vmatpush1.msra.mxu0 0.0
    %1111 = vmatprep.subr.mxu0 0.0
    %1112 = vmatpush1.msra.mxu0 0.0
    %1113 = vmatprep.subr.mxu0 0.0
    %1114 = vmatpush1.msra.mxu0 0.0
    %1115 = vmatprep.subr.mxu0 0.0
    %1116 = vmatpush1.msra.mxu0 0.0
    %1117 = vmatprep.subr.mxu0 0.0
    %1118 = vmatpush1.msra.mxu0 0.0
    %1119 = vmatprep.subr.mxu0 0.0
    %1120 = vmatpush1.msra.mxu0 0.0
    %1121 = vmatprep.subr.mxu0 0.0
    %1122 = vmatpush1.msra.mxu0 0.0
    %1123 = vmatprep.subr.mxu0 0.0
    %1124 = vmatpush1.msra.mxu0 0.0
    %1125 = vmatprep.subr.mxu0 0.0
    %1126 = vmatpush1.msra.mxu0 0.0
    %1127 = vmatprep.subr.mxu0 0.0
    %1128 = vmatpush1.msra.mxu0 0.0
    %1129 = vmatprep.subr.mxu0 0.0
    %1130 = vmatpush1.msra.mxu0 0.0
    %1131 = vmatprep.subr.mxu0 0.0
    %1132 = vmatpush1.msra.mxu0 0.0
    %1133 = vmatprep.subr.mxu0 0.0
    %1134 = vmatpush1.msra.mxu0 0.0
    %1135 = vmatprep.subr.mxu0 0.0
    %1136 = vmatpush1.msra.mxu0 0.0
    %1137 = vmatprep.subr.mxu0 0.0
    %1138 = vmatpush1.msra.mxu0 0.0
    %1139 = vmatprep.subr.mxu0 0.0
    %1140 = vmatpush1.msra.mxu0 0.0
    %1141 = vmatprep.subr.mxu0 0.0
    %1142 = vmatpush1.msra.mxu0 0.0
    %1143 = vmatprep.subr.mxu0 0.0
    %1144 = vmatpush1.msra.mxu0 0.0
    %1145 = vmatprep.subr.mxu0 0.0
    %1146 = vmatpush1.msra.mxu0 0.0
    %1147 = vmatprep.subr.mxu0 0.0
    %1148 = vmatpush1.msra.mxu0 0.0
    %1149 = vmatprep.subr.mxu0 0.0
    %1150 = vmatpush1.msra.mxu0 0.0
    %1151 = vmatprep.subr.mxu0 0.0
    %1152 = vmatpush1.msra.mxu0 0.0
    %1153 = vmatprep.subr.mxu0 0.0
    %1154 = vmatpush1.msra.mxu0 0.0
    %1155 = vmatprep.subr.mxu0 0.0
    %1156 = vmatpush1.msra.mxu0 0.0
    %1157 = vmatprep.subr.mxu0 0.0
    %1158 = vmatpush1.msra.mxu0 0.0
    %1159 = vmatprep.subr.mxu0 0.0
    %1160 = vmatpush1.msra.mxu0 0.0
    %1161 = vmatprep.subr.mxu0 0.0
    %1162 = vmatpush1.msra.mxu0 0.0
    %1163 = vmatprep.subr.mxu0 0.0
    %1164 = vmatpush1.msra.mxu0 0.0
    %1165 = vmatprep.subr.mxu0 0.0
    %1166 = vmatpush1.msra.mxu0 0.0
    %1167 = vmatprep.subr.mxu0 0.0
    %1168 = vmatpush1.msra.mxu0 0.0
    %1169 = vmatprep.mubr.f32.mxu0 0.0
    %1170 = vmatmul.mubr.f32.gmra.mrb[0].mxu0 %v1103
    %v1171 = vpop.f32.mrb[0].mxu0
    %v1172 = vadd.f32 0.0, %v1171
    %v1173 = vpop.f32.mrb[0].mxu0
    %1174 = vdwg.mxu0
    %v1176 = vsel %vm335, %v501, 0
    %1178 = vmatprep.subr.mxu0 0.0
    %1179 = vmatpush1.msra.mxu0 %v334
    %1180 = vmatprep.subr.mxu0 0.0
    %1181 = vmatpush1.msra.mxu0 0.0
    %1182 = vmatprep.subr.mxu0 0.0
    %1183 = vmatpush1.msra.mxu0 0.0
    %1184 = vmatprep.subr.mxu0 0.0
    %1185 = vmatpush1.msra.mxu0 0.0
    %1186 = vmatprep.subr.mxu0 0.0
    %1187 = vmatpush1.msra.mxu0 0.0
    %1188 = vmatprep.subr.mxu0 0.0
    %1189 = vmatpush1.msra.mxu0 0.0
    %1190 = vmatprep.subr.mxu0 0.0
    %1191 = vmatpush1.msra.mxu0 0.0
    %1192 = vmatprep.subr.mxu0 0.0
    %1193 = vmatpush1.msra.mxu0 0.0
    %1194 = vmatprep.subr.mxu0 0.0
    %1195 = vmatpush1.msra.mxu0 0.0
    %1196 = vmatprep.subr.mxu0 0.0
    %1197 = vmatpush1.msra.mxu0 0.0
    %1198 = vmatprep.subr.mxu0 0.0
    %1199 = vmatpush1.msra.mxu0 0.0
    %1200 = vmatprep.subr.mxu0 0.0
    %1201 = vmatpush1.msra.mxu0 0.0
    %1202 = vmatprep.subr.mxu0 0.0
    %1203 = vmatpush1.msra.mxu0 0.0
    %1204 = vmatprep.subr.mxu0 0.0
    %1205 = vmatpush1.msra.mxu0 0.0
    %1206 = vmatprep.subr.mxu0 0.0
    %1207 = vmatpush1.msra.mxu0 0.0
    %1208 = vmatprep.subr.mxu0 0.0
    %1209 = vmatpush1.msra.mxu0 0.0
    %1210 = vmatprep.subr.mxu0 0.0
    %1211 = vmatpush1.msra.mxu0 0.0
    %1212 = vmatprep.subr.mxu0 0.0
    %1213 = vmatpush1.msra.mxu0 0.0
    %1214 = vmatprep.subr.mxu0 0.0
    %1215 = vmatpush1.msra.mxu0 0.0
    %1216 = vmatprep.subr.mxu0 0.0
    %1217 = vmatpush1.msra.mxu0 0.0
    %1218 = vmatprep.subr.mxu0 0.0
    %1219 = vmatpush1.msra.mxu0 0.0
    %1220 = vmatprep.subr.mxu0 0.0
    %1221 = vmatpush1.msra.mxu0 0.0
    %1222 = vmatprep.subr.mxu0 0.0
    %1223 = vmatpush1.msra.mxu0 0.0
    %1224 = vmatprep.subr.mxu0 0.0
    %1225 = vmatpush1.msra.mxu0 0.0
    %1226 = vmatprep.subr.mxu0 0.0
    %1227 = vmatpush1.msra.mxu0 0.0
    %1228 = vmatprep.subr.mxu0 0.0
    %1229 = vmatpush1.msra.mxu0 0.0
    %1230 = vmatprep.subr.mxu0 0.0
    %1231 = vmatpush1.msra.mxu0 0.0
    %1232 = vmatprep.subr.mxu0 0.0
    %1233 = vmatpush1.msra.mxu0 0.0
    %1234 = vmatprep.subr.mxu0 0.0
    %1235 = vmatpush1.msra.mxu0 0.0
    %1236 = vmatprep.subr.mxu0 0.0
    %1237 = vmatpush1.msra.mxu0 0.0
    %1238 = vmatprep.subr.mxu0 0.0
    %1239 = vmatpush1.msra.mxu0 0.0
    %1240 = vmatprep.subr.mxu0 0.0
    %1241 = vmatpush1.msra.mxu0 0.0
    %1242 = vmatprep.mubr.f32.mxu0 0.0
    %1243 = vmatmul.mubr.f32.gmra.mrb[0].mxu0 %v1176
    %v1244 = vpop.f32.mrb[0].mxu0
    %v1245 = vadd.f32 %v1172, %v1244
    %v1246 = vpop.f32.mrb[0].mxu0
    %1247 = vdwg.mxu0
    %v1249 = vsel %vm335, %v758, 0
    %v1252 = vsel %vm335, %v846, 0
    %1254 = vmatprep.subr.mxu0 0.0
    %1255 = vmatpush1.xpose.msra.mxu0 %v1252
    %1256 = vmatprep.subr.mxu0 0.0
    %1257 = vmatpush1.xpose.msra.mxu0 0.0
    %1258 = vmatprep.subr.mxu0 0.0
    %1259 = vmatpush1.xpose.msra.mxu0 0.0
    %1260 = vmatprep.subr.mxu0 0.0
    %1261 = vmatpush1.xpose.msra.mxu0 0.0
    %1262 = vmatprep.subr.mxu0 0.0
    %1263 = vmatpush1.xpose.msra.mxu0 0.0
    %1264 = vmatprep.subr.mxu0 0.0
    %1265 = vmatpush1.xpose.msra.mxu0 0.0
    %1266 = vmatprep.subr.mxu0 0.0
    %1267 = vmatpush1.xpose.msra.mxu0 0.0
    %1268 = vmatprep.subr.mxu0 0.0
    %1269 = vmatpush1.xpose.msra.mxu0 0.0
    %1270 = vmatprep.subr.mxu0 0.0
    %1271 = vmatpush1.xpose.msra.mxu0 0.0
    %1272 = vmatprep.subr.mxu0 0.0
    %1273 = vmatpush1.xpose.msra.mxu0 0.0
    %1274 = vmatprep.subr.mxu0 0.0
    %1275 = vmatpush1.xpose.msra.mxu0 0.0
    %1276 = vmatprep.subr.mxu0 0.0
    %1277 = vmatpush1.xpose.msra.mxu0 0.0
    %1278 = vmatprep.subr.mxu0 0.0
    %1279 = vmatpush1.xpose.msra.mxu0 0.0
    %1280 = vmatprep.subr.mxu0 0.0
    %1281 = vmatpush1.xpose.msra.mxu0 0.0
    %1282 = vmatprep.subr.mxu0 0.0
    %1283 = vmatpush1.xpose.msra.mxu0 0.0
    %1284 = vmatprep.subr.mxu0 0.0
    %1285 = vmatpush1.xpose.msra.mxu0 0.0
    %1286 = vmatprep.subr.mxu0 0.0
    %1287 = vmatpush1.xpose.msra.mxu0 0.0
    %1288 = vmatprep.subr.mxu0 0.0
    %1289 = vmatpush1.xpose.msra.mxu0 0.0
    %1290 = vmatprep.subr.mxu0 0.0
    %1291 = vmatpush1.xpose.msra.mxu0 0.0
    %1292 = vmatprep.subr.mxu0 0.0
    %1293 = vmatpush1.xpose.msra.mxu0 0.0
    %1294 = vmatprep.subr.mxu0 0.0
    %1295 = vmatpush1.xpose.msra.mxu0 0.0
    %1296 = vmatprep.subr.mxu0 0.0
    %1297 = vmatpush1.xpose.msra.mxu0 0.0
    %1298 = vmatprep.subr.mxu0 0.0
    %1299 = vmatpush1.xpose.msra.mxu0 0.0
    %1300 = vmatprep.subr.mxu0 0.0
    %1301 = vmatpush1.xpose.msra.mxu0 0.0
    %1302 = vmatprep.subr.mxu0 0.0
    %1303 = vmatpush1.xpose.msra.mxu0 0.0
    %1304 = vmatprep.subr.mxu0 0.0
    %1305 = vmatpush1.xpose.msra.mxu0 0.0
    %1306 = vmatprep.subr.mxu0 0.0
    %1307 = vmatpush1.xpose.msra.mxu0 0.0
    %1308 = vmatprep.subr.mxu0 0.0
    %1309 = vmatpush1.xpose.msra.mxu0 0.0
    %1310 = vmatprep.subr.mxu0 0.0
    %1311 = vmatpush1.xpose.msra.mxu0 0.0
    %1312 = vmatprep.subr.mxu0 0.0
    %1313 = vmatpush1.xpose.msra.mxu0 0.0
    %1314 = vmatprep.subr.mxu0 0.0
    %1315 = vmatpush1.xpose.msra.mxu0 0.0
    %1316 = vmatprep.subr.mxu0 0.0
    %1317 = vmatpush1.xpose.msra.mxu0 0.0
    %1318 = vmatprep.mubr.f32.mxu0 0.0
    %1319 = vmatmul.mubr.f32.gmra.mrb[0].mxu0 %v1249
    %v1320 = vpop.f32.mrb[0].mxu0
    %v1321 = vadd.f32 0.0, %v1320
    %v1322 = vpop.f32.mrb[0].mxu0
    %1323 = vdwg.mxu0
    %v1324 = vsel %vm585, -10000.0, %v1321
    %v1325 = vsel %vm335, %v1324, -inf
    %1326 = vmax.xlane.f32.xlu0 %v1325
    %v1327 = vpop.xlane.xlu0 %1326
    %v1328 = vsub.f32 %v1324, %v1327
    %v1329 = vmul.f32 %v1328, 1.442695
    %v1330 = vpow.pop %v1329
    %v1331 = vsel %vm335, %v1330, 0.0
    %1332 = vadd.xlane.f32.xlu0 %v1331
    %v1333 = vpop.xlane.xlu0 %1332
    %v1334 = vrcp.pop %v1333
    %v1335 = vmul.f32 %v1330, %v1334
    %s1336 = scalar_lea.vmem [#allocation4], 40
    %1337 = vst.msk [vmem:[%s1336] sm:$0xff] %vm335, %v1335
    %v1339 = vsel %vm335, %v1335, 0
    %1341 = vmatprep.subr.mxu0 0.0
    %1342 = vmatpush1.msra.mxu0 %v934
    %1343 = vmatprep.subr.mxu0 0.0
    %1344 = vmatpush1.msra.mxu0 0.0
    %1345 = vmatprep.subr.mxu0 0.0
    %1346 = vmatpush1.msra.mxu0 0.0
    %1347 = vmatprep.subr.mxu0 0.0
    %1348 = vmatpush1.msra.mxu0 0.0
    %1349 = vmatprep.subr.mxu0 0.0
    %1350 = vmatpush1.msra.mxu0 0.0
    %1351 = vmatprep.subr.mxu0 0.0
    %1352 = vmatpush1.msra.mxu0 0.0
    %1353 = vmatprep.subr.mxu0 0.0
    %1354 = vmatpush1.msra.mxu0 0.0
    %1355 = vmatprep.subr.mxu0 0.0
    %1356 = vmatpush1.msra.mxu0 0.0
    %1357 = vmatprep.subr.mxu0 0.0
    %1358 = vmatpush1.msra.mxu0 0.0
    %1359 = vmatprep.subr.mxu0 0.0
    %1360 = vmatpush1.msra.mxu0 0.0
    %1361 = vmatprep.subr.mxu0 0.0
    %1362 = vmatpush1.msra.mxu0 0.0
    %1363 = vmatprep.subr.mxu0 0.0
    %1364 = vmatpush1.msra.mxu0 0.0
    %1365 = vmatprep.subr.mxu0 0.0
    %1366 = vmatpush1.msra.mxu0 0.0
    %1367 = vmatprep.subr.mxu0 0.0
    %1368 = vmatpush1.msra.mxu0 0.0
    %1369 = vmatprep.subr.mxu0 0.0
    %1370 = vmatpush1.msra.mxu0 0.0
    %1371 = vmatprep.subr.mxu0 0.0
    %1372 = vmatpush1.msra.mxu0 0.0
    %1373 = vmatprep.subr.mxu0 0.0
    %1374 = vmatpush1.msra.mxu0 0.0
    %1375 = vmatprep.subr.mxu0 0.0
    %1376 = vmatpush1.msra.mxu0 0.0
    %1377 = vmatprep.subr.mxu0 0.0
    %1378 = vmatpush1.msra.mxu0 0.0
    %1379 = vmatprep.subr.mxu0 0.0
    %1380 = vmatpush1.msra.mxu0 0.0
    %1381 = vmatprep.subr.mxu0 0.0
    %1382 = vmatpush1.msra.mxu0 0.0
    %1383 = vmatprep.subr.mxu0 0.0
    %1384 = vmatpush1.msra.mxu0 0.0
    %1385 = vmatprep.subr.mxu0 0.0
    %1386 = vmatpush1.msra.mxu0 0.0
    %1387 = vmatprep.subr.mxu0 0.0
    %1388 = vmatpush1.msra.mxu0 0.0
    %1389 = vmatprep.subr.mxu0 0.0
    %1390 = vmatpush1.msra.mxu0 0.0
    %1391 = vmatprep.subr.mxu0 0.0
    %1392 = vmatpush1.msra.mxu0 0.0
    %1393 = vmatprep.subr.mxu0 0.0
    %1394 = vmatpush1.msra.mxu0 0.0
    %1395 = vmatprep.subr.mxu0 0.0
    %1396 = vmatpush1.msra.mxu0 0.0
    %1397 = vmatprep.subr.mxu0 0.0
    %1398 = vmatpush1.msra.mxu0 0.0
    %1399 = vmatprep.subr.mxu0 0.0
    %1400 = vmatpush1.msra.mxu0 0.0
    %1401 = vmatprep.subr.mxu0 0.0
    %1402 = vmatpush1.msra.mxu0 0.0
    %1403 = vmatprep.subr.mxu0 0.0
    %1404 = vmatpush1.msra.mxu0 0.0
    %1405 = vmatprep.mubr.f32.mxu0 0.0
    %1406 = vmatmul.mubr.f32.gmra.mrb[0].mxu0 %v1339
    %v1407 = vpop.f32.mrb[0].mxu0
    %v1408 = vadd.f32 0.0, %v1407
    %v1409 = vpop.f32.mrb[0].mxu0
    %1410 = vdwg.mxu0
    %v1412 = vsel %vm335, %v1408, 0
    %1414 = vmatprep.subr.mxu0 0.0
    %1415 = vmatpush1.msra.mxu0 %v938
    %1416 = vmatprep.subr.mxu0 0.0
    %1417 = vmatpush1.msra.mxu0 0.0
    %1418 = vmatprep.subr.mxu0 0.0
    %1419 = vmatpush1.msra.mxu0 0.0
    %1420 = vmatprep.subr.mxu0 0.0
    %1421 = vmatpush1.msra.mxu0 0.0
    %1422 = vmatprep.subr.mxu0 0.0
    %1423 = vmatpush1.msra.mxu0 0.0
    %1424 = vmatprep.subr.mxu0 0.0
    %1425 = vmatpush1.msra.mxu0 0.0
    %1426 = vmatprep.subr.mxu0 0.0
    %1427 = vmatpush1.msra.mxu0 0.0
    %1428 = vmatprep.subr.mxu0 0.0
    %1429 = vmatpush1.msra.mxu0 0.0
    %1430 = vmatprep.subr.mxu0 0.0
    %1431 = vmatpush1.msra.mxu0 0.0
    %1432 = vmatprep.subr.mxu0 0.0
    %1433 = vmatpush1.msra.mxu0 0.0
    %1434 = vmatprep.subr.mxu0 0.0
    %1435 = vmatpush1.msra.mxu0 0.0
    %1436 = vmatprep.subr.mxu0 0.0
    %1437 = vmatpush1.msra.mxu0 0.0
    %1438 = vmatprep.subr.mxu0 0.0
    %1439 = vmatpush1.msra.mxu0 0.0
    %1440 = vmatprep.subr.mxu0 0.0
    %1441 = vmatpush1.msra.mxu0 0.0
    %1442 = vmatprep.subr.mxu0 0.0
    %1443 = vmatpush1.msra.mxu0 0.0
    %1444 = vmatprep.subr.mxu0 0.0
    %1445 = vmatpush1.msra.mxu0 0.0
    %1446 = vmatprep.subr.mxu0 0.0
    %1447 = vmatpush1.msra.mxu0 0.0
    %1448 = vmatprep.subr.mxu0 0.0
    %1449 = vmatpush1.msra.mxu0 0.0
    %1450 = vmatprep.subr.mxu0 0.0
    %1451 = vmatpush1.msra.mxu0 0.0
    %1452 = vmatprep.subr.mxu0 0.0
    %1453 = vmatpush1.msra.mxu0 0.0
    %1454 = vmatprep.subr.mxu0 0.0
    %1455 = vmatpush1.msra.mxu0 0.0
    %1456 = vmatprep.subr.mxu0 0.0
    %1457 = vmatpush1.msra.mxu0 0.0
    %1458 = vmatprep.subr.mxu0 0.0
    %1459 = vmatpush1.msra.mxu0 0.0
    %1460 = vmatprep.subr.mxu0 0.0
    %1461 = vmatpush1.msra.mxu0 0.0
    %1462 = vmatprep.subr.mxu0 0.0
    %1463 = vmatpush1.msra.mxu0 0.0
    %1464 = vmatprep.subr.mxu0 0.0
    %1465 = vmatpush1.msra.mxu0 0.0
    %1466 = vmatprep.subr.mxu0 0.0
    %1467 = vmatpush1.msra.mxu0 0.0
    %1468 = vmatprep.subr.mxu0 0.0
    %1469 = vmatpush1.msra.mxu0 0.0
    %1470 = vmatprep.subr.mxu0 0.0
    %1471 = vmatpush1.msra.mxu0 0.0
    %1472 = vmatprep.subr.mxu0 0.0
    %1473 = vmatpush1.msra.mxu0 0.0
    %1474 = vmatprep.subr.mxu0 0.0
    %1475 = vmatpush1.msra.mxu0 0.0
    %1476 = vmatprep.subr.mxu0 0.0
    %1477 = vmatpush1.msra.mxu0 0.0
    %1478 = vmatprep.mubr.f32.mxu0 0.0
    %1479 = vmatmul.mubr.f32.gmra.mrb[0].mxu0 %v1412
    %v1480 = vpop.f32.mrb[0].mxu0
    %v1481 = vadd.f32 0.0, %v1480
    %v1482 = vpop.f32.mrb[0].mxu0
    %1483 = vdwg.mxu0
    %v1485 = vsel %vm335, %v670, 0
    %1487 = vmatprep.subr.mxu0 0.0
    %1488 = vmatpush1.msra.mxu0 %v334
    %1489 = vmatprep.subr.mxu0 0.0
    %1490 = vmatpush1.msra.mxu0 0.0
    %1491 = vmatprep.subr.mxu0 0.0
    %1492 = vmatpush1.msra.mxu0 0.0
    %1493 = vmatprep.subr.mxu0 0.0
    %1494 = vmatpush1.msra.mxu0 0.0
    %1495 = vmatprep.subr.mxu0 0.0
    %1496 = vmatpush1.msra.mxu0 0.0
    %1497 = vmatprep.subr.mxu0 0.0
    %1498 = vmatpush1.msra.mxu0 0.0
    %1499 = vmatprep.subr.mxu0 0.0
    %1500 = vmatpush1.msra.mxu0 0.0
    %1501 = vmatprep.subr.mxu0 0.0
    %1502 = vmatpush1.msra.mxu0 0.0
    %1503 = vmatprep.subr.mxu0 0.0
    %1504 = vmatpush1.msra.mxu0 0.0
    %1505 = vmatprep.subr.mxu0 0.0
    %1506 = vmatpush1.msra.mxu0 0.0
    %1507 = vmatprep.subr.mxu0 0.0
    %1508 = vmatpush1.msra.mxu0 0.0
    %1509 = vmatprep.subr.mxu0 0.0
    %1510 = vmatpush1.msra.mxu0 0.0
    %1511 = vmatprep.subr.mxu0 0.0
    %1512 = vmatpush1.msra.mxu0 0.0
    %1513 = vmatprep.subr.mxu0 0.0
    %1514 = vmatpush1.msra.mxu0 0.0
    %1515 = vmatprep.subr.mxu0 0.0
    %1516 = vmatpush1.msra.mxu0 0.0
    %1517 = vmatprep.subr.mxu0 0.0
    %1518 = vmatpush1.msra.mxu0 0.0
    %1519 = vmatprep.subr.mxu0 0.0
    %1520 = vmatpush1.msra.mxu0 0.0
    %1521 = vmatprep.subr.mxu0 0.0
    %1522 = vmatpush1.msra.mxu0 0.0
    %1523 = vmatprep.subr.mxu0 0.0
    %1524 = vmatpush1.msra.mxu0 0.0
    %1525 = vmatprep.subr.mxu0 0.0
    %1526 = vmatpush1.msra.mxu0 0.0
    %1527 = vmatprep.subr.mxu0 0.0
    %1528 = vmatpush1.msra.mxu0 0.0
    %1529 = vmatprep.subr.mxu0 0.0
    %1530 = vmatpush1.msra.mxu0 0.0
    %1531 = vmatprep.subr.mxu0 0.0
    %1532 = vmatpush1.msra.mxu0 0.0
    %1533 = vmatprep.subr.mxu0 0.0
    %1534 = vmatpush1.msra.mxu0 0.0
    %1535 = vmatprep.subr.mxu0 0.0
    %1536 = vmatpush1.msra.mxu0 0.0
    %1537 = vmatprep.subr.mxu0 0.0
    %1538 = vmatpush1.msra.mxu0 0.0
    %1539 = vmatprep.subr.mxu0 0.0
    %1540 = vmatpush1.msra.mxu0 0.0
    %1541 = vmatprep.subr.mxu0 0.0
    %1542 = vmatpush1.msra.mxu0 0.0
    %1543 = vmatprep.subr.mxu0 0.0
    %1544 = vmatpush1.msra.mxu0 0.0
    %1545 = vmatprep.subr.mxu0 0.0
    %1546 = vmatpush1.msra.mxu0 0.0
    %1547 = vmatprep.subr.mxu0 0.0
    %1548 = vmatpush1.msra.mxu0 0.0
    %1549 = vmatprep.subr.mxu0 0.0
    %1550 = vmatpush1.msra.mxu0 0.0
    %1551 = vmatprep.mubr.f32.mxu0 0.0
    %1552 = vmatmul.mubr.f32.gmra.mrb[0].mxu0 %v1485
    %v1553 = vpop.f32.mrb[0].mxu0
    %v1554 = vadd.f32 %v1481, %v1553
    %v1555 = vpop.f32.mrb[0].mxu0
    %1556 = vdwg.mxu0
    %s1557 = scalar_lea.vmem %s2, 64
    %v1558 = vld [vmem:[%s1557] sm:$0xff]
    %v1559 = vld [vmem:[%s1557 + $0x8] sm:$0xff]
    %v1560 = vld [vmem:[%s1557 + $0x10] sm:$0xff]
    %v1561 = vld [vmem:[%s1557 + $0x18] sm:$0xff]
    %s1562 = scalar_lea.vmem %s3, 2
    %v1563 = vld [vmem:[%s1562] sm:$0x1]
    %v1565 = vlaneseq
    %v1566 = vshrl.u32 %v1565, 7
    %v1567 = vsub.s32 0, %v1566
    %v1568 = vrot.slane %v1563, %v1567
    %1570 = vmatprep.subr.mxu0 0.0
    %1571 = vmatpush1.msra.mxu0 %v1558
    %1572 = vmatprep.subr.mxu0 0.0
    %1573 = vmatpush1.msra.mxu0 %v1559
    %1574 = vmatprep.subr.mxu0 0.0
    %1575 = vmatpush1.msra.mxu0 %v1560
    %1576 = vmatprep.subr.mxu0 0.0
    %1577 = vmatpush1.msra.mxu0 %v1561
    %1578 = vmatprep.subr.mxu0 0.0
    %1579 = vmatpush1.msra.mxu0 0.0
    %1580 = vmatprep.subr.mxu0 0.0
    %1581 = vmatpush1.msra.mxu0 0.0
    %1582 = vmatprep.subr.mxu0 0.0
    %1583 = vmatpush1.msra.mxu0 0.0
    %1584 = vmatprep.subr.mxu0 0.0
    %1585 = vmatpush1.msra.mxu0 0.0
    %1586 = vmatprep.subr.mxu0 0.0
    %1587 = vmatpush1.msra.mxu0 0.0
    %1588 = vmatprep.subr.mxu0 0.0
    %1589 = vmatpush1.msra.mxu0 0.0
    %1590 = vmatprep.subr.mxu0 0.0
    %1591 = vmatpush1.msra.mxu0 0.0
    %1592 = vmatprep.subr.mxu0 0.0
    %1593 = vmatpush1.msra.mxu0 0.0
    %1594 = vmatprep.subr.mxu0 0.0
    %1595 = vmatpush1.msra.mxu0 0.0
    %1596 = vmatprep.subr.mxu0 0.0
    %1597 = vmatpush1.msra.mxu0 0.0
    %1598 = vmatprep.subr.mxu0 0.0
    %1599 = vmatpush1.msra.mxu0 0.0
    %1600 = vmatprep.subr.mxu0 0.0
    %1601 = vmatpush1.msra.mxu0 0.0
    %1602 = vmatprep.subr.mxu0 0.0
    %1603 = vmatpush1.msra.mxu0 0.0
    %1604 = vmatprep.subr.mxu0 0.0
    %1605 = vmatpush1.msra.mxu0 0.0
    %1606 = vmatprep.subr.mxu0 0.0
    %1607 = vmatpush1.msra.mxu0 0.0
    %1608 = vmatprep.subr.mxu0 0.0
    %1609 = vmatpush1.msra.mxu0 0.0
    %1610 = vmatprep.subr.mxu0 0.0
    %1611 = vmatpush1.msra.mxu0 0.0
    %1612 = vmatprep.subr.mxu0 0.0
    %1613 = vmatpush1.msra.mxu0 0.0
    %1614 = vmatprep.subr.mxu0 0.0
    %1615 = vmatpush1.msra.mxu0 0.0
    %1616 = vmatprep.subr.mxu0 0.0
    %1617 = vmatpush1.msra.mxu0 0.0
    %1618 = vmatprep.subr.mxu0 0.0
    %1619 = vmatpush1.msra.mxu0 0.0
    %1620 = vmatprep.subr.mxu0 0.0
    %1621 = vmatpush1.msra.mxu0 0.0
    %1622 = vmatprep.subr.mxu0 0.0
    %1623 = vmatpush1.msra.mxu0 0.0
    %1624 = vmatprep.subr.mxu0 0.0
    %1625 = vmatpush1.msra.mxu0 0.0
    %1626 = vmatprep.subr.mxu0 0.0
    %1627 = vmatpush1.msra.mxu0 0.0
    %1628 = vmatprep.subr.mxu0 0.0
    %1629 = vmatpush1.msra.mxu0 0.0
    %1630 = vmatprep.subr.mxu0 0.0
    %1631 = vmatpush1.msra.mxu0 0.0
    %1632 = vmatprep.subr.mxu0 0.0
    %1633 = vmatpush1.msra.mxu0 0.0
    %1634 = vmatprep.mubr.f32.mxu0 0.0
    %1635 = vmatmul.mubr.f32.gmra.mrb[0].mxu0 %v82
    %v1636 = vpop.f32.mrb[0].mxu0
    %v1637 = vadd.f32 %v1568, %v1636
    %v1638 = vpop.f32.mrb[0].mxu0
    %1639 = vmatprep.mubr.f32.mxu0 0.0
    %1640 = vmatmul.mubr.f32.gmra.mrb[0].mxu0 %v85
    %v1641 = vpop.f32.mrb[0].mxu0
    %v1642 = vadd.f32 %v1568, %v1641
    %v1643 = vpop.f32.mrb[0].mxu0
    %1644 = vdwg.mxu0
    %s1645 = scalar_lea.vmem %s4, 64
    %v1646 = vld [vmem:[%s1645] sm:$0xff]
    %v1647 = vld [vmem:[%s1645 + $0x8] sm:$0xff]
    %v1648 = vld [vmem:[%s1645 + $0x10] sm:$0xff]
    %v1649 = vld [vmem:[%s1645 + $0x18] sm:$0xff]
    %s1650 = scalar_lea.vmem %s5, 2
    %v1651 = vld [vmem:[%s1650] sm:$0x1]
    %v1653 = vlaneseq
    %v1654 = vshrl.u32 %v1653, 7
    %v1655 = vsub.s32 0, %v1654
    %v1656 = vrot.slane %v1651, %v1655
    %1658 = vmatprep.subr.mxu0 0.0
    %1659 = vmatpush1.msra.mxu0 %v1646
    %1660 = vmatprep.subr.mxu0 0.0
    %1661 = vmatpush1.msra.mxu0 %v1647
    %1662 = vmatprep.subr.mxu0 0.0
    %1663 = vmatpush1.msra.mxu0 %v1648
    %1664 = vmatprep.subr.mxu0 0.0
    %1665 = vmatpush1.msra.mxu0 %v1649
    %1666 = vmatprep.subr.mxu0 0.0
    %1667 = vmatpush1.msra.mxu0 0.0
    %1668 = vmatprep.subr.mxu0 0.0
    %1669 = vmatpush1.msra.mxu0 0.0
    %1670 = vmatprep.subr.mxu0 0.0
    %1671 = vmatpush1.msra.mxu0 0.0
    %1672 = vmatprep.subr.mxu0 0.0
    %1673 = vmatpush1.msra.mxu0 0.0
    %1674 = vmatprep.subr.mxu0 0.0
    %1675 = vmatpush1.msra.mxu0 0.0
    %1676 = vmatprep.subr.mxu0 0.0
    %1677 = vmatpush1.msra.mxu0 0.0
    %1678 = vmatprep.subr.mxu0 0.0
    %1679 = vmatpush1.msra.mxu0 0.0
    %1680 = vmatprep.subr.mxu0 0.0
    %1681 = vmatpush1.msra.mxu0 0.0
    %1682 = vmatprep.subr.mxu0 0.0
    %1683 = vmatpush1.msra.mxu0 0.0
    %1684 = vmatprep.subr.mxu0 0.0
    %1685 = vmatpush1.msra.mxu0 0.0
    %1686 = vmatprep.subr.mxu0 0.0
    %1687 = vmatpush1.msra.mxu0 0.0
    %1688 = vmatprep.subr.mxu0 0.0
    %1689 = vmatpush1.msra.mxu0 0.0
    %1690 = vmatprep.subr.mxu0 0.0
    %1691 = vmatpush1.msra.mxu0 0.0
    %1692 = vmatprep.subr.mxu0 0.0
    %1693 = vmatpush1.msra.mxu0 0.0
    %1694 = vmatprep.subr.mxu0 0.0
    %1695 = vmatpush1.msra.mxu0 0.0
    %1696 = vmatprep.subr.mxu0 0.0
    %1697 = vmatpush1.msra.mxu0 0.0
    %1698 = vmatprep.subr.mxu0 0.0
    %1699 = vmatpush1.msra.mxu0 0.0
    %1700 = vmatprep.subr.mxu0 0.0
    %1701 = vmatpush1.msra.mxu0 0.0
    %1702 = vmatprep.subr.mxu0 0.0
    %1703 = vmatpush1.msra.mxu0 0.0
    %1704 = vmatprep.subr.mxu0 0.0
    %1705 = vmatpush1.msra.mxu0 0.0
    %1706 = vmatprep.subr.mxu0 0.0
    %1707 = vmatpush1.msra.mxu0 0.0
    %1708 = vmatprep.subr.mxu0 0.0
    %1709 = vmatpush1.msra.mxu0 0.0
    %1710 = vmatprep.subr.mxu0 0.0
    %1711 = vmatpush1.msra.mxu0 0.0
    %1712 = vmatprep.subr.mxu0 0.0
    %1713 = vmatpush1.msra.mxu0 0.0
    %1714 = vmatprep.subr.mxu0 0.0
    %1715 = vmatpush1.msra.mxu0 0.0
    %1716 = vmatprep.subr.mxu0 0.0
    %1717 = vmatpush1.msra.mxu0 0.0
    %1718 = vmatprep.subr.mxu0 0.0
    %1719 = vmatpush1.msra.mxu0 0.0
    %1720 = vmatprep.subr.mxu0 0.0
    %1721 = vmatpush1.msra.mxu0 0.0
    %1722 = vmatprep.mubr.f32.mxu0 0.0
    %1723 = vmatmul.mubr.f32.gmra.mrb[0].mxu0 %v82
    %v1724 = vpop.f32.mrb[0].mxu0
    %v1725 = vadd.f32 %v1656, %v1724
    %v1726 = vpop.f32.mrb[0].mxu0
    %1727 = vmatprep.mubr.f32.mxu0 0.0
    %1728 = vmatmul.mubr.f32.gmra.mrb[0].mxu0 %v85
    %v1729 = vpop.f32.mrb[0].mxu0
    %v1730 = vadd.f32 %v1656, %v1729
    %v1731 = vpop.f32.mrb[0].mxu0
    %1732 = vdwg.mxu0
    %s1733 = scalar_lea.vmem %s6, 64
    %v1734 = vld [vmem:[%s1733] sm:$0xff]
    %v1735 = vld [vmem:[%s1733 + $0x8] sm:$0xff]
    %v1736 = vld [vmem:[%s1733 + $0x10] sm:$0xff]
    %v1737 = vld [vmem:[%s1733 + $0x18] sm:$0xff]
    %s1738 = scalar_lea.vmem %s7, 2
    %v1739 = vld [vmem:[%s1738] sm:$0x1]
    %v1741 = vlaneseq
    %v1742 = vshrl.u32 %v1741, 7
    %v1743 = vsub.s32 0, %v1742
    %v1744 = vrot.slane %v1739, %v1743
    %1746 = vmatprep.subr.mxu0 0.0
    %1747 = vmatpush1.msra.mxu0 %v1734
    %1748 = vmatprep.subr.mxu0 0.0
    %1749 = vmatpush1.msra.mxu0 %v1735
    %1750 = vmatprep.subr.mxu0 0.0
    %1751 = vmatpush1.msra.mxu0 %v1736
    %1752 = vmatprep.subr.mxu0 0.0
    %1753 = vmatpush1.msra.mxu0 %v1737
    %1754 = vmatprep.subr.mxu0 0.0
    %1755 = vmatpush1.msra.mxu0 0.0
    %1756 = vmatprep.subr.mxu0 0.0
    %1757 = vmatpush1.msra.mxu0 0.0
    %1758 = vmatprep.subr.mxu0 0.0
    %1759 = vmatpush1.msra.mxu0 0.0
    %1760 = vmatprep.subr.mxu0 0.0
    %1761 = vmatpush1.msra.mxu0 0.0
    %1762 = vmatprep.subr.mxu0 0.0
    %1763 = vmatpush1.msra.mxu0 0.0
    %1764 = vmatprep.subr.mxu0 0.0
    %1765 = vmatpush1.msra.mxu0 0.0
    %1766 = vmatprep.subr.mxu0 0.0
    %1767 = vmatpush1.msra.mxu0 0.0
    %1768 = vmatprep.subr.mxu0 0.0
    %1769 = vmatpush1.msra.mxu0 0.0
    %1770 = vmatprep.subr.mxu0 0.0
    %1771 = vmatpush1.msra.mxu0 0.0
    %1772 = vmatprep.subr.mxu0 0.0
    %1773 = vmatpush1.msra.mxu0 0.0
    %1774 = vmatprep.subr.mxu0 0.0
    %1775 = vmatpush1.msra.mxu0 0.0
    %1776 = vmatprep.subr.mxu0 0.0
    %1777 = vmatpush1.msra.mxu0 0.0
    %1778 = vmatprep.subr.mxu0 0.0
    %1779 = vmatpush1.msra.mxu0 0.0
    %1780 = vmatprep.subr.mxu0 0.0
    %1781 = vmatpush1.msra.mxu0 0.0
    %1782 = vmatprep.subr.mxu0 0.0
    %1783 = vmatpush1.msra.mxu0 0.0
    %1784 = vmatprep.subr.mxu0 0.0
    %1785 = vmatpush1.msra.mxu0 0.0
    %1786 = vmatprep.subr.mxu0 0.0
    %1787 = vmatpush1.msra.mxu0 0.0
    %1788 = vmatprep.subr.mxu0 0.0
    %1789 = vmatpush1.msra.mxu0 0.0
    %1790 = vmatprep.subr.mxu0 0.0
    %1791 = vmatpush1.msra.mxu0 0.0
    %1792 = vmatprep.subr.mxu0 0.0
    %1793 = vmatpush1.msra.mxu0 0.0
    %1794 = vmatprep.subr.mxu0 0.0
    %1795 = vmatpush1.msra.mxu0 0.0
    %1796 = vmatprep.subr.mxu0 0.0
    %1797 = vmatpush1.msra.mxu0 0.0
    %1798 = vmatprep.subr.mxu0 0.0
    %1799 = vmatpush1.msra.mxu0 0.0
    %1800 = vmatprep.subr.mxu0 0.0
    %1801 = vmatpush1.msra.mxu0 0.0
    %1802 = vmatprep.subr.mxu0 0.0
    %1803 = vmatpush1.msra.mxu0 0.0
    %1804 = vmatprep.subr.mxu0 0.0
    %1805 = vmatpush1.msra.mxu0 0.0
    %1806 = vmatprep.subr.mxu0 0.0
    %1807 = vmatpush1.msra.mxu0 0.0
    %1808 = vmatprep.subr.mxu0 0.0
    %1809 = vmatpush1.msra.mxu0 0.0
    %1810 = vmatprep.mubr.f32.mxu0 0.0
    %1811 = vmatmul.mubr.f32.gmra.mrb[0].mxu0 %v82
    %v1812 = vpop.f32.mrb[0].mxu0
    %v1813 = vadd.f32 %v1744, %v1812
    %v1814 = vpop.f32.mrb[0].mxu0
    %1815 = vmatprep.mubr.f32.mxu0 0.0
    %1816 = vmatmul.mubr.f32.gmra.mrb[0].mxu0 %v85
    %v1817 = vpop.f32.mrb[0].mxu0
    %v1818 = vadd.f32 %v1744, %v1817
    %v1819 = vpop.f32.mrb[0].mxu0
    %1820 = vdwg.mxu0
    %s1821 = scalar_lea.vmem %s8, 16
    %v1822 = vld [vmem:[%s1821] sm:$0xff]
    %v1824 = vsel %vm335, %v1637, 0
    %v1827 = vsel %vm335, %v1725, 0
    %1829 = vmatprep.subr.mxu0 0.0
    %1830 = vmatpush1.xpose.msra.mxu0 %v1827
    %1831 = vmatprep.subr.mxu0 0.0
    %1832 = vmatpush1.xpose.msra.mxu0 0.0
    %1833 = vmatprep.subr.mxu0 0.0
    %1834 = vmatpush1.xpose.msra.mxu0 0.0
    %1835 = vmatprep.subr.mxu0 0.0
    %1836 = vmatpush1.xpose.msra.mxu0 0.0
    %1837 = vmatprep.subr.mxu0 0.0
    %1838 = vmatpush1.xpose.msra.mxu0 0.0
    %1839 = vmatprep.subr.mxu0 0.0
    %1840 = vmatpush1.xpose.msra.mxu0 0.0
    %1841 = vmatprep.subr.mxu0 0.0
    %1842 = vmatpush1.xpose.msra.mxu0 0.0
    %1843 = vmatprep.subr.mxu0 0.0
    %1844 = vmatpush1.xpose.msra.mxu0 0.0
    %1845 = vmatprep.subr.mxu0 0.0
    %1846 = vmatpush1.xpose.msra.mxu0 0.0
    %1847 = vmatprep.subr.mxu0 0.0
    %1848 = vmatpush1.xpose.msra.mxu0 0.0
    %1849 = vmatprep.subr.mxu0 0.0
    %1850 = vmatpush1.xpose.msra.mxu0 0.0
    %1851 = vmatprep.subr.mxu0 0.0
    %1852 = vmatpush1.xpose.msra.mxu0 0.0
    %1853 = vmatprep.subr.mxu0 0.0
    %1854 = vmatpush1.xpose.msra.mxu0 0.0
    %1855 = vmatprep.subr.mxu0 0.0
    %1856 = vmatpush1.xpose.msra.mxu0 0.0
    %1857 = vmatprep.subr.mxu0 0.0
    %1858 = vmatpush1.xpose.msra.mxu0 0.0
    %1859 = vmatprep.subr.mxu0 0.0
    %1860 = vmatpush1.xpose.msra.mxu0 0.0
    %1861 = vmatprep.subr.mxu0 0.0
    %1862 = vmatpush1.xpose.msra.mxu0 0.0
    %1863 = vmatprep.subr.mxu0 0.0
    %1864 = vmatpush1.xpose.msra.mxu0 0.0
    %1865 = vmatprep.subr.mxu0 0.0
    %1866 = vmatpush1.xpose.msra.mxu0 0.0
    %1867 = vmatprep.subr.mxu0 0.0
    %1868 = vmatpush1.xpose.msra.mxu0 0.0
    %1869 = vmatprep.subr.mxu0 0.0
    %1870 = vmatpush1.xpose.msra.mxu0 0.0
    %1871 = vmatprep.subr.mxu0 0.0
    %1872 = vmatpush1.xpose.msra.mxu0 0.0
    %1873 = vmatprep.subr.mxu0 0.0
    %1874 = vmatpush1.xpose.msra.mxu0 0.0
    %1875 = vmatprep.subr.mxu0 0.0
    %1876 = vmatpush1.xpose.msra.mxu0 0.0
    %1877 = vmatprep.subr.mxu0 0.0
    %1878 = vmatpush1.xpose.msra.mxu0 0.0
    %1879 = vmatprep.subr.mxu0 0.0
    %1880 = vmatpush1.xpose.msra.mxu0 0.0
    %1881 = vmatprep.subr.mxu0 0.0
    %1882 = vmatpush1.xpose.msra.mxu0 0.0
    %1883 = vmatprep.subr.mxu0 0.0
    %1884 = vmatpush1.xpose.msra.mxu0 0.0
    %1885 = vmatprep.subr.mxu0 0.0
    %1886 = vmatpush1.xpose.msra.mxu0 0.0
    %1887 = vmatprep.subr.mxu0 0.0
    %1888 = vmatpush1.xpose.msra.mxu0 0.0
    %1889 = vmatprep.subr.mxu0 0.0
    %1890 = vmatpush1.xpose.msra.mxu0 0.0
    %1891 = vmatprep.subr.mxu0 0.0
    %1892 = vmatpush1.xpose.msra.mxu0 0.0
    %1893 = vmatprep.mubr.f32.mxu0 0.0
    %1894 = vmatmul.mubr.f32.gmra.mrb[0].mxu0 %v1824
    %v1895 = vpop.f32.mrb[0].mxu0
    %v1896 = vadd.f32 0.0, %v1895
    %v1897 = vpop.f32.mrb[0].mxu0
    %1898 = vdwg.mxu0
    %v1899 = vsel %vm417, -10000.0, %v1896
    %v1900 = vsel %vm335, %v1899, -inf
    %1901 = vmax.xlane.f32.xlu0 %v1900
    %v1902 = vpop.xlane.xlu0 %1901
    %v1903 = vsub.f32 %v1899, %v1902
    %v1904 = vmul.f32 %v1903, 1.442695
    %v1905 = vpow.pop %v1904
    %v1906 = vsel %vm335, %v1905, 0.0
    %1907 = vadd.xlane.f32.xlu0 %v1906
    %v1908 = vpop.xlane.xlu0 %1907
    %v1909 = vrcp.pop %v1908
    %v1910 = vmul.f32 %v1905, %v1909
    %s1911 = scalar_lea.vmem [#allocation4], 16
    %1912 = vst.msk [vmem:[%s1911] sm:$0xff] %vm335, %v1910
    %v1914 = vsel %vm335, %v1910, 0
    %1916 = vmatprep.subr.mxu0 0.0
    %1917 = vmatpush1.msra.mxu0 %v1813
    %1918 = vmatprep.subr.mxu0 0.0
    %1919 = vmatpush1.msra.mxu0 0.0
    %1920 = vmatprep.subr.mxu0 0.0
    %1921 = vmatpush1.msra.mxu0 0.0
    %1922 = vmatprep.subr.mxu0 0.0
    %1923 = vmatpush1.msra.mxu0 0.0
    %1924 = vmatprep.subr.mxu0 0.0
    %1925 = vmatpush1.msra.mxu0 0.0
    %1926 = vmatprep.subr.mxu0 0.0
    %1927 = vmatpush1.msra.mxu0 0.0
    %1928 = vmatprep.subr.mxu0 0.0
    %1929 = vmatpush1.msra.mxu0 0.0
    %1930 = vmatprep.subr.mxu0 0.0
    %1931 = vmatpush1.msra.mxu0 0.0
    %1932 = vmatprep.subr.mxu0 0.0
    %1933 = vmatpush1.msra.mxu0 0.0
    %1934 = vmatprep.subr.mxu0 0.0
    %1935 = vmatpush1.msra.mxu0 0.0
    %1936 = vmatprep.subr.mxu0 0.0
    %1937 = vmatpush1.msra.mxu0 0.0
    %1938 = vmatprep.subr.mxu0 0.0
    %1939 = vmatpush1.msra.mxu0 0.0
    %1940 = vmatprep.subr.mxu0 0.0
    %1941 = vmatpush1.msra.mxu0 0.0
    %1942 = vmatprep.subr.mxu0 0.0
    %1943 = vmatpush1.msra.mxu0 0.0
    %1944 = vmatprep.subr.mxu0 0.0
    %1945 = vmatpush1.msra.mxu0 0.0
    %1946 = vmatprep.subr.mxu0 0.0
    %1947 = vmatpush1.msra.mxu0 0.0
    %1948 = vmatprep.subr.mxu0 0.0
    %1949 = vmatpush1.msra.mxu0 0.0
    %1950 = vmatprep.subr.mxu0 0.0
    %1951 = vmatpush1.msra.mxu0 0.0
    %1952 = vmatprep.subr.mxu0 0.0
    %1953 = vmatpush1.msra.mxu0 0.0
    %1954 = vmatprep.subr.mxu0 0.0
    %1955 = vmatpush1.msra.mxu0 0.0
    %1956 = vmatprep.subr.mxu0 0.0
    %1957 = vmatpush1.msra.mxu0 0.0
    %1958 = vmatprep.subr.mxu0 0.0
    %1959 = vmatpush1.msra.mxu0 0.0
    %1960 = vmatprep.subr.mxu0 0.0
    %1961 = vmatpush1.msra.mxu0 0.0
    %1962 = vmatprep.subr.mxu0 0.0
    %1963 = vmatpush1.msra.mxu0 0.0
    %1964 = vmatprep.subr.mxu0 0.0
    %1965 = vmatpush1.msra.mxu0 0.0
    %1966 = vmatprep.subr.mxu0 0.0
    %1967 = vmatpush1.msra.mxu0 0.0
    %1968 = vmatprep.subr.mxu0 0.0
    %1969 = vmatpush1.msra.mxu0 0.0
    %1970 = vmatprep.subr.mxu0 0.0
    %1971 = vmatpush1.msra.mxu0 0.0
    %1972 = vmatprep.subr.mxu0 0.0
    %1973 = vmatpush1.msra.mxu0 0.0
    %1974 = vmatprep.subr.mxu0 0.0
    %1975 = vmatpush1.msra.mxu0 0.0
    %1976 = vmatprep.subr.mxu0 0.0
    %1977 = vmatpush1.msra.mxu0 0.0
    %1978 = vmatprep.subr.mxu0 0.0
    %1979 = vmatpush1.msra.mxu0 0.0
    %1980 = vmatprep.mubr.f32.mxu0 0.0
    %1981 = vmatmul.mubr.f32.gmra.mrb[0].mxu0 %v1914
    %v1982 = vpop.f32.mrb[0].mxu0
    %v1983 = vadd.f32 0.0, %v1982
    %v1984 = vpop.f32.mrb[0].mxu0
    %1985 = vdwg.mxu0
    %v1987 = vsel %vm335, %v1983, 0
    %1989 = vmatprep.subr.mxu0 0.0
    %1990 = vmatpush1.msra.mxu0 %v1822
    %1991 = vmatprep.subr.mxu0 0.0
    %1992 = vmatpush1.msra.mxu0 0.0
    %1993 = vmatprep.subr.mxu0 0.0
    %1994 = vmatpush1.msra.mxu0 0.0
    %1995 = vmatprep.subr.mxu0 0.0
    %1996 = vmatpush1.msra.mxu0 0.0
    %1997 = vmatprep.subr.mxu0 0.0
    %1998 = vmatpush1.msra.mxu0 0.0
    %1999 = vmatprep.subr.mxu0 0.0
    %2000 = vmatpush1.msra.mxu0 0.0
    %2001 = vmatprep.subr.mxu0 0.0
    %2002 = vmatpush1.msra.mxu0 0.0
    %2003 = vmatprep.subr.mxu0 0.0
    %2004 = vmatpush1.msra.mxu0 0.0
    %2005 = vmatprep.subr.mxu0 0.0
    %2006 = vmatpush1.msra.mxu0 0.0
    %2007 = vmatprep.subr.mxu0 0.0
    %2008 = vmatpush1.msra.mxu0 0.0
    %2009 = vmatprep.subr.mxu0 0.0
    %2010 = vmatpush1.msra.mxu0 0.0
    %2011 = vmatprep.subr.mxu0 0.0
    %2012 = vmatpush1.msra.mxu0 0.0
    %2013 = vmatprep.subr.mxu0 0.0
    %2014 = vmatpush1.msra.mxu0 0.0
    %2015 = vmatprep.subr.mxu0 0.0
    %2016 = vmatpush1.msra.mxu0 0.0
    %2017 = vmatprep.subr.mxu0 0.0
    %2018 = vmatpush1.msra.mxu0 0.0
    %2019 = vmatprep.subr.mxu0 0.0
    %2020 = vmatpush1.msra.mxu0 0.0
    %2021 = vmatprep.subr.mxu0 0.0
    %2022 = vmatpush1.msra.mxu0 0.0
    %2023 = vmatprep.subr.mxu0 0.0
    %2024 = vmatpush1.msra.mxu0 0.0
    %2025 = vmatprep.subr.mxu0 0.0
    %2026 = vmatpush1.msra.mxu0 0.0
    %2027 = vmatprep.subr.mxu0 0.0
    %2028 = vmatpush1.msra.mxu0 0.0
    %2029 = vmatprep.subr.mxu0 0.0
    %2030 = vmatpush1.msra.mxu0 0.0
    %2031 = vmatprep.subr.mxu0 0.0
    %2032 = vmatpush1.msra.mxu0 0.0
    %2033 = vmatprep.subr.mxu0 0.0
    %2034 = vmatpush1.msra.mxu0 0.0
    %2035 = vmatprep.subr.mxu0 0.0
    %2036 = vmatpush1.msra.mxu0 0.0
    %2037 = vmatprep.subr.mxu0 0.0
    %2038 = vmatpush1.msra.mxu0 0.0
    %2039 = vmatprep.subr.mxu0 0.0
    %2040 = vmatpush1.msra.mxu0 0.0
    %2041 = vmatprep.subr.mxu0 0.0
    %2042 = vmatpush1.msra.mxu0 0.0
    %2043 = vmatprep.subr.mxu0 0.0
    %2044 = vmatpush1.msra.mxu0 0.0
    %2045 = vmatprep.subr.mxu0 0.0
    %2046 = vmatpush1.msra.mxu0 0.0
    %2047 = vmatprep.subr.mxu0 0.0
    %2048 = vmatpush1.msra.mxu0 0.0
    %2049 = vmatprep.subr.mxu0 0.0
    %2050 = vmatpush1.msra.mxu0 0.0
    %2051 = vmatprep.subr.mxu0 0.0
    %2052 = vmatpush1.msra.mxu0 0.0
    %2053 = vmatprep.mubr.f32.mxu0 0.0
    %2054 = vmatmul.mubr.f32.gmra.mrb[0].mxu0 %v1987
    %v2055 = vpop.f32.mrb[0].mxu0
    %v2056 = vadd.f32 0.0, %v2055
    %v2057 = vpop.f32.mrb[0].mxu0
    %2058 = vdwg.mxu0
    %v2059 = vadd.f32 %v1245, %v2056
    %v2061 = vsel %vm335, %v1642, 0
    %v2064 = vsel %vm335, %v1730, 0
    %2066 = vmatprep.subr.mxu0 0.0
    %2067 = vmatpush1.xpose.msra.mxu0 %v2064
    %2068 = vmatprep.subr.mxu0 0.0
    %2069 = vmatpush1.xpose.msra.mxu0 0.0
    %2070 = vmatprep.subr.mxu0 0.0
    %2071 = vmatpush1.xpose.msra.mxu0 0.0
    %2072 = vmatprep.subr.mxu0 0.0
    %2073 = vmatpush1.xpose.msra.mxu0 0.0
    %2074 = vmatprep.subr.mxu0 0.0
    %2075 = vmatpush1.xpose.msra.mxu0 0.0
    %2076 = vmatprep.subr.mxu0 0.0
    %2077 = vmatpush1.xpose.msra.mxu0 0.0
    %2078 = vmatprep.subr.mxu0 0.0
    %2079 = vmatpush1.xpose.msra.mxu0 0.0
    %2080 = vmatprep.subr.mxu0 0.0
    %2081 = vmatpush1.xpose.msra.mxu0 0.0
    %2082 = vmatprep.subr.mxu0 0.0
    %2083 = vmatpush1.xpose.msra.mxu0 0.0
    %2084 = vmatprep.subr.mxu0 0.0
    %2085 = vmatpush1.xpose.msra.mxu0 0.0
    %2086 = vmatprep.subr.mxu0 0.0
    %2087 = vmatpush1.xpose.msra.mxu0 0.0
    %2088 = vmatprep.subr.mxu0 0.0
    %2089 = vmatpush1.xpose.msra.mxu0 0.0
    %2090 = vmatprep.subr.mxu0 0.0
    %2091 = vmatpush1.xpose.msra.mxu0 0.0
    %2092 = vmatprep.subr.mxu0 0.0
    %2093 = vmatpush1.xpose.msra.mxu0 0.0
    %2094 = vmatprep.subr.mxu0 0.0
    %2095 = vmatpush1.xpose.msra.mxu0 0.0
    %2096 = vmatprep.subr.mxu0 0.0
    %2097 = vmatpush1.xpose.msra.mxu0 0.0
    %2098 = vmatprep.subr.mxu0 0.0
    %2099 = vmatpush1.xpose.msra.mxu0 0.0
    %2100 = vmatprep.subr.mxu0 0.0
    %2101 = vmatpush1.xpose.msra.mxu0 0.0
    %2102 = vmatprep.subr.mxu0 0.0
    %2103 = vmatpush1.xpose.msra.mxu0 0.0
    %2104 = vmatprep.subr.mxu0 0.0
    %2105 = vmatpush1.xpose.msra.mxu0 0.0
    %2106 = vmatprep.subr.mxu0 0.0
    %2107 = vmatpush1.xpose.msra.mxu0 0.0
    %2108 = vmatprep.subr.mxu0 0.0
    %2109 = vmatpush1.xpose.msra.mxu0 0.0
    %2110 = vmatprep.subr.mxu0 0.0
    %2111 = vmatpush1.xpose.msra.mxu0 0.0
    %2112 = vmatprep.subr.mxu0 0.0
    %2113 = vmatpush1.xpose.msra.mxu0 0.0
    %2114 = vmatprep.subr.mxu0 0.0
    %2115 = vmatpush1.xpose.msra.mxu0 0.0
    %2116 = vmatprep.subr.mxu0 0.0
    %2117 = vmatpush1.xpose.msra.mxu0 0.0
    %2118 = vmatprep.subr.mxu0 0.0
    %2119 = vmatpush1.xpose.msra.mxu0 0.0
    %2120 = vmatprep.subr.mxu0 0.0
    %2121 = vmatpush1.xpose.msra.mxu0 0.0
    %2122 = vmatprep.subr.mxu0 0.0
    %2123 = vmatpush1.xpose.msra.mxu0 0.0
    %2124 = vmatprep.subr.mxu0 0.0
    %2125 = vmatpush1.xpose.msra.mxu0 0.0
    %2126 = vmatprep.subr.mxu0 0.0
    %2127 = vmatpush1.xpose.msra.mxu0 0.0
    %2128 = vmatprep.subr.mxu0 0.0
    %2129 = vmatpush1.xpose.msra.mxu0 0.0
    %2130 = vmatprep.mubr.f32.mxu0 0.0
    %2131 = vmatmul.mubr.f32.gmra.mrb[0].mxu0 %v2061
    %v2132 = vpop.f32.mrb[0].mxu0
    %v2133 = vadd.f32 0.0, %v2132
    %v2134 = vpop.f32.mrb[0].mxu0
    %2135 = vdwg.mxu0
    %v2136 = vsel %vm585, -10000.0, %v2133
    %v2137 = vsel %vm335, %v2136, -inf
    %2138 = vmax.xlane.f32.xlu0 %v2137
    %v2139 = vpop.xlane.xlu0 %2138
    %v2140 = vsub.f32 %v2136, %v2139
    %v2141 = vmul.f32 %v2140, 1.442695
    %v2142 = vpow.pop %v2141
    %v2143 = vsel %vm335, %v2142, 0.0
    %2144 = vadd.xlane.f32.xlu0 %v2143
    %v2145 = vpop.xlane.xlu0 %2144
    %v2146 = vrcp.pop %v2145
    %v2147 = vmul.f32 %v2142, %v2146
    %s2148 = scalar_lea.vmem [#allocation4], 48
    %2149 = vst.msk [vmem:[%s2148] sm:$0xff] %vm335, %v2147
    %v2151 = vsel %vm335, %v2147, 0
    %2153 = vmatprep.subr.mxu0 0.0
    %2154 = vmatpush1.msra.mxu0 %v1818
    %2155 = vmatprep.subr.mxu0 0.0
    %2156 = vmatpush1.msra.mxu0 0.0
    %2157 = vmatprep.subr.mxu0 0.0
    %2158 = vmatpush1.msra.mxu0 0.0
    %2159 = vmatprep.subr.mxu0 0.0
    %2160 = vmatpush1.msra.mxu0 0.0
    %2161 = vmatprep.subr.mxu0 0.0
    %2162 = vmatpush1.msra.mxu0 0.0
    %2163 = vmatprep.subr.mxu0 0.0
    %2164 = vmatpush1.msra.mxu0 0.0
    %2165 = vmatprep.subr.mxu0 0.0
    %2166 = vmatpush1.msra.mxu0 0.0
    %2167 = vmatprep.subr.mxu0 0.0
    %2168 = vmatpush1.msra.mxu0 0.0
    %2169 = vmatprep.subr.mxu0 0.0
    %2170 = vmatpush1.msra.mxu0 0.0
    %2171 = vmatprep.subr.mxu0 0.0
    %2172 = vmatpush1.msra.mxu0 0.0
    %2173 = vmatprep.subr.mxu0 0.0
    %2174 = vmatpush1.msra.mxu0 0.0
    %2175 = vmatprep.subr.mxu0 0.0
    %2176 = vmatpush1.msra.mxu0 0.0
    %2177 = vmatprep.subr.mxu0 0.0
    %2178 = vmatpush1.msra.mxu0 0.0
    %2179 = vmatprep.subr.mxu0 0.0
    %2180 = vmatpush1.msra.mxu0 0.0
    %2181 = vmatprep.subr.mxu0 0.0
    %2182 = vmatpush1.msra.mxu0 0.0
    %2183 = vmatprep.subr.mxu0 0.0
    %2184 = vmatpush1.msra.mxu0 0.0
    %2185 = vmatprep.subr.mxu0 0.0
    %2186 = vmatpush1.msra.mxu0 0.0
    %2187 = vmatprep.subr.mxu0 0.0
    %2188 = vmatpush1.msra.mxu0 0.0
    %2189 = vmatprep.subr.mxu0 0.0
    %2190 = vmatpush1.msra.mxu0 0.0
    %2191 = vmatprep.subr.mxu0 0.0
    %2192 = vmatpush1.msra.mxu0 0.0
    %2193 = vmatprep.subr.mxu0 0.0
    %2194 = vmatpush1.msra.mxu0 0.0
    %2195 = vmatprep.subr.mxu0 0.0
    %2196 = vmatpush1.msra.mxu0 0.0
    %2197 = vmatprep.subr.mxu0 0.0
    %2198 = vmatpush1.msra.mxu0 0.0
    %2199 = vmatprep.subr.mxu0 0.0
    %2200 = vmatpush1.msra.mxu0 0.0
    %2201 = vmatprep.subr.mxu0 0.0
    %2202 = vmatpush1.msra.mxu0 0.0
    %2203 = vmatprep.subr.mxu0 0.0
    %2204 = vmatpush1.msra.mxu0 0.0
    %2205 = vmatprep.subr.mxu0 0.0
    %2206 = vmatpush1.msra.mxu0 0.0
    %2207 = vmatprep.subr.mxu0 0.0
    %2208 = vmatpush1.msra.mxu0 0.0
    %2209 = vmatprep.subr.mxu0 0.0
    %2210 = vmatpush1.msra.mxu0 0.0
    %2211 = vmatprep.subr.mxu0 0.0
    %2212 = vmatpush1.msra.mxu0 0.0
    %2213 = vmatprep.subr.mxu0 0.0
    %2214 = vmatpush1.msra.mxu0 0.0
    %2215 = vmatprep.subr.mxu0 0.0
    %2216 = vmatpush1.msra.mxu0 0.0
    %2217 = vmatprep.mubr.f32.mxu0 0.0
    %2218 = vmatmul.mubr.f32.gmra.mrb[0].mxu0 %v2151
    %v2219 = vpop.f32.mrb[0].mxu0
    %v2220 = vadd.f32 0.0, %v2219
    %v2221 = vpop.f32.mrb[0].mxu0
    %2222 = vdwg.mxu0
    %v2224 = vsel %vm335, %v2220, 0
    %2226 = vmatprep.subr.mxu0 0.0
    %2227 = vmatpush1.msra.mxu0 %v1822
    %2228 = vmatprep.subr.mxu0 0.0
    %2229 = vmatpush1.msra.mxu0 0.0
    %2230 = vmatprep.subr.mxu0 0.0
    %2231 = vmatpush1.msra.mxu0 0.0
    %2232 = vmatprep.subr.mxu0 0.0
    %2233 = vmatpush1.msra.mxu0 0.0
    %2234 = vmatprep.subr.mxu0 0.0
    %2235 = vmatpush1.msra.mxu0 0.0
    %2236 = vmatprep.subr.mxu0 0.0
    %2237 = vmatpush1.msra.mxu0 0.0
    %2238 = vmatprep.subr.mxu0 0.0
    %2239 = vmatpush1.msra.mxu0 0.0
    %2240 = vmatprep.subr.mxu0 0.0
    %2241 = vmatpush1.msra.mxu0 0.0
    %2242 = vmatprep.subr.mxu0 0.0
    %2243 = vmatpush1.msra.mxu0 0.0
    %2244 = vmatprep.subr.mxu0 0.0
    %2245 = vmatpush1.msra.mxu0 0.0
    %2246 = vmatprep.subr.mxu0 0.0
    %2247 = vmatpush1.msra.mxu0 0.0
    %2248 = vmatprep.subr.mxu0 0.0
    %2249 = vmatpush1.msra.mxu0 0.0
    %2250 = vmatprep.subr.mxu0 0.0
    %2251 = vmatpush1.msra.mxu0 0.0
    %2252 = vmatprep.subr.mxu0 0.0
    %2253 = vmatpush1.msra.mxu0 0.0
    %2254 = vmatprep.subr.mxu0 0.0
    %2255 = vmatpush1.msra.mxu0 0.0
    %2256 = vmatprep.subr.mxu0 0.0
    %2257 = vmatpush1.msra.mxu0 0.0
    %2258 = vmatprep.subr.mxu0 0.0
    %2259 = vmatpush1.msra.mxu0 0.0
    %2260 = vmatprep.subr.mxu0 0.0
    %2261 = vmatpush1.msra.mxu0 0.0
    %2262 = vmatprep.subr.mxu0 0.0
    %2263 = vmatpush1.msra.mxu0 0.0
    %2264 = vmatprep.subr.mxu0 0.0
    %2265 = vmatpush1.msra.mxu0 0.0
    %2266 = vmatprep.subr.mxu0 0.0
    %2267 = vmatpush1.msra.mxu0 0.0
    %2268 = vmatprep.subr.mxu0 0.0
    %2269 = vmatpush1.msra.mxu0 0.0
    %2270 = vmatprep.subr.mxu0 0.0
    %2271 = vmatpush1.msra.mxu0 0.0
    %2272 = vmatprep.subr.mxu0 0.0
    %2273 = vmatpush1.msra.mxu0 0.0
    %2274 = vmatprep.subr.mxu0 0.0
    %2275 = vmatpush1.msra.mxu0 0.0
    %2276 = vmatprep.subr.mxu0 0.0
    %2277 = vmatpush1.msra.mxu0 0.0
    %2278 = vmatprep.subr.mxu0 0.0
    %2279 = vmatpush1.msra.mxu0 0.0
    %2280 = vmatprep.subr.mxu0 0.0
    %2281 = vmatpush1.msra.mxu0 0.0
    %2282 = vmatprep.subr.mxu0 0.0
    %2283 = vmatpush1.msra.mxu0 0.0
    %2284 = vmatprep.subr.mxu0 0.0
    %2285 = vmatpush1.msra.mxu0 0.0
    %2286 = vmatprep.subr.mxu0 0.0
    %2287 = vmatpush1.msra.mxu0 0.0
    %2288 = vmatprep.subr.mxu0 0.0
    %2289 = vmatpush1.msra.mxu0 0.0
    %2290 = vmatprep.mubr.f32.mxu0 0.0
    %2291 = vmatmul.mubr.f32.gmra.mrb[0].mxu0 %v2224
    %v2292 = vpop.f32.mrb[0].mxu0
    %v2293 = vadd.f32 0.0, %v2292
    %v2294 = vpop.f32.mrb[0].mxu0
    %2295 = vdwg.mxu0
    %v2296 = vadd.f32 %v1554, %v2293
    %s2297 = scalar_lea.vmem %s2, 96
    %v2298 = vld [vmem:[%s2297] sm:$0xff]
    %v2299 = vld [vmem:[%s2297 + $0x8] sm:$0xff]
    %v2300 = vld [vmem:[%s2297 + $0x10] sm:$0xff]
    %v2301 = vld [vmem:[%s2297 + $0x18] sm:$0xff]
    %s2302 = scalar_lea.vmem %s3, 3
    %v2303 = vld [vmem:[%s2302] sm:$0x1]
    %v2305 = vlaneseq
    %v2306 = vshrl.u32 %v2305, 7
    %v2307 = vsub.s32 0, %v2306
    %v2308 = vrot.slane %v2303, %v2307
    %2310 = vmatprep.subr.mxu0 0.0
    %2311 = vmatpush1.msra.mxu0 %v2298
    %2312 = vmatprep.subr.mxu0 0.0
    %2313 = vmatpush1.msra.mxu0 %v2299
    %2314 = vmatprep.subr.mxu0 0.0
    %2315 = vmatpush1.msra.mxu0 %v2300
    %2316 = vmatprep.subr.mxu0 0.0
    %2317 = vmatpush1.msra.mxu0 %v2301
    %2318 = vmatprep.subr.mxu0 0.0
    %2319 = vmatpush1.msra.mxu0 0.0
    %2320 = vmatprep.subr.mxu0 0.0
    %2321 = vmatpush1.msra.mxu0 0.0
    %2322 = vmatprep.subr.mxu0 0.0
    %2323 = vmatpush1.msra.mxu0 0.0
    %2324 = vmatprep.subr.mxu0 0.0
    %2325 = vmatpush1.msra.mxu0 0.0
    %2326 = vmatprep.subr.mxu0 0.0
    %2327 = vmatpush1.msra.mxu0 0.0
    %2328 = vmatprep.subr.mxu0 0.0
    %2329 = vmatpush1.msra.mxu0 0.0
    %2330 = vmatprep.subr.mxu0 0.0
    %2331 = vmatpush1.msra.mxu0 0.0
    %2332 = vmatprep.subr.mxu0 0.0
    %2333 = vmatpush1.msra.mxu0 0.0
    %2334 = vmatprep.subr.mxu0 0.0
    %2335 = vmatpush1.msra.mxu0 0.0
    %2336 = vmatprep.subr.mxu0 0.0
    %2337 = vmatpush1.msra.mxu0 0.0
    %2338 = vmatprep.subr.mxu0 0.0
    %2339 = vmatpush1.msra.mxu0 0.0
    %2340 = vmatprep.subr.mxu0 0.0
    %2341 = vmatpush1.msra.mxu0 0.0
    %2342 = vmatprep.subr.mxu0 0.0
    %2343 = vmatpush1.msra.mxu0 0.0
    %2344 = vmatprep.subr.mxu0 0.0
    %2345 = vmatpush1.msra.mxu0 0.0
    %2346 = vmatprep.subr.mxu0 0.0
    %2347 = vmatpush1.msra.mxu0 0.0
    %2348 = vmatprep.subr.mxu0 0.0
    %2349 = vmatpush1.msra.mxu0 0.0
    %2350 = vmatprep.subr.mxu0 0.0
    %2351 = vmatpush1.msra.mxu0 0.0
    %2352 = vmatprep.subr.mxu0 0.0
    %2353 = vmatpush1.msra.mxu0 0.0
    %2354 = vmatprep.subr.mxu0 0.0
    %2355 = vmatpush1.msra.mxu0 0.0
    %2356 = vmatprep.subr.mxu0 0.0
    %2357 = vmatpush1.msra.mxu0 0.0
    %2358 = vmatprep.subr.mxu0 0.0
    %2359 = vmatpush1.msra.mxu0 0.0
    %2360 = vmatprep.subr.mxu0 0.0
    %2361 = vmatpush1.msra.mxu0 0.0
    %2362 = vmatprep.subr.mxu0 0.0
    %2363 = vmatpush1.msra.mxu0 0.0
    %2364 = vmatprep.subr.mxu0 0.0
    %2365 = vmatpush1.msra.mxu0 0.0
    %2366 = vmatprep.subr.mxu0 0.0
    %2367 = vmatpush1.msra.mxu0 0.0
    %2368 = vmatprep.subr.mxu0 0.0
    %2369 = vmatpush1.msra.mxu0 0.0
    %2370 = vmatprep.subr.mxu0 0.0
    %2371 = vmatpush1.msra.mxu0 0.0
    %2372 = vmatprep.subr.mxu0 0.0
    %2373 = vmatpush1.msra.mxu0 0.0
    %2374 = vmatprep.mubr.f32.mxu0 0.0
    %2375 = vmatmul.mubr.f32.gmra.mrb[0].mxu0 %v82
    %v2376 = vpop.f32.mrb[0].mxu0
    %v2377 = vadd.f32 %v2308, %v2376
    %v2378 = vpop.f32.mrb[0].mxu0
    %2379 = vmatprep.mubr.f32.mxu0 0.0
    %2380 = vmatmul.mubr.f32.gmra.mrb[0].mxu0 %v85
    %v2381 = vpop.f32.mrb[0].mxu0
    %v2382 = vadd.f32 %v2308, %v2381
    %v2383 = vpop.f32.mrb[0].mxu0
    %2384 = vdwg.mxu0
    %s2385 = scalar_lea.vmem %s4, 96
    %v2386 = vld [vmem:[%s2385] sm:$0xff]
    %v2387 = vld [vmem:[%s2385 + $0x8] sm:$0xff]
    %v2388 = vld [vmem:[%s2385 + $0x10] sm:$0xff]
    %v2389 = vld [vmem:[%s2385 + $0x18] sm:$0xff]
    %s2390 = scalar_lea.vmem %s5, 3
    %v2391 = vld [vmem:[%s2390] sm:$0x1]
    %v2393 = vlaneseq
    %v2394 = vshrl.u32 %v2393, 7
    %v2395 = vsub.s32 0, %v2394
    %v2396 = vrot.slane %v2391, %v2395
    %2398 = vmatprep.subr.mxu0 0.0
    %2399 = vmatpush1.msra.mxu0 %v2386
    %2400 = vmatprep.subr.mxu0 0.0
    %2401 = vmatpush1.msra.mxu0 %v2387
    %2402 = vmatprep.subr.mxu0 0.0
    %2403 = vmatpush1.msra.mxu0 %v2388
    %2404 = vmatprep.subr.mxu0 0.0
    %2405 = vmatpush1.msra.mxu0 %v2389
    %2406 = vmatprep.subr.mxu0 0.0
    %2407 = vmatpush1.msra.mxu0 0.0
    %2408 = vmatprep.subr.mxu0 0.0
    %2409 = vmatpush1.msra.mxu0 0.0
    %2410 = vmatprep.subr.mxu0 0.0
    %2411 = vmatpush1.msra.mxu0 0.0
    %2412 = vmatprep.subr.mxu0 0.0
    %2413 = vmatpush1.msra.mxu0 0.0
    %2414 = vmatprep.subr.mxu0 0.0
    %2415 = vmatpush1.msra.mxu0 0.0
    %2416 = vmatprep.subr.mxu0 0.0
    %2417 = vmatpush1.msra.mxu0 0.0
    %2418 = vmatprep.subr.mxu0 0.0
    %2419 = vmatpush1.msra.mxu0 0.0
    %2420 = vmatprep.subr.mxu0 0.0
    %2421 = vmatpush1.msra.mxu0 0.0
    %2422 = vmatprep.subr.mxu0 0.0
    %2423 = vmatpush1.msra.mxu0 0.0
    %2424 = vmatprep.subr.mxu0 0.0
    %2425 = vmatpush1.msra.mxu0 0.0
    %2426 = vmatprep.subr.mxu0 0.0
    %2427 = vmatpush1.msra.mxu0 0.0
    %2428 = vmatprep.subr.mxu0 0.0
    %2429 = vmatpush1.msra.mxu0 0.0
    %2430 = vmatprep.subr.mxu0 0.0
    %2431 = vmatpush1.msra.mxu0 0.0
    %2432 = vmatprep.subr.mxu0 0.0
    %2433 = vmatpush1.msra.mxu0 0.0
    %2434 = vmatprep.subr.mxu0 0.0
    %2435 = vmatpush1.msra.mxu0 0.0
    %2436 = vmatprep.subr.mxu0 0.0
    %2437 = vmatpush1.msra.mxu0 0.0
    %2438 = vmatprep.subr.mxu0 0.0
    %2439 = vmatpush1.msra.mxu0 0.0
    %2440 = vmatprep.subr.mxu0 0.0
    %2441 = vmatpush1.msra.mxu0 0.0
    %2442 = vmatprep.subr.mxu0 0.0
    %2443 = vmatpush1.msra.mxu0 0.0
    %2444 = vmatprep.subr.mxu0 0.0
    %2445 = vmatpush1.msra.mxu0 0.0
    %2446 = vmatprep.subr.mxu0 0.0
    %2447 = vmatpush1.msra.mxu0 0.0
    %2448 = vmatprep.subr.mxu0 0.0
    %2449 = vmatpush1.msra.mxu0 0.0
    %2450 = vmatprep.subr.mxu0 0.0
    %2451 = vmatpush1.msra.mxu0 0.0
    %2452 = vmatprep.subr.mxu0 0.0
    %2453 = vmatpush1.msra.mxu0 0.0
    %2454 = vmatprep.subr.mxu0 0.0
    %2455 = vmatpush1.msra.mxu0 0.0
    %2456 = vmatprep.subr.mxu0 0.0
    %2457 = vmatpush1.msra.mxu0 0.0
    %2458 = vmatprep.subr.mxu0 0.0
    %2459 = vmatpush1.msra.mxu0 0.0
    %2460 = vmatprep.subr.mxu0 0.0
    %2461 = vmatpush1.msra.mxu0 0.0
    %2462 = vmatprep.mubr.f32.mxu0 0.0
    %2463 = vmatmul.mubr.f32.gmra.mrb[0].mxu0 %v82
    %v2464 = vpop.f32.mrb[0].mxu0
    %v2465 = vadd.f32 %v2396, %v2464
    %v2466 = vpop.f32.mrb[0].mxu0
    %2467 = vmatprep.mubr.f32.mxu0 0.0
    %2468 = vmatmul.mubr.f32.gmra.mrb[0].mxu0 %v85
    %v2469 = vpop.f32.mrb[0].mxu0
    %v2470 = vadd.f32 %v2396, %v2469
    %v2471 = vpop.f32.mrb[0].mxu0
    %2472 = vdwg.mxu0
    %s2473 = scalar_lea.vmem %s6, 96
    %v2474 = vld [vmem:[%s2473] sm:$0xff]
    %v2475 = vld [vmem:[%s2473 + $0x8] sm:$0xff]
    %v2476 = vld [vmem:[%s2473 + $0x10] sm:$0xff]
    %v2477 = vld [vmem:[%s2473 + $0x18] sm:$0xff]
    %s2478 = scalar_lea.vmem %s7, 3
    %v2479 = vld [vmem:[%s2478] sm:$0x1]
    %v2481 = vlaneseq
    %v2482 = vshrl.u32 %v2481, 7
    %v2483 = vsub.s32 0, %v2482
    %v2484 = vrot.slane %v2479, %v2483
    %2486 = vmatprep.subr.mxu0 0.0
    %2487 = vmatpush1.msra.mxu0 %v2474
    %2488 = vmatprep.subr.mxu0 0.0
    %2489 = vmatpush1.msra.mxu0 %v2475
    %2490 = vmatprep.subr.mxu0 0.0
    %2491 = vmatpush1.msra.mxu0 %v2476
    %2492 = vmatprep.subr.mxu0 0.0
    %2493 = vmatpush1.msra.mxu0 %v2477
    %2494 = vmatprep.subr.mxu0 0.0
    %2495 = vmatpush1.msra.mxu0 0.0
    %2496 = vmatprep.subr.mxu0 0.0
    %2497 = vmatpush1.msra.mxu0 0.0
    %2498 = vmatprep.subr.mxu0 0.0
    %2499 = vmatpush1.msra.mxu0 0.0
    %2500 = vmatprep.subr.mxu0 0.0
    %2501 = vmatpush1.msra.mxu0 0.0
    %2502 = vmatprep.subr.mxu0 0.0
    %2503 = vmatpush1.msra.mxu0 0.0
    %2504 = vmatprep.subr.mxu0 0.0
    %2505 = vmatpush1.msra.mxu0 0.0
    %2506 = vmatprep.subr.mxu0 0.0
    %2507 = vmatpush1.msra.mxu0 0.0
    %2508 = vmatprep.subr.mxu0 0.0
    %2509 = vmatpush1.msra.mxu0 0.0
    %2510 = vmatprep.subr.mxu0 0.0
    %2511 = vmatpush1.msra.mxu0 0.0
    %2512 = vmatprep.subr.mxu0 0.0
    %2513 = vmatpush1.msra.mxu0 0.0
    %2514 = vmatprep.subr.mxu0 0.0
    %2515 = vmatpush1.msra.mxu0 0.0
    %2516 = vmatprep.subr.mxu0 0.0
    %2517 = vmatpush1.msra.mxu0 0.0
    %2518 = vmatprep.subr.mxu0 0.0
    %2519 = vmatpush1.msra.mxu0 0.0
    %2520 = vmatprep.subr.mxu0 0.0
    %2521 = vmatpush1.msra.mxu0 0.0
    %2522 = vmatprep.subr.mxu0 0.0
    %2523 = vmatpush1.msra.mxu0 0.0
    %2524 = vmatprep.subr.mxu0 0.0
    %2525 = vmatpush1.msra.mxu0 0.0
    %2526 = vmatprep.subr.mxu0 0.0
    %2527 = vmatpush1.msra.mxu0 0.0
    %2528 = vmatprep.subr.mxu0 0.0
    %2529 = vmatpush1.msra.mxu0 0.0
    %2530 = vmatprep.subr.mxu0 0.0
    %2531 = vmatpush1.msra.mxu0 0.0
    %2532 = vmatprep.subr.mxu0 0.0
    %2533 = vmatpush1.msra.mxu0 0.0
    %2534 = vmatprep.subr.mxu0 0.0
    %2535 = vmatpush1.msra.mxu0 0.0
    %2536 = vmatprep.subr.mxu0 0.0
    %2537 = vmatpush1.msra.mxu0 0.0
    %2538 = vmatprep.subr.mxu0 0.0
    %2539 = vmatpush1.msra.mxu0 0.0
    %2540 = vmatprep.subr.mxu0 0.0
    %2541 = vmatpush1.msra.mxu0 0.0
    %2542 = vmatprep.subr.mxu0 0.0
    %2543 = vmatpush1.msra.mxu0 0.0
    %2544 = vmatprep.subr.mxu0 0.0
    %2545 = vmatpush1.msra.mxu0 0.0
    %2546 = vmatprep.subr.mxu0 0.0
    %2547 = vmatpush1.msra.mxu0 0.0
    %2548 = vmatprep.subr.mxu0 0.0
    %2549 = vmatpush1.msra.mxu0 0.0
    %2550 = vmatprep.mubr.f32.mxu0 0.0
    %2551 = vmatmul.mubr.f32.gmra.mrb[0].mxu0 %v82
    %v2552 = vpop.f32.mrb[0].mxu0
    %v2553 = vadd.f32 %v2484, %v2552
    %v2554 = vpop.f32.mrb[0].mxu0
    %2555 = vmatprep.mubr.f32.mxu0 0.0
    %2556 = vmatmul.mubr.f32.gmra.mrb[0].mxu0 %v85
    %v2557 = vpop.f32.mrb[0].mxu0
    %v2558 = vadd.f32 %v2484, %v2557
    %v2559 = vpop.f32.mrb[0].mxu0
    %2560 = vdwg.mxu0
    %s2561 = scalar_lea.vmem %s8, 24
    %v2562 = vld [vmem:[%s2561] sm:$0xff]
    %v2564 = vsel %vm335, %v2377, 0
    %v2567 = vsel %vm335, %v2465, 0
    %2569 = vmatprep.subr.mxu0 0.0
    %2570 = vmatpush1.xpose.msra.mxu0 %v2567
    %2571 = vmatprep.subr.mxu0 0.0
    %2572 = vmatpush1.xpose.msra.mxu0 0.0
    %2573 = vmatprep.subr.mxu0 0.0
    %2574 = vmatpush1.xpose.msra.mxu0 0.0
    %2575 = vmatprep.subr.mxu0 0.0
    %2576 = vmatpush1.xpose.msra.mxu0 0.0
    %2577 = vmatprep.subr.mxu0 0.0
    %2578 = vmatpush1.xpose.msra.mxu0 0.0
    %2579 = vmatprep.subr.mxu0 0.0
    %2580 = vmatpush1.xpose.msra.mxu0 0.0
    %2581 = vmatprep.subr.mxu0 0.0
    %2582 = vmatpush1.xpose.msra.mxu0 0.0
    %2583 = vmatprep.subr.mxu0 0.0
    %2584 = vmatpush1.xpose.msra.mxu0 0.0
    %2585 = vmatprep.subr.mxu0 0.0
    %2586 = vmatpush1.xpose.msra.mxu0 0.0
    %2587 = vmatprep.subr.mxu0 0.0
    %2588 = vmatpush1.xpose.msra.mxu0 0.0
    %2589 = vmatprep.subr.mxu0 0.0
    %2590 = vmatpush1.xpose.msra.mxu0 0.0
    %2591 = vmatprep.subr.mxu0 0.0
    %2592 = vmatpush1.xpose.msra.mxu0 0.0
    %2593 = vmatprep.subr.mxu0 0.0
    %2594 = vmatpush1.xpose.msra.mxu0 0.0
    %2595 = vmatprep.subr.mxu0 0.0
    %2596 = vmatpush1.xpose.msra.mxu0 0.0
    %2597 = vmatprep.subr.mxu0 0.0
    %2598 = vmatpush1.xpose.msra.mxu0 0.0
    %2599 = vmatprep.subr.mxu0 0.0
    %2600 = vmatpush1.xpose.msra.mxu0 0.0
    %2601 = vmatprep.subr.mxu0 0.0
    %2602 = vmatpush1.xpose.msra.mxu0 0.0
    %2603 = vmatprep.subr.mxu0 0.0
    %2604 = vmatpush1.xpose.msra.mxu0 0.0
    %2605 = vmatprep.subr.mxu0 0.0
    %2606 = vmatpush1.xpose.msra.mxu0 0.0
    %2607 = vmatprep.subr.mxu0 0.0
    %2608 = vmatpush1.xpose.msra.mxu0 0.0
    %2609 = vmatprep.subr.mxu0 0.0
    %2610 = vmatpush1.xpose.msra.mxu0 0.0
    %2611 = vmatprep.subr.mxu0 0.0
    %2612 = vmatpush1.xpose.msra.mxu0 0.0
    %2613 = vmatprep.subr.mxu0 0.0
    %2614 = vmatpush1.xpose.msra.mxu0 0.0
    %2615 = vmatprep.subr.mxu0 0.0
    %2616 = vmatpush1.xpose.msra.mxu0 0.0
    %2617 = vmatprep.subr.mxu0 0.0
    %2618 = vmatpush1.xpose.msra.mxu0 0.0
    %2619 = vmatprep.subr.mxu0 0.0
    %2620 = vmatpush1.xpose.msra.mxu0 0.0
    %2621 = vmatprep.subr.mxu0 0.0
    %2622 = vmatpush1.xpose.msra.mxu0 0.0
    %2623 = vmatprep.subr.mxu0 0.0
    %2624 = vmatpush1.xpose.msra.mxu0 0.0
    %2625 = vmatprep.subr.mxu0 0.0
    %2626 = vmatpush1.xpose.msra.mxu0 0.0
    %2627 = vmatprep.subr.mxu0 0.0
    %2628 = vmatpush1.xpose.msra.mxu0 0.0
    %2629 = vmatprep.subr.mxu0 0.0
    %2630 = vmatpush1.xpose.msra.mxu0 0.0
    %2631 = vmatprep.subr.mxu0 0.0
    %2632 = vmatpush1.xpose.msra.mxu0 0.0
    %2633 = vmatprep.mubr.f32.mxu0 0.0
    %2634 = vmatmul.mubr.f32.gmra.mrb[0].mxu0 %v2564
    %v2635 = vpop.f32.mrb[0].mxu0
    %v2636 = vadd.f32 0.0, %v2635
    %v2637 = vpop.f32.mrb[0].mxu0
    %2638 = vdwg.mxu0
    %v2639 = vsel %vm417, -10000.0, %v2636
    %v2640 = vsel %vm335, %v2639, -inf
    %2641 = vmax.xlane.f32.xlu0 %v2640
    %v2642 = vpop.xlane.xlu0 %2641
    %v2643 = vsub.f32 %v2639, %v2642
    %v2644 = vmul.f32 %v2643, 1.442695
    %v2645 = vpow.pop %v2644
    %v2646 = vsel %vm335, %v2645, 0.0
    %2647 = vadd.xlane.f32.xlu0 %v2646
    %v2648 = vpop.xlane.xlu0 %2647
    %v2649 = vrcp.pop %v2648
    %v2650 = vmul.f32 %v2645, %v2649
    %s2651 = scalar_lea.vmem [#allocation4], 24
    %2652 = vst.msk [vmem:[%s2651] sm:$0xff] %vm335, %v2650
    %v2654 = vsel %vm335, %v2650, 0
    %2656 = vmatprep.subr.mxu0 0.0
    %2657 = vmatpush1.msra.mxu0 %v2553
    %2658 = vmatprep.subr.mxu0 0.0
    %2659 = vmatpush1.msra.mxu0 0.0
    %2660 = vmatprep.subr.mxu0 0.0
    %2661 = vmatpush1.msra.mxu0 0.0
    %2662 = vmatprep.subr.mxu0 0.0
    %2663 = vmatpush1.msra.mxu0 0.0
    %2664 = vmatprep.subr.mxu0 0.0
    %2665 = vmatpush1.msra.mxu0 0.0
    %2666 = vmatprep.subr.mxu0 0.0
    %2667 = vmatpush1.msra.mxu0 0.0
    %2668 = vmatprep.subr.mxu0 0.0
    %2669 = vmatpush1.msra.mxu0 0.0
    %2670 = vmatprep.subr.mxu0 0.0
    %2671 = vmatpush1.msra.mxu0 0.0
    %2672 = vmatprep.subr.mxu0 0.0
    %2673 = vmatpush1.msra.mxu0 0.0
    %2674 = vmatprep.subr.mxu0 0.0
    %2675 = vmatpush1.msra.mxu0 0.0
    %2676 = vmatprep.subr.mxu0 0.0
    %2677 = vmatpush1.msra.mxu0 0.0
    %2678 = vmatprep.subr.mxu0 0.0
    %2679 = vmatpush1.msra.mxu0 0.0
    %2680 = vmatprep.subr.mxu0 0.0
    %2681 = vmatpush1.msra.mxu0 0.0
    %2682 = vmatprep.subr.mxu0 0.0
    %2683 = vmatpush1.msra.mxu0 0.0
    %2684 = vmatprep.subr.mxu0 0.0
    %2685 = vmatpush1.msra.mxu0 0.0
    %2686 = vmatprep.subr.mxu0 0.0
    %2687 = vmatpush1.msra.mxu0 0.0
    %2688 = vmatprep.subr.mxu0 0.0
    %2689 = vmatpush1.msra.mxu0 0.0
    %2690 = vmatprep.subr.mxu0 0.0
    %2691 = vmatpush1.msra.mxu0 0.0
    %2692 = vmatprep.subr.mxu0 0.0
    %2693 = vmatpush1.msra.mxu0 0.0
    %2694 = vmatprep.subr.mxu0 0.0
    %2695 = vmatpush1.msra.mxu0 0.0
    %2696 = vmatprep.subr.mxu0 0.0
    %2697 = vmatpush1.msra.mxu0 0.0
    %2698 = vmatprep.subr.mxu0 0.0
    %2699 = vmatpush1.msra.mxu0 0.0
    %2700 = vmatprep.subr.mxu0 0.0
    %2701 = vmatpush1.msra.mxu0 0.0
    %2702 = vmatprep.subr.mxu0 0.0
    %2703 = vmatpush1.msra.mxu0 0.0
    %2704 = vmatprep.subr.mxu0 0.0
    %2705 = vmatpush1.msra.mxu0 0.0
    %2706 = vmatprep.subr.mxu0 0.0
    %2707 = vmatpush1.msra.mxu0 0.0
    %2708 = vmatprep.subr.mxu0 0.0
    %2709 = vmatpush1.msra.mxu0 0.0
    %2710 = vmatprep.subr.mxu0 0.0
    %2711 = vmatpush1.msra.mxu0 0.0
    %2712 = vmatprep.subr.mxu0 0.0
    %2713 = vmatpush1.msra.mxu0 0.0
    %2714 = vmatprep.subr.mxu0 0.0
    %2715 = vmatpush1.msra.mxu0 0.0
    %2716 = vmatprep.subr.mxu0 0.0
    %2717 = vmatpush1.msra.mxu0 0.0
    %2718 = vmatprep.subr.mxu0 0.0
    %2719 = vmatpush1.msra.mxu0 0.0
    %2720 = vmatprep.mubr.f32.mxu0 0.0
    %2721 = vmatmul.mubr.f32.gmra.mrb[0].mxu0 %v2654
    %v2722 = vpop.f32.mrb[0].mxu0
    %v2723 = vadd.f32 0.0, %v2722
    %v2724 = vpop.f32.mrb[0].mxu0
    %2725 = vdwg.mxu0
    %v2727 = vsel %vm335, %v2723, 0
    %2729 = vmatprep.subr.mxu0 0.0
    %2730 = vmatpush1.msra.mxu0 %v2562
    %2731 = vmatprep.subr.mxu0 0.0
    %2732 = vmatpush1.msra.mxu0 0.0
    %2733 = vmatprep.subr.mxu0 0.0
    %2734 = vmatpush1.msra.mxu0 0.0
    %2735 = vmatprep.subr.mxu0 0.0
    %2736 = vmatpush1.msra.mxu0 0.0
    %2737 = vmatprep.subr.mxu0 0.0
    %2738 = vmatpush1.msra.mxu0 0.0
    %2739 = vmatprep.subr.mxu0 0.0
    %2740 = vmatpush1.msra.mxu0 0.0
    %2741 = vmatprep.subr.mxu0 0.0
    %2742 = vmatpush1.msra.mxu0 0.0
    %2743 = vmatprep.subr.mxu0 0.0
    %2744 = vmatpush1.msra.mxu0 0.0
    %2745 = vmatprep.subr.mxu0 0.0
    %2746 = vmatpush1.msra.mxu0 0.0
    %2747 = vmatprep.subr.mxu0 0.0
    %2748 = vmatpush1.msra.mxu0 0.0
    %2749 = vmatprep.subr.mxu0 0.0
    %2750 = vmatpush1.msra.mxu0 0.0
    %2751 = vmatprep.subr.mxu0 0.0
    %2752 = vmatpush1.msra.mxu0 0.0
    %2753 = vmatprep.subr.mxu0 0.0
    %2754 = vmatpush1.msra.mxu0 0.0
    %2755 = vmatprep.subr.mxu0 0.0
    %2756 = vmatpush1.msra.mxu0 0.0
    %2757 = vmatprep.subr.mxu0 0.0
    %2758 = vmatpush1.msra.mxu0 0.0
    %2759 = vmatprep.subr.mxu0 0.0
    %2760 = vmatpush1.msra.mxu0 0.0
    %2761 = vmatprep.subr.mxu0 0.0
    %2762 = vmatpush1.msra.mxu0 0.0
    %2763 = vmatprep.subr.mxu0 0.0
    %2764 = vmatpush1.msra.mxu0 0.0
    %2765 = vmatprep.subr.mxu0 0.0
    %2766 = vmatpush1.msra.mxu0 0.0
    %2767 = vmatprep.subr.mxu0 0.0
    %2768 = vmatpush1.msra.mxu0 0.0
    %2769 = vmatprep.subr.mxu0 0.0
    %2770 = vmatpush1.msra.mxu0 0.0
    %2771 = vmatprep.subr.mxu0 0.0
    %2772 = vmatpush1.msra.mxu0 0.0
    %2773 = vmatprep.subr.mxu0 0.0
    %2774 = vmatpush1.msra.mxu0 0.0
    %2775 = vmatprep.subr.mxu0 0.0
    %2776 = vmatpush1.msra.mxu0 0.0
    %2777 = vmatprep.subr.mxu0 0.0
    %2778 = vmatpush1.msra.mxu0 0.0
    %2779 = vmatprep.subr.mxu0 0.0
    %2780 = vmatpush1.msra.mxu0 0.0
    %2781 = vmatprep.subr.mxu0 0.0
    %2782 = vmatpush1.msra.mxu0 0.0
    %2783 = vmatprep.subr.mxu0 0.0
    %2784 = vmatpush1.msra.mxu0 0.0
    %2785 = vmatprep.subr.mxu0 0.0
    %2786 = vmatpush1.msra.mxu0 0.0
    %2787 = vmatprep.subr.mxu0 0.0
    %2788 = vmatpush1.msra.mxu0 0.0
    %2789 = vmatprep.subr.mxu0 0.0
    %2790 = vmatpush1.msra.mxu0 0.0
    %2791 = vmatprep.subr.mxu0 0.0
    %2792 = vmatpush1.msra.mxu0 0.0
    %2793 = vmatprep.mubr.f32.mxu0 0.0
    %2794 = vmatmul.mubr.f32.gmra.mrb[0].mxu0 %v2727
    %v2795 = vpop.f32.mrb[0].mxu0
    %v2796 = vadd.f32 0.0, %v2795
    %v2797 = vpop.f32.mrb[0].mxu0
    %2798 = vdwg.mxu0
    %v2799 = vadd.f32 %v2059, %v2796
    %v2801 = vsel %vm335, %v2382, 0
    %v2804 = vsel %vm335, %v2470, 0
    %2806 = vmatprep.subr.mxu0 0.0
    %2807 = vmatpush1.xpose.msra.mxu0 %v2804
    %2808 = vmatprep.subr.mxu0 0.0
    %2809 = vmatpush1.xpose.msra.mxu0 0.0
    %2810 = vmatprep.subr.mxu0 0.0
    %2811 = vmatpush1.xpose.msra.mxu0 0.0
    %2812 = vmatprep.subr.mxu0 0.0
    %2813 = vmatpush1.xpose.msra.mxu0 0.0
    %2814 = vmatprep.subr.mxu0 0.0
    %2815 = vmatpush1.xpose.msra.mxu0 0.0
    %2816 = vmatprep.subr.mxu0 0.0
    %2817 = vmatpush1.xpose.msra.mxu0 0.0
    %2818 = vmatprep.subr.mxu0 0.0
    %2819 = vmatpush1.xpose.msra.mxu0 0.0
    %2820 = vmatprep.subr.mxu0 0.0
    %2821 = vmatpush1.xpose.msra.mxu0 0.0
    %2822 = vmatprep.subr.mxu0 0.0
    %2823 = vmatpush1.xpose.msra.mxu0 0.0
    %2824 = vmatprep.subr.mxu0 0.0
    %2825 = vmatpush1.xpose.msra.mxu0 0.0
    %2826 = vmatprep.subr.mxu0 0.0
    %2827 = vmatpush1.xpose.msra.mxu0 0.0
    %2828 = vmatprep.subr.mxu0 0.0
    %2829 = vmatpush1.xpose.msra.mxu0 0.0
    %2830 = vmatprep.subr.mxu0 0.0
    %2831 = vmatpush1.xpose.msra.mxu0 0.0
    %2832 = vmatprep.subr.mxu0 0.0
    %2833 = vmatpush1.xpose.msra.mxu0 0.0
    %2834 = vmatprep.subr.mxu0 0.0
    %2835 = vmatpush1.xpose.msra.mxu0 0.0
    %2836 = vmatprep.subr.mxu0 0.0
    %2837 = vmatpush1.xpose.msra.mxu0 0.0
    %2838 = vmatprep.subr.mxu0 0.0
    %2839 = vmatpush1.xpose.msra.mxu0 0.0
    %2840 = vmatprep.subr.mxu0 0.0
    %2841 = vmatpush1.xpose.msra.mxu0 0.0
    %2842 = vmatprep.subr.mxu0 0.0
    %2843 = vmatpush1.xpose.msra.mxu0 0.0
    %2844 = vmatprep.subr.mxu0 0.0
    %2845 = vmatpush1.xpose.msra.mxu0 0.0
    %2846 = vmatprep.subr.mxu0 0.0
    %2847 = vmatpush1.xpose.msra.mxu0 0.0
    %2848 = vmatprep.subr.mxu0 0.0
    %2849 = vmatpush1.xpose.msra.mxu0 0.0
    %2850 = vmatprep.subr.mxu0 0.0
    %2851 = vmatpush1.xpose.msra.mxu0 0.0
    %2852 = vmatprep.subr.mxu0 0.0
    %2853 = vmatpush1.xpose.msra.mxu0 0.0
    %2854 = vmatprep.subr.mxu0 0.0
    %2855 = vmatpush1.xpose.msra.mxu0 0.0
    %2856 = vmatprep.subr.mxu0 0.0
    %2857 = vmatpush1.xpose.msra.mxu0 0.0
    %2858 = vmatprep.subr.mxu0 0.0
    %2859 = vmatpush1.xpose.msra.mxu0 0.0
    %2860 = vmatprep.subr.mxu0 0.0
    %2861 = vmatpush1.xpose.msra.mxu0 0.0
    %2862 = vmatprep.subr.mxu0 0.0
    %2863 = vmatpush1.xpose.msra.mxu0 0.0
    %2864 = vmatprep.subr.mxu0 0.0
    %2865 = vmatpush1.xpose.msra.mxu0 0.0
    %2866 = vmatprep.subr.mxu0 0.0
    %2867 = vmatpush1.xpose.msra.mxu0 0.0
    %2868 = vmatprep.subr.mxu0 0.0
    %2869 = vmatpush1.xpose.msra.mxu0 0.0
    %2870 = vmatprep.mubr.f32.mxu0 0.0
    %2871 = vmatmul.mubr.f32.gmra.mrb[0].mxu0 %v2801
    %v2872 = vpop.f32.mrb[0].mxu0
    %v2873 = vadd.f32 0.0, %v2872
    %v2874 = vpop.f32.mrb[0].mxu0
    %2875 = vdwg.mxu0
    %v2876 = vsel %vm585, -10000.0, %v2873
    %v2877 = vsel %vm335, %v2876, -inf
    %2878 = vmax.xlane.f32.xlu0 %v2877
    %v2879 = vpop.xlane.xlu0 %2878
    %v2880 = vsub.f32 %v2876, %v2879
    %v2881 = vmul.f32 %v2880, 1.442695
    %v2882 = vpow.pop %v2881
    %v2883 = vsel %vm335, %v2882, 0.0
    %2884 = vadd.xlane.f32.xlu0 %v2883
    %v2885 = vpop.xlane.xlu0 %2884
    %v2886 = vrcp.pop %v2885
    %v2887 = vmul.f32 %v2882, %v2886
    %s2888 = scalar_lea.vmem [#allocation4], 56
    %2889 = vst.msk [vmem:[%s2888] sm:$0xff] %vm335, %v2887
    %v2891 = vsel %vm335, %v2887, 0
    %2893 = vmatprep.subr.mxu0 0.0
    %2894 = vmatpush1.msra.mxu0 %v2558
    %2895 = vmatprep.subr.mxu0 0.0
    %2896 = vmatpush1.msra.mxu0 0.0
    %2897 = vmatprep.subr.mxu0 0.0
    %2898 = vmatpush1.msra.mxu0 0.0
    %2899 = vmatprep.subr.mxu0 0.0
    %2900 = vmatpush1.msra.mxu0 0.0
    %2901 = vmatprep.subr.mxu0 0.0
    %2902 = vmatpush1.msra.mxu0 0.0
    %2903 = vmatprep.subr.mxu0 0.0
    %2904 = vmatpush1.msra.mxu0 0.0
    %2905 = vmatprep.subr.mxu0 0.0
    %2906 = vmatpush1.msra.mxu0 0.0
    %2907 = vmatprep.subr.mxu0 0.0
    %2908 = vmatpush1.msra.mxu0 0.0
    %2909 = vmatprep.subr.mxu0 0.0
    %2910 = vmatpush1.msra.mxu0 0.0
    %2911 = vmatprep.subr.mxu0 0.0
    %2912 = vmatpush1.msra.mxu0 0.0
    %2913 = vmatprep.subr.mxu0 0.0
    %2914 = vmatpush1.msra.mxu0 0.0
    %2915 = vmatprep.subr.mxu0 0.0
    %2916 = vmatpush1.msra.mxu0 0.0
    %2917 = vmatprep.subr.mxu0 0.0
    %2918 = vmatpush1.msra.mxu0 0.0
    %2919 = vmatprep.subr.mxu0 0.0
    %2920 = vmatpush1.msra.mxu0 0.0
    %2921 = vmatprep.subr.mxu0 0.0
    %2922 = vmatpush1.msra.mxu0 0.0
    %2923 = vmatprep.subr.mxu0 0.0
    %2924 = vmatpush1.msra.mxu0 0.0
    %2925 = vmatprep.subr.mxu0 0.0
    %2926 = vmatpush1.msra.mxu0 0.0
    %2927 = vmatprep.subr.mxu0 0.0
    %2928 = vmatpush1.msra.mxu0 0.0
    %2929 = vmatprep.subr.mxu0 0.0
    %2930 = vmatpush1.msra.mxu0 0.0
    %2931 = vmatprep.subr.mxu0 0.0
    %2932 = vmatpush1.msra.mxu0 0.0
    %2933 = vmatprep.subr.mxu0 0.0
    %2934 = vmatpush1.msra.mxu0 0.0
    %2935 = vmatprep.subr.mxu0 0.0
    %2936 = vmatpush1.msra.mxu0 0.0
    %2937 = vmatprep.subr.mxu0 0.0
    %2938 = vmatpush1.msra.mxu0 0.0
    %2939 = vmatprep.subr.mxu0 0.0
    %2940 = vmatpush1.msra.mxu0 0.0
    %2941 = vmatprep.subr.mxu0 0.0
    %2942 = vmatpush1.msra.mxu0 0.0
    %2943 = vmatprep.subr.mxu0 0.0
    %2944 = vmatpush1.msra.mxu0 0.0
    %2945 = vmatprep.subr.mxu0 0.0
    %2946 = vmatpush1.msra.mxu0 0.0
    %2947 = vmatprep.subr.mxu0 0.0
    %2948 = vmatpush1.msra.mxu0 0.0
    %2949 = vmatprep.subr.mxu0 0.0
    %2950 = vmatpush1.msra.mxu0 0.0
    %2951 = vmatprep.subr.mxu0 0.0
    %2952 = vmatpush1.msra.mxu0 0.0
    %2953 = vmatprep.subr.mxu0 0.0
    %2954 = vmatpush1.msra.mxu0 0.0
    %2955 = vmatprep.subr.mxu0 0.0
    %2956 = vmatpush1.msra.mxu0 0.0
    %2957 = vmatprep.mubr.f32.mxu0 0.0
    %2958 = vmatmul.mubr.f32.gmra.mrb[0].mxu0 %v2891
    %v2959 = vpop.f32.mrb[0].mxu0
    %v2960 = vadd.f32 0.0, %v2959
    %v2961 = vpop.f32.mrb[0].mxu0
    %2962 = vdwg.mxu0
    %v2964 = vsel %vm335, %v2960, 0
    %2966 = vmatprep.subr.mxu0 0.0
    %2967 = vmatpush1.msra.mxu0 %v2562
    %2968 = vmatprep.subr.mxu0 0.0
    %2969 = vmatpush1.msra.mxu0 0.0
    %2970 = vmatprep.subr.mxu0 0.0
    %2971 = vmatpush1.msra.mxu0 0.0
    %2972 = vmatprep.subr.mxu0 0.0
    %2973 = vmatpush1.msra.mxu0 0.0
    %2974 = vmatprep.subr.mxu0 0.0
    %2975 = vmatpush1.msra.mxu0 0.0
    %2976 = vmatprep.subr.mxu0 0.0
    %2977 = vmatpush1.msra.mxu0 0.0
    %2978 = vmatprep.subr.mxu0 0.0
    %2979 = vmatpush1.msra.mxu0 0.0
    %2980 = vmatprep.subr.mxu0 0.0
    %2981 = vmatpush1.msra.mxu0 0.0
    %2982 = vmatprep.subr.mxu0 0.0
    %2983 = vmatpush1.msra.mxu0 0.0
    %2984 = vmatprep.subr.mxu0 0.0
    %2985 = vmatpush1.msra.mxu0 0.0
    %2986 = vmatprep.subr.mxu0 0.0
    %2987 = vmatpush1.msra.mxu0 0.0
    %2988 = vmatprep.subr.mxu0 0.0
    %2989 = vmatpush1.msra.mxu0 0.0
    %2990 = vmatprep.subr.mxu0 0.0
    %2991 = vmatpush1.msra.mxu0 0.0
    %2992 = vmatprep.subr.mxu0 0.0
    %2993 = vmatpush1.msra.mxu0 0.0
    %2994 = vmatprep.subr.mxu0 0.0
    %2995 = vmatpush1.msra.mxu0 0.0
    %2996 = vmatprep.subr.mxu0 0.0
    %2997 = vmatpush1.msra.mxu0 0.0
    %2998 = vmatprep.subr.mxu0 0.0
    %2999 = vmatpush1.msra.mxu0 0.0
    %3000 = vmatprep.subr.mxu0 0.0
    %3001 = vmatpush1.msra.mxu0 0.0
    %3002 = vmatprep.subr.mxu0 0.0
    %3003 = vmatpush1.msra.mxu0 0.0
    %3004 = vmatprep.subr.mxu0 0.0
    %3005 = vmatpush1.msra.mxu0 0.0
    %3006 = vmatprep.subr.mxu0 0.0
    %3007 = vmatpush1.msra.mxu0 0.0
    %3008 = vmatprep.subr.mxu0 0.0
    %3009 = vmatpush1.msra.mxu0 0.0
    %3010 = vmatprep.subr.mxu0 0.0
    %3011 = vmatpush1.msra.mxu0 0.0
    %3012 = vmatprep.subr.mxu0 0.0
    %3013 = vmatpush1.msra.mxu0 0.0
    %3014 = vmatprep.subr.mxu0 0.0
    %3015 = vmatpush1.msra.mxu0 0.0
    %3016 = vmatprep.subr.mxu0 0.0
    %3017 = vmatpush1.msra.mxu0 0.0
    %3018 = vmatprep.subr.mxu0 0.0
    %3019 = vmatpush1.msra.mxu0 0.0
    %3020 = vmatprep.subr.mxu0 0.0
    %3021 = vmatpush1.msra.mxu0 0.0
    %3022 = vmatprep.subr.mxu0 0.0
    %3023 = vmatpush1.msra.mxu0 0.0
    %3024 = vmatprep.subr.mxu0 0.0
    %3025 = vmatpush1.msra.mxu0 0.0
    %3026 = vmatprep.subr.mxu0 0.0
    %3027 = vmatpush1.msra.mxu0 0.0
    %3028 = vmatprep.subr.mxu0 0.0
    %3029 = vmatpush1.msra.mxu0 0.0
    %3030 = vmatprep.mubr.f32.mxu0 0.0
    %3031 = vmatmul.mubr.f32.gmra.mrb[0].mxu0 %v2964
    %v3032 = vpop.f32.mrb[0].mxu0
    %v3033 = vadd.f32 0.0, %v3032
    %v3034 = vpop.f32.mrb[0].mxu0
    %3035 = vdwg.mxu0
    %v3036 = vadd.f32 %v2296, %v3033
    %v3037 = vld [vmem:[%s9] sm:$0x1]
    %v3039 = vlaneseq
    %v3040 = vshrl.u32 %v3039, 7
    %v3041 = vsub.s32 0, %v3040
    %v3042 = vrot.slane %v3037, %v3041
    %v3044 = vadd.f32 %v2799, %v3042
    %v3045 = vadd.f32 %v3036, %v3042
    %v3046 = vadd.f32 %v63, %v3044
    %v3047 = vadd.f32 %v64, %v3045
    %v3048 = vld [vmem:[%s10] sm:$0x1]
    %v3049 = vld [vmem:[%s11] sm:$0x1]
    %v3050 = vsel %vm80, %v3046, 0.0
    %3051 = vadd.xlane.f32.xlu0 %v3050
    %v3052 = vpop.xlane.xlu0 %3051
    %v3053 = vsel %vm80, %v3047, 0.0
    %3054 = vadd.xlane.f32.xlu0 %v3053
    %v3055 = vpop.xlane.xlu0 %3054
    %v3056 = vrcp.pop 32.0
    %v3057 = vmul.f32 %v3052, %v3056
    %v3058 = vmul.f32 %v3055, %v3056
    %v3059 = vsub.f32 %v3046, %v3057
    %v3060 = vsub.f32 %v3047, %v3058
    %v3061 = vmul.f32 %v3059, %v3059
    %v3062 = vmul.f32 %v3060, %v3060
    %v3063 = vsel %vm80, %v3061, 0.0
    %3064 = vadd.xlane.f32.xlu0 %v3063
    %v3065 = vpop.xlane.xlu0 %3064
    %v3066 = vsel %vm80, %v3062, 0.0
    %3067 = vadd.xlane.f32.xlu0 %v3066
    %v3068 = vpop.xlane.xlu0 %3067
    %v3069 = vmul.f32 %v3065, %v3056
    %v3070 = vmul.f32 %v3068, %v3056
    %v3071 = vadd.f32 %v3069, 1e-05
    %v3072 = vadd.f32 %v3070, 1e-05
    %v3073 = vrsqrt.pop %v3071
    %v3074 = vrsqrt.pop %v3072
    %v3075 = vmul.f32 %v3059, %v3073
    %v3076 = vmul.f32 %v3060, %v3074
    %v3078 = vlaneseq
    %v3079 = vshrl.u32 %v3078, 7
    %v3080 = vsub.s32 0, %v3079
    %v3081 = vrot.slane %v3048, %v3080
    %v3083 = vmul.f32 %v3075, %v3081
    %v3084 = vmul.f32 %v3076, %v3081
    %v3086 = vlaneseq
    %v3087 = vshrl.u32 %v3086, 7
    %v3088 = vsub.s32 0, %v3087
    %v3089 = vrot.slane %v3049, %v3088
    %v3091 = vadd.f32 %v3083, %v3089
    %v3092 = vadd.f32 %v3084, %v3089
    %v3093 = vld [vmem:[%s12] sm:$0xff]
    %v3094 = vld [vmem:[%s12 + $0x8] sm:$0xff]
    %v3095 = vld [vmem:[%s12 + $0x10] sm:$0xff]
    %v3096 = vld [vmem:[%s12 + $0x18] sm:$0xff]
    %v3097 = vld [vmem:[%s13] sm:$0x1]
    %v3099 = vlaneseq
    %v3100 = vshrl.u32 %v3099, 7
    %v3101 = vsub.s32 0, %v3100
    %v3102 = vrot.slane %v3097, %v3101
    %v3105 = vsel %vm80, %v3091, 0
    %v3108 = vsel %vm80, %v3092, 0
    %3110 = vmatprep.subr.mxu0 0.0
    %3111 = vmatpush1.msra.mxu0 %v3093
    %3112 = vmatprep.subr.mxu0 0.0
    %3113 = vmatpush1.msra.mxu0 %v3094
    %3114 = vmatprep.subr.mxu0 0.0
    %3115 = vmatpush1.msra.mxu0 %v3095
    %3116 = vmatprep.subr.mxu0 0.0
    %3117 = vmatpush1.msra.mxu0 %v3096
    %3118 = vmatprep.subr.mxu0 0.0
    %3119 = vmatpush1.msra.mxu0 0.0
    %3120 = vmatprep.subr.mxu0 0.0
    %3121 = vmatpush1.msra.mxu0 0.0
    %3122 = vmatprep.subr.mxu0 0.0
    %3123 = vmatpush1.msra.mxu0 0.0
    %3124 = vmatprep.subr.mxu0 0.0
    %3125 = vmatpush1.msra.mxu0 0.0
    %3126 = vmatprep.subr.mxu0 0.0
    %3127 = vmatpush1.msra.mxu0 0.0
    %3128 = vmatprep.subr.mxu0 0.0
    %3129 = vmatpush1.msra.mxu0 0.0
    %3130 = vmatprep.subr.mxu0 0.0
    %3131 = vmatpush1.msra.mxu0 0.0
    %3132 = vmatprep.subr.mxu0 0.0
    %3133 = vmatpush1.msra.mxu0 0.0
    %3134 = vmatprep.subr.mxu0 0.0
    %3135 = vmatpush1.msra.mxu0 0.0
    %3136 = vmatprep.subr.mxu0 0.0
    %3137 = vmatpush1.msra.mxu0 0.0
    %3138 = vmatprep.subr.mxu0 0.0
    %3139 = vmatpush1.msra.mxu0 0.0
    %3140 = vmatprep.subr.mxu0 0.0
    %3141 = vmatpush1.msra.mxu0 0.0
    %3142 = vmatprep.subr.mxu0 0.0
    %3143 = vmatpush1.msra.mxu0 0.0
    %3144 = vmatprep.subr.mxu0 0.0
    %3145 = vmatpush1.msra.mxu0 0.0
    %3146 = vmatprep.subr.mxu0 0.0
    %3147 = vmatpush1.msra.mxu0 0.0
    %3148 = vmatprep.subr.mxu0 0.0
    %3149 = vmatpush1.msra.mxu0 0.0
    %3150 = vmatprep.subr.mxu0 0.0
    %3151 = vmatpush1.msra.mxu0 0.0
    %3152 = vmatprep.subr.mxu0 0.0
    %3153 = vmatpush1.msra.mxu0 0.0
    %3154 = vmatprep.subr.mxu0 0.0
    %3155 = vmatpush1.msra.mxu0 0.0
    %3156 = vmatprep.subr.mxu0 0.0
    %3157 = vmatpush1.msra.mxu0 0.0
    %3158 = vmatprep.subr.mxu0 0.0
    %3159 = vmatpush1.msra.mxu0 0.0
    %3160 = vmatprep.subr.mxu0 0.0
    %3161 = vmatpush1.msra.mxu0 0.0
    %3162 = vmatprep.subr.mxu0 0.0
    %3163 = vmatpush1.msra.mxu0 0.0
    %3164 = vmatprep.subr.mxu0 0.0
    %3165 = vmatpush1.msra.mxu0 0.0
    %3166 = vmatprep.subr.mxu0 0.0
    %3167 = vmatpush1.msra.mxu0 0.0
    %3168 = vmatprep.subr.mxu0 0.0
    %3169 = vmatpush1.msra.mxu0 0.0
    %3170 = vmatprep.subr.mxu0 0.0
    %3171 = vmatpush1.msra.mxu0 0.0
    %3172 = vmatprep.subr.mxu0 0.0
    %3173 = vmatpush1.msra.mxu0 0.0
    %3174 = vmatprep.mubr.f32.mxu0 0.0
    %3175 = vmatmul.mubr.f32.gmra.mrb[0].mxu0 %v3105
    %v3176 = vpop.f32.mrb[0].mxu0
    %v3177 = vadd.f32 %v3102, %v3176
    %v3178 = vpop.f32.mrb[0].mxu0
    %3179 = vmatprep.mubr.f32.mxu0 0.0
    %3180 = vmatmul.mubr.f32.gmra.mrb[0].mxu0 %v3108
    %v3181 = vpop.f32.mrb[0].mxu0
    %v3182 = vadd.f32 %v3102, %v3181
    %v3183 = vpop.f32.mrb[0].mxu0
    %3184 = vdwg.mxu0
    %v3185 = vmax.f32 %v3177, 0.0
    %v3186 = vmax.f32 %v3182, 0.0
    %v3187 = vld [vmem:[%s14] sm:$0xff]
    %v3188 = vld [vmem:[%s14 + $0x8] sm:$0xff]
    %v3189 = vld [vmem:[%s14 + $0x10] sm:$0xff]
    %v3190 = vld [vmem:[%s14 + $0x18] sm:$0xff]
    %v3191 = vld [vmem:[%s14 + $0x20] sm:$0xff]
    %v3192 = vld [vmem:[%s14 + $0x28] sm:$0xff]
    %v3193 = vld [vmem:[%s14 + $0x30] sm:$0xff]
    %v3194 = vld [vmem:[%s14 + $0x38] sm:$0xff]
    %v3195 = vld [vmem:[%s15] sm:$0x1]
    %v3197 = vlaneseq
    %v3198 = vshrl.u32 %v3197, 7
    %v3199 = vsub.s32 0, %v3198
    %v3200 = vrot.slane %v3195, %v3199
    %vm3202 = vcmask 523264
    %v3204 = vsel %vm3202, %v3185, 0
    %v3207 = vsel %vm3202, %v3186, 0
    %3209 = vmatprep.subr.mxu0 0.0
    %3210 = vmatpush1.msra.mxu0 %v3187
    %3211 = vmatprep.subr.mxu0 0.0
    %3212 = vmatpush1.msra.mxu0 %v3188
    %3213 = vmatprep.subr.mxu0 0.0
    %3214 = vmatpush1.msra.mxu0 %v3189
    %3215 = vmatprep.subr.mxu0 0.0
    %3216 = vmatpush1.msra.mxu0 %v3190
    %3217 = vmatprep.subr.mxu0 0.0
    %3218 = vmatpush1.msra.mxu0 %v3191
    %3219 = vmatprep.subr.mxu0 0.0
    %3220 = vmatpush1.msra.mxu0 %v3192
    %3221 = vmatprep.subr.mxu0 0.0
    %3222 = vmatpush1.msra.mxu0 %v3193
    %3223 = vmatprep.subr.mxu0 0.0
    %3224 = vmatpush1.msra.mxu0 %v3194
    %3225 = vmatprep.subr.mxu0 0.0
    %3226 = vmatpush1.msra.mxu0 0.0
    %3227 = vmatprep.subr.mxu0 0.0
    %3228 = vmatpush1.msra.mxu0 0.0
    %3229 = vmatprep.subr.mxu0 0.0
    %3230 = vmatpush1.msra.mxu0 0.0
    %3231 = vmatprep.subr.mxu0 0.0
    %3232 = vmatpush1.msra.mxu0 0.0
    %3233 = vmatprep.subr.mxu0 0.0
    %3234 = vmatpush1.msra.mxu0 0.0
    %3235 = vmatprep.subr.mxu0 0.0
    %3236 = vmatpush1.msra.mxu0 0.0
    %3237 = vmatprep.subr.mxu0 0.0
    %3238 = vmatpush1.msra.mxu0 0.0
    %3239 = vmatprep.subr.mxu0 0.0
    %3240 = vmatpush1.msra.mxu0 0.0
    %3241 = vmatprep.subr.mxu0 0.0
    %3242 = vmatpush1.msra.mxu0 0.0
    %3243 = vmatprep.subr.mxu0 0.0
    %3244 = vmatpush1.msra.mxu0 0.0
    %3245 = vmatprep.subr.mxu0 0.0
    %3246 = vmatpush1.msra.mxu0 0.0
    %3247 = vmatprep.subr.mxu0 0.0
    %3248 = vmatpush1.msra.mxu0 0.0
    %3249 = vmatprep.subr.mxu0 0.0
    %3250 = vmatpush1.msra.mxu0 0.0
    %3251 = vmatprep.subr.mxu0 0.0
    %3252 = vmatpush1.msra.mxu0 0.0
    %3253 = vmatprep.subr.mxu0 0.0
    %3254 = vmatpush1.msra.mxu0 0.0
    %3255 = vmatprep.subr.mxu0 0.0
    %3256 = vmatpush1.msra.mxu0 0.0
    %3257 = vmatprep.subr.mxu0 0.0
    %3258 = vmatpush1.msra.mxu0 0.0
    %3259 = vmatprep.subr.mxu0 0.0
    %3260 = vmatpush1.msra.mxu0 0.0
    %3261 = vmatprep.subr.mxu0 0.0
    %3262 = vmatpush1.msra.mxu0 0.0
    %3263 = vmatprep.subr.mxu0 0.0
    %3264 = vmatpush1.msra.mxu0 0.0
    %3265 = vmatprep.subr.mxu0 0.0
    %3266 = vmatpush1.msra.mxu0 0.0
    %3267 = vmatprep.subr.mxu0 0.0
    %3268 = vmatpush1.msra.mxu0 0.0
    %3269 = vmatprep.subr.mxu0 0.0
    %3270 = vmatpush1.msra.mxu0 0.0
    %3271 = vmatprep.subr.mxu0 0.0
    %3272 = vmatpush1.msra.mxu0 0.0
    %3273 = vmatprep.mubr.f32.mxu0 0.0
    %3274 = vmatmul.mubr.f32.gmra.mrb[0].mxu0 %v3204
    %v3275 = vpop.f32.mrb[0].mxu0
    %v3276 = vadd.f32 %v3200, %v3275
    %v3277 = vpop.f32.mrb[0].mxu0
    %3278 = vmatprep.mubr.f32.mxu0 0.0
    %3279 = vmatmul.mubr.f32.gmra.mrb[0].mxu0 %v3207
    %v3280 = vpop.f32.mrb[0].mxu0
    %v3281 = vadd.f32 %v3200, %v3280
    %v3282 = vpop.f32.mrb[0].mxu0
    %3283 = vdwg.mxu0
    %v3284 = vadd.f32 %v3091, %v3276
    %v3285 = vadd.f32 %v3092, %v3281
    %v3286 = vld [vmem:[%s16] sm:$0x1]
    %v3287 = vld [vmem:[%s17] sm:$0x1]
    %v3288 = vsel %vm80, %v3284, 0.0
    %3289 = vadd.xlane.f32.xlu0 %v3288
    %v3290 = vpop.xlane.xlu0 %3289
    %v3291 = vsel %vm80, %v3285, 0.0
    %3292 = vadd.xlane.f32.xlu0 %v3291
    %v3293 = vpop.xlane.xlu0 %3292
    %v3294 = vmul.f32 %v3290, %v3056
    %v3295 = vmul.f32 %v3293, %v3056
    %v3296 = vsub.f32 %v3284, %v3294
    %v3297 = vsub.f32 %v3285, %v3295
    %v3298 = vmul.f32 %v3296, %v3296
    %v3299 = vmul.f32 %v3297, %v3297
    %v3300 = vsel %vm80, %v3298, 0.0
    %3301 = vadd.xlane.f32.xlu0 %v3300
    %v3302 = vpop.xlane.xlu0 %3301
    %v3303 = vsel %vm80, %v3299, 0.0
    %3304 = vadd.xlane.f32.xlu0 %v3303
    %v3305 = vpop.xlane.xlu0 %3304
    %v3306 = vmul.f32 %v3302, %v3056
    %v3307 = vmul.f32 %v3305, %v3056
    %v3308 = vadd.f32 %v3306, 1e-05
    %v3309 = vadd.f32 %v3307, 1e-05
    %v3310 = vrsqrt.pop %v3308
    %v3311 = vrsqrt.pop %v3309
    %v3312 = vmul.f32 %v3296, %v3310
    %v3313 = vmul.f32 %v3297, %v3311
    %v3315 = vlaneseq
    %v3316 = vshrl.u32 %v3315, 7
    %v3317 = vsub.s32 0, %v3316
    %v3318 = vrot.slane %v3286, %v3317
    %v3320 = vmul.f32 %v3312, %v3318
    %v3321 = vmul.f32 %v3313, %v3318
    %v3323 = vlaneseq
    %v3324 = vshrl.u32 %v3323, 7
    %v3325 = vsub.s32 0, %v3324
    %v3326 = vrot.slane %v3287, %v3325
    %v3328 = vadd.f32 %v3320, %v3326
    %v3329 = vadd.f32 %v3321, %v3326
    %s3330 = scalar_lea.vmem %s2, 128
    %v3331 = vld [vmem:[%s3330] sm:$0xff]
    %v3332 = vld [vmem:[%s3330 + $0x8] sm:$0xff]
    %v3333 = vld [vmem:[%s3330 + $0x10] sm:$0xff]
    %v3334 = vld [vmem:[%s3330 + $0x18] sm:$0xff]
    %s3335 = scalar_lea.vmem %s3, 4
    %v3336 = vld [vmem:[%s3335] sm:$0x1]
    %v3338 = vlaneseq
    %v3339 = vshrl.u32 %v3338, 7
    %v3340 = vsub.s32 0, %v3339
    %v3341 = vrot.slane %v3336, %v3340
    %v3344 = vsel %vm80, %v3328, 0
    %v3347 = vsel %vm80, %v3329, 0
    %3349 = vmatprep.subr.mxu0 0.0
    %3350 = vmatpush1.msra.mxu0 %v3331
    %3351 = vmatprep.subr.mxu0 0.0
    %3352 = vmatpush1.msra.mxu0 %v3332
    %3353 = vmatprep.subr.mxu0 0.0
    %3354 = vmatpush1.msra.mxu0 %v3333
    %3355 = vmatprep.subr.mxu0 0.0
    %3356 = vmatpush1.msra.mxu0 %v3334
    %3357 = vmatprep.subr.mxu0 0.0
    %3358 = vmatpush1.msra.mxu0 0.0
    %3359 = vmatprep.subr.mxu0 0.0
    %3360 = vmatpush1.msra.mxu0 0.0
    %3361 = vmatprep.subr.mxu0 0.0
    %3362 = vmatpush1.msra.mxu0 0.0
    %3363 = vmatprep.subr.mxu0 0.0
    %3364 = vmatpush1.msra.mxu0 0.0
    %3365 = vmatprep.subr.mxu0 0.0
    %3366 = vmatpush1.msra.mxu0 0.0
    %3367 = vmatprep.subr.mxu0 0.0
    %3368 = vmatpush1.msra.mxu0 0.0
    %3369 = vmatprep.subr.mxu0 0.0
    %3370 = vmatpush1.msra.mxu0 0.0
    %3371 = vmatprep.subr.mxu0 0.0
    %3372 = vmatpush1.msra.mxu0 0.0
    %3373 = vmatprep.subr.mxu0 0.0
    %3374 = vmatpush1.msra.mxu0 0.0
    %3375 = vmatprep.subr.mxu0 0.0
    %3376 = vmatpush1.msra.mxu0 0.0
    %3377 = vmatprep.subr.mxu0 0.0
    %3378 = vmatpush1.msra.mxu0 0.0
    %3379 = vmatprep.subr.mxu0 0.0
    %3380 = vmatpush1.msra.mxu0 0.0
    %3381 = vmatprep.subr.mxu0 0.0
    %3382 = vmatpush1.msra.mxu0 0.0
    %3383 = vmatprep.subr.mxu0 0.0
    %3384 = vmatpush1.msra.mxu0 0.0
    %3385 = vmatprep.subr.mxu0 0.0
    %3386 = vmatpush1.msra.mxu0 0.0
    %3387 = vmatprep.subr.mxu0 0.0
    %3388 = vmatpush1.msra.mxu0 0.0
    %3389 = vmatprep.subr.mxu0 0.0
    %3390 = vmatpush1.msra.mxu0 0.0
    %3391 = vmatprep.subr.mxu0 0.0
    %3392 = vmatpush1.msra.mxu0 0.0
    %3393 = vmatprep.subr.mxu0 0.0
    %3394 = vmatpush1.msra.mxu0 0.0
    %3395 = vmatprep.subr.mxu0 0.0
    %3396 = vmatpush1.msra.mxu0 0.0
    %3397 = vmatprep.subr.mxu0 0.0
    %3398 = vmatpush1.msra.mxu0 0.0
    %3399 = vmatprep.subr.mxu0 0.0
    %3400 = vmatpush1.msra.mxu0 0.0
    %3401 = vmatprep.subr.mxu0 0.0
    %3402 = vmatpush1.msra.mxu0 0.0
    %3403 = vmatprep.subr.mxu0 0.0
    %3404 = vmatpush1.msra.mxu0 0.0
    %3405 = vmatprep.subr.mxu0 0.0
    %3406 = vmatpush1.msra.mxu0 0.0
    %3407 = vmatprep.subr.mxu0 0.0
    %3408 = vmatpush1.msra.mxu0 0.0
    %3409 = vmatprep.subr.mxu0 0.0
    %3410 = vmatpush1.msra.mxu0 0.0
    %3411 = vmatprep.subr.mxu0 0.0
    %3412 = vmatpush1.msra.mxu0 0.0
    %3413 = vmatprep.mubr.f32.mxu0 0.0
    %3414 = vmatmul.mubr.f32.gmra.mrb[0].mxu0 %v3344
    %v3415 = vpop.f32.mrb[0].mxu0
    %v3416 = vadd.f32 %v3341, %v3415
    %v3417 = vpop.f32.mrb[0].mxu0
    %3418 = vmatprep.mubr.f32.mxu0 0.0
    %3419 = vmatmul.mubr.f32.gmra.mrb[0].mxu0 %v3347
    %v3420 = vpop.f32.mrb[0].mxu0
    %v3421 = vadd.f32 %v3341, %v3420
    %v3422 = vpop.f32.mrb[0].mxu0
    %3423 = vdwg.mxu0
    %s3424 = scalar_lea.vmem %s4, 128
    %v3425 = vld [vmem:[%s3424] sm:$0xff]
    %v3426 = vld [vmem:[%s3424 + $0x8] sm:$0xff]
    %v3427 = vld [vmem:[%s3424 + $0x10] sm:$0xff]
    %v3428 = vld [vmem:[%s3424 + $0x18] sm:$0xff]
    %s3429 = scalar_lea.vmem %s5, 4
    %v3430 = vld [vmem:[%s3429] sm:$0x1]
    %v3432 = vlaneseq
    %v3433 = vshrl.u32 %v3432, 7
    %v3434 = vsub.s32 0, %v3433
    %v3435 = vrot.slane %v3430, %v3434
    %3437 = vmatprep.subr.mxu0 0.0
    %3438 = vmatpush1.msra.mxu0 %v3425
    %3439 = vmatprep.subr.mxu0 0.0
    %3440 = vmatpush1.msra.mxu0 %v3426
    %3441 = vmatprep.subr.mxu0 0.0
    %3442 = vmatpush1.msra.mxu0 %v3427
    %3443 = vmatprep.subr.mxu0 0.0
    %3444 = vmatpush1.msra.mxu0 %v3428
    %3445 = vmatprep.subr.mxu0 0.0
    %3446 = vmatpush1.msra.mxu0 0.0
    %3447 = vmatprep.subr.mxu0 0.0
    %3448 = vmatpush1.msra.mxu0 0.0
    %3449 = vmatprep.subr.mxu0 0.0
    %3450 = vmatpush1.msra.mxu0 0.0
    %3451 = vmatprep.subr.mxu0 0.0
    %3452 = vmatpush1.msra.mxu0 0.0
    %3453 = vmatprep.subr.mxu0 0.0
    %3454 = vmatpush1.msra.mxu0 0.0
    %3455 = vmatprep.subr.mxu0 0.0
    %3456 = vmatpush1.msra.mxu0 0.0
    %3457 = vmatprep.subr.mxu0 0.0
    %3458 = vmatpush1.msra.mxu0 0.0
    %3459 = vmatprep.subr.mxu0 0.0
    %3460 = vmatpush1.msra.mxu0 0.0
    %3461 = vmatprep.subr.mxu0 0.0
    %3462 = vmatpush1.msra.mxu0 0.0
    %3463 = vmatprep.subr.mxu0 0.0
    %3464 = vmatpush1.msra.mxu0 0.0
    %3465 = vmatprep.subr.mxu0 0.0
    %3466 = vmatpush1.msra.mxu0 0.0
    %3467 = vmatprep.subr.mxu0 0.0
    %3468 = vmatpush1.msra.mxu0 0.0
    %3469 = vmatprep.subr.mxu0 0.0
    %3470 = vmatpush1.msra.mxu0 0.0
    %3471 = vmatprep.subr.mxu0 0.0
    %3472 = vmatpush1.msra.mxu0 0.0
    %3473 = vmatprep.subr.mxu0 0.0
    %3474 = vmatpush1.msra.mxu0 0.0
    %3475 = vmatprep.subr.mxu0 0.0
    %3476 = vmatpush1.msra.mxu0 0.0
    %3477 = vmatprep.subr.mxu0 0.0
    %3478 = vmatpush1.msra.mxu0 0.0
    %3479 = vmatprep.subr.mxu0 0.0
    %3480 = vmatpush1.msra.mxu0 0.0
    %3481 = vmatprep.subr.mxu0 0.0
    %3482 = vmatpush1.msra.mxu0 0.0
    %3483 = vmatprep.subr.mxu0 0.0
    %3484 = vmatpush1.msra.mxu0 0.0
    %3485 = vmatprep.subr.mxu0 0.0
    %3486 = vmatpush1.msra.mxu0 0.0
    %3487 = vmatprep.subr.mxu0 0.0
    %3488 = vmatpush1.msra.mxu0 0.0
    %3489 = vmatprep.subr.mxu0 0.0
    %3490 = vmatpush1.msra.mxu0 0.0
    %3491 = vmatprep.subr.mxu0 0.0
    %3492 = vmatpush1.msra.mxu0 0.0
    %3493 = vmatprep.subr.mxu0 0.0
    %3494 = vmatpush1.msra.mxu0 0.0
    %3495 = vmatprep.subr.mxu0 0.0
    %3496 = vmatpush1.msra.mxu0 0.0
    %3497 = vmatprep.subr.mxu0 0.0
    %3498 = vmatpush1.msra.mxu0 0.0
    %3499 = vmatprep.subr.mxu0 0.0
    %3500 = vmatpush1.msra.mxu0 0.0
    %3501 = vmatprep.mubr.f32.mxu0 0.0
    %3502 = vmatmul.mubr.f32.gmra.mrb[0].mxu0 %v3344
    %v3503 = vpop.f32.mrb[0].mxu0
    %v3504 = vadd.f32 %v3435, %v3503
    %v3505 = vpop.f32.mrb[0].mxu0
    %3506 = vmatprep.mubr.f32.mxu0 0.0
    %3507 = vmatmul.mubr.f32.gmra.mrb[0].mxu0 %v3347
    %v3508 = vpop.f32.mrb[0].mxu0
    %v3509 = vadd.f32 %v3435, %v3508
    %v3510 = vpop.f32.mrb[0].mxu0
    %3511 = vdwg.mxu0
    %s3512 = scalar_lea.vmem %s6, 128
    %v3513 = vld [vmem:[%s3512] sm:$0xff]
    %v3514 = vld [vmem:[%s3512 + $0x8] sm:$0xff]
    %v3515 = vld [vmem:[%s3512 + $0x10] sm:$0xff]
    %v3516 = vld [vmem:[%s3512 + $0x18] sm:$0xff]
    %s3517 = scalar_lea.vmem %s7, 4
    %v3518 = vld [vmem:[%s3517] sm:$0x1]
    %v3520 = vlaneseq
    %v3521 = vshrl.u32 %v3520, 7
    %v3522 = vsub.s32 0, %v3521
    %v3523 = vrot.slane %v3518, %v3522
    %3525 = vmatprep.subr.mxu0 0.0
    %3526 = vmatpush1.msra.mxu0 %v3513
    %3527 = vmatprep.subr.mxu0 0.0
    %3528 = vmatpush1.msra.mxu0 %v3514
    %3529 = vmatprep.subr.mxu0 0.0
    %3530 = vmatpush1.msra.mxu0 %v3515
    %3531 = vmatprep.subr.mxu0 0.0
    %3532 = vmatpush1.msra.mxu0 %v3516
    %3533 = vmatprep.subr.mxu0 0.0
    %3534 = vmatpush1.msra.mxu0 0.0
    %3535 = vmatprep.subr.mxu0 0.0
    %3536 = vmatpush1.msra.mxu0 0.0
    %3537 = vmatprep.subr.mxu0 0.0
    %3538 = vmatpush1.msra.mxu0 0.0
    %3539 = vmatprep.subr.mxu0 0.0
    %3540 = vmatpush1.msra.mxu0 0.0
    %3541 = vmatprep.subr.mxu0 0.0
    %3542 = vmatpush1.msra.mxu0 0.0
    %3543 = vmatprep.subr.mxu0 0.0
    %3544 = vmatpush1.msra.mxu0 0.0
    %3545 = vmatprep.subr.mxu0 0.0
    %3546 = vmatpush1.msra.mxu0 0.0
    %3547 = vmatprep.subr.mxu0 0.0
    %3548 = vmatpush1.msra.mxu0 0.0
    %3549 = vmatprep.subr.mxu0 0.0
    %3550 = vmatpush1.msra.mxu0 0.0
    %3551 = vmatprep.subr.mxu0 0.0
    %3552 = vmatpush1.msra.mxu0 0.0
    %3553 = vmatprep.subr.mxu0 0.0
    %3554 = vmatpush1.msra.mxu0 0.0
    %3555 = vmatprep.subr.mxu0 0.0
    %3556 = vmatpush1.msra.mxu0 0.0
    %3557 = vmatprep.subr.mxu0 0.0
    %3558 = vmatpush1.msra.mxu0 0.0
    %3559 = vmatprep.subr.mxu0 0.0
    %3560 = vmatpush1.msra.mxu0 0.0
    %3561 = vmatprep.subr.mxu0 0.0
    %3562 = vmatpush1.msra.mxu0 0.0
    %3563 = vmatprep.subr.mxu0 0.0
    %3564 = vmatpush1.msra.mxu0 0.0
    %3565 = vmatprep.subr.mxu0 0.0
    %3566 = vmatpush1.msra.mxu0 0.0
    %3567 = vmatprep.subr.mxu0 0.0
    %3568 = vmatpush1.msra.mxu0 0.0
    %3569 = vmatprep.subr.mxu0 0.0
    %3570 = vmatpush1.msra.mxu0 0.0
    %3571 = vmatprep.subr.mxu0 0.0
    %3572 = vmatpush1.msra.mxu0 0.0
    %3573 = vmatprep.subr.mxu0 0.0
    %3574 = vmatpush1.msra.mxu0 0.0
    %3575 = vmatprep.subr.mxu0 0.0
    %3576 = vmatpush1.msra.mxu0 0.0
    %3577 = vmatprep.subr.mxu0 0.0
    %3578 = vmatpush1.msra.mxu0 0.0
    %3579 = vmatprep.subr.mxu0 0.0
    %3580 = vmatpush1.msra.mxu0 0.0
    %3581 = vmatprep.subr.mxu0 0.0
    %3582 = vmatpush1.msra.mxu0 0.0
    %3583 = vmatprep.subr.mxu0 0.0
    %3584 = vmatpush1.msra.mxu0 0.0
    %3585 = vmatprep.subr.mxu0 0.0
    %3586 = vmatpush1.msra.mxu0 0.0
    %3587 = vmatprep.subr.mxu0 0.0
    %3588 = vmatpush1.msra.mxu0 0.0
    %3589 = vmatprep.mubr.f32.mxu0 0.0
    %3590 = vmatmul.mubr.f32.gmra.mrb[0].mxu0 %v3344
    %v3591 = vpop.f32.mrb[0].mxu0
    %v3592 = vadd.f32 %v3523, %v3591
    %v3593 = vpop.f32.mrb[0].mxu0
    %3594 = vmatprep.mubr.f32.mxu0 0.0
    %3595 = vmatmul.mubr.f32.gmra.mrb[0].mxu0 %v3347
    %v3596 = vpop.f32.mrb[0].mxu0
    %v3597 = vadd.f32 %v3523, %v3596
    %v3598 = vpop.f32.mrb[0].mxu0
    %3599 = vdwg.mxu0
    %s3600 = scalar_lea.vmem %s8, 32
    %v3601 = vld [vmem:[%s3600] sm:$0xff]
    %v3603 = vsel %vm335, %v3416, 0
    %v3606 = vsel %vm335, %v3504, 0
    %3608 = vmatprep.subr.mxu0 0.0
    %3609 = vmatpush1.xpose.msra.mxu0 %v3606
    %3610 = vmatprep.subr.mxu0 0.0
    %3611 = vmatpush1.xpose.msra.mxu0 0.0
    %3612 = vmatprep.subr.mxu0 0.0
    %3613 = vmatpush1.xpose.msra.mxu0 0.0
    %3614 = vmatprep.subr.mxu0 0.0
    %3615 = vmatpush1.xpose.msra.mxu0 0.0
    %3616 = vmatprep.subr.mxu0 0.0
    %3617 = vmatpush1.xpose.msra.mxu0 0.0
    %3618 = vmatprep.subr.mxu0 0.0
    %3619 = vmatpush1.xpose.msra.mxu0 0.0
    %3620 = vmatprep.subr.mxu0 0.0
    %3621 = vmatpush1.xpose.msra.mxu0 0.0
    %3622 = vmatprep.subr.mxu0 0.0
    %3623 = vmatpush1.xpose.msra.mxu0 0.0
    %3624 = vmatprep.subr.mxu0 0.0
    %3625 = vmatpush1.xpose.msra.mxu0 0.0
    %3626 = vmatprep.subr.mxu0 0.0
    %3627 = vmatpush1.xpose.msra.mxu0 0.0
    %3628 = vmatprep.subr.mxu0 0.0
    %3629 = vmatpush1.xpose.msra.mxu0 0.0
    %3630 = vmatprep.subr.mxu0 0.0
    %3631 = vmatpush1.xpose.msra.mxu0 0.0
    %3632 = vmatprep.subr.mxu0 0.0
    %3633 = vmatpush1.xpose.msra.mxu0 0.0
    %3634 = vmatprep.subr.mxu0 0.0
    %3635 = vmatpush1.xpose.msra.mxu0 0.0
    %3636 = vmatprep.subr.mxu0 0.0
    %3637 = vmatpush1.xpose.msra.mxu0 0.0
    %3638 = vmatprep.subr.mxu0 0.0
    %3639 = vmatpush1.xpose.msra.mxu0 0.0
    %3640 = vmatprep.subr.mxu0 0.0
    %3641 = vmatpush1.xpose.msra.mxu0 0.0
    %3642 = vmatprep.subr.mxu0 0.0
    %3643 = vmatpush1.xpose.msra.mxu0 0.0
    %3644 = vmatprep.subr.mxu0 0.0
    %3645 = vmatpush1.xpose.msra.mxu0 0.0
    %3646 = vmatprep.subr.mxu0 0.0
    %3647 = vmatpush1.xpose.msra.mxu0 0.0
    %3648 = vmatprep.subr.mxu0 0.0
    %3649 = vmatpush1.xpose.msra.mxu0 0.0
    %3650 = vmatprep.subr.mxu0 0.0
    %3651 = vmatpush1.xpose.msra.mxu0 0.0
    %3652 = vmatprep.subr.mxu0 0.0
    %3653 = vmatpush1.xpose.msra.mxu0 0.0
    %3654 = vmatprep.subr.mxu0 0.0
    %3655 = vmatpush1.xpose.msra.mxu0 0.0
    %3656 = vmatprep.subr.mxu0 0.0
    %3657 = vmatpush1.xpose.msra.mxu0 0.0
    %3658 = vmatprep.subr.mxu0 0.0
    %3659 = vmatpush1.xpose.msra.mxu0 0.0
    %3660 = vmatprep.subr.mxu0 0.0
    %3661 = vmatpush1.xpose.msra.mxu0 0.0
    %3662 = vmatprep.subr.mxu0 0.0
    %3663 = vmatpush1.xpose.msra.mxu0 0.0
    %3664 = vmatprep.subr.mxu0 0.0
    %3665 = vmatpush1.xpose.msra.mxu0 0.0
    %3666 = vmatprep.subr.mxu0 0.0
    %3667 = vmatpush1.xpose.msra.mxu0 0.0
    %3668 = vmatprep.subr.mxu0 0.0
    %3669 = vmatpush1.xpose.msra.mxu0 0.0
    %3670 = vmatprep.subr.mxu0 0.0
    %3671 = vmatpush1.xpose.msra.mxu0 0.0
    %3672 = vmatprep.mubr.f32.mxu0 0.0
    %3673 = vmatmul.mubr.f32.gmra.mrb[0].mxu0 %v3603
    %v3674 = vpop.f32.mrb[0].mxu0
    %v3675 = vadd.f32 0.0, %v3674
    %v3676 = vpop.f32.mrb[0].mxu0
    %3677 = vdwg.mxu0
    %v3678 = vsel %vm417, -10000.0, %v3675
    %v3679 = vsel %vm335, %v3678, -inf
    %3680 = vmax.xlane.f32.xlu0 %v3679
    %v3681 = vpop.xlane.xlu0 %3680
    %v3682 = vsub.f32 %v3678, %v3681
    %v3683 = vmul.f32 %v3682, 1.442695
    %v3684 = vpow.pop %v3683
    %v3685 = vsel %vm335, %v3684, 0.0
    %3686 = vadd.xlane.f32.xlu0 %v3685
    %v3687 = vpop.xlane.xlu0 %3686
    %v3688 = vrcp.pop %v3687
    %v3689 = vmul.f32 %v3684, %v3688
    %s3690 = scalar_lea.vmem [#allocation4], 64
    %3691 = vst.msk [vmem:[%s3690] sm:$0xff] %vm335, %v3689
    %v3693 = vsel %vm335, %v3689, 0
    %3695 = vmatprep.subr.mxu0 0.0
    %3696 = vmatpush1.msra.mxu0 %v3592
    %3697 = vmatprep.subr.mxu0 0.0
    %3698 = vmatpush1.msra.mxu0 0.0
    %3699 = vmatprep.subr.mxu0 0.0
    %3700 = vmatpush1.msra.mxu0 0.0
    %3701 = vmatprep.subr.mxu0 0.0
    %3702 = vmatpush1.msra.mxu0 0.0
    %3703 = vmatprep.subr.mxu0 0.0
    %3704 = vmatpush1.msra.mxu0 0.0
    %3705 = vmatprep.subr.mxu0 0.0
    %3706 = vmatpush1.msra.mxu0 0.0
    %3707 = vmatprep.subr.mxu0 0.0
    %3708 = vmatpush1.msra.mxu0 0.0
    %3709 = vmatprep.subr.mxu0 0.0
    %3710 = vmatpush1.msra.mxu0 0.0
    %3711 = vmatprep.subr.mxu0 0.0
    %3712 = vmatpush1.msra.mxu0 0.0
    %3713 = vmatprep.subr.mxu0 0.0
    %3714 = vmatpush1.msra.mxu0 0.0
    %3715 = vmatprep.subr.mxu0 0.0
    %3716 = vmatpush1.msra.mxu0 0.0
    %3717 = vmatprep.subr.mxu0 0.0
    %3718 = vmatpush1.msra.mxu0 0.0
    %3719 = vmatprep.subr.mxu0 0.0
    %3720 = vmatpush1.msra.mxu0 0.0
    %3721 = vmatprep.subr.mxu0 0.0
    %3722 = vmatpush1.msra.mxu0 0.0
    %3723 = vmatprep.subr.mxu0 0.0
    %3724 = vmatpush1.msra.mxu0 0.0
    %3725 = vmatprep.subr.mxu0 0.0
    %3726 = vmatpush1.msra.mxu0 0.0
    %3727 = vmatprep.subr.mxu0 0.0
    %3728 = vmatpush1.msra.mxu0 0.0
    %3729 = vmatprep.subr.mxu0 0.0
    %3730 = vmatpush1.msra.mxu0 0.0
    %3731 = vmatprep.subr.mxu0 0.0
    %3732 = vmatpush1.msra.mxu0 0.0
    %3733 = vmatprep.subr.mxu0 0.0
    %3734 = vmatpush1.msra.mxu0 0.0
    %3735 = vmatprep.subr.mxu0 0.0
    %3736 = vmatpush1.msra.mxu0 0.0
    %3737 = vmatprep.subr.mxu0 0.0
    %3738 = vmatpush1.msra.mxu0 0.0
    %3739 = vmatprep.subr.mxu0 0.0
    %3740 = vmatpush1.msra.mxu0 0.0
    %3741 = vmatprep.subr.mxu0 0.0
    %3742 = vmatpush1.msra.mxu0 0.0
    %3743 = vmatprep.subr.mxu0 0.0
    %3744 = vmatpush1.msra.mxu0 0.0
    %3745 = vmatprep.subr.mxu0 0.0
    %3746 = vmatpush1.msra.mxu0 0.0
    %3747 = vmatprep.subr.mxu0 0.0
    %3748 = vmatpush1.msra.mxu0 0.0
    %3749 = vmatprep.subr.mxu0 0.0
    %3750 = vmatpush1.msra.mxu0 0.0
    %3751 = vmatprep.subr.mxu0 0.0
    %3752 = vmatpush1.msra.mxu0 0.0
    %3753 = vmatprep.subr.mxu0 0.0
    %3754 = vmatpush1.msra.mxu0 0.0
    %3755 = vmatprep.subr.mxu0 0.0
    %3756 = vmatpush1.msra.mxu0 0.0
    %3757 = vmatprep.subr.mxu0 0.0
    %3758 = vmatpush1.msra.mxu0 0.0
    %3759 = vmatprep.mubr.f32.mxu0 0.0
    %3760 = vmatmul.mubr.f32.gmra.mrb[0].mxu0 %v3693
    %v3761 = vpop.f32.mrb[0].mxu0
    %v3762 = vadd.f32 0.0, %v3761
    %v3763 = vpop.f32.mrb[0].mxu0
    %3764 = vdwg.mxu0
    %v3766 = vsel %vm335, %v3421, 0
    %v3769 = vsel %vm335, %v3509, 0
    %3771 = vmatprep.subr.mxu0 0.0
    %3772 = vmatpush1.xpose.msra.mxu0 %v3769
    %3773 = vmatprep.subr.mxu0 0.0
    %3774 = vmatpush1.xpose.msra.mxu0 0.0
    %3775 = vmatprep.subr.mxu0 0.0
    %3776 = vmatpush1.xpose.msra.mxu0 0.0
    %3777 = vmatprep.subr.mxu0 0.0
    %3778 = vmatpush1.xpose.msra.mxu0 0.0
    %3779 = vmatprep.subr.mxu0 0.0
    %3780 = vmatpush1.xpose.msra.mxu0 0.0
    %3781 = vmatprep.subr.mxu0 0.0
    %3782 = vmatpush1.xpose.msra.mxu0 0.0
    %3783 = vmatprep.subr.mxu0 0.0
    %3784 = vmatpush1.xpose.msra.mxu0 0.0
    %3785 = vmatprep.subr.mxu0 0.0
    %3786 = vmatpush1.xpose.msra.mxu0 0.0
    %3787 = vmatprep.subr.mxu0 0.0
    %3788 = vmatpush1.xpose.msra.mxu0 0.0
    %3789 = vmatprep.subr.mxu0 0.0
    %3790 = vmatpush1.xpose.msra.mxu0 0.0
    %3791 = vmatprep.subr.mxu0 0.0
    %3792 = vmatpush1.xpose.msra.mxu0 0.0
    %3793 = vmatprep.subr.mxu0 0.0
    %3794 = vmatpush1.xpose.msra.mxu0 0.0
    %3795 = vmatprep.subr.mxu0 0.0
    %3796 = vmatpush1.xpose.msra.mxu0 0.0
    %3797 = vmatprep.subr.mxu0 0.0
    %3798 = vmatpush1.xpose.msra.mxu0 0.0
    %3799 = vmatprep.subr.mxu0 0.0
    %3800 = vmatpush1.xpose.msra.mxu0 0.0
    %3801 = vmatprep.subr.mxu0 0.0
    %3802 = vmatpush1.xpose.msra.mxu0 0.0
    %3803 = vmatprep.subr.mxu0 0.0
    %3804 = vmatpush1.xpose.msra.mxu0 0.0
    %3805 = vmatprep.subr.mxu0 0.0
    %3806 = vmatpush1.xpose.msra.mxu0 0.0
    %3807 = vmatprep.subr.mxu0 0.0
    %3808 = vmatpush1.xpose.msra.mxu0 0.0
    %3809 = vmatprep.subr.mxu0 0.0
    %3810 = vmatpush1.xpose.msra.mxu0 0.0
    %3811 = vmatprep.subr.mxu0 0.0
    %3812 = vmatpush1.xpose.msra.mxu0 0.0
    %3813 = vmatprep.subr.mxu0 0.0
    %3814 = vmatpush1.xpose.msra.mxu0 0.0
    %3815 = vmatprep.subr.mxu0 0.0
    %3816 = vmatpush1.xpose.msra.mxu0 0.0
    %3817 = vmatprep.subr.mxu0 0.0
    %3818 = vmatpush1.xpose.msra.mxu0 0.0
    %3819 = vmatprep.subr.mxu0 0.0
    %3820 = vmatpush1.xpose.msra.mxu0 0.0
    %3821 = vmatprep.subr.mxu0 0.0
    %3822 = vmatpush1.xpose.msra.mxu0 0.0
    %3823 = vmatprep.subr.mxu0 0.0
    %3824 = vmatpush1.xpose.msra.mxu0 0.0
    %3825 = vmatprep.subr.mxu0 0.0
    %3826 = vmatpush1.xpose.msra.mxu0 0.0
    %3827 = vmatprep.subr.mxu0 0.0
    %3828 = vmatpush1.xpose.msra.mxu0 0.0
    %3829 = vmatprep.subr.mxu0 0.0
    %3830 = vmatpush1.xpose.msra.mxu0 0.0
    %3831 = vmatprep.subr.mxu0 0.0
    %3832 = vmatpush1.xpose.msra.mxu0 0.0
    %3833 = vmatprep.subr.mxu0 0.0
    %3834 = vmatpush1.xpose.msra.mxu0 0.0
    %3835 = vmatprep.mubr.f32.mxu0 0.0
    %3836 = vmatmul.mubr.f32.gmra.mrb[0].mxu0 %v3766
    %v3837 = vpop.f32.mrb[0].mxu0
    %v3838 = vadd.f32 0.0, %v3837
    %v3839 = vpop.f32.mrb[0].mxu0
    %3840 = vdwg.mxu0
    %v3841 = vsel %vm585, -10000.0, %v3838
    %v3842 = vsel %vm335, %v3841, -inf
    %3843 = vmax.xlane.f32.xlu0 %v3842
    %v3844 = vpop.xlane.xlu0 %3843
    %v3845 = vsub.f32 %v3841, %v3844
    %v3846 = vmul.f32 %v3845, 1.442695
    %v3847 = vpow.pop %v3846
    %v3848 = vsel %vm335, %v3847, 0.0
    %3849 = vadd.xlane.f32.xlu0 %v3848
    %v3850 = vpop.xlane.xlu0 %3849
    %v3851 = vrcp.pop %v3850
    %v3852 = vmul.f32 %v3847, %v3851
    %s3853 = scalar_lea.vmem [#allocation4], 96
    %3854 = vst.msk [vmem:[%s3853] sm:$0xff] %vm335, %v3852
    %v3856 = vsel %vm335, %v3852, 0
    %3858 = vmatprep.subr.mxu0 0.0
    %3859 = vmatpush1.msra.mxu0 %v3597
    %3860 = vmatprep.subr.mxu0 0.0
    %3861 = vmatpush1.msra.mxu0 0.0
    %3862 = vmatprep.subr.mxu0 0.0
    %3863 = vmatpush1.msra.mxu0 0.0
    %3864 = vmatprep.subr.mxu0 0.0
    %3865 = vmatpush1.msra.mxu0 0.0
    %3866 = vmatprep.subr.mxu0 0.0
    %3867 = vmatpush1.msra.mxu0 0.0
    %3868 = vmatprep.subr.mxu0 0.0
    %3869 = vmatpush1.msra.mxu0 0.0
    %3870 = vmatprep.subr.mxu0 0.0
    %3871 = vmatpush1.msra.mxu0 0.0
    %3872 = vmatprep.subr.mxu0 0.0
    %3873 = vmatpush1.msra.mxu0 0.0
    %3874 = vmatprep.subr.mxu0 0.0
    %3875 = vmatpush1.msra.mxu0 0.0
    %3876 = vmatprep.subr.mxu0 0.0
    %3877 = vmatpush1.msra.mxu0 0.0
    %3878 = vmatprep.subr.mxu0 0.0
    %3879 = vmatpush1.msra.mxu0 0.0
    %3880 = vmatprep.subr.mxu0 0.0
    %3881 = vmatpush1.msra.mxu0 0.0
    %3882 = vmatprep.subr.mxu0 0.0
    %3883 = vmatpush1.msra.mxu0 0.0
    %3884 = vmatprep.subr.mxu0 0.0
    %3885 = vmatpush1.msra.mxu0 0.0
    %3886 = vmatprep.subr.mxu0 0.0
    %3887 = vmatpush1.msra.mxu0 0.0
    %3888 = vmatprep.subr.mxu0 0.0
    %3889 = vmatpush1.msra.mxu0 0.0
    %3890 = vmatprep.subr.mxu0 0.0
    %3891 = vmatpush1.msra.mxu0 0.0
    %3892 = vmatprep.subr.mxu0 0.0
    %3893 = vmatpush1.msra.mxu0 0.0
    %3894 = vmatprep.subr.mxu0 0.0
    %3895 = vmatpush1.msra.mxu0 0.0
    %3896 = vmatprep.subr.mxu0 0.0
    %3897 = vmatpush1.msra.mxu0 0.0
    %3898 = vmatprep.subr.mxu0 0.0
    %3899 = vmatpush1.msra.mxu0 0.0
    %3900 = vmatprep.subr.mxu0 0.0
    %3901 = vmatpush1.msra.mxu0 0.0
    %3902 = vmatprep.subr.mxu0 0.0
    %3903 = vmatpush1.msra.mxu0 0.0
    %3904 = vmatprep.subr.mxu0 0.0
    %3905 = vmatpush1.msra.mxu0 0.0
    %3906 = vmatprep.subr.mxu0 0.0
    %3907 = vmatpush1.msra.mxu0 0.0
    %3908 = vmatprep.subr.mxu0 0.0
    %3909 = vmatpush1.msra.mxu0 0.0
    %3910 = vmatprep.subr.mxu0 0.0
    %3911 = vmatpush1.msra.mxu0 0.0
    %3912 = vmatprep.subr.mxu0 0.0
    %3913 = vmatpush1.msra.mxu0 0.0
    %3914 = vmatprep.subr.mxu0 0.0
    %3915 = vmatpush1.msra.mxu0 0.0
    %3916 = vmatprep.subr.mxu0 0.0
    %3917 = vmatpush1.msra.mxu0 0.0
    %3918 = vmatprep.subr.mxu0 0.0
    %3919 = vmatpush1.msra.mxu0 0.0
    %3920 = vmatprep.subr.mxu0 0.0
    %3921 = vmatpush1.msra.mxu0 0.0
    %3922 = vmatprep.mubr.f32.mxu0 0.0
    %3923 = vmatmul.mubr.f32.gmra.mrb[0].mxu0 %v3856
    %v3924 = vpop.f32.mrb[0].mxu0
    %v3925 = vadd.f32 0.0, %v3924
    %v3926 = vpop.f32.mrb[0].mxu0
    %3927 = vdwg.mxu0
    %s3928 = scalar_lea.vmem %s2, 160
    %v3929 = vld [vmem:[%s3928] sm:$0xff]
    %v3930 = vld [vmem:[%s3928 + $0x8] sm:$0xff]
    %v3931 = vld [vmem:[%s3928 + $0x10] sm:$0xff]
    %v3932 = vld [vmem:[%s3928 + $0x18] sm:$0xff]
    %s3933 = scalar_lea.vmem %s3, 5
    %v3934 = vld [vmem:[%s3933] sm:$0x1]
    %v3936 = vlaneseq
    %v3937 = vshrl.u32 %v3936, 7
    %v3938 = vsub.s32 0, %v3937
    %v3939 = vrot.slane %v3934, %v3938
    %3941 = vmatprep.subr.mxu0 0.0
    %3942 = vmatpush1.msra.mxu0 %v3929
    %3943 = vmatprep.subr.mxu0 0.0
    %3944 = vmatpush1.msra.mxu0 %v3930
    %3945 = vmatprep.subr.mxu0 0.0
    %3946 = vmatpush1.msra.mxu0 %v3931
    %3947 = vmatprep.subr.mxu0 0.0
    %3948 = vmatpush1.msra.mxu0 %v3932
    %3949 = vmatprep.subr.mxu0 0.0
    %3950 = vmatpush1.msra.mxu0 0.0
    %3951 = vmatprep.subr.mxu0 0.0
    %3952 = vmatpush1.msra.mxu0 0.0
    %3953 = vmatprep.subr.mxu0 0.0
    %3954 = vmatpush1.msra.mxu0 0.0
    %3955 = vmatprep.subr.mxu0 0.0
    %3956 = vmatpush1.msra.mxu0 0.0
    %3957 = vmatprep.subr.mxu0 0.0
    %3958 = vmatpush1.msra.mxu0 0.0
    %3959 = vmatprep.subr.mxu0 0.0
    %3960 = vmatpush1.msra.mxu0 0.0
    %3961 = vmatprep.subr.mxu0 0.0
    %3962 = vmatpush1.msra.mxu0 0.0
    %3963 = vmatprep.subr.mxu0 0.0
    %3964 = vmatpush1.msra.mxu0 0.0
    %3965 = vmatprep.subr.mxu0 0.0
    %3966 = vmatpush1.msra.mxu0 0.0
    %3967 = vmatprep.subr.mxu0 0.0
    %3968 = vmatpush1.msra.mxu0 0.0
    %3969 = vmatprep.subr.mxu0 0.0
    %3970 = vmatpush1.msra.mxu0 0.0
    %3971 = vmatprep.subr.mxu0 0.0
    %3972 = vmatpush1.msra.mxu0 0.0
    %3973 = vmatprep.subr.mxu0 0.0
    %3974 = vmatpush1.msra.mxu0 0.0
    %3975 = vmatprep.subr.mxu0 0.0
    %3976 = vmatpush1.msra.mxu0 0.0
    %3977 = vmatprep.subr.mxu0 0.0
    %3978 = vmatpush1.msra.mxu0 0.0
    %3979 = vmatprep.subr.mxu0 0.0
    %3980 = vmatpush1.msra.mxu0 0.0
    %3981 = vmatprep.subr.mxu0 0.0
    %3982 = vmatpush1.msra.mxu0 0.0
    %3983 = vmatprep.subr.mxu0 0.0
    %3984 = vmatpush1.msra.mxu0 0.0
    %3985 = vmatprep.subr.mxu0 0.0
    %3986 = vmatpush1.msra.mxu0 0.0
    %3987 = vmatprep.subr.mxu0 0.0
    %3988 = vmatpush1.msra.mxu0 0.0
    %3989 = vmatprep.subr.mxu0 0.0
    %3990 = vmatpush1.msra.mxu0 0.0
    %3991 = vmatprep.subr.mxu0 0.0
    %3992 = vmatpush1.msra.mxu0 0.0
    %3993 = vmatprep.subr.mxu0 0.0
    %3994 = vmatpush1.msra.mxu0 0.0
    %3995 = vmatprep.subr.mxu0 0.0
    %3996 = vmatpush1.msra.mxu0 0.0
    %3997 = vmatprep.subr.mxu0 0.0
    %3998 = vmatpush1.msra.mxu0 0.0
    %3999 = vmatprep.subr.mxu0 0.0
    %4000 = vmatpush1.msra.mxu0 0.0
    %4001 = vmatprep.subr.mxu0 0.0
    %4002 = vmatpush1.msra.mxu0 0.0
    %4003 = vmatprep.subr.mxu0 0.0
    %4004 = vmatpush1.msra.mxu0 0.0
    %4005 = vmatprep.mubr.f32.mxu0 0.0
    %4006 = vmatmul.mubr.f32.gmra.mrb[0].mxu0 %v3344
    %v4007 = vpop.f32.mrb[0].mxu0
    %v4008 = vadd.f32 %v3939, %v4007
    %v4009 = vpop.f32.mrb[0].mxu0
    %4010 = vmatprep.mubr.f32.mxu0 0.0
    %4011 = vmatmul.mubr.f32.gmra.mrb[0].mxu0 %v3347
    %v4012 = vpop.f32.mrb[0].mxu0
    %v4013 = vadd.f32 %v3939, %v4012
    %v4014 = vpop.f32.mrb[0].mxu0
    %4015 = vdwg.mxu0
    %s4016 = scalar_lea.vmem %s4, 160
    %v4017 = vld [vmem:[%s4016] sm:$0xff]
    %v4018 = vld [vmem:[%s4016 + $0x8] sm:$0xff]
    %v4019 = vld [vmem:[%s4016 + $0x10] sm:$0xff]
    %v4020 = vld [vmem:[%s4016 + $0x18] sm:$0xff]
    %s4021 = scalar_lea.vmem %s5, 5
    %v4022 = vld [vmem:[%s4021] sm:$0x1]
    %v4024 = vlaneseq
    %v4025 = vshrl.u32 %v4024, 7
    %v4026 = vsub.s32 0, %v4025
    %v4027 = vrot.slane %v4022, %v4026
    %4029 = vmatprep.subr.mxu0 0.0
    %4030 = vmatpush1.msra.mxu0 %v4017
    %4031 = vmatprep.subr.mxu0 0.0
    %4032 = vmatpush1.msra.mxu0 %v4018
    %4033 = vmatprep.subr.mxu0 0.0
    %4034 = vmatpush1.msra.mxu0 %v4019
    %4035 = vmatprep.subr.mxu0 0.0
    %4036 = vmatpush1.msra.mxu0 %v4020
    %4037 = vmatprep.subr.mxu0 0.0
    %4038 = vmatpush1.msra.mxu0 0.0
    %4039 = vmatprep.subr.mxu0 0.0
    %4040 = vmatpush1.msra.mxu0 0.0
    %4041 = vmatprep.subr.mxu0 0.0
    %4042 = vmatpush1.msra.mxu0 0.0
    %4043 = vmatprep.subr.mxu0 0.0
    %4044 = vmatpush1.msra.mxu0 0.0
    %4045 = vmatprep.subr.mxu0 0.0
    %4046 = vmatpush1.msra.mxu0 0.0
    %4047 = vmatprep.subr.mxu0 0.0
    %4048 = vmatpush1.msra.mxu0 0.0
    %4049 = vmatprep.subr.mxu0 0.0
    %4050 = vmatpush1.msra.mxu0 0.0
    %4051 = vmatprep.subr.mxu0 0.0
    %4052 = vmatpush1.msra.mxu0 0.0
    %4053 = vmatprep.subr.mxu0 0.0
    %4054 = vmatpush1.msra.mxu0 0.0
    %4055 = vmatprep.subr.mxu0 0.0
    %4056 = vmatpush1.msra.mxu0 0.0
    %4057 = vmatprep.subr.mxu0 0.0
    %4058 = vmatpush1.msra.mxu0 0.0
    %4059 = vmatprep.subr.mxu0 0.0
    %4060 = vmatpush1.msra.mxu0 0.0
    %4061 = vmatprep.subr.mxu0 0.0
    %4062 = vmatpush1.msra.mxu0 0.0
    %4063 = vmatprep.subr.mxu0 0.0
    %4064 = vmatpush1.msra.mxu0 0.0
    %4065 = vmatprep.subr.mxu0 0.0
    %4066 = vmatpush1.msra.mxu0 0.0
    %4067 = vmatprep.subr.mxu0 0.0
    %4068 = vmatpush1.msra.mxu0 0.0
    %4069 = vmatprep.subr.mxu0 0.0
    %4070 = vmatpush1.msra.mxu0 0.0
    %4071 = vmatprep.subr.mxu0 0.0
    %4072 = vmatpush1.msra.mxu0 0.0
    %4073 = vmatprep.subr.mxu0 0.0
    %4074 = vmatpush1.msra.mxu0 0.0
    %4075 = vmatprep.subr.mxu0 0.0
    %4076 = vmatpush1.msra.mxu0 0.0
    %4077 = vmatprep.subr.mxu0 0.0
    %4078 = vmatpush1.msra.mxu0 0.0
    %4079 = vmatprep.subr.mxu0 0.0
    %4080 = vmatpush1.msra.mxu0 0.0
    %4081 = vmatprep.subr.mxu0 0.0
    %4082 = vmatpush1.msra.mxu0 0.0
    %4083 = vmatprep.subr.mxu0 0.0
    %4084 = vmatpush1.msra.mxu0 0.0
    %4085 = vmatprep.subr.mxu0 0.0
    %4086 = vmatpush1.msra.mxu0 0.0
    %4087 = vmatprep.subr.mxu0 0.0
    %4088 = vmatpush1.msra.mxu0 0.0
    %4089 = vmatprep.subr.mxu0 0.0
    %4090 = vmatpush1.msra.mxu0 0.0
    %4091 = vmatprep.subr.mxu0 0.0
    %4092 = vmatpush1.msra.mxu0 0.0
    %4093 = vmatprep.mubr.f32.mxu0 0.0
    %4094 = vmatmul.mubr.f32.gmra.mrb[0].mxu0 %v3344
    %v4095 = vpop.f32.mrb[0].mxu0
    %v4096 = vadd.f32 %v4027, %v4095
    %v4097 = vpop.f32.mrb[0].mxu0
    %4098 = vmatprep.mubr.f32.mxu0 0.0
    %4099 = vmatmul.mubr.f32.gmra.mrb[0].mxu0 %v3347
    %v4100 = vpop.f32.mrb[0].mxu0
    %v4101 = vadd.f32 %v4027, %v4100
    %v4102 = vpop.f32.mrb[0].mxu0
    %4103 = vdwg.mxu0
    %s4104 = scalar_lea.vmem %s6, 160
    %v4105 = vld [vmem:[%s4104] sm:$0xff]
    %v4106 = vld [vmem:[%s4104 + $0x8] sm:$0xff]
    %v4107 = vld [vmem:[%s4104 + $0x10] sm:$0xff]
    %v4108 = vld [vmem:[%s4104 + $0x18] sm:$0xff]
    %s4109 = scalar_lea.vmem %s7, 5
    %v4110 = vld [vmem:[%s4109] sm:$0x1]
    %v4112 = vlaneseq
    %v4113 = vshrl.u32 %v4112, 7
    %v4114 = vsub.s32 0, %v4113
    %v4115 = vrot.slane %v4110, %v4114
    %4117 = vmatprep.subr.mxu0 0.0
    %4118 = vmatpush1.msra.mxu0 %v4105
    %4119 = vmatprep.subr.mxu0 0.0
    %4120 = vmatpush1.msra.mxu0 %v4106
    %4121 = vmatprep.subr.mxu0 0.0
    %4122 = vmatpush1.msra.mxu0 %v4107
    %4123 = vmatprep.subr.mxu0 0.0
    %4124 = vmatpush1.msra.mxu0 %v4108
    %4125 = vmatprep.subr.mxu0 0.0
    %4126 = vmatpush1.msra.mxu0 0.0
    %4127 = vmatprep.subr.mxu0 0.0
    %4128 = vmatpush1.msra.mxu0 0.0
    %4129 = vmatprep.subr.mxu0 0.0
    %4130 = vmatpush1.msra.mxu0 0.0
    %4131 = vmatprep.subr.mxu0 0.0
    %4132 = vmatpush1.msra.mxu0 0.0
    %4133 = vmatprep.subr.mxu0 0.0
    %4134 = vmatpush1.msra.mxu0 0.0
    %4135 = vmatprep.subr.mxu0 0.0
    %4136 = vmatpush1.msra.mxu0 0.0
    %4137 = vmatprep.subr.mxu0 0.0
    %4138 = vmatpush1.msra.mxu0 0.0
    %4139 = vmatprep.subr.mxu0 0.0
    %4140 = vmatpush1.msra.mxu0 0.0
    %4141 = vmatprep.subr.mxu0 0.0
    %4142 = vmatpush1.msra.mxu0 0.0
    %4143 = vmatprep.subr.mxu0 0.0
    %4144 = vmatpush1.msra.mxu0 0.0
    %4145 = vmatprep.subr.mxu0 0.0
    %4146 = vmatpush1.msra.mxu0 0.0
    %4147 = vmatprep.subr.mxu0 0.0
    %4148 = vmatpush1.msra.mxu0 0.0
    %4149 = vmatprep.subr.mxu0 0.0
    %4150 = vmatpush1.msra.mxu0 0.0
    %4151 = vmatprep.subr.mxu0 0.0
    %4152 = vmatpush1.msra.mxu0 0.0
    %4153 = vmatprep.subr.mxu0 0.0
    %4154 = vmatpush1.msra.mxu0 0.0
    %4155 = vmatprep.subr.mxu0 0.0
    %4156 = vmatpush1.msra.mxu0 0.0
    %4157 = vmatprep.subr.mxu0 0.0
    %4158 = vmatpush1.msra.mxu0 0.0
    %4159 = vmatprep.subr.mxu0 0.0
    %4160 = vmatpush1.msra.mxu0 0.0
    %4161 = vmatprep.subr.mxu0 0.0
    %4162 = vmatpush1.msra.mxu0 0.0
    %4163 = vmatprep.subr.mxu0 0.0
    %4164 = vmatpush1.msra.mxu0 0.0
    %4165 = vmatprep.subr.mxu0 0.0
    %4166 = vmatpush1.msra.mxu0 0.0
    %4167 = vmatprep.subr.mxu0 0.0
    %4168 = vmatpush1.msra.mxu0 0.0
    %4169 = vmatprep.subr.mxu0 0.0
    %4170 = vmatpush1.msra.mxu0 0.0
    %4171 = vmatprep.subr.mxu0 0.0
    %4172 = vmatpush1.msra.mxu0 0.0
    %4173 = vmatprep.subr.mxu0 0.0
    %4174 = vmatpush1.msra.mxu0 0.0
    %4175 = vmatprep.subr.mxu0 0.0
    %4176 = vmatpush1.msra.mxu0 0.0
    %4177 = vmatprep.subr.mxu0 0.0
    %4178 = vmatpush1.msra.mxu0 0.0
    %4179 = vmatprep.subr.mxu0 0.0
    %4180 = vmatpush1.msra.mxu0 0.0
    %4181 = vmatprep.mubr.f32.mxu0 0.0
    %4182 = vmatmul.mubr.f32.gmra.mrb[0].mxu0 %v3344
    %v4183 = vpop.f32.mrb[0].mxu0
    %v4184 = vadd.f32 %v4115, %v4183
    %v4185 = vpop.f32.mrb[0].mxu0
    %4186 = vmatprep.mubr.f32.mxu0 0.0
    %4187 = vmatmul.mubr.f32.gmra.mrb[0].mxu0 %v3347
    %v4188 = vpop.f32.mrb[0].mxu0
    %v4189 = vadd.f32 %v4115, %v4188
    %v4190 = vpop.f32.mrb[0].mxu0
    %4191 = vdwg.mxu0
    %s4192 = scalar_lea.vmem %s8, 40
    %v4193 = vld [vmem:[%s4192] sm:$0xff]
    %v4195 = vsel %vm335, %v4008, 0
    %v4198 = vsel %vm335, %v4096, 0
    %4200 = vmatprep.subr.mxu0 0.0
    %4201 = vmatpush1.xpose.msra.mxu0 %v4198
    %4202 = vmatprep.subr.mxu0 0.0
    %4203 = vmatpush1.xpose.msra.mxu0 0.0
    %4204 = vmatprep.subr.mxu0 0.0
    %4205 = vmatpush1.xpose.msra.mxu0 0.0
    %4206 = vmatprep.subr.mxu0 0.0
    %4207 = vmatpush1.xpose.msra.mxu0 0.0
    %4208 = vmatprep.subr.mxu0 0.0
    %4209 = vmatpush1.xpose.msra.mxu0 0.0
    %4210 = vmatprep.subr.mxu0 0.0
    %4211 = vmatpush1.xpose.msra.mxu0 0.0
    %4212 = vmatprep.subr.mxu0 0.0
    %4213 = vmatpush1.xpose.msra.mxu0 0.0
    %4214 = vmatprep.subr.mxu0 0.0
    %4215 = vmatpush1.xpose.msra.mxu0 0.0
    %4216 = vmatprep.subr.mxu0 0.0
    %4217 = vmatpush1.xpose.msra.mxu0 0.0
    %4218 = vmatprep.subr.mxu0 0.0
    %4219 = vmatpush1.xpose.msra.mxu0 0.0
    %4220 = vmatprep.subr.mxu0 0.0
    %4221 = vmatpush1.xpose.msra.mxu0 0.0
    %4222 = vmatprep.subr.mxu0 0.0
    %4223 = vmatpush1.xpose.msra.mxu0 0.0
    %4224 = vmatprep.subr.mxu0 0.0
    %4225 = vmatpush1.xpose.msra.mxu0 0.0
    %4226 = vmatprep.subr.mxu0 0.0
    %4227 = vmatpush1.xpose.msra.mxu0 0.0
    %4228 = vmatprep.subr.mxu0 0.0
    %4229 = vmatpush1.xpose.msra.mxu0 0.0
    %4230 = vmatprep.subr.mxu0 0.0
    %4231 = vmatpush1.xpose.msra.mxu0 0.0
    %4232 = vmatprep.subr.mxu0 0.0
    %4233 = vmatpush1.xpose.msra.mxu0 0.0
    %4234 = vmatprep.subr.mxu0 0.0
    %4235 = vmatpush1.xpose.msra.mxu0 0.0
    %4236 = vmatprep.subr.mxu0 0.0
    %4237 = vmatpush1.xpose.msra.mxu0 0.0
    %4238 = vmatprep.subr.mxu0 0.0
    %4239 = vmatpush1.xpose.msra.mxu0 0.0
    %4240 = vmatprep.subr.mxu0 0.0
    %4241 = vmatpush1.xpose.msra.mxu0 0.0
    %4242 = vmatprep.subr.mxu0 0.0
    %4243 = vmatpush1.xpose.msra.mxu0 0.0
    %4244 = vmatprep.subr.mxu0 0.0
    %4245 = vmatpush1.xpose.msra.mxu0 0.0
    %4246 = vmatprep.subr.mxu0 0.0
    %4247 = vmatpush1.xpose.msra.mxu0 0.0
    %4248 = vmatprep.subr.mxu0 0.0
    %4249 = vmatpush1.xpose.msra.mxu0 0.0
    %4250 = vmatprep.subr.mxu0 0.0
    %4251 = vmatpush1.xpose.msra.mxu0 0.0
    %4252 = vmatprep.subr.mxu0 0.0
    %4253 = vmatpush1.xpose.msra.mxu0 0.0
    %4254 = vmatprep.subr.mxu0 0.0
    %4255 = vmatpush1.xpose.msra.mxu0 0.0
    %4256 = vmatprep.subr.mxu0 0.0
    %4257 = vmatpush1.xpose.msra.mxu0 0.0
    %4258 = vmatprep.subr.mxu0 0.0
    %4259 = vmatpush1.xpose.msra.mxu0 0.0
    %4260 = vmatprep.subr.mxu0 0.0
    %4261 = vmatpush1.xpose.msra.mxu0 0.0
    %4262 = vmatprep.subr.mxu0 0.0
    %4263 = vmatpush1.xpose.msra.mxu0 0.0
    %4264 = vmatprep.mubr.f32.mxu0 0.0
    %4265 = vmatmul.mubr.f32.gmra.mrb[0].mxu0 %v4195
    %v4266 = vpop.f32.mrb[0].mxu0
    %v4267 = vadd.f32 0.0, %v4266
    %v4268 = vpop.f32.mrb[0].mxu0
    %4269 = vdwg.mxu0
    %v4270 = vsel %vm417, -10000.0, %v4267
    %v4271 = vsel %vm335, %v4270, -inf
    %4272 = vmax.xlane.f32.xlu0 %v4271
    %v4273 = vpop.xlane.xlu0 %4272
    %v4274 = vsub.f32 %v4270, %v4273
    %v4275 = vmul.f32 %v4274, 1.442695
    %v4276 = vpow.pop %v4275
    %v4277 = vsel %vm335, %v4276, 0.0
    %4278 = vadd.xlane.f32.xlu0 %v4277
    %v4279 = vpop.xlane.xlu0 %4278
    %v4280 = vrcp.pop %v4279
    %v4281 = vmul.f32 %v4276, %v4280
    %s4282 = scalar_lea.vmem [#allocation4], 72
    %4283 = vst.msk [vmem:[%s4282] sm:$0xff] %vm335, %v4281
    %v4285 = vsel %vm335, %v4281, 0
    %4287 = vmatprep.subr.mxu0 0.0
    %4288 = vmatpush1.msra.mxu0 %v4184
    %4289 = vmatprep.subr.mxu0 0.0
    %4290 = vmatpush1.msra.mxu0 0.0
    %4291 = vmatprep.subr.mxu0 0.0
    %4292 = vmatpush1.msra.mxu0 0.0
    %4293 = vmatprep.subr.mxu0 0.0
    %4294 = vmatpush1.msra.mxu0 0.0
    %4295 = vmatprep.subr.mxu0 0.0
    %4296 = vmatpush1.msra.mxu0 0.0
    %4297 = vmatprep.subr.mxu0 0.0
    %4298 = vmatpush1.msra.mxu0 0.0
    %4299 = vmatprep.subr.mxu0 0.0
    %4300 = vmatpush1.msra.mxu0 0.0
    %4301 = vmatprep.subr.mxu0 0.0
    %4302 = vmatpush1.msra.mxu0 0.0
    %4303 = vmatprep.subr.mxu0 0.0
    %4304 = vmatpush1.msra.mxu0 0.0
    %4305 = vmatprep.subr.mxu0 0.0
    %4306 = vmatpush1.msra.mxu0 0.0
    %4307 = vmatprep.subr.mxu0 0.0
    %4308 = vmatpush1.msra.mxu0 0.0
    %4309 = vmatprep.subr.mxu0 0.0
    %4310 = vmatpush1.msra.mxu0 0.0
    %4311 = vmatprep.subr.mxu0 0.0
    %4312 = vmatpush1.msra.mxu0 0.0
    %4313 = vmatprep.subr.mxu0 0.0
    %4314 = vmatpush1.msra.mxu0 0.0
    %4315 = vmatprep.subr.mxu0 0.0
    %4316 = vmatpush1.msra.mxu0 0.0
    %4317 = vmatprep.subr.mxu0 0.0
    %4318 = vmatpush1.msra.mxu0 0.0
    %4319 = vmatprep.subr.mxu0 0.0
    %4320 = vmatpush1.msra.mxu0 0.0
    %4321 = vmatprep.subr.mxu0 0.0
    %4322 = vmatpush1.msra.mxu0 0.0
    %4323 = vmatprep.subr.mxu0 0.0
    %4324 = vmatpush1.msra.mxu0 0.0
    %4325 = vmatprep.subr.mxu0 0.0
    %4326 = vmatpush1.msra.mxu0 0.0
    %4327 = vmatprep.subr.mxu0 0.0
    %4328 = vmatpush1.msra.mxu0 0.0
    %4329 = vmatprep.subr.mxu0 0.0
    %4330 = vmatpush1.msra.mxu0 0.0
    %4331 = vmatprep.subr.mxu0 0.0
    %4332 = vmatpush1.msra.mxu0 0.0
    %4333 = vmatprep.subr.mxu0 0.0
    %4334 = vmatpush1.msra.mxu0 0.0
    %4335 = vmatprep.subr.mxu0 0.0
    %4336 = vmatpush1.msra.mxu0 0.0
    %4337 = vmatprep.subr.mxu0 0.0
    %4338 = vmatpush1.msra.mxu0 0.0
    %4339 = vmatprep.subr.mxu0 0.0
    %4340 = vmatpush1.msra.mxu0 0.0
    %4341 = vmatprep.subr.mxu0 0.0
    %4342 = vmatpush1.msra.mxu0 0.0
    %4343 = vmatprep.subr.mxu0 0.0
    %4344 = vmatpush1.msra.mxu0 0.0
    %4345 = vmatprep.subr.mxu0 0.0
    %4346 = vmatpush1.msra.mxu0 0.0
    %4347 = vmatprep.subr.mxu0 0.0
    %4348 = vmatpush1.msra.mxu0 0.0
    %4349 = vmatprep.subr.mxu0 0.0
    %4350 = vmatpush1.msra.mxu0 0.0
    %4351 = vmatprep.mubr.f32.mxu0 0.0
    %4352 = vmatmul.mubr.f32.gmra.mrb[0].mxu0 %v4285
    %v4353 = vpop.f32.mrb[0].mxu0
    %v4354 = vadd.f32 0.0, %v4353
    %v4355 = vpop.f32.mrb[0].mxu0
    %4356 = vdwg.mxu0
    %v4358 = vsel %vm335, %v4354, 0
    %4360 = vmatprep.subr.mxu0 0.0
    %4361 = vmatpush1.msra.mxu0 %v4193
    %4362 = vmatprep.subr.mxu0 0.0
    %4363 = vmatpush1.msra.mxu0 0.0
    %4364 = vmatprep.subr.mxu0 0.0
    %4365 = vmatpush1.msra.mxu0 0.0
    %4366 = vmatprep.subr.mxu0 0.0
    %4367 = vmatpush1.msra.mxu0 0.0
    %4368 = vmatprep.subr.mxu0 0.0
    %4369 = vmatpush1.msra.mxu0 0.0
    %4370 = vmatprep.subr.mxu0 0.0
    %4371 = vmatpush1.msra.mxu0 0.0
    %4372 = vmatprep.subr.mxu0 0.0
    %4373 = vmatpush1.msra.mxu0 0.0
    %4374 = vmatprep.subr.mxu0 0.0
    %4375 = vmatpush1.msra.mxu0 0.0
    %4376 = vmatprep.subr.mxu0 0.0
    %4377 = vmatpush1.msra.mxu0 0.0
    %4378 = vmatprep.subr.mxu0 0.0
    %4379 = vmatpush1.msra.mxu0 0.0
    %4380 = vmatprep.subr.mxu0 0.0
    %4381 = vmatpush1.msra.mxu0 0.0
    %4382 = vmatprep.subr.mxu0 0.0
    %4383 = vmatpush1.msra.mxu0 0.0
    %4384 = vmatprep.subr.mxu0 0.0
    %4385 = vmatpush1.msra.mxu0 0.0
    %4386 = vmatprep.subr.mxu0 0.0
    %4387 = vmatpush1.msra.mxu0 0.0
    %4388 = vmatprep.subr.mxu0 0.0
    %4389 = vmatpush1.msra.mxu0 0.0
    %4390 = vmatprep.subr.mxu0 0.0
    %4391 = vmatpush1.msra.mxu0 0.0
    %4392 = vmatprep.subr.mxu0 0.0
    %4393 = vmatpush1.msra.mxu0 0.0
    %4394 = vmatprep.subr.mxu0 0.0
    %4395 = vmatpush1.msra.mxu0 0.0
    %4396 = vmatprep.subr.mxu0 0.0
    %4397 = vmatpush1.msra.mxu0 0.0
    %4398 = vmatprep.subr.mxu0 0.0
    %4399 = vmatpush1.msra.mxu0 0.0
    %4400 = vmatprep.subr.mxu0 0.0
    %4401 = vmatpush1.msra.mxu0 0.0
    %4402 = vmatprep.subr.mxu0 0.0
    %4403 = vmatpush1.msra.mxu0 0.0
    %4404 = vmatprep.subr.mxu0 0.0
    %4405 = vmatpush1.msra.mxu0 0.0
    %4406 = vmatprep.subr.mxu0 0.0
    %4407 = vmatpush1.msra.mxu0 0.0
    %4408 = vmatprep.subr.mxu0 0.0
    %4409 = vmatpush1.msra.mxu0 0.0
    %4410 = vmatprep.subr.mxu0 0.0
    %4411 = vmatpush1.msra.mxu0 0.0
    %4412 = vmatprep.subr.mxu0 0.0
    %4413 = vmatpush1.msra.mxu0 0.0
    %4414 = vmatprep.subr.mxu0 0.0
    %4415 = vmatpush1.msra.mxu0 0.0
    %4416 = vmatprep.subr.mxu0 0.0
    %4417 = vmatpush1.msra.mxu0 0.0
    %4418 = vmatprep.subr.mxu0 0.0
    %4419 = vmatpush1.msra.mxu0 0.0
    %4420 = vmatprep.subr.mxu0 0.0
    %4421 = vmatpush1.msra.mxu0 0.0
    %4422 = vmatprep.subr.mxu0 0.0
    %4423 = vmatpush1.msra.mxu0 0.0
    %4424 = vmatprep.mubr.f32.mxu0 0.0
    %4425 = vmatmul.mubr.f32.gmra.mrb[0].mxu0 %v4358
    %v4426 = vpop.f32.mrb[0].mxu0
    %v4427 = vadd.f32 0.0, %v4426
    %v4428 = vpop.f32.mrb[0].mxu0
    %4429 = vdwg.mxu0
    %v4431 = vsel %vm335, %v3762, 0
    %4433 = vmatprep.subr.mxu0 0.0
    %4434 = vmatpush1.msra.mxu0 %v3601
    %4435 = vmatprep.subr.mxu0 0.0
    %4436 = vmatpush1.msra.mxu0 0.0
    %4437 = vmatprep.subr.mxu0 0.0
    %4438 = vmatpush1.msra.mxu0 0.0
    %4439 = vmatprep.subr.mxu0 0.0
    %4440 = vmatpush1.msra.mxu0 0.0
    %4441 = vmatprep.subr.mxu0 0.0
    %4442 = vmatpush1.msra.mxu0 0.0
    %4443 = vmatprep.subr.mxu0 0.0
    %4444 = vmatpush1.msra.mxu0 0.0
    %4445 = vmatprep.subr.mxu0 0.0
    %4446 = vmatpush1.msra.mxu0 0.0
    %4447 = vmatprep.subr.mxu0 0.0
    %4448 = vmatpush1.msra.mxu0 0.0
    %4449 = vmatprep.subr.mxu0 0.0
    %4450 = vmatpush1.msra.mxu0 0.0
    %4451 = vmatprep.subr.mxu0 0.0
    %4452 = vmatpush1.msra.mxu0 0.0
    %4453 = vmatprep.subr.mxu0 0.0
    %4454 = vmatpush1.msra.mxu0 0.0
    %4455 = vmatprep.subr.mxu0 0.0
    %4456 = vmatpush1.msra.mxu0 0.0
    %4457 = vmatprep.subr.mxu0 0.0
    %4458 = vmatpush1.msra.mxu0 0.0
    %4459 = vmatprep.subr.mxu0 0.0
    %4460 = vmatpush1.msra.mxu0 0.0
    %4461 = vmatprep.subr.mxu0 0.0
    %4462 = vmatpush1.msra.mxu0 0.0
    %4463 = vmatprep.subr.mxu0 0.0
    %4464 = vmatpush1.msra.mxu0 0.0
    %4465 = vmatprep.subr.mxu0 0.0
    %4466 = vmatpush1.msra.mxu0 0.0
    %4467 = vmatprep.subr.mxu0 0.0
    %4468 = vmatpush1.msra.mxu0 0.0
    %4469 = vmatprep.subr.mxu0 0.0
    %4470 = vmatpush1.msra.mxu0 0.0
    %4471 = vmatprep.subr.mxu0 0.0
    %4472 = vmatpush1.msra.mxu0 0.0
    %4473 = vmatprep.subr.mxu0 0.0
    %4474 = vmatpush1.msra.mxu0 0.0
    %4475 = vmatprep.subr.mxu0 0.0
    %4476 = vmatpush1.msra.mxu0 0.0
    %4477 = vmatprep.subr.mxu0 0.0
    %4478 = vmatpush1.msra.mxu0 0.0
    %4479 = vmatprep.subr.mxu0 0.0
    %4480 = vmatpush1.msra.mxu0 0.0
    %4481 = vmatprep.subr.mxu0 0.0
    %4482 = vmatpush1.msra.mxu0 0.0
    %4483 = vmatprep.subr.mxu0 0.0
    %4484 = vmatpush1.msra.mxu0 0.0
    %4485 = vmatprep.subr.mxu0 0.0
    %4486 = vmatpush1.msra.mxu0 0.0
    %4487 = vmatprep.subr.mxu0 0.0
    %4488 = vmatpush1.msra.mxu0 0.0
    %4489 = vmatprep.subr.mxu0 0.0
    %4490 = vmatpush1.msra.mxu0 0.0
    %4491 = vmatprep.subr.mxu0 0.0
    %4492 = vmatpush1.msra.mxu0 0.0
    %4493 = vmatprep.subr.mxu0 0.0
    %4494 = vmatpush1.msra.mxu0 0.0
    %4495 = vmatprep.subr.mxu0 0.0
    %4496 = vmatpush1.msra.mxu0 0.0
    %4497 = vmatprep.mubr.f32.mxu0 0.0
    %4498 = vmatmul.mubr.f32.gmra.mrb[0].mxu0 %v4431
    %v4499 = vpop.f32.mrb[0].mxu0
    %v4500 = vadd.f32 %v4427, %v4499
    %v4501 = vpop.f32.mrb[0].mxu0
    %4502 = vdwg.mxu0
    %v4504 = vsel %vm335, %v4013, 0
    %v4507 = vsel %vm335, %v4101, 0
    %4509 = vmatprep.subr.mxu0 0.0
    %4510 = vmatpush1.xpose.msra.mxu0 %v4507
    %4511 = vmatprep.subr.mxu0 0.0
    %4512 = vmatpush1.xpose.msra.mxu0 0.0
    %4513 = vmatprep.subr.mxu0 0.0
    %4514 = vmatpush1.xpose.msra.mxu0 0.0
    %4515 = vmatprep.subr.mxu0 0.0
    %4516 = vmatpush1.xpose.msra.mxu0 0.0
    %4517 = vmatprep.subr.mxu0 0.0
    %4518 = vmatpush1.xpose.msra.mxu0 0.0
    %4519 = vmatprep.subr.mxu0 0.0
    %4520 = vmatpush1.xpose.msra.mxu0 0.0
    %4521 = vmatprep.subr.mxu0 0.0
    %4522 = vmatpush1.xpose.msra.mxu0 0.0
    %4523 = vmatprep.subr.mxu0 0.0
    %4524 = vmatpush1.xpose.msra.mxu0 0.0
    %4525 = vmatprep.subr.mxu0 0.0
    %4526 = vmatpush1.xpose.msra.mxu0 0.0
    %4527 = vmatprep.subr.mxu0 0.0
    %4528 = vmatpush1.xpose.msra.mxu0 0.0
    %4529 = vmatprep.subr.mxu0 0.0
    %4530 = vmatpush1.xpose.msra.mxu0 0.0
    %4531 = vmatprep.subr.mxu0 0.0
    %4532 = vmatpush1.xpose.msra.mxu0 0.0
    %4533 = vmatprep.subr.mxu0 0.0
    %4534 = vmatpush1.xpose.msra.mxu0 0.0
    %4535 = vmatprep.subr.mxu0 0.0
    %4536 = vmatpush1.xpose.msra.mxu0 0.0
    %4537 = vmatprep.subr.mxu0 0.0
    %4538 = vmatpush1.xpose.msra.mxu0 0.0
    %4539 = vmatprep.subr.mxu0 0.0
    %4540 = vmatpush1.xpose.msra.mxu0 0.0
    %4541 = vmatprep.subr.mxu0 0.0
    %4542 = vmatpush1.xpose.msra.mxu0 0.0
    %4543 = vmatprep.subr.mxu0 0.0
    %4544 = vmatpush1.xpose.msra.mxu0 0.0
    %4545 = vmatprep.subr.mxu0 0.0
    %4546 = vmatpush1.xpose.msra.mxu0 0.0
    %4547 = vmatprep.subr.mxu0 0.0
    %4548 = vmatpush1.xpose.msra.mxu0 0.0
    %4549 = vmatprep.subr.mxu0 0.0
    %4550 = vmatpush1.xpose.msra.mxu0 0.0
    %4551 = vmatprep.subr.mxu0 0.0
    %4552 = vmatpush1.xpose.msra.mxu0 0.0
    %4553 = vmatprep.subr.mxu0 0.0
    %4554 = vmatpush1.xpose.msra.mxu0 0.0
    %4555 = vmatprep.subr.mxu0 0.0
    %4556 = vmatpush1.xpose.msra.mxu0 0.0
    %4557 = vmatprep.subr.mxu0 0.0
    %4558 = vmatpush1.xpose.msra.mxu0 0.0
    %4559 = vmatprep.subr.mxu0 0.0
    %4560 = vmatpush1.xpose.msra.mxu0 0.0
    %4561 = vmatprep.subr.mxu0 0.0
    %4562 = vmatpush1.xpose.msra.mxu0 0.0
    %4563 = vmatprep.subr.mxu0 0.0
    %4564 = vmatpush1.xpose.msra.mxu0 0.0
    %4565 = vmatprep.subr.mxu0 0.0
    %4566 = vmatpush1.xpose.msra.mxu0 0.0
    %4567 = vmatprep.subr.mxu0 0.0
    %4568 = vmatpush1.xpose.msra.mxu0 0.0
    %4569 = vmatprep.subr.mxu0 0.0
    %4570 = vmatpush1.xpose.msra.mxu0 0.0
    %4571 = vmatprep.subr.mxu0 0.0
    %4572 = vmatpush1.xpose.msra.mxu0 0.0
    %4573 = vmatprep.mubr.f32.mxu0 0.0
    %4574 = vmatmul.mubr.f32.gmra.mrb[0].mxu0 %v4504
    %v4575 = vpop.f32.mrb[0].mxu0
    %v4576 = vadd.f32 0.0, %v4575
    %v4577 = vpop.f32.mrb[0].mxu0
    %4578 = vdwg.mxu0
    %v4579 = vsel %vm585, -10000.0, %v4576
    %v4580 = vsel %vm335, %v4579, -inf
    %4581 = vmax.xlane.f32.xlu0 %v4580
    %v4582 = vpop.xlane.xlu0 %4581
    %v4583 = vsub.f32 %v4579, %v4582
    %v4584 = vmul.f32 %v4583, 1.442695
    %v4585 = vpow.pop %v4584
    %v4586 = vsel %vm335, %v4585, 0.0
    %4587 = vadd.xlane.f32.xlu0 %v4586
    %v4588 = vpop.xlane.xlu0 %4587
    %v4589 = vrcp.pop %v4588
    %v4590 = vmul.f32 %v4585, %v4589
    %s4591 = scalar_lea.vmem [#allocation4], 104
    %4592 = vst.msk [vmem:[%s4591] sm:$0xff] %vm335, %v4590
    %v4594 = vsel %vm335, %v4590, 0
    %4596 = vmatprep.subr.mxu0 0.0
    %4597 = vmatpush1.msra.mxu0 %v4189
    %4598 = vmatprep.subr.mxu0 0.0
    %4599 = vmatpush1.msra.mxu0 0.0
    %4600 = vmatprep.subr.mxu0 0.0
    %4601 = vmatpush1.msra.mxu0 0.0
    %4602 = vmatprep.subr.mxu0 0.0
    %4603 = vmatpush1.msra.mxu0 0.0
    %4604 = vmatprep.subr.mxu0 0.0
    %4605 = vmatpush1.msra.mxu0 0.0
    %4606 = vmatprep.subr.mxu0 0.0
    %4607 = vmatpush1.msra.mxu0 0.0
    %4608 = vmatprep.subr.mxu0 0.0
    %4609 = vmatpush1.msra.mxu0 0.0
    %4610 = vmatprep.subr.mxu0 0.0
    %4611 = vmatpush1.msra.mxu0 0.0
    %4612 = vmatprep.subr.mxu0 0.0
    %4613 = vmatpush1.msra.mxu0 0.0
    %4614 = vmatprep.subr.mxu0 0.0
    %4615 = vmatpush1.msra.mxu0 0.0
    %4616 = vmatprep.subr.mxu0 0.0
    %4617 = vmatpush1.msra.mxu0 0.0
    %4618 = vmatprep.subr.mxu0 0.0
    %4619 = vmatpush1.msra.mxu0 0.0
    %4620 = vmatprep.subr.mxu0 0.0
    %4621 = vmatpush1.msra.mxu0 0.0
    %4622 = vmatprep.subr.mxu0 0.0
    %4623 = vmatpush1.msra.mxu0 0.0
    %4624 = vmatprep.subr.mxu0 0.0
    %4625 = vmatpush1.msra.mxu0 0.0
    %4626 = vmatprep.subr.mxu0 0.0
    %4627 = vmatpush1.msra.mxu0 0.0
    %4628 = vmatprep.subr.mxu0 0.0
    %4629 = vmatpush1.msra.mxu0 0.0
    %4630 = vmatprep.subr.mxu0 0.0
    %4631 = vmatpush1.msra.mxu0 0.0
    %4632 = vmatprep.subr.mxu0 0.0
    %4633 = vmatpush1.msra.mxu0 0.0
    %4634 = vmatprep.subr.mxu0 0.0
    %4635 = vmatpush1.msra.mxu0 0.0
    %4636 = vmatprep.subr.mxu0 0.0
    %4637 = vmatpush1.msra.mxu0 0.0
    %4638 = vmatprep.subr.mxu0 0.0
    %4639 = vmatpush1.msra.mxu0 0.0
    %4640 = vmatprep.subr.mxu0 0.0
    %4641 = vmatpush1.msra.mxu0 0.0
    %4642 = vmatprep.subr.mxu0 0.0
    %4643 = vmatpush1.msra.mxu0 0.0
    %4644 = vmatprep.subr.mxu0 0.0
    %4645 = vmatpush1.msra.mxu0 0.0
    %4646 = vmatprep.subr.mxu0 0.0
    %4647 = vmatpush1.msra.mxu0 0.0
    %4648 = vmatprep.subr.mxu0 0.0
    %4649 = vmatpush1.msra.mxu0 0.0
    %4650 = vmatprep.subr.mxu0 0.0
    %4651 = vmatpush1.msra.mxu0 0.0
    %4652 = vmatprep.subr.mxu0 0.0
    %4653 = vmatpush1.msra.mxu0 0.0
    %4654 = vmatprep.subr.mxu0 0.0
    %4655 = vmatpush1.msra.mxu0 0.0
    %4656 = vmatprep.subr.mxu0 0.0
    %4657 = vmatpush1.msra.mxu0 0.0
    %4658 = vmatprep.subr.mxu0 0.0
    %4659 = vmatpush1.msra.mxu0 0.0
    %4660 = vmatprep.mubr.f32.mxu0 0.0
    %4661 = vmatmul.mubr.f32.gmra.mrb[0].mxu0 %v4594
    %v4662 = vpop.f32.mrb[0].mxu0
    %v4663 = vadd.f32 0.0, %v4662
    %v4664 = vpop.f32.mrb[0].mxu0
    %4665 = vdwg.mxu0
    %v4667 = vsel %vm335, %v4663, 0
    %4669 = vmatprep.subr.mxu0 0.0
    %4670 = vmatpush1.msra.mxu0 %v4193
    %4671 = vmatprep.subr.mxu0 0.0
    %4672 = vmatpush1.msra.mxu0 0.0
    %4673 = vmatprep.subr.mxu0 0.0
    %4674 = vmatpush1.msra.mxu0 0.0
    %4675 = vmatprep.subr.mxu0 0.0
    %4676 = vmatpush1.msra.mxu0 0.0
    %4677 = vmatprep.subr.mxu0 0.0
    %4678 = vmatpush1.msra.mxu0 0.0
    %4679 = vmatprep.subr.mxu0 0.0
    %4680 = vmatpush1.msra.mxu0 0.0
    %4681 = vmatprep.subr.mxu0 0.0
    %4682 = vmatpush1.msra.mxu0 0.0
    %4683 = vmatprep.subr.mxu0 0.0
    %4684 = vmatpush1.msra.mxu0 0.0
    %4685 = vmatprep.subr.mxu0 0.0
    %4686 = vmatpush1.msra.mxu0 0.0
    %4687 = vmatprep.subr.mxu0 0.0
    %4688 = vmatpush1.msra.mxu0 0.0
    %4689 = vmatprep.subr.mxu0 0.0
    %4690 = vmatpush1.msra.mxu0 0.0
    %4691 = vmatprep.subr.mxu0 0.0
    %4692 = vmatpush1.msra.mxu0 0.0
    %4693 = vmatprep.subr.mxu0 0.0
    %4694 = vmatpush1.msra.mxu0 0.0
    %4695 = vmatprep.subr.mxu0 0.0
    %4696 = vmatpush1.msra.mxu0 0.0
    %4697 = vmatprep.subr.mxu0 0.0
    %4698 = vmatpush1.msra.mxu0 0.0
    %4699 = vmatprep.subr.mxu0 0.0
    %4700 = vmatpush1.msra.mxu0 0.0
    %4701 = vmatprep.subr.mxu0 0.0
    %4702 = vmatpush1.msra.mxu0 0.0
    %4703 = vmatprep.subr.mxu0 0.0
    %4704 = vmatpush1.msra.mxu0 0.0
    %4705 = vmatprep.subr.mxu0 0.0
    %4706 = vmatpush1.msra.mxu0 0.0
    %4707 = vmatprep.subr.mxu0 0.0
    %4708 = vmatpush1.msra.mxu0 0.0
    %4709 = vmatprep.subr.mxu0 0.0
    %4710 = vmatpush1.msra.mxu0 0.0
    %4711 = vmatprep.subr.mxu0 0.0
    %4712 = vmatpush1.msra.mxu0 0.0
    %4713 = vmatprep.subr.mxu0 0.0
    %4714 = vmatpush1.msra.mxu0 0.0
    %4715 = vmatprep.subr.mxu0 0.0
    %4716 = vmatpush1.msra.mxu0 0.0
    %4717 = vmatprep.subr.mxu0 0.0
    %4718 = vmatpush1.msra.mxu0 0.0
    %4719 = vmatprep.subr.mxu0 0.0
    %4720 = vmatpush1.msra.mxu0 0.0
    %4721 = vmatprep.subr.mxu0 0.0
    %4722 = vmatpush1.msra.mxu0 0.0
    %4723 = vmatprep.subr.mxu0 0.0
    %4724 = vmatpush1.msra.mxu0 0.0
    %4725 = vmatprep.subr.mxu0 0.0
    %4726 = vmatpush1.msra.mxu0 0.0
    %4727 = vmatprep.subr.mxu0 0.0
    %4728 = vmatpush1.msra.mxu0 0.0
    %4729 = vmatprep.subr.mxu0 0.0
    %4730 = vmatpush1.msra.mxu0 0.0
    %4731 = vmatprep.subr.mxu0 0.0
    %4732 = vmatpush1.msra.mxu0 0.0
    %4733 = vmatprep.mubr.f32.mxu0 0.0
    %4734 = vmatmul.mubr.f32.gmra.mrb[0].mxu0 %v4667
    %v4735 = vpop.f32.mrb[0].mxu0
    %v4736 = vadd.f32 0.0, %v4735
    %v4737 = vpop.f32.mrb[0].mxu0
    %4738 = vdwg.mxu0
    %v4740 = vsel %vm335, %v3925, 0
    %4742 = vmatprep.subr.mxu0 0.0
    %4743 = vmatpush1.msra.mxu0 %v3601
    %4744 = vmatprep.subr.mxu0 0.0
    %4745 = vmatpush1.msra.mxu0 0.0
    %4746 = vmatprep.subr.mxu0 0.0
    %4747 = vmatpush1.msra.mxu0 0.0
    %4748 = vmatprep.subr.mxu0 0.0
    %4749 = vmatpush1.msra.mxu0 0.0
    %4750 = vmatprep.subr.mxu0 0.0
    %4751 = vmatpush1.msra.mxu0 0.0
    %4752 = vmatprep.subr.mxu0 0.0
    %4753 = vmatpush1.msra.mxu0 0.0
    %4754 = vmatprep.subr.mxu0 0.0
    %4755 = vmatpush1.msra.mxu0 0.0
    %4756 = vmatprep.subr.mxu0 0.0
    %4757 = vmatpush1.msra.mxu0 0.0
    %4758 = vmatprep.subr.mxu0 0.0
    %4759 = vmatpush1.msra.mxu0 0.0
    %4760 = vmatprep.subr.mxu0 0.0
    %4761 = vmatpush1.msra.mxu0 0.0
    %4762 = vmatprep.subr.mxu0 0.0
    %4763 = vmatpush1.msra.mxu0 0.0
    %4764 = vmatprep.subr.mxu0 0.0
    %4765 = vmatpush1.msra.mxu0 0.0
    %4766 = vmatprep.subr.mxu0 0.0
    %4767 = vmatpush1.msra.mxu0 0.0
    %4768 = vmatprep.subr.mxu0 0.0
    %4769 = vmatpush1.msra.mxu0 0.0
    %4770 = vmatprep.subr.mxu0 0.0
    %4771 = vmatpush1.msra.mxu0 0.0
    %4772 = vmatprep.subr.mxu0 0.0
    %4773 = vmatpush1.msra.mxu0 0.0
    %4774 = vmatprep.subr.mxu0 0.0
    %4775 = vmatpush1.msra.mxu0 0.0
    %4776 = vmatprep.subr.mxu0 0.0
    %4777 = vmatpush1.msra.mxu0 0.0
    %4778 = vmatprep.subr.mxu0 0.0
    %4779 = vmatpush1.msra.mxu0 0.0
    %4780 = vmatprep.subr.mxu0 0.0
    %4781 = vmatpush1.msra.mxu0 0.0
    %4782 = vmatprep.subr.mxu0 0.0
    %4783 = vmatpush1.msra.mxu0 0.0
    %4784 = vmatprep.subr.mxu0 0.0
    %4785 = vmatpush1.msra.mxu0 0.0
    %4786 = vmatprep.subr.mxu0 0.0
    %4787 = vmatpush1.msra.mxu0 0.0
    %4788 = vmatprep.subr.mxu0 0.0
    %4789 = vmatpush1.msra.mxu0 0.0
    %4790 = vmatprep.subr.mxu0 0.0
    %4791 = vmatpush1.msra.mxu0 0.0
    %4792 = vmatprep.subr.mxu0 0.0
    %4793 = vmatpush1.msra.mxu0 0.0
    %4794 = vmatprep.subr.mxu0 0.0
    %4795 = vmatpush1.msra.mxu0 0.0
    %4796 = vmatprep.subr.mxu0 0.0
    %4797 = vmatpush1.msra.mxu0 0.0
    %4798 = vmatprep.subr.mxu0 0.0
    %4799 = vmatpush1.msra.mxu0 0.0
    %4800 = vmatprep.subr.mxu0 0.0
    %4801 = vmatpush1.msra.mxu0 0.0
    %4802 = vmatprep.subr.mxu0 0.0
    %4803 = vmatpush1.msra.mxu0 0.0
    %4804 = vmatprep.subr.mxu0 0.0
    %4805 = vmatpush1.msra.mxu0 0.0
    %4806 = vmatprep.mubr.f32.mxu0 0.0
    %4807 = vmatmul.mubr.f32.gmra.mrb[0].mxu0 %v4740
    %v4808 = vpop.f32.mrb[0].mxu0
    %v4809 = vadd.f32 %v4736, %v4808
    %v4810 = vpop.f32.mrb[0].mxu0
    %4811 = vdwg.mxu0
    %s4812 = scalar_lea.vmem %s2, 192
    %v4813 = vld [vmem:[%s4812] sm:$0xff]
    %v4814 = vld [vmem:[%s4812 + $0x8] sm:$0xff]
    %v4815 = vld [vmem:[%s4812 + $0x10] sm:$0xff]
    %v4816 = vld [vmem:[%s4812 + $0x18] sm:$0xff]
    %s4817 = scalar_lea.vmem %s3, 6
    %v4818 = vld [vmem:[%s4817] sm:$0x1]
    %v4820 = vlaneseq
    %v4821 = vshrl.u32 %v4820, 7
    %v4822 = vsub.s32 0, %v4821
    %v4823 = vrot.slane %v4818, %v4822
    %4825 = vmatprep.subr.mxu0 0.0
    %4826 = vmatpush1.msra.mxu0 %v4813
    %4827 = vmatprep.subr.mxu0 0.0
    %4828 = vmatpush1.msra.mxu0 %v4814
    %4829 = vmatprep.subr.mxu0 0.0
    %4830 = vmatpush1.msra.mxu0 %v4815
    %4831 = vmatprep.subr.mxu0 0.0
    %4832 = vmatpush1.msra.mxu0 %v4816
    %4833 = vmatprep.subr.mxu0 0.0
    %4834 = vmatpush1.msra.mxu0 0.0
    %4835 = vmatprep.subr.mxu0 0.0
    %4836 = vmatpush1.msra.mxu0 0.0
    %4837 = vmatprep.subr.mxu0 0.0
    %4838 = vmatpush1.msra.mxu0 0.0
    %4839 = vmatprep.subr.mxu0 0.0
    %4840 = vmatpush1.msra.mxu0 0.0
    %4841 = vmatprep.subr.mxu0 0.0
    %4842 = vmatpush1.msra.mxu0 0.0
    %4843 = vmatprep.subr.mxu0 0.0
    %4844 = vmatpush1.msra.mxu0 0.0
    %4845 = vmatprep.subr.mxu0 0.0
    %4846 = vmatpush1.msra.mxu0 0.0
    %4847 = vmatprep.subr.mxu0 0.0
    %4848 = vmatpush1.msra.mxu0 0.0
    %4849 = vmatprep.subr.mxu0 0.0
    %4850 = vmatpush1.msra.mxu0 0.0
    %4851 = vmatprep.subr.mxu0 0.0
    %4852 = vmatpush1.msra.mxu0 0.0
    %4853 = vmatprep.subr.mxu0 0.0
    %4854 = vmatpush1.msra.mxu0 0.0
    %4855 = vmatprep.subr.mxu0 0.0
    %4856 = vmatpush1.msra.mxu0 0.0
    %4857 = vmatprep.subr.mxu0 0.0
    %4858 = vmatpush1.msra.mxu0 0.0
    %4859 = vmatprep.subr.mxu0 0.0
    %4860 = vmatpush1.msra.mxu0 0.0
    %4861 = vmatprep.subr.mxu0 0.0
    %4862 = vmatpush1.msra.mxu0 0.0
    %4863 = vmatprep.subr.mxu0 0.0
    %4864 = vmatpush1.msra.mxu0 0.0
    %4865 = vmatprep.subr.mxu0 0.0
    %4866 = vmatpush1.msra.mxu0 0.0
    %4867 = vmatprep.subr.mxu0 0.0
    %4868 = vmatpush1.msra.mxu0 0.0
    %4869 = vmatprep.subr.mxu0 0.0
    %4870 = vmatpush1.msra.mxu0 0.0
    %4871 = vmatprep.subr.mxu0 0.0
    %4872 = vmatpush1.msra.mxu0 0.0
    %4873 = vmatprep.subr.mxu0 0.0
    %4874 = vmatpush1.msra.mxu0 0.0
    %4875 = vmatprep.subr.mxu0 0.0
    %4876 = vmatpush1.msra.mxu0 0.0
    %4877 = vmatprep.subr.mxu0 0.0
    %4878 = vmatpush1.msra.mxu0 0.0
    %4879 = vmatprep.subr.mxu0 0.0
    %4880 = vmatpush1.msra.mxu0 0.0
    %4881 = vmatprep.subr.mxu0 0.0
    %4882 = vmatpush1.msra.mxu0 0.0
    %4883 = vmatprep.subr.mxu0 0.0
    %4884 = vmatpush1.msra.mxu0 0.0
    %4885 = vmatprep.subr.mxu0 0.0
    %4886 = vmatpush1.msra.mxu0 0.0
    %4887 = vmatprep.subr.mxu0 0.0
    %4888 = vmatpush1.msra.mxu0 0.0
    %4889 = vmatprep.mubr.f32.mxu0 0.0
    %4890 = vmatmul.mubr.f32.gmra.mrb[0].mxu0 %v3344
    %v4891 = vpop.f32.mrb[0].mxu0
    %v4892 = vadd.f32 %v4823, %v4891
    %v4893 = vpop.f32.mrb[0].mxu0
    %4894 = vmatprep.mubr.f32.mxu0 0.0
    %4895 = vmatmul.mubr.f32.gmra.mrb[0].mxu0 %v3347
    %v4896 = vpop.f32.mrb[0].mxu0
    %v4897 = vadd.f32 %v4823, %v4896
    %v4898 = vpop.f32.mrb[0].mxu0
    %4899 = vdwg.mxu0
    %s4900 = scalar_lea.vmem %s4, 192
    %v4901 = vld [vmem:[%s4900] sm:$0xff]
    %v4902 = vld [vmem:[%s4900 + $0x8] sm:$0xff]
    %v4903 = vld [vmem:[%s4900 + $0x10] sm:$0xff]
    %v4904 = vld [vmem:[%s4900 + $0x18] sm:$0xff]
    %s4905 = scalar_lea.vmem %s5, 6
    %v4906 = vld [vmem:[%s4905] sm:$0x1]
    %v4908 = vlaneseq
    %v4909 = vshrl.u32 %v4908, 7
    %v4910 = vsub.s32 0, %v4909
    %v4911 = vrot.slane %v4906, %v4910
    %4913 = vmatprep.subr.mxu0 0.0
    %4914 = vmatpush1.msra.mxu0 %v4901
    %4915 = vmatprep.subr.mxu0 0.0
    %4916 = vmatpush1.msra.mxu0 %v4902
    %4917 = vmatprep.subr.mxu0 0.0
    %4918 = vmatpush1.msra.mxu0 %v4903
    %4919 = vmatprep.subr.mxu0 0.0
    %4920 = vmatpush1.msra.mxu0 %v4904
    %4921 = vmatprep.subr.mxu0 0.0
    %4922 = vmatpush1.msra.mxu0 0.0
    %4923 = vmatprep.subr.mxu0 0.0
    %4924 = vmatpush1.msra.mxu0 0.0
    %4925 = vmatprep.subr.mxu0 0.0
    %4926 = vmatpush1.msra.mxu0 0.0
    %4927 = vmatprep.subr.mxu0 0.0
    %4928 = vmatpush1.msra.mxu0 0.0
    %4929 = vmatprep.subr.mxu0 0.0
    %4930 = vmatpush1.msra.mxu0 0.0
    %4931 = vmatprep.subr.mxu0 0.0
    %4932 = vmatpush1.msra.mxu0 0.0
    %4933 = vmatprep.subr.mxu0 0.0
    %4934 = vmatpush1.msra.mxu0 0.0
    %4935 = vmatprep.subr.mxu0 0.0
    %4936 = vmatpush1.msra.mxu0 0.0
    %4937 = vmatprep.subr.mxu0 0.0
    %4938 = vmatpush1.msra.mxu0 0.0
    %4939 = vmatprep.subr.mxu0 0.0
    %4940 = vmatpush1.msra.mxu0 0.0
    %4941 = vmatprep.subr.mxu0 0.0
    %4942 = vmatpush1.msra.mxu0 0.0
    %4943 = vmatprep.subr.mxu0 0.0
    %4944 = vmatpush1.msra.mxu0 0.0
    %4945 = vmatprep.subr.mxu0 0.0
    %4946 = vmatpush1.msra.mxu0 0.0
    %4947 = vmatprep.subr.mxu0 0.0
    %4948 = vmatpush1.msra.mxu0 0.0
    %4949 = vmatprep.subr.mxu0 0.0
    %4950 = vmatpush1.msra.mxu0 0.0
    %4951 = vmatprep.subr.mxu0 0.0
    %4952 = vmatpush1.msra.mxu0 0.0
    %4953 = vmatprep.subr.mxu0 0.0
    %4954 = vmatpush1.msra.mxu0 0.0
    %4955 = vmatprep.subr.mxu0 0.0
    %4956 = vmatpush1.msra.mxu0 0.0
    %4957 = vmatprep.subr.mxu0 0.0
    %4958 = vmatpush1.msra.mxu0 0.0
    %4959 = vmatprep.subr.mxu0 0.0
    %4960 = vmatpush1.msra.mxu0 0.0
    %4961 = vmatprep.subr.mxu0 0.0
    %4962 = vmatpush1.msra.mxu0 0.0
    %4963 = vmatprep.subr.mxu0 0.0
    %4964 = vmatpush1.msra.mxu0 0.0
    %4965 = vmatprep.subr.mxu0 0.0
    %4966 = vmatpush1.msra.mxu0 0.0
    %4967 = vmatprep.subr.mxu0 0.0
    %4968 = vmatpush1.msra.mxu0 0.0
    %4969 = vmatprep.subr.mxu0 0.0
    %4970 = vmatpush1.msra.mxu0 0.0
    %4971 = vmatprep.subr.mxu0 0.0
    %4972 = vmatpush1.msra.mxu0 0.0
    %4973 = vmatprep.subr.mxu0 0.0
    %4974 = vmatpush1.msra.mxu0 0.0
    %4975 = vmatprep.subr.mxu0 0.0
    %4976 = vmatpush1.msra.mxu0 0.0
    %4977 = vmatprep.mubr.f32.mxu0 0.0
    %4978 = vmatmul.mubr.f32.gmra.mrb[0].mxu0 %v3344
    %v4979 = vpop.f32.mrb[0].mxu0
    %v4980 = vadd.f32 %v4911, %v4979
    %v4981 = vpop.f32.mrb[0].mxu0
    %4982 = vmatprep.mubr.f32.mxu0 0.0
    %4983 = vmatmul.mubr.f32.gmra.mrb[0].mxu0 %v3347
    %v4984 = vpop.f32.mrb[0].mxu0
    %v4985 = vadd.f32 %v4911, %v4984
    %v4986 = vpop.f32.mrb[0].mxu0
    %4987 = vdwg.mxu0
    %s4988 = scalar_lea.vmem %s6, 192
    %v4989 = vld [vmem:[%s4988] sm:$0xff]
    %v4990 = vld [vmem:[%s4988 + $0x8] sm:$0xff]
    %v4991 = vld [vmem:[%s4988 + $0x10] sm:$0xff]
    %v4992 = vld [vmem:[%s4988 + $0x18] sm:$0xff]
    %s4993 = scalar_lea.vmem %s7, 6
    %v4994 = vld [vmem:[%s4993] sm:$0x1]
    %v4996 = vlaneseq
    %v4997 = vshrl.u32 %v4996, 7
    %v4998 = vsub.s32 0, %v4997
    %v4999 = vrot.slane %v4994, %v4998
    %5001 = vmatprep.subr.mxu0 0.0
    %5002 = vmatpush1.msra.mxu0 %v4989
    %5003 = vmatprep.subr.mxu0 0.0
    %5004 = vmatpush1.msra.mxu0 %v4990
    %5005 = vmatprep.subr.mxu0 0.0
    %5006 = vmatpush1.msra.mxu0 %v4991
    %5007 = vmatprep.subr.mxu0 0.0
    %5008 = vmatpush1.msra.mxu0 %v4992
    %5009 = vmatprep.subr.mxu0 0.0
    %5010 = vmatpush1.msra.mxu0 0.0
    %5011 = vmatprep.subr.mxu0 0.0
    %5012 = vmatpush1.msra.mxu0 0.0
    %5013 = vmatprep.subr.mxu0 0.0
    %5014 = vmatpush1.msra.mxu0 0.0
    %5015 = vmatprep.subr.mxu0 0.0
    %5016 = vmatpush1.msra.mxu0 0.0
    %5017 = vmatprep.subr.mxu0 0.0
    %5018 = vmatpush1.msra.mxu0 0.0
    %5019 = vmatprep.subr.mxu0 0.0
    %5020 = vmatpush1.msra.mxu0 0.0
    %5021 = vmatprep.subr.mxu0 0.0
    %5022 = vmatpush1.msra.mxu0 0.0
    %5023 = vmatprep.subr.mxu0 0.0
    %5024 = vmatpush1.msra.mxu0 0.0
    %5025 = vmatprep.subr.mxu0 0.0
    %5026 = vmatpush1.msra.mxu0 0.0
    %5027 = vmatprep.subr.mxu0 0.0
    %5028 = vmatpush1.msra.mxu0 0.0
    %5029 = vmatprep.subr.mxu0 0.0
    %5030 = vmatpush1.msra.mxu0 0.0
    %5031 = vmatprep.subr.mxu0 0.0
    %5032 = vmatpush1.msra.mxu0 0.0
    %5033 = vmatprep.subr.mxu0 0.0
    %5034 = vmatpush1.msra.mxu0 0.0
    %5035 = vmatprep.subr.mxu0 0.0
    %5036 = vmatpush1.msra.mxu0 0.0
    %5037 = vmatprep.subr.mxu0 0.0
    %5038 = vmatpush1.msra.mxu0 0.0
    %5039 = vmatprep.subr.mxu0 0.0
    %5040 = vmatpush1.msra.mxu0 0.0
    %5041 = vmatprep.subr.mxu0 0.0
    %5042 = vmatpush1.msra.mxu0 0.0
    %5043 = vmatprep.subr.mxu0 0.0
    %5044 = vmatpush1.msra.mxu0 0.0
    %5045 = vmatprep.subr.mxu0 0.0
    %5046 = vmatpush1.msra.mxu0 0.0
    %5047 = vmatprep.subr.mxu0 0.0
    %5048 = vmatpush1.msra.mxu0 0.0
    %5049 = vmatprep.subr.mxu0 0.0
    %5050 = vmatpush1.msra.mxu0 0.0
    %5051 = vmatprep.subr.mxu0 0.0
    %5052 = vmatpush1.msra.mxu0 0.0
    %5053 = vmatprep.subr.mxu0 0.0
    %5054 = vmatpush1.msra.mxu0 0.0
    %5055 = vmatprep.subr.mxu0 0.0
    %5056 = vmatpush1.msra.mxu0 0.0
    %5057 = vmatprep.subr.mxu0 0.0
    %5058 = vmatpush1.msra.mxu0 0.0
    %5059 = vmatprep.subr.mxu0 0.0
    %5060 = vmatpush1.msra.mxu0 0.0
    %5061 = vmatprep.subr.mxu0 0.0
    %5062 = vmatpush1.msra.mxu0 0.0
    %5063 = vmatprep.subr.mxu0 0.0
    %5064 = vmatpush1.msra.mxu0 0.0
    %5065 = vmatprep.mubr.f32.mxu0 0.0
    %5066 = vmatmul.mubr.f32.gmra.mrb[0].mxu0 %v3344
    %v5067 = vpop.f32.mrb[0].mxu0
    %v5068 = vadd.f32 %v4999, %v5067
    %v5069 = vpop.f32.mrb[0].mxu0
    %5070 = vmatprep.mubr.f32.mxu0 0.0
    %5071 = vmatmul.mubr.f32.gmra.mrb[0].mxu0 %v3347
    %v5072 = vpop.f32.mrb[0].mxu0
    %v5073 = vadd.f32 %v4999, %v5072
    %v5074 = vpop.f32.mrb[0].mxu0
    %5075 = vdwg.mxu0
    %s5076 = scalar_lea.vmem %s8, 48
    %v5077 = vld [vmem:[%s5076] sm:$0xff]
    %v5079 = vsel %vm335, %v4892, 0
    %v5082 = vsel %vm335, %v4980, 0
    %5084 = vmatprep.subr.mxu0 0.0
    %5085 = vmatpush1.xpose.msra.mxu0 %v5082
    %5086 = vmatprep.subr.mxu0 0.0
    %5087 = vmatpush1.xpose.msra.mxu0 0.0
    %5088 = vmatprep.subr.mxu0 0.0
    %5089 = vmatpush1.xpose.msra.mxu0 0.0
    %5090 = vmatprep.subr.mxu0 0.0
    %5091 = vmatpush1.xpose.msra.mxu0 0.0
    %5092 = vmatprep.subr.mxu0 0.0
    %5093 = vmatpush1.xpose.msra.mxu0 0.0
    %5094 = vmatprep.subr.mxu0 0.0
    %5095 = vmatpush1.xpose.msra.mxu0 0.0
    %5096 = vmatprep.subr.mxu0 0.0
    %5097 = vmatpush1.xpose.msra.mxu0 0.0
    %5098 = vmatprep.subr.mxu0 0.0
    %5099 = vmatpush1.xpose.msra.mxu0 0.0
    %5100 = vmatprep.subr.mxu0 0.0
    %5101 = vmatpush1.xpose.msra.mxu0 0.0
    %5102 = vmatprep.subr.mxu0 0.0
    %5103 = vmatpush1.xpose.msra.mxu0 0.0
    %5104 = vmatprep.subr.mxu0 0.0
    %5105 = vmatpush1.xpose.msra.mxu0 0.0
    %5106 = vmatprep.subr.mxu0 0.0
    %5107 = vmatpush1.xpose.msra.mxu0 0.0
    %5108 = vmatprep.subr.mxu0 0.0
    %5109 = vmatpush1.xpose.msra.mxu0 0.0
    %5110 = vmatprep.subr.mxu0 0.0
    %5111 = vmatpush1.xpose.msra.mxu0 0.0
    %5112 = vmatprep.subr.mxu0 0.0
    %5113 = vmatpush1.xpose.msra.mxu0 0.0
    %5114 = vmatprep.subr.mxu0 0.0
    %5115 = vmatpush1.xpose.msra.mxu0 0.0
    %5116 = vmatprep.subr.mxu0 0.0
    %5117 = vmatpush1.xpose.msra.mxu0 0.0
    %5118 = vmatprep.subr.mxu0 0.0
    %5119 = vmatpush1.xpose.msra.mxu0 0.0
    %5120 = vmatprep.subr.mxu0 0.0
    %5121 = vmatpush1.xpose.msra.mxu0 0.0
    %5122 = vmatprep.subr.mxu0 0.0
    %5123 = vmatpush1.xpose.msra.mxu0 0.0
    %5124 = vmatprep.subr.mxu0 0.0
    %5125 = vmatpush1.xpose.msra.mxu0 0.0
    %5126 = vmatprep.subr.mxu0 0.0
    %5127 = vmatpush1.xpose.msra.mxu0 0.0
    %5128 = vmatprep.subr.mxu0 0.0
    %5129 = vmatpush1.xpose.msra.mxu0 0.0
    %5130 = vmatprep.subr.mxu0 0.0
    %5131 = vmatpush1.xpose.msra.mxu0 0.0
    %5132 = vmatprep.subr.mxu0 0.0
    %5133 = vmatpush1.xpose.msra.mxu0 0.0
    %5134 = vmatprep.subr.mxu0 0.0
    %5135 = vmatpush1.xpose.msra.mxu0 0.0
    %5136 = vmatprep.subr.mxu0 0.0
    %5137 = vmatpush1.xpose.msra.mxu0 0.0
    %5138 = vmatprep.subr.mxu0 0.0
    %5139 = vmatpush1.xpose.msra.mxu0 0.0
    %5140 = vmatprep.subr.mxu0 0.0
    %5141 = vmatpush1.xpose.msra.mxu0 0.0
    %5142 = vmatprep.subr.mxu0 0.0
    %5143 = vmatpush1.xpose.msra.mxu0 0.0
    %5144 = vmatprep.subr.mxu0 0.0
    %5145 = vmatpush1.xpose.msra.mxu0 0.0
    %5146 = vmatprep.subr.mxu0 0.0
    %5147 = vmatpush1.xpose.msra.mxu0 0.0
    %5148 = vmatprep.mubr.f32.mxu0 0.0
    %5149 = vmatmul.mubr.f32.gmra.mrb[0].mxu0 %v5079
    %v5150 = vpop.f32.mrb[0].mxu0
    %v5151 = vadd.f32 0.0, %v5150
    %v5152 = vpop.f32.mrb[0].mxu0
    %5153 = vdwg.mxu0
    %v5154 = vsel %vm417, -10000.0, %v5151
    %v5155 = vsel %vm335, %v5154, -inf
    %5156 = vmax.xlane.f32.xlu0 %v5155
    %v5157 = vpop.xlane.xlu0 %5156
    %v5158 = vsub.f32 %v5154, %v5157
    %v5159 = vmul.f32 %v5158, 1.442695
    %v5160 = vpow.pop %v5159
    %v5161 = vsel %vm335, %v5160, 0.0
    %5162 = vadd.xlane.f32.xlu0 %v5161
    %v5163 = vpop.xlane.xlu0 %5162
    %v5164 = vrcp.pop %v5163
    %v5165 = vmul.f32 %v5160, %v5164
    %s5166 = scalar_lea.vmem [#allocation4], 80
    %5167 = vst.msk [vmem:[%s5166] sm:$0xff] %vm335, %v5165
    %v5169 = vsel %vm335, %v5165, 0
    %5171 = vmatprep.subr.mxu0 0.0
    %5172 = vmatpush1.msra.mxu0 %v5068
    %5173 = vmatprep.subr.mxu0 0.0
    %5174 = vmatpush1.msra.mxu0 0.0
    %5175 = vmatprep.subr.mxu0 0.0
    %5176 = vmatpush1.msra.mxu0 0.0
    %5177 = vmatprep.subr.mxu0 0.0
    %5178 = vmatpush1.msra.mxu0 0.0
    %5179 = vmatprep.subr.mxu0 0.0
    %5180 = vmatpush1.msra.mxu0 0.0
    %5181 = vmatprep.subr.mxu0 0.0
    %5182 = vmatpush1.msra.mxu0 0.0
    %5183 = vmatprep.subr.mxu0 0.0
    %5184 = vmatpush1.msra.mxu0 0.0
    %5185 = vmatprep.subr.mxu0 0.0
    %5186 = vmatpush1.msra.mxu0 0.0
    %5187 = vmatprep.subr.mxu0 0.0
    %5188 = vmatpush1.msra.mxu0 0.0
    %5189 = vmatprep.subr.mxu0 0.0
    %5190 = vmatpush1.msra.mxu0 0.0
    %5191 = vmatprep.subr.mxu0 0.0
    %5192 = vmatpush1.msra.mxu0 0.0
    %5193 = vmatprep.subr.mxu0 0.0
    %5194 = vmatpush1.msra.mxu0 0.0
    %5195 = vmatprep.subr.mxu0 0.0
    %5196 = vmatpush1.msra.mxu0 0.0
    %5197 = vmatprep.subr.mxu0 0.0
    %5198 = vmatpush1.msra.mxu0 0.0
    %5199 = vmatprep.subr.mxu0 0.0
    %5200 = vmatpush1.msra.mxu0 0.0
    %5201 = vmatprep.subr.mxu0 0.0
    %5202 = vmatpush1.msra.mxu0 0.0
    %5203 = vmatprep.subr.mxu0 0.0
    %5204 = vmatpush1.msra.mxu0 0.0
    %5205 = vmatprep.subr.mxu0 0.0
    %5206 = vmatpush1.msra.mxu0 0.0
    %5207 = vmatprep.subr.mxu0 0.0
    %5208 = vmatpush1.msra.mxu0 0.0
    %5209 = vmatprep.subr.mxu0 0.0
    %5210 = vmatpush1.msra.mxu0 0.0
    %5211 = vmatprep.subr.mxu0 0.0
    %5212 = vmatpush1.msra.mxu0 0.0
    %5213 = vmatprep.subr.mxu0 0.0
    %5214 = vmatpush1.msra.mxu0 0.0
    %5215 = vmatprep.subr.mxu0 0.0
    %5216 = vmatpush1.msra.mxu0 0.0
    %5217 = vmatprep.subr.mxu0 0.0
    %5218 = vmatpush1.msra.mxu0 0.0
    %5219 = vmatprep.subr.mxu0 0.0
    %5220 = vmatpush1.msra.mxu0 0.0
    %5221 = vmatprep.subr.mxu0 0.0
    %5222 = vmatpush1.msra.mxu0 0.0
    %5223 = vmatprep.subr.mxu0 0.0
    %5224 = vmatpush1.msra.mxu0 0.0
    %5225 = vmatprep.subr.mxu0 0.0
    %5226 = vmatpush1.msra.mxu0 0.0
    %5227 = vmatprep.subr.mxu0 0.0
    %5228 = vmatpush1.msra.mxu0 0.0
    %5229 = vmatprep.subr.mxu0 0.0
    %5230 = vmatpush1.msra.mxu0 0.0
    %5231 = vmatprep.subr.mxu0 0.0
    %5232 = vmatpush1.msra.mxu0 0.0
    %5233 = vmatprep.subr.mxu0 0.0
    %5234 = vmatpush1.msra.mxu0 0.0
    %5235 = vmatprep.mubr.f32.mxu0 0.0
    %5236 = vmatmul.mubr.f32.gmra.mrb[0].mxu0 %v5169
    %v5237 = vpop.f32.mrb[0].mxu0
    %v5238 = vadd.f32 0.0, %v5237
    %v5239 = vpop.f32.mrb[0].mxu0
    %5240 = vdwg.mxu0
    %v5242 = vsel %vm335, %v5238, 0
    %5244 = vmatprep.subr.mxu0 0.0
    %5245 = vmatpush1.msra.mxu0 %v5077
    %5246 = vmatprep.subr.mxu0 0.0
    %5247 = vmatpush1.msra.mxu0 0.0
    %5248 = vmatprep.subr.mxu0 0.0
    %5249 = vmatpush1.msra.mxu0 0.0
    %5250 = vmatprep.subr.mxu0 0.0
    %5251 = vmatpush1.msra.mxu0 0.0
    %5252 = vmatprep.subr.mxu0 0.0
    %5253 = vmatpush1.msra.mxu0 0.0
    %5254 = vmatprep.subr.mxu0 0.0
    %5255 = vmatpush1.msra.mxu0 0.0
    %5256 = vmatprep.subr.mxu0 0.0
    %5257 = vmatpush1.msra.mxu0 0.0
    %5258 = vmatprep.subr.mxu0 0.0
    %5259 = vmatpush1.msra.mxu0 0.0
    %5260 = vmatprep.subr.mxu0 0.0
    %5261 = vmatpush1.msra.mxu0 0.0
    %5262 = vmatprep.subr.mxu0 0.0
    %5263 = vmatpush1.msra.mxu0 0.0
    %5264 = vmatprep.subr.mxu0 0.0
    %5265 = vmatpush1.msra.mxu0 0.0
    %5266 = vmatprep.subr.mxu0 0.0
    %5267 = vmatpush1.msra.mxu0 0.0
    %5268 = vmatprep.subr.mxu0 0.0
    %5269 = vmatpush1.msra.mxu0 0.0
    %5270 = vmatprep.subr.mxu0 0.0
    %5271 = vmatpush1.msra.mxu0 0.0
    %5272 = vmatprep.subr.mxu0 0.0
    %5273 = vmatpush1.msra.mxu0 0.0
    %5274 = vmatprep.subr.mxu0 0.0
    %5275 = vmatpush1.msra.mxu0 0.0
    %5276 = vmatprep.subr.mxu0 0.0
    %5277 = vmatpush1.msra.mxu0 0.0
    %5278 = vmatprep.subr.mxu0 0.0
    %5279 = vmatpush1.msra.mxu0 0.0
    %5280 = vmatprep.subr.mxu0 0.0
    %5281 = vmatpush1.msra.mxu0 0.0
    %5282 = vmatprep.subr.mxu0 0.0
    %5283 = vmatpush1.msra.mxu0 0.0
    %5284 = vmatprep.subr.mxu0 0.0
    %5285 = vmatpush1.msra.mxu0 0.0
    %5286 = vmatprep.subr.mxu0 0.0
    %5287 = vmatpush1.msra.mxu0 0.0
    %5288 = vmatprep.subr.mxu0 0.0
    %5289 = vmatpush1.msra.mxu0 0.0
    %5290 = vmatprep.subr.mxu0 0.0
    %5291 = vmatpush1.msra.mxu0 0.0
    %5292 = vmatprep.subr.mxu0 0.0
    %5293 = vmatpush1.msra.mxu0 0.0
    %5294 = vmatprep.subr.mxu0 0.0
    %5295 = vmatpush1.msra.mxu0 0.0
    %5296 = vmatprep.subr.mxu0 0.0
    %5297 = vmatpush1.msra.mxu0 0.0
    %5298 = vmatprep.subr.mxu0 0.0
    %5299 = vmatpush1.msra.mxu0 0.0
    %5300 = vmatprep.subr.mxu0 0.0
    %5301 = vmatpush1.msra.mxu0 0.0
    %5302 = vmatprep.subr.mxu0 0.0
    %5303 = vmatpush1.msra.mxu0 0.0
    %5304 = vmatprep.subr.mxu0 0.0
    %5305 = vmatpush1.msra.mxu0 0.0
    %5306 = vmatprep.subr.mxu0 0.0
    %5307 = vmatpush1.msra.mxu0 0.0
    %5308 = vmatprep.mubr.f32.mxu0 0.0
    %5309 = vmatmul.mubr.f32.gmra.mrb[0].mxu0 %v5242
    %v5310 = vpop.f32.mrb[0].mxu0
    %v5311 = vadd.f32 0.0, %v5310
    %v5312 = vpop.f32.mrb[0].mxu0
    %5313 = vdwg.mxu0
    %v5314 = vadd.f32 %v4500, %v5311
    %v5316 = vsel %vm335, %v4897, 0
    %v5319 = vsel %vm335, %v4985, 0
    %5321 = vmatprep.subr.mxu0 0.0
    %5322 = vmatpush1.xpose.msra.mxu0 %v5319
    %5323 = vmatprep.subr.mxu0 0.0
    %5324 = vmatpush1.xpose.msra.mxu0 0.0
    %5325 = vmatprep.subr.mxu0 0.0
    %5326 = vmatpush1.xpose.msra.mxu0 0.0
    %5327 = vmatprep.subr.mxu0 0.0
    %5328 = vmatpush1.xpose.msra.mxu0 0.0
    %5329 = vmatprep.subr.mxu0 0.0
    %5330 = vmatpush1.xpose.msra.mxu0 0.0
    %5331 = vmatprep.subr.mxu0 0.0
    %5332 = vmatpush1.xpose.msra.mxu0 0.0
    %5333 = vmatprep.subr.mxu0 0.0
    %5334 = vmatpush1.xpose.msra.mxu0 0.0
    %5335 = vmatprep.subr.mxu0 0.0
    %5336 = vmatpush1.xpose.msra.mxu0 0.0
    %5337 = vmatprep.subr.mxu0 0.0
    %5338 = vmatpush1.xpose.msra.mxu0 0.0
    %5339 = vmatprep.subr.mxu0 0.0
    %5340 = vmatpush1.xpose.msra.mxu0 0.0
    %5341 = vmatprep.subr.mxu0 0.0
    %5342 = vmatpush1.xpose.msra.mxu0 0.0
    %5343 = vmatprep.subr.mxu0 0.0
    %5344 = vmatpush1.xpose.msra.mxu0 0.0
    %5345 = vmatprep.subr.mxu0 0.0
    %5346 = vmatpush1.xpose.msra.mxu0 0.0
    %5347 = vmatprep.subr.mxu0 0.0
    %5348 = vmatpush1.xpose.msra.mxu0 0.0
    %5349 = vmatprep.subr.mxu0 0.0
    %5350 = vmatpush1.xpose.msra.mxu0 0.0
    %5351 = vmatprep.subr.mxu0 0.0
    %5352 = vmatpush1.xpose.msra.mxu0 0.0
    %5353 = vmatprep.subr.mxu0 0.0
    %5354 = vmatpush1.xpose.msra.mxu0 0.0
    %5355 = vmatprep.subr.mxu0 0.0
    %5356 = vmatpush1.xpose.msra.mxu0 0.0
    %5357 = vmatprep.subr.mxu0 0.0
    %5358 = vmatpush1.xpose.msra.mxu0 0.0
    %5359 = vmatprep.subr.mxu0 0.0
    %5360 = vmatpush1.xpose.msra.mxu0 0.0
    %5361 = vmatprep.subr.mxu0 0.0
    %5362 = vmatpush1.xpose.msra.mxu0 0.0
    %5363 = vmatprep.subr.mxu0 0.0
    %5364 = vmatpush1.xpose.msra.mxu0 0.0
    %5365 = vmatprep.subr.mxu0 0.0
    %5366 = vmatpush1.xpose.msra.mxu0 0.0
    %5367 = vmatprep.subr.mxu0 0.0
    %5368 = vmatpush1.xpose.msra.mxu0 0.0
    %5369 = vmatprep.subr.mxu0 0.0
    %5370 = vmatpush1.xpose.msra.mxu0 0.0
    %5371 = vmatprep.subr.mxu0 0.0
    %5372 = vmatpush1.xpose.msra.mxu0 0.0
    %5373 = vmatprep.subr.mxu0 0.0
    %5374 = vmatpush1.xpose.msra.mxu0 0.0
    %5375 = vmatprep.subr.mxu0 0.0
    %5376 = vmatpush1.xpose.msra.mxu0 0.0
    %5377 = vmatprep.subr.mxu0 0.0
    %5378 = vmatpush1.xpose.msra.mxu0 0.0
    %5379 = vmatprep.subr.mxu0 0.0
    %5380 = vmatpush1.xpose.msra.mxu0 0.0
    %5381 = vmatprep.subr.mxu0 0.0
    %5382 = vmatpush1.xpose.msra.mxu0 0.0
    %5383 = vmatprep.subr.mxu0 0.0
    %5384 = vmatpush1.xpose.msra.mxu0 0.0
    %5385 = vmatprep.mubr.f32.mxu0 0.0
    %5386 = vmatmul.mubr.f32.gmra.mrb[0].mxu0 %v5316
    %v5387 = vpop.f32.mrb[0].mxu0
    %v5388 = vadd.f32 0.0, %v5387
    %v5389 = vpop.f32.mrb[0].mxu0
    %5390 = vdwg.mxu0
    %v5391 = vsel %vm585, -10000.0, %v5388
    %v5392 = vsel %vm335, %v5391, -inf
    %5393 = vmax.xlane.f32.xlu0 %v5392
    %v5394 = vpop.xlane.xlu0 %5393
    %v5395 = vsub.f32 %v5391, %v5394
    %v5396 = vmul.f32 %v5395, 1.442695
    %v5397 = vpow.pop %v5396
    %v5398 = vsel %vm335, %v5397, 0.0
    %5399 = vadd.xlane.f32.xlu0 %v5398
    %v5400 = vpop.xlane.xlu0 %5399
    %v5401 = vrcp.pop %v5400
    %v5402 = vmul.f32 %v5397, %v5401
    %s5403 = scalar_lea.vmem [#allocation4], 112
    %5404 = vst.msk [vmem:[%s5403] sm:$0xff] %vm335, %v5402
    %v5406 = vsel %vm335, %v5402, 0
    %5408 = vmatprep.subr.mxu0 0.0
    %5409 = vmatpush1.msra.mxu0 %v5073
    %5410 = vmatprep.subr.mxu0 0.0
    %5411 = vmatpush1.msra.mxu0 0.0
    %5412 = vmatprep.subr.mxu0 0.0
    %5413 = vmatpush1.msra.mxu0 0.0
    %5414 = vmatprep.subr.mxu0 0.0
    %5415 = vmatpush1.msra.mxu0 0.0
    %5416 = vmatprep.subr.mxu0 0.0
    %5417 = vmatpush1.msra.mxu0 0.0
    %5418 = vmatprep.subr.mxu0 0.0
    %5419 = vmatpush1.msra.mxu0 0.0
    %5420 = vmatprep.subr.mxu0 0.0
    %5421 = vmatpush1.msra.mxu0 0.0
    %5422 = vmatprep.subr.mxu0 0.0
    %5423 = vmatpush1.msra.mxu0 0.0
    %5424 = vmatprep.subr.mxu0 0.0
    %5425 = vmatpush1.msra.mxu0 0.0
    %5426 = vmatprep.subr.mxu0 0.0
    %5427 = vmatpush1.msra.mxu0 0.0
    %5428 = vmatprep.subr.mxu0 0.0
    %5429 = vmatpush1.msra.mxu0 0.0
    %5430 = vmatprep.subr.mxu0 0.0
    %5431 = vmatpush1.msra.mxu0 0.0
    %5432 = vmatprep.subr.mxu0 0.0
    %5433 = vmatpush1.msra.mxu0 0.0
    %5434 = vmatprep.subr.mxu0 0.0
    %5435 = vmatpush1.msra.mxu0 0.0
    %5436 = vmatprep.subr.mxu0 0.0
    %5437 = vmatpush1.msra.mxu0 0.0
    %5438 = vmatprep.subr.mxu0 0.0
    %5439 = vmatpush1.msra.mxu0 0.0
    %5440 = vmatprep.subr.mxu0 0.0
    %5441 = vmatpush1.msra.mxu0 0.0
    %5442 = vmatprep.subr.mxu0 0.0
    %5443 = vmatpush1.msra.mxu0 0.0
    %5444 = vmatprep.subr.mxu0 0.0
    %5445 = vmatpush1.msra.mxu0 0.0
    %5446 = vmatprep.subr.mxu0 0.0
    %5447 = vmatpush1.msra.mxu0 0.0
    %5448 = vmatprep.subr.mxu0 0.0
    %5449 = vmatpush1.msra.mxu0 0.0
    %5450 = vmatprep.subr.mxu0 0.0
    %5451 = vmatpush1.msra.mxu0 0.0
    %5452 = vmatprep.subr.mxu0 0.0
    %5453 = vmatpush1.msra.mxu0 0.0
    %5454 = vmatprep.subr.mxu0 0.0
    %5455 = vmatpush1.msra.mxu0 0.0
    %5456 = vmatprep.subr.mxu0 0.0
    %5457 = vmatpush1.msra.mxu0 0.0
    %5458 = vmatprep.subr.mxu0 0.0
    %5459 = vmatpush1.msra.mxu0 0.0
    %5460 = vmatprep.subr.mxu0 0.0
    %5461 = vmatpush1.msra.mxu0 0.0
    %5462 = vmatprep.subr.mxu0 0.0
    %5463 = vmatpush1.msra.mxu0 0.0
    %5464 = vmatprep.subr.mxu0 0.0
    %5465 = vmatpush1.msra.mxu0 0.0
    %5466 = vmatprep.subr.mxu0 0.0
    %5467 = vmatpush1.msra.mxu0 0.0
    %5468 = vmatprep.subr.mxu0 0.0
    %5469 = vmatpush1.msra.mxu0 0.0
    %5470 = vmatprep.subr.mxu0 0.0
    %5471 = vmatpush1.msra.mxu0 0.0
    %5472 = vmatprep.mubr.f32.mxu0 0.0
    %5473 = vmatmul.mubr.f32.gmra.mrb[0].mxu0 %v5406
    %v5474 = vpop.f32.mrb[0].mxu0
    %v5475 = vadd.f32 0.0, %v5474
    %v5476 = vpop.f32.mrb[0].mxu0
    %5477 = vdwg.mxu0
    %v5479 = vsel %vm335, %v5475, 0
    %5481 = vmatprep.subr.mxu0 0.0
    %5482 = vmatpush1.msra.mxu0 %v5077
    %5483 = vmatprep.subr.mxu0 0.0
    %5484 = vmatpush1.msra.mxu0 0.0
    %5485 = vmatprep.subr.mxu0 0.0
    %5486 = vmatpush1.msra.mxu0 0.0
    %5487 = vmatprep.subr.mxu0 0.0
    %5488 = vmatpush1.msra.mxu0 0.0
    %5489 = vmatprep.subr.mxu0 0.0
    %5490 = vmatpush1.msra.mxu0 0.0
    %5491 = vmatprep.subr.mxu0 0.0
    %5492 = vmatpush1.msra.mxu0 0.0
    %5493 = vmatprep.subr.mxu0 0.0
    %5494 = vmatpush1.msra.mxu0 0.0
    %5495 = vmatprep.subr.mxu0 0.0
    %5496 = vmatpush1.msra.mxu0 0.0
    %5497 = vmatprep.subr.mxu0 0.0
    %5498 = vmatpush1.msra.mxu0 0.0
    %5499 = vmatprep.subr.mxu0 0.0
    %5500 = vmatpush1.msra.mxu0 0.0
    %5501 = vmatprep.subr.mxu0 0.0
    %5502 = vmatpush1.msra.mxu0 0.0
    %5503 = vmatprep.subr.mxu0 0.0
    %5504 = vmatpush1.msra.mxu0 0.0
    %5505 = vmatprep.subr.mxu0 0.0
    %5506 = vmatpush1.msra.mxu0 0.0
    %5507 = vmatprep.subr.mxu0 0.0
    %5508 = vmatpush1.msra.mxu0 0.0
    %5509 = vmatprep.subr.mxu0 0.0
    %5510 = vmatpush1.msra.mxu0 0.0
    %5511 = vmatprep.subr.mxu0 0.0
    %5512 = vmatpush1.msra.mxu0 0.0
    %5513 = vmatprep.subr.mxu0 0.0
    %5514 = vmatpush1.msra.mxu0 0.0
    %5515 = vmatprep.subr.mxu0 0.0
    %5516 = vmatpush1.msra.mxu0 0.0
    %5517 = vmatprep.subr.mxu0 0.0
    %5518 = vmatpush1.msra.mxu0 0.0
    %5519 = vmatprep.subr.mxu0 0.0
    %5520 = vmatpush1.msra.mxu0 0.0
    %5521 = vmatprep.subr.mxu0 0.0
    %5522 = vmatpush1.msra.mxu0 0.0
    %5523 = vmatprep.subr.mxu0 0.0
    %5524 = vmatpush1.msra.mxu0 0.0
    %5525 = vmatprep.subr.mxu0 0.0
    %5526 = vmatpush1.msra.mxu0 0.0
    %5527 = vmatprep.subr.mxu0 0.0
    %5528 = vmatpush1.msra.mxu0 0.0
    %5529 = vmatprep.subr.mxu0 0.0
    %5530 = vmatpush1.msra.mxu0 0.0
    %5531 = vmatprep.subr.mxu0 0.0
    %5532 = vmatpush1.msra.mxu0 0.0
    %5533 = vmatprep.subr.mxu0 0.0
    %5534 = vmatpush1.msra.mxu0 0.0
    %5535 = vmatprep.subr.mxu0 0.0
    %5536 = vmatpush1.msra.mxu0 0.0
    %5537 = vmatprep.subr.mxu0 0.0
    %5538 = vmatpush1.msra.mxu0 0.0
    %5539 = vmatprep.subr.mxu0 0.0
    %5540 = vmatpush1.msra.mxu0 0.0
    %5541 = vmatprep.subr.mxu0 0.0
    %5542 = vmatpush1.msra.mxu0 0.0
    %5543 = vmatprep.subr.mxu0 0.0
    %5544 = vmatpush1.msra.mxu0 0.0
    %5545 = vmatprep.mubr.f32.mxu0 0.0
    %5546 = vmatmul.mubr.f32.gmra.mrb[0].mxu0 %v5479
    %v5547 = vpop.f32.mrb[0].mxu0
    %v5548 = vadd.f32 0.0, %v5547
    %v5549 = vpop.f32.mrb[0].mxu0
    %5550 = vdwg.mxu0
    %v5551 = vadd.f32 %v4809, %v5548
    %s5552 = scalar_lea.vmem %s2, 224
    %v5553 = vld [vmem:[%s5552] sm:$0xff]
    %v5554 = vld [vmem:[%s5552 + $0x8] sm:$0xff]
    %v5555 = vld [vmem:[%s5552 + $0x10] sm:$0xff]
    %v5556 = vld [vmem:[%s5552 + $0x18] sm:$0xff]
    %s5557 = scalar_lea.vmem %s3, 7
    %v5558 = vld [vmem:[%s5557] sm:$0x1]
    %v5560 = vlaneseq
    %v5561 = vshrl.u32 %v5560, 7
    %v5562 = vsub.s32 0, %v5561
    %v5563 = vrot.slane %v5558, %v5562
    %5565 = vmatprep.subr.mxu0 0.0
    %5566 = vmatpush1.msra.mxu0 %v5553
    %5567 = vmatprep.subr.mxu0 0.0
    %5568 = vmatpush1.msra.mxu0 %v5554
    %5569 = vmatprep.subr.mxu0 0.0
    %5570 = vmatpush1.msra.mxu0 %v5555
    %5571 = vmatprep.subr.mxu0 0.0
    %5572 = vmatpush1.msra.mxu0 %v5556
    %5573 = vmatprep.subr.mxu0 0.0
    %5574 = vmatpush1.msra.mxu0 0.0
    %5575 = vmatprep.subr.mxu0 0.0
    %5576 = vmatpush1.msra.mxu0 0.0
    %5577 = vmatprep.subr.mxu0 0.0
    %5578 = vmatpush1.msra.mxu0 0.0
    %5579 = vmatprep.subr.mxu0 0.0
    %5580 = vmatpush1.msra.mxu0 0.0
    %5581 = vmatprep.subr.mxu0 0.0
    %5582 = vmatpush1.msra.mxu0 0.0
    %5583 = vmatprep.subr.mxu0 0.0
    %5584 = vmatpush1.msra.mxu0 0.0
    %5585 = vmatprep.subr.mxu0 0.0
    %5586 = vmatpush1.msra.mxu0 0.0
    %5587 = vmatprep.subr.mxu0 0.0
    %5588 = vmatpush1.msra.mxu0 0.0
    %5589 = vmatprep.subr.mxu0 0.0
    %5590 = vmatpush1.msra.mxu0 0.0
    %5591 = vmatprep.subr.mxu0 0.0
    %5592 = vmatpush1.msra.mxu0 0.0
    %5593 = vmatprep.subr.mxu0 0.0
    %5594 = vmatpush1.msra.mxu0 0.0
    %5595 = vmatprep.subr.mxu0 0.0
    %5596 = vmatpush1.msra.mxu0 0.0
    %5597 = vmatprep.subr.mxu0 0.0
    %5598 = vmatpush1.msra.mxu0 0.0
    %5599 = vmatprep.subr.mxu0 0.0
    %5600 = vmatpush1.msra.mxu0 0.0
    %5601 = vmatprep.subr.mxu0 0.0
    %5602 = vmatpush1.msra.mxu0 0.0
    %5603 = vmatprep.subr.mxu0 0.0
    %5604 = vmatpush1.msra.mxu0 0.0
    %5605 = vmatprep.subr.mxu0 0.0
    %5606 = vmatpush1.msra.mxu0 0.0
    %5607 = vmatprep.subr.mxu0 0.0
    %5608 = vmatpush1.msra.mxu0 0.0
    %5609 = vmatprep.subr.mxu0 0.0
    %5610 = vmatpush1.msra.mxu0 0.0
    %5611 = vmatprep.subr.mxu0 0.0
    %5612 = vmatpush1.msra.mxu0 0.0
    %5613 = vmatprep.subr.mxu0 0.0
    %5614 = vmatpush1.msra.mxu0 0.0
    %5615 = vmatprep.subr.mxu0 0.0
    %5616 = vmatpush1.msra.mxu0 0.0
    %5617 = vmatprep.subr.mxu0 0.0
    %5618 = vmatpush1.msra.mxu0 0.0
    %5619 = vmatprep.subr.mxu0 0.0
    %5620 = vmatpush1.msra.mxu0 0.0
    %5621 = vmatprep.subr.mxu0 0.0
    %5622 = vmatpush1.msra.mxu0 0.0
    %5623 = vmatprep.subr.mxu0 0.0
    %5624 = vmatpush1.msra.mxu0 0.0
    %5625 = vmatprep.subr.mxu0 0.0
    %5626 = vmatpush1.msra.mxu0 0.0
    %5627 = vmatprep.subr.mxu0 0.0
    %5628 = vmatpush1.msra.mxu0 0.0
    %5629 = vmatprep.mubr.f32.mxu0 0.0
    %5630 = vmatmul.mubr.f32.gmra.mrb[0].mxu0 %v3344
    %v5631 = vpop.f32.mrb[0].mxu0
    %v5632 = vadd.f32 %v5563, %v5631
    %v5633 = vpop.f32.mrb[0].mxu0
    %5634 = vmatprep.mubr.f32.mxu0 0.0
    %5635 = vmatmul.mubr.f32.gmra.mrb[0].mxu0 %v3347
    %v5636 = vpop.f32.mrb[0].mxu0
    %v5637 = vadd.f32 %v5563, %v5636
    %v5638 = vpop.f32.mrb[0].mxu0
    %5639 = vdwg.mxu0
    %s5640 = scalar_lea.vmem %s4, 224
    %v5641 = vld [vmem:[%s5640] sm:$0xff]
    %v5642 = vld [vmem:[%s5640 + $0x8] sm:$0xff]
    %v5643 = vld [vmem:[%s5640 + $0x10] sm:$0xff]
    %v5644 = vld [vmem:[%s5640 + $0x18] sm:$0xff]
    %s5645 = scalar_lea.vmem %s5, 7
    %v5646 = vld [vmem:[%s5645] sm:$0x1]
    %v5648 = vlaneseq
    %v5649 = vshrl.u32 %v5648, 7
    %v5650 = vsub.s32 0, %v5649
    %v5651 = vrot.slane %v5646, %v5650
    %5653 = vmatprep.subr.mxu0 0.0
    %5654 = vmatpush1.msra.mxu0 %v5641
    %5655 = vmatprep.subr.mxu0 0.0
    %5656 = vmatpush1.msra.mxu0 %v5642
    %5657 = vmatprep.subr.mxu0 0.0
    %5658 = vmatpush1.msra.mxu0 %v5643
    %5659 = vmatprep.subr.mxu0 0.0
    %5660 = vmatpush1.msra.mxu0 %v5644
    %5661 = vmatprep.subr.mxu0 0.0
    %5662 = vmatpush1.msra.mxu0 0.0
    %5663 = vmatprep.subr.mxu0 0.0
    %5664 = vmatpush1.msra.mxu0 0.0
    %5665 = vmatprep.subr.mxu0 0.0
    %5666 = vmatpush1.msra.mxu0 0.0
    %5667 = vmatprep.subr.mxu0 0.0
    %5668 = vmatpush1.msra.mxu0 0.0
    %5669 = vmatprep.subr.mxu0 0.0
    %5670 = vmatpush1.msra.mxu0 0.0
    %5671 = vmatprep.subr.mxu0 0.0
    %5672 = vmatpush1.msra.mxu0 0.0
    %5673 = vmatprep.subr.mxu0 0.0
    %5674 = vmatpush1.msra.mxu0 0.0
    %5675 = vmatprep.subr.mxu0 0.0
    %5676 = vmatpush1.msra.mxu0 0.0
    %5677 = vmatprep.subr.mxu0 0.0
    %5678 = vmatpush1.msra.mxu0 0.0
    %5679 = vmatprep.subr.mxu0 0.0
    %5680 = vmatpush1.msra.mxu0 0.0
    %5681 = vmatprep.subr.mxu0 0.0
    %5682 = vmatpush1.msra.mxu0 0.0
    %5683 = vmatprep.subr.mxu0 0.0
    %5684 = vmatpush1.msra.mxu0 0.0
    %5685 = vmatprep.subr.mxu0 0.0
    %5686 = vmatpush1.msra.mxu0 0.0
    %5687 = vmatprep.subr.mxu0 0.0
    %5688 = vmatpush1.msra.mxu0 0.0
    %5689 = vmatprep.subr.mxu0 0.0
    %5690 = vmatpush1.msra.mxu0 0.0
    %5691 = vmatprep.subr.mxu0 0.0
    %5692 = vmatpush1.msra.mxu0 0.0
    %5693 = vmatprep.subr.mxu0 0.0
    %5694 = vmatpush1.msra.mxu0 0.0
    %5695 = vmatprep.subr.mxu0 0.0
    %5696 = vmatpush1.msra.mxu0 0.0
    %5697 = vmatprep.subr.mxu0 0.0
    %5698 = vmatpush1.msra.mxu0 0.0
    %5699 = vmatprep.subr.mxu0 0.0
    %5700 = vmatpush1.msra.mxu0 0.0
    %5701 = vmatprep.subr.mxu0 0.0
    %5702 = vmatpush1.msra.mxu0 0.0
    %5703 = vmatprep.subr.mxu0 0.0
    %5704 = vmatpush1.msra.mxu0 0.0
    %5705 = vmatprep.subr.mxu0 0.0
    %5706 = vmatpush1.msra.mxu0 0.0
    %5707 = vmatprep.subr.mxu0 0.0
    %5708 = vmatpush1.msra.mxu0 0.0
    %5709 = vmatprep.subr.mxu0 0.0
    %5710 = vmatpush1.msra.mxu0 0.0
    %5711 = vmatprep.subr.mxu0 0.0
    %5712 = vmatpush1.msra.mxu0 0.0
    %5713 = vmatprep.subr.mxu0 0.0
    %5714 = vmatpush1.msra.mxu0 0.0
    %5715 = vmatprep.subr.mxu0 0.0
    %5716 = vmatpush1.msra.mxu0 0.0
    %5717 = vmatprep.mubr.f32.mxu0 0.0
    %5718 = vmatmul.mubr.f32.gmra.mrb[0].mxu0 %v3344
    %v5719 = vpop.f32.mrb[0].mxu0
    %v5720 = vadd.f32 %v5651, %v5719
    %v5721 = vpop.f32.mrb[0].mxu0
    %5722 = vmatprep.mubr.f32.mxu0 0.0
    %5723 = vmatmul.mubr.f32.gmra.mrb[0].mxu0 %v3347
    %v5724 = vpop.f32.mrb[0].mxu0
    %v5725 = vadd.f32 %v5651, %v5724
    %v5726 = vpop.f32.mrb[0].mxu0
    %5727 = vdwg.mxu0
    %s5728 = scalar_lea.vmem %s6, 224
    %v5729 = vld [vmem:[%s5728] sm:$0xff]
    %v5730 = vld [vmem:[%s5728 + $0x8] sm:$0xff]
    %v5731 = vld [vmem:[%s5728 + $0x10] sm:$0xff]
    %v5732 = vld [vmem:[%s5728 + $0x18] sm:$0xff]
    %s5733 = scalar_lea.vmem %s7, 7
    %v5734 = vld [vmem:[%s5733] sm:$0x1]
    %v5736 = vlaneseq
    %v5737 = vshrl.u32 %v5736, 7
    %v5738 = vsub.s32 0, %v5737
    %v5739 = vrot.slane %v5734, %v5738
    %5741 = vmatprep.subr.mxu0 0.0
    %5742 = vmatpush1.msra.mxu0 %v5729
    %5743 = vmatprep.subr.mxu0 0.0
    %5744 = vmatpush1.msra.mxu0 %v5730
    %5745 = vmatprep.subr.mxu0 0.0
    %5746 = vmatpush1.msra.mxu0 %v5731
    %5747 = vmatprep.subr.mxu0 0.0
    %5748 = vmatpush1.msra.mxu0 %v5732
    %5749 = vmatprep.subr.mxu0 0.0
    %5750 = vmatpush1.msra.mxu0 0.0
    %5751 = vmatprep.subr.mxu0 0.0
    %5752 = vmatpush1.msra.mxu0 0.0
    %5753 = vmatprep.subr.mxu0 0.0
    %5754 = vmatpush1.msra.mxu0 0.0
    %5755 = vmatprep.subr.mxu0 0.0
    %5756 = vmatpush1.msra.mxu0 0.0
    %5757 = vmatprep.subr.mxu0 0.0
    %5758 = vmatpush1.msra.mxu0 0.0
    %5759 = vmatprep.subr.mxu0 0.0
    %5760 = vmatpush1.msra.mxu0 0.0
    %5761 = vmatprep.subr.mxu0 0.0
    %5762 = vmatpush1.msra.mxu0 0.0
    %5763 = vmatprep.subr.mxu0 0.0
    %5764 = vmatpush1.msra.mxu0 0.0
    %5765 = vmatprep.subr.mxu0 0.0
    %5766 = vmatpush1.msra.mxu0 0.0
    %5767 = vmatprep.subr.mxu0 0.0
    %5768 = vmatpush1.msra.mxu0 0.0
    %5769 = vmatprep.subr.mxu0 0.0
    %5770 = vmatpush1.msra.mxu0 0.0
    %5771 = vmatprep.subr.mxu0 0.0
    %5772 = vmatpush1.msra.mxu0 0.0
    %5773 = vmatprep.subr.mxu0 0.0
    %5774 = vmatpush1.msra.mxu0 0.0
    %5775 = vmatprep.subr.mxu0 0.0
    %5776 = vmatpush1.msra.mxu0 0.0
    %5777 = vmatprep.subr.mxu0 0.0
    %5778 = vmatpush1.msra.mxu0 0.0
    %5779 = vmatprep.subr.mxu0 0.0
    %5780 = vmatpush1.msra.mxu0 0.0
    %5781 = vmatprep.subr.mxu0 0.0
    %5782 = vmatpush1.msra.mxu0 0.0
    %5783 = vmatprep.subr.mxu0 0.0
    %5784 = vmatpush1.msra.mxu0 0.0
    %5785 = vmatprep.subr.mxu0 0.0
    %5786 = vmatpush1.msra.mxu0 0.0
    %5787 = vmatprep.subr.mxu0 0.0
    %5788 = vmatpush1.msra.mxu0 0.0
    %5789 = vmatprep.subr.mxu0 0.0
    %5790 = vmatpush1.msra.mxu0 0.0
    %5791 = vmatprep.subr.mxu0 0.0
    %5792 = vmatpush1.msra.mxu0 0.0
    %5793 = vmatprep.subr.mxu0 0.0
    %5794 = vmatpush1.msra.mxu0 0.0
    %5795 = vmatprep.subr.mxu0 0.0
    %5796 = vmatpush1.msra.mxu0 0.0
    %5797 = vmatprep.subr.mxu0 0.0
    %5798 = vmatpush1.msra.mxu0 0.0
    %5799 = vmatprep.subr.mxu0 0.0
    %5800 = vmatpush1.msra.mxu0 0.0
    %5801 = vmatprep.subr.mxu0 0.0
    %5802 = vmatpush1.msra.mxu0 0.0
    %5803 = vmatprep.subr.mxu0 0.0
    %5804 = vmatpush1.msra.mxu0 0.0
    %5805 = vmatprep.mubr.f32.mxu0 0.0
    %5806 = vmatmul.mubr.f32.gmra.mrb[0].mxu0 %v3344
    %v5807 = vpop.f32.mrb[0].mxu0
    %v5808 = vadd.f32 %v5739, %v5807
    %v5809 = vpop.f32.mrb[0].mxu0
    %5810 = vmatprep.mubr.f32.mxu0 0.0
    %5811 = vmatmul.mubr.f32.gmra.mrb[0].mxu0 %v3347
    %v5812 = vpop.f32.mrb[0].mxu0
    %v5813 = vadd.f32 %v5739, %v5812
    %v5814 = vpop.f32.mrb[0].mxu0
    %5815 = vdwg.mxu0
    %s5816 = scalar_lea.vmem %s8, 56
    %v5817 = vld [vmem:[%s5816] sm:$0xff]
    %v5819 = vsel %vm335, %v5632, 0
    %v5822 = vsel %vm335, %v5720, 0
    %5824 = vmatprep.subr.mxu0 0.0
    %5825 = vmatpush1.xpose.msra.mxu0 %v5822
    %5826 = vmatprep.subr.mxu0 0.0
    %5827 = vmatpush1.xpose.msra.mxu0 0.0
    %5828 = vmatprep.subr.mxu0 0.0
    %5829 = vmatpush1.xpose.msra.mxu0 0.0
    %5830 = vmatprep.subr.mxu0 0.0
    %5831 = vmatpush1.xpose.msra.mxu0 0.0
    %5832 = vmatprep.subr.mxu0 0.0
    %5833 = vmatpush1.xpose.msra.mxu0 0.0
    %5834 = vmatprep.subr.mxu0 0.0
    %5835 = vmatpush1.xpose.msra.mxu0 0.0
    %5836 = vmatprep.subr.mxu0 0.0
    %5837 = vmatpush1.xpose.msra.mxu0 0.0
    %5838 = vmatprep.subr.mxu0 0.0
    %5839 = vmatpush1.xpose.msra.mxu0 0.0
    %5840 = vmatprep.subr.mxu0 0.0
    %5841 = vmatpush1.xpose.msra.mxu0 0.0
    %5842 = vmatprep.subr.mxu0 0.0
    %5843 = vmatpush1.xpose.msra.mxu0 0.0
    %5844 = vmatprep.subr.mxu0 0.0
    %5845 = vmatpush1.xpose.msra.mxu0 0.0
    %5846 = vmatprep.subr.mxu0 0.0
    %5847 = vmatpush1.xpose.msra.mxu0 0.0
    %5848 = vmatprep.subr.mxu0 0.0
    %5849 = vmatpush1.xpose.msra.mxu0 0.0
    %5850 = vmatprep.subr.mxu0 0.0
    %5851 = vmatpush1.xpose.msra.mxu0 0.0
    %5852 = vmatprep.subr.mxu0 0.0
    %5853 = vmatpush1.xpose.msra.mxu0 0.0
    %5854 = vmatprep.subr.mxu0 0.0
    %5855 = vmatpush1.xpose.msra.mxu0 0.0
    %5856 = vmatprep.subr.mxu0 0.0
    %5857 = vmatpush1.xpose.msra.mxu0 0.0
    %5858 = vmatprep.subr.mxu0 0.0
    %5859 = vmatpush1.xpose.msra.mxu0 0.0
    %5860 = vmatprep.subr.mxu0 0.0
    %5861 = vmatpush1.xpose.msra.mxu0 0.0
    %5862 = vmatprep.subr.mxu0 0.0
    %5863 = vmatpush1.xpose.msra.mxu0 0.0
    %5864 = vmatprep.subr.mxu0 0.0
    %5865 = vmatpush1.xpose.msra.mxu0 0.0
    %5866 = vmatprep.subr.mxu0 0.0
    %5867 = vmatpush1.xpose.msra.mxu0 0.0
    %5868 = vmatprep.subr.mxu0 0.0
    %5869 = vmatpush1.xpose.msra.mxu0 0.0
    %5870 = vmatprep.subr.mxu0 0.0
    %5871 = vmatpush1.xpose.msra.mxu0 0.0
    %5872 = vmatprep.subr.mxu0 0.0
    %5873 = vmatpush1.xpose.msra.mxu0 0.0
    %5874 = vmatprep.subr.mxu0 0.0
    %5875 = vmatpush1.xpose.msra.mxu0 0.0
    %5876 = vmatprep.subr.mxu0 0.0
    %5877 = vmatpush1.xpose.msra.mxu0 0.0
    %5878 = vmatprep.subr.mxu0 0.0
    %5879 = vmatpush1.xpose.msra.mxu0 0.0
    %5880 = vmatprep.subr.mxu0 0.0
    %5881 = vmatpush1.xpose.msra.mxu0 0.0
    %5882 = vmatprep.subr.mxu0 0.0
    %5883 = vmatpush1.xpose.msra.mxu0 0.0
    %5884 = vmatprep.subr.mxu0 0.0
    %5885 = vmatpush1.xpose.msra.mxu0 0.0
    %5886 = vmatprep.subr.mxu0 0.0
    %5887 = vmatpush1.xpose.msra.mxu0 0.0
    %5888 = vmatprep.mubr.f32.mxu0 0.0
    %5889 = vmatmul.mubr.f32.gmra.mrb[0].mxu0 %v5819
    %v5890 = vpop.f32.mrb[0].mxu0
    %v5891 = vadd.f32 0.0, %v5890
    %v5892 = vpop.f32.mrb[0].mxu0
    %5893 = vdwg.mxu0
    %v5894 = vsel %vm417, -10000.0, %v5891
    %v5895 = vsel %vm335, %v5894, -inf
    %5896 = vmax.xlane.f32.xlu0 %v5895
    %v5897 = vpop.xlane.xlu0 %5896
    %v5898 = vsub.f32 %v5894, %v5897
    %v5899 = vmul.f32 %v5898, 1.442695
    %v5900 = vpow.pop %v5899
    %v5901 = vsel %vm335, %v5900, 0.0
    %5902 = vadd.xlane.f32.xlu0 %v5901
    %v5903 = vpop.xlane.xlu0 %5902
    %v5904 = vrcp.pop %v5903
    %v5905 = vmul.f32 %v5900, %v5904
    %s5906 = scalar_lea.vmem [#allocation4], 88
    %5907 = vst.msk [vmem:[%s5906] sm:$0xff] %vm335, %v5905
    %v5909 = vsel %vm335, %v5905, 0
    %5911 = vmatprep.subr.mxu0 0.0
    %5912 = vmatpush1.msra.mxu0 %v5808
    %5913 = vmatprep.subr.mxu0 0.0
    %5914 = vmatpush1.msra.mxu0 0.0
    %5915 = vmatprep.subr.mxu0 0.0
    %5916 = vmatpush1.msra.mxu0 0.0
    %5917 = vmatprep.subr.mxu0 0.0
    %5918 = vmatpush1.msra.mxu0 0.0
    %5919 = vmatprep.subr.mxu0 0.0
    %5920 = vmatpush1.msra.mxu0 0.0
    %5921 = vmatprep.subr.mxu0 0.0
    %5922 = vmatpush1.msra.mxu0 0.0
    %5923 = vmatprep.subr.mxu0 0.0
    %5924 = vmatpush1.msra.mxu0 0.0
    %5925 = vmatprep.subr.mxu0 0.0
    %5926 = vmatpush1.msra.mxu0 0.0
    %5927 = vmatprep.subr.mxu0 0.0
    %5928 = vmatpush1.msra.mxu0 0.0
    %5929 = vmatprep.subr.mxu0 0.0
    %5930 = vmatpush1.msra.mxu0 0.0
    %5931 = vmatprep.subr.mxu0 0.0
    %5932 = vmatpush1.msra.mxu0 0.0
    %5933 = vmatprep.subr.mxu0 0.0
    %5934 = vmatpush1.msra.mxu0 0.0
    %5935 = vmatprep.subr.mxu0 0.0
    %5936 = vmatpush1.msra.mxu0 0.0
    %5937 = vmatprep.subr.mxu0 0.0
    %5938 = vmatpush1.msra.mxu0 0.0
    %5939 = vmatprep.subr.mxu0 0.0
    %5940 = vmatpush1.msra.mxu0 0.0
    %5941 = vmatprep.subr.mxu0 0.0
    %5942 = vmatpush1.msra.mxu0 0.0
    %5943 = vmatprep.subr.mxu0 0.0
    %5944 = vmatpush1.msra.mxu0 0.0
    %5945 = vmatprep.subr.mxu0 0.0
    %5946 = vmatpush1.msra.mxu0 0.0
    %5947 = vmatprep.subr.mxu0 0.0
    %5948 = vmatpush1.msra.mxu0 0.0
    %5949 = vmatprep.subr.mxu0 0.0
    %5950 = vmatpush1.msra.mxu0 0.0
    %5951 = vmatprep.subr.mxu0 0.0
    %5952 = vmatpush1.msra.mxu0 0.0
    %5953 = vmatprep.subr.mxu0 0.0
    %5954 = vmatpush1.msra.mxu0 0.0
    %5955 = vmatprep.subr.mxu0 0.0
    %5956 = vmatpush1.msra.mxu0 0.0
    %5957 = vmatprep.subr.mxu0 0.0
    %5958 = vmatpush1.msra.mxu0 0.0
    %5959 = vmatprep.subr.mxu0 0.0
    %5960 = vmatpush1.msra.mxu0 0.0
    %5961 = vmatprep.subr.mxu0 0.0
    %5962 = vmatpush1.msra.mxu0 0.0
    %5963 = vmatprep.subr.mxu0 0.0
    %5964 = vmatpush1.msra.mxu0 0.0
    %5965 = vmatprep.subr.mxu0 0.0
    %5966 = vmatpush1.msra.mxu0 0.0
    %5967 = vmatprep.subr.mxu0 0.0
    %5968 = vmatpush1.msra.mxu0 0.0
    %5969 = vmatprep.subr.mxu0 0.0
    %5970 = vmatpush1.msra.mxu0 0.0
    %5971 = vmatprep.subr.mxu0 0.0
    %5972 = vmatpush1.msra.mxu0 0.0
    %5973 = vmatprep.subr.mxu0 0.0
    %5974 = vmatpush1.msra.mxu0 0.0
    %5975 = vmatprep.mubr.f32.mxu0 0.0
    %5976 = vmatmul.mubr.f32.gmra.mrb[0].mxu0 %v5909
    %v5977 = vpop.f32.mrb[0].mxu0
    %v5978 = vadd.f32 0.0, %v5977
    %v5979 = vpop.f32.mrb[0].mxu0
    %5980 = vdwg.mxu0
    %v5982 = vsel %vm335, %v5978, 0
    %5984 = vmatprep.subr.mxu0 0.0
    %5985 = vmatpush1.msra.mxu0 %v5817
    %5986 = vmatprep.subr.mxu0 0.0
    %5987 = vmatpush1.msra.mxu0 0.0
    %5988 = vmatprep.subr.mxu0 0.0
    %5989 = vmatpush1.msra.mxu0 0.0
    %5990 = vmatprep.subr.mxu0 0.0
    %5991 = vmatpush1.msra.mxu0 0.0
    %5992 = vmatprep.subr.mxu0 0.0
    %5993 = vmatpush1.msra.mxu0 0.0
    %5994 = vmatprep.subr.mxu0 0.0
    %5995 = vmatpush1.msra.mxu0 0.0
    %5996 = vmatprep.subr.mxu0 0.0
    %5997 = vmatpush1.msra.mxu0 0.0
    %5998 = vmatprep.subr.mxu0 0.0
    %5999 = vmatpush1.msra.mxu0 0.0
    %6000 = vmatprep.subr.mxu0 0.0
    %6001 = vmatpush1.msra.mxu0 0.0
    %6002 = vmatprep.subr.mxu0 0.0
    %6003 = vmatpush1.msra.mxu0 0.0
    %6004 = vmatprep.subr.mxu0 0.0
    %6005 = vmatpush1.msra.mxu0 0.0
    %6006 = vmatprep.subr.mxu0 0.0
    %6007 = vmatpush1.msra.mxu0 0.0
    %6008 = vmatprep.subr.mxu0 0.0
    %6009 = vmatpush1.msra.mxu0 0.0
    %6010 = vmatprep.subr.mxu0 0.0
    %6011 = vmatpush1.msra.mxu0 0.0
    %6012 = vmatprep.subr.mxu0 0.0
    %6013 = vmatpush1.msra.mxu0 0.0
    %6014 = vmatprep.subr.mxu0 0.0
    %6015 = vmatpush1.msra.mxu0 0.0
    %6016 = vmatprep.subr.mxu0 0.0
    %6017 = vmatpush1.msra.mxu0 0.0
    %6018 = vmatprep.subr.mxu0 0.0
    %6019 = vmatpush1.msra.mxu0 0.0
    %6020 = vmatprep.subr.mxu0 0.0
    %6021 = vmatpush1.msra.mxu0 0.0
    %6022 = vmatprep.subr.mxu0 0.0
    %6023 = vmatpush1.msra.mxu0 0.0
    %6024 = vmatprep.subr.mxu0 0.0
    %6025 = vmatpush1.msra.mxu0 0.0
    %6026 = vmatprep.subr.mxu0 0.0
    %6027 = vmatpush1.msra.mxu0 0.0
    %6028 = vmatprep.subr.mxu0 0.0
    %6029 = vmatpush1.msra.mxu0 0.0
    %6030 = vmatprep.subr.mxu0 0.0
    %6031 = vmatpush1.msra.mxu0 0.0
    %6032 = vmatprep.subr.mxu0 0.0
    %6033 = vmatpush1.msra.mxu0 0.0
    %6034 = vmatprep.subr.mxu0 0.0
    %6035 = vmatpush1.msra.mxu0 0.0
    %6036 = vmatprep.subr.mxu0 0.0
    %6037 = vmatpush1.msra.mxu0 0.0
    %6038 = vmatprep.subr.mxu0 0.0
    %6039 = vmatpush1.msra.mxu0 0.0
    %6040 = vmatprep.subr.mxu0 0.0
    %6041 = vmatpush1.msra.mxu0 0.0
    %6042 = vmatprep.subr.mxu0 0.0
    %6043 = vmatpush1.msra.mxu0 0.0
    %6044 = vmatprep.subr.mxu0 0.0
    %6045 = vmatpush1.msra.mxu0 0.0
    %6046 = vmatprep.subr.mxu0 0.0
    %6047 = vmatpush1.msra.mxu0 0.0
    %6048 = vmatprep.mubr.f32.mxu0 0.0
    %6049 = vmatmul.mubr.f32.gmra.mrb[0].mxu0 %v5982
    %v6050 = vpop.f32.mrb[0].mxu0
    %v6051 = vadd.f32 0.0, %v6050
    %v6052 = vpop.f32.mrb[0].mxu0
    %6053 = vdwg.mxu0
    %v6054 = vadd.f32 %v5314, %v6051
    %v6056 = vsel %vm335, %v5637, 0
    %v6059 = vsel %vm335, %v5725, 0
    %6061 = vmatprep.subr.mxu0 0.0
    %6062 = vmatpush1.xpose.msra.mxu0 %v6059
    %6063 = vmatprep.subr.mxu0 0.0
    %6064 = vmatpush1.xpose.msra.mxu0 0.0
    %6065 = vmatprep.subr.mxu0 0.0
    %6066 = vmatpush1.xpose.msra.mxu0 0.0
    %6067 = vmatprep.subr.mxu0 0.0
    %6068 = vmatpush1.xpose.msra.mxu0 0.0
    %6069 = vmatprep.subr.mxu0 0.0
    %6070 = vmatpush1.xpose.msra.mxu0 0.0
    %6071 = vmatprep.subr.mxu0 0.0
    %6072 = vmatpush1.xpose.msra.mxu0 0.0
    %6073 = vmatprep.subr.mxu0 0.0
    %6074 = vmatpush1.xpose.msra.mxu0 0.0
    %6075 = vmatprep.subr.mxu0 0.0
    %6076 = vmatpush1.xpose.msra.mxu0 0.0
    %6077 = vmatprep.subr.mxu0 0.0
    %6078 = vmatpush1.xpose.msra.mxu0 0.0
    %6079 = vmatprep.subr.mxu0 0.0
    %6080 = vmatpush1.xpose.msra.mxu0 0.0
    %6081 = vmatprep.subr.mxu0 0.0
    %6082 = vmatpush1.xpose.msra.mxu0 0.0
    %6083 = vmatprep.subr.mxu0 0.0
    %6084 = vmatpush1.xpose.msra.mxu0 0.0
    %6085 = vmatprep.subr.mxu0 0.0
    %6086 = vmatpush1.xpose.msra.mxu0 0.0
    %6087 = vmatprep.subr.mxu0 0.0
    %6088 = vmatpush1.xpose.msra.mxu0 0.0
    %6089 = vmatprep.subr.mxu0 0.0
    %6090 = vmatpush1.xpose.msra.mxu0 0.0
    %6091 = vmatprep.subr.mxu0 0.0
    %6092 = vmatpush1.xpose.msra.mxu0 0.0
    %6093 = vmatprep.subr.mxu0 0.0
    %6094 = vmatpush1.xpose.msra.mxu0 0.0
    %6095 = vmatprep.subr.mxu0 0.0
    %6096 = vmatpush1.xpose.msra.mxu0 0.0
    %6097 = vmatprep.subr.mxu0 0.0
    %6098 = vmatpush1.xpose.msra.mxu0 0.0
    %6099 = vmatprep.subr.mxu0 0.0
    %6100 = vmatpush1.xpose.msra.mxu0 0.0
    %6101 = vmatprep.subr.mxu0 0.0
    %6102 = vmatpush1.xpose.msra.mxu0 0.0
    %6103 = vmatprep.subr.mxu0 0.0
    %6104 = vmatpush1.xpose.msra.mxu0 0.0
    %6105 = vmatprep.subr.mxu0 0.0
    %6106 = vmatpush1.xpose.msra.mxu0 0.0
    %6107 = vmatprep.subr.mxu0 0.0
    %6108 = vmatpush1.xpose.msra.mxu0 0.0
    %6109 = vmatprep.subr.mxu0 0.0
    %6110 = vmatpush1.xpose.msra.mxu0 0.0
    %6111 = vmatprep.subr.mxu0 0.0
    %6112 = vmatpush1.xpose.msra.mxu0 0.0
    %6113 = vmatprep.subr.mxu0 0.0
    %6114 = vmatpush1.xpose.msra.mxu0 0.0
    %6115 = vmatprep.subr.mxu0 0.0
    %6116 = vmatpush1.xpose.msra.mxu0 0.0
    %6117 = vmatprep.subr.mxu0 0.0
    %6118 = vmatpush1.xpose.msra.mxu0 0.0
    %6119 = vmatprep.subr.mxu0 0.0
    %6120 = vmatpush1.xpose.msra.mxu0 0.0
    %6121 = vmatprep.subr.mxu0 0.0
    %6122 = vmatpush1.xpose.msra.mxu0 0.0
    %6123 = vmatprep.subr.mxu0 0.0
    %6124 = vmatpush1.xpose.msra.mxu0 0.0
    %6125 = vmatprep.mubr.f32.mxu0 0.0
    %6126 = vmatmul.mubr.f32.gmra.mrb[0].mxu0 %v6056
    %v6127 = vpop.f32.mrb[0].mxu0
    %v6128 = vadd.f32 0.0, %v6127
    %v6129 = vpop.f32.mrb[0].mxu0
    %6130 = vdwg.mxu0
    %v6131 = vsel %vm585, -10000.0, %v6128
    %v6132 = vsel %vm335, %v6131, -inf
    %6133 = vmax.xlane.f32.xlu0 %v6132
    %v6134 = vpop.xlane.xlu0 %6133
    %v6135 = vsub.f32 %v6131, %v6134
    %v6136 = vmul.f32 %v6135, 1.442695
    %v6137 = vpow.pop %v6136
    %v6138 = vsel %vm335, %v6137, 0.0
    %6139 = vadd.xlane.f32.xlu0 %v6138
    %v6140 = vpop.xlane.xlu0 %6139
    %v6141 = vrcp.pop %v6140
    %v6142 = vmul.f32 %v6137, %v6141
    %s6143 = scalar_lea.vmem [#allocation4], 120
    %6144 = vst.msk [vmem:[%s6143] sm:$0xff] %vm335, %v6142
    %v6146 = vsel %vm335, %v6142, 0
    %6148 = vmatprep.subr.mxu0 0.0
    %6149 = vmatpush1.msra.mxu0 %v5813
    %6150 = vmatprep.subr.mxu0 0.0
    %6151 = vmatpush1.msra.mxu0 0.0
    %6152 = vmatprep.subr.mxu0 0.0
    %6153 = vmatpush1.msra.mxu0 0.0
    %6154 = vmatprep.subr.mxu0 0.0
    %6155 = vmatpush1.msra.mxu0 0.0
    %6156 = vmatprep.subr.mxu0 0.0
    %6157 = vmatpush1.msra.mxu0 0.0
    %6158 = vmatprep.subr.mxu0 0.0
    %6159 = vmatpush1.msra.mxu0 0.0
    %6160 = vmatprep.subr.mxu0 0.0
    %6161 = vmatpush1.msra.mxu0 0.0
    %6162 = vmatprep.subr.mxu0 0.0
    %6163 = vmatpush1.msra.mxu0 0.0
    %6164 = vmatprep.subr.mxu0 0.0
    %6165 = vmatpush1.msra.mxu0 0.0
    %6166 = vmatprep.subr.mxu0 0.0
    %6167 = vmatpush1.msra.mxu0 0.0
    %6168 = vmatprep.subr.mxu0 0.0
    %6169 = vmatpush1.msra.mxu0 0.0
    %6170 = vmatprep.subr.mxu0 0.0
    %6171 = vmatpush1.msra.mxu0 0.0
    %6172 = vmatprep.subr.mxu0 0.0
    %6173 = vmatpush1.msra.mxu0 0.0
    %6174 = vmatprep.subr.mxu0 0.0
    %6175 = vmatpush1.msra.mxu0 0.0
    %6176 = vmatprep.subr.mxu0 0.0
    %6177 = vmatpush1.msra.mxu0 0.0
    %6178 = vmatprep.subr.mxu0 0.0
    %6179 = vmatpush1.msra.mxu0 0.0
    %6180 = vmatprep.subr.mxu0 0.0
    %6181 = vmatpush1.msra.mxu0 0.0
    %6182 = vmatprep.subr.mxu0 0.0
    %6183 = vmatpush1.msra.mxu0 0.0
    %6184 = vmatprep.subr.mxu0 0.0
    %6185 = vmatpush1.msra.mxu0 0.0
    %6186 = vmatprep.subr.mxu0 0.0
    %6187 = vmatpush1.msra.mxu0 0.0
    %6188 = vmatprep.subr.mxu0 0.0
    %6189 = vmatpush1.msra.mxu0 0.0
    %6190 = vmatprep.subr.mxu0 0.0
    %6191 = vmatpush1.msra.mxu0 0.0
    %6192 = vmatprep.subr.mxu0 0.0
    %6193 = vmatpush1.msra.mxu0 0.0
    %6194 = vmatprep.subr.mxu0 0.0
    %6195 = vmatpush1.msra.mxu0 0.0
    %6196 = vmatprep.subr.mxu0 0.0
    %6197 = vmatpush1.msra.mxu0 0.0
    %6198 = vmatprep.subr.mxu0 0.0
    %6199 = vmatpush1.msra.mxu0 0.0
    %6200 = vmatprep.subr.mxu0 0.0
    %6201 = vmatpush1.msra.mxu0 0.0
    %6202 = vmatprep.subr.mxu0 0.0
    %6203 = vmatpush1.msra.mxu0 0.0
    %6204 = vmatprep.subr.mxu0 0.0
    %6205 = vmatpush1.msra.mxu0 0.0
    %6206 = vmatprep.subr.mxu0 0.0
    %6207 = vmatpush1.msra.mxu0 0.0
    %6208 = vmatprep.subr.mxu0 0.0
    %6209 = vmatpush1.msra.mxu0 0.0
    %6210 = vmatprep.subr.mxu0 0.0
    %6211 = vmatpush1.msra.mxu0 0.0
    %6212 = vmatprep.mubr.f32.mxu0 0.0
    %6213 = vmatmul.mubr.f32.gmra.mrb[0].mxu0 %v6146
    %v6214 = vpop.f32.mrb[0].mxu0
    %v6215 = vadd.f32 0.0, %v6214
    %v6216 = vpop.f32.mrb[0].mxu0
    %6217 = vdwg.mxu0
    %v6219 = vsel %vm335, %v6215, 0
    %6221 = vmatprep.subr.mxu0 0.0
    %6222 = vmatpush1.msra.mxu0 %v5817
    %6223 = vmatprep.subr.mxu0 0.0
    %6224 = vmatpush1.msra.mxu0 0.0
    %6225 = vmatprep.subr.mxu0 0.0
    %6226 = vmatpush1.msra.mxu0 0.0
    %6227 = vmatprep.subr.mxu0 0.0
    %6228 = vmatpush1.msra.mxu0 0.0
    %6229 = vmatprep.subr.mxu0 0.0
    %6230 = vmatpush1.msra.mxu0 0.0
    %6231 = vmatprep.subr.mxu0 0.0
    %6232 = vmatpush1.msra.mxu0 0.0
    %6233 = vmatprep.subr.mxu0 0.0
    %6234 = vmatpush1.msra.mxu0 0.0
    %6235 = vmatprep.subr.mxu0 0.0
    %6236 = vmatpush1.msra.mxu0 0.0
    %6237 = vmatprep.subr.mxu0 0.0
    %6238 = vmatpush1.msra.mxu0 0.0
    %6239 = vmatprep.subr.mxu0 0.0
    %6240 = vmatpush1.msra.mxu0 0.0
    %6241 = vmatprep.subr.mxu0 0.0
    %6242 = vmatpush1.msra.mxu0 0.0
    %6243 = vmatprep.subr.mxu0 0.0
    %6244 = vmatpush1.msra.mxu0 0.0
    %6245 = vmatprep.subr.mxu0 0.0
    %6246 = vmatpush1.msra.mxu0 0.0
    %6247 = vmatprep.subr.mxu0 0.0
    %6248 = vmatpush1.msra.mxu0 0.0
    %6249 = vmatprep.subr.mxu0 0.0
    %6250 = vmatpush1.msra.mxu0 0.0
    %6251 = vmatprep.subr.mxu0 0.0
    %6252 = vmatpush1.msra.mxu0 0.0
    %6253 = vmatprep.subr.mxu0 0.0
    %6254 = vmatpush1.msra.mxu0 0.0
    %6255 = vmatprep.subr.mxu0 0.0
    %6256 = vmatpush1.msra.mxu0 0.0
    %6257 = vmatprep.subr.mxu0 0.0
    %6258 = vmatpush1.msra.mxu0 0.0
    %6259 = vmatprep.subr.mxu0 0.0
    %6260 = vmatpush1.msra.mxu0 0.0
    %6261 = vmatprep.subr.mxu0 0.0
    %6262 = vmatpush1.msra.mxu0 0.0
    %6263 = vmatprep.subr.mxu0 0.0
    %6264 = vmatpush1.msra.mxu0 0.0
    %6265 = vmatprep.subr.mxu0 0.0
    %6266 = vmatpush1.msra.mxu0 0.0
    %6267 = vmatprep.subr.mxu0 0.0
    %6268 = vmatpush1.msra.mxu0 0.0
    %6269 = vmatprep.subr.mxu0 0.0
    %6270 = vmatpush1.msra.mxu0 0.0
    %6271 = vmatprep.subr.mxu0 0.0
    %6272 = vmatpush1.msra.mxu0 0.0
    %6273 = vmatprep.subr.mxu0 0.0
    %6274 = vmatpush1.msra.mxu0 0.0
    %6275 = vmatprep.subr.mxu0 0.0
    %6276 = vmatpush1.msra.mxu0 0.0
    %6277 = vmatprep.subr.mxu0 0.0
    %6278 = vmatpush1.msra.mxu0 0.0
    %6279 = vmatprep.subr.mxu0 0.0
    %6280 = vmatpush1.msra.mxu0 0.0
    %6281 = vmatprep.subr.mxu0 0.0
    %6282 = vmatpush1.msra.mxu0 0.0
    %6283 = vmatprep.subr.mxu0 0.0
    %6284 = vmatpush1.msra.mxu0 0.0
    %6285 = vmatprep.mubr.f32.mxu0 0.0
    %6286 = vmatmul.mubr.f32.gmra.mrb[0].mxu0 %v6219
    %v6287 = vpop.f32.mrb[0].mxu0
    %v6288 = vadd.f32 0.0, %v6287
    %v6289 = vpop.f32.mrb[0].mxu0
    %6290 = vdwg.mxu0
    %v6291 = vadd.f32 %v5551, %v6288
    %s6292 = scalar_lea.vmem %s9, 1
    %v6293 = vld [vmem:[%s6292] sm:$0x1]
    %v6295 = vlaneseq
    %v6296 = vshrl.u32 %v6295, 7
    %v6297 = vsub.s32 0, %v6296
    %v6298 = vrot.slane %v6293, %v6297
    %v6300 = vadd.f32 %v6054, %v6298
    %v6301 = vadd.f32 %v6291, %v6298
    %v6302 = vadd.f32 %v3328, %v6300
    %v6303 = vadd.f32 %v3329, %v6301
    %s6304 = scalar_lea.vmem %s10, 1
    %v6305 = vld [vmem:[%s6304] sm:$0x1]
    %s6306 = scalar_lea.vmem %s11, 1
    %v6307 = vld [vmem:[%s6306] sm:$0x1]
    %v6308 = vsel %vm80, %v6302, 0.0
    %6309 = vadd.xlane.f32.xlu0 %v6308
    %v6310 = vpop.xlane.xlu0 %6309
    %v6311 = vsel %vm80, %v6303, 0.0
    %6312 = vadd.xlane.f32.xlu0 %v6311
    %v6313 = vpop.xlane.xlu0 %6312
    %v6314 = vmul.f32 %v6310, %v3056
    %v6315 = vmul.f32 %v6313, %v3056
    %v6316 = vsub.f32 %v6302, %v6314
    %v6317 = vsub.f32 %v6303, %v6315
    %v6318 = vmul.f32 %v6316, %v6316
    %v6319 = vmul.f32 %v6317, %v6317
    %v6320 = vsel %vm80, %v6318, 0.0
    %6321 = vadd.xlane.f32.xlu0 %v6320
    %v6322 = vpop.xlane.xlu0 %6321
    %v6323 = vsel %vm80, %v6319, 0.0
    %6324 = vadd.xlane.f32.xlu0 %v6323
    %v6325 = vpop.xlane.xlu0 %6324
    %v6326 = vmul.f32 %v6322, %v3056
    %v6327 = vmul.f32 %v6325, %v3056
    %v6328 = vadd.f32 %v6326, 1e-05
    %v6329 = vadd.f32 %v6327, 1e-05
    %v6330 = vrsqrt.pop %v6328
    %v6331 = vrsqrt.pop %v6329
    %v6332 = vmul.f32 %v6316, %v6330
    %v6333 = vmul.f32 %v6317, %v6331
    %v6335 = vlaneseq
    %v6336 = vshrl.u32 %v6335, 7
    %v6337 = vsub.s32 0, %v6336
    %v6338 = vrot.slane %v6305, %v6337
    %v6340 = vmul.f32 %v6332, %v6338
    %v6341 = vmul.f32 %v6333, %v6338
    %v6343 = vlaneseq
    %v6344 = vshrl.u32 %v6343, 7
    %v6345 = vsub.s32 0, %v6344
    %v6346 = vrot.slane %v6307, %v6345
    %v6348 = vadd.f32 %v6340, %v6346
    %v6349 = vadd.f32 %v6341, %v6346
    %s6350 = scalar_lea.vmem %s12, 32
    %v6351 = vld [vmem:[%s6350] sm:$0xff]
    %v6352 = vld [vmem:[%s6350 + $0x8] sm:$0xff]
    %v6353 = vld [vmem:[%s6350 + $0x10] sm:$0xff]
    %v6354 = vld [vmem:[%s6350 + $0x18] sm:$0xff]
    %s6355 = scalar_lea.vmem %s13, 1
    %v6356 = vld [vmem:[%s6355] sm:$0x1]
    %v6358 = vlaneseq
    %v6359 = vshrl.u32 %v6358, 7
    %v6360 = vsub.s32 0, %v6359
    %v6361 = vrot.slane %v6356, %v6360
    %v6364 = vsel %vm80, %v6348, 0
    %v6367 = vsel %vm80, %v6349, 0
    %6369 = vmatprep.subr.mxu0 0.0
    %6370 = vmatpush1.msra.mxu0 %v6351
    %6371 = vmatprep.subr.mxu0 0.0
    %6372 = vmatpush1.msra.mxu0 %v6352
    %6373 = vmatprep.subr.mxu0 0.0
    %6374 = vmatpush1.msra.mxu0 %v6353
    %6375 = vmatprep.subr.mxu0 0.0
    %6376 = vmatpush1.msra.mxu0 %v6354
    %6377 = vmatprep.subr.mxu0 0.0
    %6378 = vmatpush1.msra.mxu0 0.0
    %6379 = vmatprep.subr.mxu0 0.0
    %6380 = vmatpush1.msra.mxu0 0.0
    %6381 = vmatprep.subr.mxu0 0.0
    %6382 = vmatpush1.msra.mxu0 0.0
    %6383 = vmatprep.subr.mxu0 0.0
    %6384 = vmatpush1.msra.mxu0 0.0
    %6385 = vmatprep.subr.mxu0 0.0
    %6386 = vmatpush1.msra.mxu0 0.0
    %6387 = vmatprep.subr.mxu0 0.0
    %6388 = vmatpush1.msra.mxu0 0.0
    %6389 = vmatprep.subr.mxu0 0.0
    %6390 = vmatpush1.msra.mxu0 0.0
    %6391 = vmatprep.subr.mxu0 0.0
    %6392 = vmatpush1.msra.mxu0 0.0
    %6393 = vmatprep.subr.mxu0 0.0
    %6394 = vmatpush1.msra.mxu0 0.0
    %6395 = vmatprep.subr.mxu0 0.0
    %6396 = vmatpush1.msra.mxu0 0.0
    %6397 = vmatprep.subr.mxu0 0.0
    %6398 = vmatpush1.msra.mxu0 0.0
    %6399 = vmatprep.subr.mxu0 0.0
    %6400 = vmatpush1.msra.mxu0 0.0
    %6401 = vmatprep.subr.mxu0 0.0
    %6402 = vmatpush1.msra.mxu0 0.0
    %6403 = vmatprep.subr.mxu0 0.0
    %6404 = vmatpush1.msra.mxu0 0.0
    %6405 = vmatprep.subr.mxu0 0.0
    %6406 = vmatpush1.msra.mxu0 0.0
    %6407 = vmatprep.subr.mxu0 0.0
    %6408 = vmatpush1.msra.mxu0 0.0
    %6409 = vmatprep.subr.mxu0 0.0
    %6410 = vmatpush1.msra.mxu0 0.0
    %6411 = vmatprep.subr.mxu0 0.0
    %6412 = vmatpush1.msra.mxu0 0.0
    %6413 = vmatprep.subr.mxu0 0.0
    %6414 = vmatpush1.msra.mxu0 0.0
    %6415 = vmatprep.subr.mxu0 0.0
    %6416 = vmatpush1.msra.mxu0 0.0
    %6417 = vmatprep.subr.mxu0 0.0
    %6418 = vmatpush1.msra.mxu0 0.0
    %6419 = vmatprep.subr.mxu0 0.0
    %6420 = vmatpush1.msra.mxu0 0.0
    %6421 = vmatprep.subr.mxu0 0.0
    %6422 = vmatpush1.msra.mxu0 0.0
    %6423 = vmatprep.subr.mxu0 0.0
    %6424 = vmatpush1.msra.mxu0 0.0
    %6425 = vmatprep.subr.mxu0 0.0
    %6426 = vmatpush1.msra.mxu0 0.0
    %6427 = vmatprep.subr.mxu0 0.0
    %6428 = vmatpush1.msra.mxu0 0.0
    %6429 = vmatprep.subr.mxu0 0.0
    %6430 = vmatpush1.msra.mxu0 0.0
    %6431 = vmatprep.subr.mxu0 0.0
    %6432 = vmatpush1.msra.mxu0 0.0
    %6433 = vmatprep.mubr.f32.mxu0 0.0
    %6434 = vmatmul.mubr.f32.gmra.mrb[0].mxu0 %v6364
    %v6435 = vpop.f32.mrb[0].mxu0
    %v6436 = vadd.f32 %v6361, %v6435
    %v6437 = vpop.f32.mrb[0].mxu0
    %6438 = vmatprep.mubr.f32.mxu0 0.0
    %6439 = vmatmul.mubr.f32.gmra.mrb[0].mxu0 %v6367
    %v6440 = vpop.f32.mrb[0].mxu0
    %v6441 = vadd.f32 %v6361, %v6440
    %v6442 = vpop.f32.mrb[0].mxu0
    %6443 = vdwg.mxu0
    %v6444 = vmax.f32 %v6436, 0.0
    %v6445 = vmax.f32 %v6441, 0.0
    %s6446 = scalar_lea.vmem %s14, 64
    %v6447 = vld [vmem:[%s6446] sm:$0xff]
    %v6448 = vld [vmem:[%s6446 + $0x8] sm:$0xff]
    %v6449 = vld [vmem:[%s6446 + $0x10] sm:$0xff]
    %v6450 = vld [vmem:[%s6446 + $0x18] sm:$0xff]
    %v6451 = vld [vmem:[%s6446 + $0x20] sm:$0xff]
    %v6452 = vld [vmem:[%s6446 + $0x28] sm:$0xff]
    %v6453 = vld [vmem:[%s6446 + $0x30] sm:$0xff]
    %v6454 = vld [vmem:[%s6446 + $0x38] sm:$0xff]
    %s6455 = scalar_lea.vmem %s15, 1
    %v6456 = vld [vmem:[%s6455] sm:$0x1]
    %v6458 = vlaneseq
    %v6459 = vshrl.u32 %v6458, 7
    %v6460 = vsub.s32 0, %v6459
    %v6461 = vrot.slane %v6456, %v6460
    %v6464 = vsel %vm3202, %v6444, 0
    %v6467 = vsel %vm3202, %v6445, 0
    %6469 = vmatprep.subr.mxu0 0.0
    %6470 = vmatpush1.msra.mxu0 %v6447
    %6471 = vmatprep.subr.mxu0 0.0
    %6472 = vmatpush1.msra.mxu0 %v6448
    %6473 = vmatprep.subr.mxu0 0.0
    %6474 = vmatpush1.msra.mxu0 %v6449
    %6475 = vmatprep.subr.mxu0 0.0
    %6476 = vmatpush1.msra.mxu0 %v6450
    %6477 = vmatprep.subr.mxu0 0.0
    %6478 = vmatpush1.msra.mxu0 %v6451
    %6479 = vmatprep.subr.mxu0 0.0
    %6480 = vmatpush1.msra.mxu0 %v6452
    %6481 = vmatprep.subr.mxu0 0.0
    %6482 = vmatpush1.msra.mxu0 %v6453
    %6483 = vmatprep.subr.mxu0 0.0
    %6484 = vmatpush1.msra.mxu0 %v6454
    %6485 = vmatprep.subr.mxu0 0.0
    %6486 = vmatpush1.msra.mxu0 0.0
    %6487 = vmatprep.subr.mxu0 0.0
    %6488 = vmatpush1.msra.mxu0 0.0
    %6489 = vmatprep.subr.mxu0 0.0
    %6490 = vmatpush1.msra.mxu0 0.0
    %6491 = vmatprep.subr.mxu0 0.0
    %6492 = vmatpush1.msra.mxu0 0.0
    %6493 = vmatprep.subr.mxu0 0.0
    %6494 = vmatpush1.msra.mxu0 0.0
    %6495 = vmatprep.subr.mxu0 0.0
    %6496 = vmatpush1.msra.mxu0 0.0
    %6497 = vmatprep.subr.mxu0 0.0
    %6498 = vmatpush1.msra.mxu0 0.0
    %6499 = vmatprep.subr.mxu0 0.0
    %6500 = vmatpush1.msra.mxu0 0.0
    %6501 = vmatprep.subr.mxu0 0.0
    %6502 = vmatpush1.msra.mxu0 0.0
    %6503 = vmatprep.subr.mxu0 0.0
    %6504 = vmatpush1.msra.mxu0 0.0
    %6505 = vmatprep.subr.mxu0 0.0
    %6506 = vmatpush1.msra.mxu0 0.0
    %6507 = vmatprep.subr.mxu0 0.0
    %6508 = vmatpush1.msra.mxu0 0.0
    %6509 = vmatprep.subr.mxu0 0.0
    %6510 = vmatpush1.msra.mxu0 0.0
    %6511 = vmatprep.subr.mxu0 0.0
    %6512 = vmatpush1.msra.mxu0 0.0
    %6513 = vmatprep.subr.mxu0 0.0
    %6514 = vmatpush1.msra.mxu0 0.0
    %6515 = vmatprep.subr.mxu0 0.0
    %6516 = vmatpush1.msra.mxu0 0.0
    %6517 = vmatprep.subr.mxu0 0.0
    %6518 = vmatpush1.msra.mxu0 0.0
    %6519 = vmatprep.subr.mxu0 0.0
    %6520 = vmatpush1.msra.mxu0 0.0
    %6521 = vmatprep.subr.mxu0 0.0
    %6522 = vmatpush1.msra.mxu0 0.0
    %6523 = vmatprep.subr.mxu0 0.0
    %6524 = vmatpush1.msra.mxu0 0.0
    %6525 = vmatprep.subr.mxu0 0.0
    %6526 = vmatpush1.msra.mxu0 0.0
    %6527 = vmatprep.subr.mxu0 0.0
    %6528 = vmatpush1.msra.mxu0 0.0
    %6529 = vmatprep.subr.mxu0 0.0
    %6530 = vmatpush1.msra.mxu0 0.0
    %6531 = vmatprep.subr.mxu0 0.0
    %6532 = vmatpush1.msra.mxu0 0.0
    %6533 = vmatprep.mubr.f32.mxu0 0.0
    %6534 = vmatmul.mubr.f32.gmra.mrb[0].mxu0 %v6464
    %v6535 = vpop.f32.mrb[0].mxu0
    %v6536 = vadd.f32 %v6461, %v6535
    %v6537 = vpop.f32.mrb[0].mxu0
    %6538 = vmatprep.mubr.f32.mxu0 0.0
    %6539 = vmatmul.mubr.f32.gmra.mrb[0].mxu0 %v6467
    %v6540 = vpop.f32.mrb[0].mxu0
    %v6541 = vadd.f32 %v6461, %v6540
    %v6542 = vpop.f32.mrb[0].mxu0
    %6543 = vdwg.mxu0
    %v6544 = vadd.f32 %v6348, %v6536
    %v6545 = vadd.f32 %v6349, %v6541
    %s6546 = scalar_lea.vmem %s16, 1
    %v6547 = vld [vmem:[%s6546] sm:$0x1]
    %s6548 = scalar_lea.vmem %s17, 1
    %v6549 = vld [vmem:[%s6548] sm:$0x1]
    %v6550 = vsel %vm80, %v6544, 0.0
    %6551 = vadd.xlane.f32.xlu0 %v6550
    %v6552 = vpop.xlane.xlu0 %6551
    %v6553 = vsel %vm80, %v6545, 0.0
    %6554 = vadd.xlane.f32.xlu0 %v6553
    %v6555 = vpop.xlane.xlu0 %6554
    %v6556 = vmul.f32 %v6552, %v3056
    %v6557 = vmul.f32 %v6555, %v3056
    %v6558 = vsub.f32 %v6544, %v6556
    %v6559 = vsub.f32 %v6545, %v6557
    %v6560 = vmul.f32 %v6558, %v6558
    %v6561 = vmul.f32 %v6559, %v6559
    %v6562 = vsel %vm80, %v6560, 0.0
    %6563 = vadd.xlane.f32.xlu0 %v6562
    %v6564 = vpop.xlane.xlu0 %6563
    %v6565 = vsel %vm80, %v6561, 0.0
    %6566 = vadd.xlane.f32.xlu0 %v6565
    %v6567 = vpop.xlane.xlu0 %6566
    %v6568 = vmul.f32 %v6564, %v3056
    %v6569 = vmul.f32 %v6567, %v3056
    %v6570 = vadd.f32 %v6568, 1e-05
    %v6571 = vadd.f32 %v6569, 1e-05
    %v6572 = vrsqrt.pop %v6570
    %v6573 = vrsqrt.pop %v6571
    %v6574 = vmul.f32 %v6558, %v6572
    %v6575 = vmul.f32 %v6559, %v6573
    %v6577 = vlaneseq
    %v6578 = vshrl.u32 %v6577, 7
    %v6579 = vsub.s32 0, %v6578
    %v6580 = vrot.slane %v6547, %v6579
    %v6582 = vmul.f32 %v6574, %v6580
    %v6583 = vmul.f32 %v6575, %v6580
    %v6585 = vlaneseq
    %v6586 = vshrl.u32 %v6585, 7
    %v6587 = vsub.s32 0, %v6586
    %v6588 = vrot.slane %v6549, %v6587
    %v6590 = vadd.f32 %v6582, %v6588
    %v6591 = vadd.f32 %v6583, %v6588
    %6592 = vst.msk [vmem:[#allocation2] sm:$0xff] %vm80, %v6590
    %6593 = vst.msk [vmem:[#allocation2 + $0x8] sm:$0xff] %vm80, %v6591
    // Predicated region
    $region74: #{tpu_custom_call.1} parent=1 // pred_check
      _
    $region75: #{tpu_custom_call.1} parent=1 // pred_check_branch
      %6595 = sbr.rel (0) target = $region77
    $region76: #{tpu_custom_call.1} parent=1 // pred_region
      %s6597 = ssub.s32 256, 256
      %6598 = vsyncadd [#allocation3], %s6597
      %s6599 = sshll.u32 [#allocation2], 4
      %s6600 = int_to_ptr.vmem [resolvable:$true] %s6599
      %6605 = dma.vmem_to_hbm [thread:$0]  %s6600, 256, %s18, [#allocation3], 128, 128, 8
    $region77: #{tpu_custom_call.1} parent=1 // pred_fallthru
      _
    // Predicated region
    $region78: #{tpu_custom_call.1} parent=1 // pred_check
      _
    $region79: #{tpu_custom_call.1} parent=1 // pred_check_branch
      %6607 = sbr.rel (0) target = $region81
    $region80: #{tpu_custom_call.1} parent=1 // pred_region
      %s6609 = ssub.s32 2048, 2048
      %6610 = vsyncadd [#allocation5], %s6609
      %s6611 = sshll.u32 [#allocation4], 4
      %s6612 = int_to_ptr.vmem [resolvable:$true] %s6611
      %6617 = dma.vmem_to_hbm [thread:$0]  %s6612, 2048, %s19, [#allocation5], 128, 128, 8
    $region81: #{tpu_custom_call.1} parent=1 // pred_fallthru
      _
    // Predicated region
    $region82: #{tpu_custom_call.1} parent=1 // pred_check
      _
    $region83: #{tpu_custom_call.1} parent=1 // pred_check_branch
      %6619 = sbr.rel (0) target = $region85
    $region84: #{tpu_custom_call.1} parent=1 // pred_region
      %6620 = dma.done [#allocation3], 256
    $region85: #{tpu_custom_call.1} parent=1 // pred_fallthru
      _
    // Predicated region
    $region86: #{tpu_custom_call.1} parent=1 // pred_check
      _
    $region87: #{tpu_custom_call.1} parent=1 // pred_check_branch
      %6622 = sbr.rel (0) target = $region89
    $region88: #{tpu_custom_call.1} parent=1 // pred_region
      %6623 = dma.done [#allocation5], 2048
    $region89: #{tpu_custom_call.1} parent=1 // pred_fallthru
      _
    %6624 = vsyncpa [#allocation3], 1
    %6625 = vsyncpa [#allocation5], 1

</llo_original>
